<compile_context>
chip_gen: v6e
topology: v6e:2x2x1
jax: 0.10.0
libtpu: 0.0.40
codegen_flags: <defaults>
</compile_context>

<pallas_src>
import functools

import jax
import jax.numpy as jnp
from jax.experimental import pallas as pl
from jax.experimental.pallas import tpu as pltpu


_TM_TARGET = 512                       # M-tile target for the 1x1-conv matmuls


@functools.lru_cache(maxsize=None)
def _vmem_limit_bytes():
    cap = 64 * 1024 * 1024
    try:
        cap = int(pltpu.get_tpu_info().vmem_capacity_bytes)
    except Exception:
        pass
    # ~3/4 of physical VMEM: 96 MiB on v5e/v6e (128 MiB), 48 MiB on v7x (64 MiB)
    return min((cap * 3) // 4, 112 * 1024 * 1024)


def _compiler_params():
    return pltpu.CompilerParams(dimension_semantics=("parallel",),
                                vmem_limit_bytes=_vmem_limit_bytes())


def _pick_tile(m, target=_TM_TARGET):
    """Largest multiple of 8 <= target that divides m (else m itself)."""
    if m <= target:
        return m
    t = (target // 8) * 8
    while t >= 8:
        if m % t == 0:
            return t
        t -= 8
    return m


# --------------------------- bn + relu + 1x1 conv ---------------------------

def _bn_relu_matmul_kernel(want_stats, x_ref, scale_ref, shift_ref, w_ref,
                           o_ref, *maybe_stats):
    # x: (tm, K) f32 ; scale/shift: (1, K) f32 ; w: (K, N) bf16 ; o: (tm, N) f32
    a = jnp.maximum(x_ref[...] * scale_ref[...] + shift_ref[...], 0.0)
    out = jnp.dot(a.astype(jnp.bfloat16), w_ref[...],
                  preferred_element_type=jnp.float32)
    o_ref[...] = out
    if want_stats:
        stats_ref, = maybe_stats
        s = jnp.sum(out, axis=0, keepdims=True)                 # (1, N)
        ss = jnp.sum(out * out, axis=0, keepdims=True)          # (1, N)
        stats_ref[0] = jnp.concatenate([s, ss], axis=0)         # (2, N)


def bn_relu_matmul(x, scale, shift, w_bf16, *, want_stats=False):
    m, k = x.shape
    n = w_bf16.shape[1]
    tm = _pick_tile(m)
    grid_m = m // tm

    out_shape = jax.ShapeDtypeStruct((m, n), jnp.float32)
    out_specs = pl.BlockSpec((tm, n), lambda i: (i, 0))
    if want_stats:
        out_shape = (out_shape,
                     jax.ShapeDtypeStruct((grid_m, 2, n), jnp.float32))
        out_specs = (out_specs, pl.BlockSpec((1, 2, n), lambda i: (i, 0, 0)))

    return pl.pallas_call(
        functools.partial(_bn_relu_matmul_kernel, want_stats),
        out_shape=out_shape,
        grid=(grid_m,),
        in_specs=[
            pl.BlockSpec((tm, k), lambda i: (i, 0)),
            pl.BlockSpec((1, k), lambda i: (0, 0)),
            pl.BlockSpec((1, k), lambda i: (0, 0)),
            pl.BlockSpec((k, n), lambda i: (0, 0)),
        ],
        out_specs=out_specs,
        compiler_params=_compiler_params(),
    )(x, scale.reshape(1, k), shift.reshape(1, k), w_bf16)


# --------------------------- bn + relu + 3x3 conv ---------------------------

def _bn_relu_conv3x3_kernel(stride, use_im2col, x_ref, scale_ref, shift_ref,
                            w_ref, o_ref, stats_ref, pad_ref):
    _, h, w, cin = x_ref.shape
    _, ho, wo, cout = o_ref.shape

    # Zero only the 1-wide padding ring (O(perimeter) stores; done every step,
    # so it stays correct under "parallel"/megacore grid semantics).
    zrow = jnp.zeros((1, w + 2, cin), pad_ref.dtype)
    zcol = jnp.zeros((h, 1, cin), pad_ref.dtype)
    pad_ref[0:1, :, :] = zrow
    pad_ref[h + 1:h + 2, :, :] = zrow
    pad_ref[1:h + 1, 0:1, :] = zcol
    pad_ref[1:h + 1, w + 1:w + 2, :] = zcol

    # bn + relu (padding applied AFTER bn+relu, exactly like PyTorch); a single
    # cast on store when the pad scratch is bf16.
    act = jnp.maximum(x_ref[0] * scale_ref[0] + shift_ref[0], 0.0)
    pad_ref[1:h + 1, 1:w + 1, :] = act.astype(pad_ref.dtype)

    def tap(kh, kw):
        if stride == 1:
            return pad_ref[kh:kh + ho, kw:kw + wo, :]
        # direct stride-2 conv: strided reads of the padded scratch
        return pad_ref[pl.ds(kh, ho, 2), pl.ds(kw, wo, 2), :]

    if use_im2col:
        # Fill the MXU K-depth: 3 dots with K = 3*cin (w_ref is (3, 3*cin, cout)).
        for kh in range(3):
            patch = jnp.concatenate([tap(kh, kw) for kw in range(3)], axis=-1)
            part = jnp.dot(patch.astype(jnp.bfloat16).reshape(ho * wo, 3 * cin),
                           w_ref[kh],
                           preferred_element_type=jnp.float32)
            part = part.reshape(ho, wo, cout)
            if kh == 0:
                o_ref[0] = part
            else:
                o_ref[0] += part
    else:
        for kh in range(3):
            for kw in range(3):
                part = jnp.dot(
                    tap(kh, kw).astype(jnp.bfloat16).reshape(ho * wo, cin),
                    w_ref[kh, kw],
                    preferred_element_type=jnp.float32)
                part = part.reshape(ho, wo, cout)
                if kh == 0 and kw == 0:
                    o_ref[0] = part
                else:
                    o_ref[0] += part

    # per-batch partial statistics for the following BatchNorm (bn3)
    val = o_ref[0]
    s = jnp.sum(val, axis=(0, 1))[None, :]
    ss = jnp.sum(val * val, axis=(0, 1))[None, :]
    stats_ref[0] = jnp.concatenate([s, ss], axis=0)


def bn_relu_conv3x3(x_nhwc, scale, shift, w_bf16, *, stride):
    b, h, w, cin = x_nhwc.shape
    cout = w_bf16.shape[3]
    assert stride in (1, 2)
    if stride == 2:
        assert h % 2 == 0 and w % 2 == 0
    ho, wo = h // stride, w // stride

    use_im2col = (cin % 128 == 0)
    if use_im2col:
        w_arg = w_bf16.reshape(3, 3 * cin, cout)
        w_spec = pl.BlockSpec((3, 3 * cin, cout), lambda i: (0, 0, 0))
    else:
        w_arg = w_bf16
        w_spec = pl.BlockSpec((3, 3, cin, cout), lambda i: (0, 0, 0, 0))

    # bf16 pad scratch for stride 1 (contiguous reads); keep f32 for stride 2 so
    # the sublane-strided tap reads stay on a native (unpacked) layout.
    pad_dtype = jnp.bfloat16 if stride == 1 else jnp.float32

    return pl.pallas_call(
        functools.partial(_bn_relu_conv3x3_kernel, stride, use_im2col),
        out_shape=(jax.ShapeDtypeStruct((b, ho, wo, cout), jnp.float32),
                   jax.ShapeDtypeStruct((b, 2, cout), jnp.float32)),
        grid=(b,),
        in_specs=[
            pl.BlockSpec((1, h, w, cin), lambda i: (i, 0, 0, 0)),
            pl.BlockSpec((1, 1, cin), lambda i: (0, 0, 0)),
            pl.BlockSpec((1, 1, cin), lambda i: (0, 0, 0)),
            w_spec,
        ],
        out_specs=(pl.BlockSpec((1, ho, wo, cout), lambda i: (i, 0, 0, 0)),
                   pl.BlockSpec((1, 2, cout), lambda i: (i, 0, 0))),
        scratch_shapes=[pltpu.VMEM((h + 2, w + 2, cin), pad_dtype)],
        compiler_params=_compiler_params(),
    )(x_nhwc, scale.reshape(1, 1, cin), shift.reshape(1, 1, cin), w_arg)


# --------------- RSLayer attention + final gating (one kernel) ---------------

def _rs_att_fuse_kernel(mode, o3_ref, sc_ref, *args):
    if mode == "none":
        (snap_r_ref, snap_c_ref, g5w, g5b, g3w, g3b, exw, exb,
         outx_ref, att_ref, pad5, pad3) = args
        x1_ref = None
    elif mode == "direct":
        (x1_ref, snap_r_ref, snap_c_ref, g5w, g5b, g3w, g3b, exw, exb,
         outx_ref, att_ref, pad5, pad3) = args
    else:  # "conv"
        (x1_ref, snap_r_ref, snap_c_ref, sel_r_ref, sel_c_ref,
         g5w, g5b, g3w, g3b, exw, exb, attw, attb,
         outx_ref, att_ref, pad5, pad3, padx) = args

    _, ho, wo, _ = o3_ref.shape

    def conv_same(pad_ref, src, w_smem, ksize, extent):
        # single-channel "same" conv on the VPU; pads are tiny so the memset
        # cost is negligible.
        hh, ww = extent
        p = ksize // 2
        pad_ref[...] = jnp.zeros_like(pad_ref)
        pad_ref[p:p + hh, p:p + ww] = src
        acc = jnp.zeros((hh, ww), jnp.float32)
        for kh in range(ksize):
            for kw in range(ksize):
                acc = acc + pad_ref[kh:kh + hh, kw:kw + ww] * w_smem[kh, kw]
        return acc

    # gather: channel mean -> 5x5 conv -> relu
    g1 = jnp.maximum(
        conv_same(pad5, jnp.mean(o3_ref[0], axis=-1), g5w, 5, (ho, wo))
        + g5b[0], 0.0)
    # gather: 3x3 conv (stride 2) -> relu, computed dense; the subsample and the
    # x2 nearest upsample compose to "snap indices to even", expressed as two
    # tiny one-hot matmuls (grid-invariant matrices passed in from the wrapper).
    g2 = jnp.maximum(conv_same(pad3, g1, g3w, 3, (ho, wo)) + g3b[0], 0.0)
    up = jnp.dot(jnp.dot(snap_r_ref[...], g2, preferred_element_type=jnp.float32),
                 snap_c_ref[...], preferred_element_type=jnp.float32)
    # excite: 3x3 conv + bias (no relu)
    y = conv_same(pad3, up, exw, 3, (ho, wo)) + exb[0]

    if mode == "conv":
        _, hx, wx = x1_ref.shape
        pre_full = conv_same(padx, x1_ref[0], attw, 3, (hx, wx)) + attb[0]
        pre = jnp.dot(
            jnp.dot(sel_r_ref[...], pre_full, preferred_element_type=jnp.float32),
            sel_c_ref[...], preferred_element_type=jnp.float32)
        all_att = y + pre
    elif mode == "direct":
        all_att = y + x1_ref[0]
    else:
        all_att = y

    att_ref[0] = all_att
    sig = 1.0 / (1.0 + jnp.exp(-all_att))                       # exact sigmoid
    outx_ref[0] = o3_ref[0] * sig[:, :, None] + sc_ref[0]       # fused gating


def rs_attention_fuse(o3, shortcut, x1_map, params, *, mode):
    b, ho, wo, c = o3.shape
    assert ho % 2 == 0 and wo % 2 == 0

    def smem(shape):
        return pl.BlockSpec(shape, lambda i: (0,) * len(shape),
                            memory_space=pltpu.MemorySpace.SMEM)

    def const(arr):
        return pl.BlockSpec(arr.shape, lambda i: (0,) * arr.ndim)

    # grid-invariant one-hot "snap to even index" matrices (subsample+upsample)
    snap_r = (jnp.arange(ho)[None, :] ==
              2 * (jnp.arange(ho)[:, None] // 2)).astype(jnp.float32)  # (ho,ho)
    snap_c = (jnp.arange(wo)[:, None] ==
              2 * (jnp.arange(wo)[None, :] // 2)).astype(jnp.float32)  # (wo,wo)

    big = pl.BlockSpec((1, ho, wo, c), lambda i: (i, 0, 0, 0))
    in_specs = [big, big]
    args = [o3, shortcut]
    if mode != "none":
        hx, wx = x1_map.shape[1], x1_map.shape[2]
        in_specs.append(pl.BlockSpec((1, hx, wx), lambda i: (i, 0, 0)))
        args.append(x1_map)
    in_specs += [const(snap_r), const(snap_c)]
    args += [snap_r, snap_c]
    if mode == "conv":
        sel_r = (jnp.arange(hx)[None, :] ==
                 2 * jnp.arange(ho)[:, None]).astype(jnp.float32)      # (ho,hx)
        sel_c = (jnp.arange(wx)[:, None] ==
                 2 * jnp.arange(wo)[None, :]).astype(jnp.float32)      # (wx,wo)
        in_specs += [const(sel_r), const(sel_c)]
        args += [sel_r, sel_c]
    in_specs += [smem((5, 5)), smem((1,)), smem((3, 3)), smem((1,)),
                 smem((3, 3)), smem((1,))]
    args += [params["g5_w"], params["g5_b"], params["g3_w"], params["g3_b"],
             params["ex_w"], params["ex_b"]]
    if mode == "conv":
        in_specs += [smem((3, 3)), smem((1,))]
        args += [params["att_w"], params["att_b"]]

    scratch = [pltpu.VMEM((ho + 4, wo + 4), jnp.float32),
               pltpu.VMEM((ho + 2, wo + 2), jnp.float32)]
    if mode == "conv":
        scratch.append(pltpu.VMEM((hx + 2, wx + 2), jnp.float32))

    return pl.pallas_call(
        functools.partial(_rs_att_fuse_kernel, mode),
        out_shape=(jax.ShapeDtypeStruct((b, ho, wo, c), jnp.float32),
                   jax.ShapeDtypeStruct((b, ho, wo), jnp.float32)),
        grid=(b,),
        in_specs=in_specs,
        out_specs=(pl.BlockSpec((1, ho, wo, c), lambda i: (i, 0, 0, 0)),
                   pl.BlockSpec((1, ho, wo), lambda i: (i, 0, 0))),
        scratch_shapes=scratch,
        compiler_params=_compiler_params(),
    )(*args)


# ------------------------------- glue / model -------------------------------

def _bn_train_scale_shift(x_nhwc, gamma, beta, eps=1e-5):
    # Training-mode BatchNorm2d over the block *input* (bn1): plain-XLA reduce,
    # folded into per-channel scale/shift that the consuming kernels fuse.
    mean = jnp.mean(x_nhwc, axis=(0, 1, 2))
    var = jnp.mean(jnp.square(x_nhwc - mean), axis=(0, 1, 2))
    scale = gamma * jax.lax.rsqrt(var + eps)
    shift = beta - mean * scale
    return scale, shift


def _scale_shift_from_stats(stats, count, gamma, beta, eps=1e-5):
    # stats: (n_blocks, 2, C) per-block (sum, sum_sq) partials from the kernels.
    s = jnp.sum(stats[:, 0, :], axis=0)
    ss = jnp.sum(stats[:, 1, :], axis=0)
    mean = s / count
    var = jnp.maximum(ss / count - mean * mean, 0.0)
    scale = gamma * jax.lax.rsqrt(var + eps)
    shift = beta - mean * scale
    return scale, shift


def preact_bottleneck_forward(params, x0_nchw, x1_nchw, *, stride):
    x0 = jnp.transpose(x0_nchw, (0, 2, 3, 1)).astype(jnp.float32)   # NHWC
    b, h, w, cin = x0.shape
    planes = params["conv1_w"].shape[1]
    cout = 4 * planes

    w1 = params["conv1_w"].astype(jnp.bfloat16)
    w2 = params["conv2_w"].astype(jnp.bfloat16)
    w3 = params["conv3_w"].astype(jnp.bfloat16)

    s1, t1 = _bn_train_scale_shift(x0, params["bn1_g"], params["bn1_b"])

    has_proj = (stride != 1) or (cin != cout)
    if has_proj:
        # 1x1 stride-s conv == spatial subsample then 1x1 conv (per-channel
        # bn+relu commutes with the subsample).
        x0s = x0 if stride == 1 else x0[:, ::stride, ::stride, :]
        bs, hs, ws_, _ = x0s.shape
        sc = bn_relu_matmul(x0s.reshape(bs * hs * ws_, cin), s1, t1,
                            params["short_w"].astype(jnp.bfloat16)
                            ).reshape(bs, hs, ws_, cout)
    else:
        sc = x0                                  # identity shortcut = raw x[0]

    # conv1 (+ fused bn2 partial statistics: no extra HBM pass over o1)
    o1, st1 = bn_relu_matmul(x0.reshape(b * h * w, cin), s1, t1, w1,
                             want_stats=True)
    o1 = o1.reshape(b, h, w, planes)
    s2, t2 = _scale_shift_from_stats(st1, b * h * w,
                                     params["bn2_g"], params["bn2_b"])

    # conv2 (+ fused bn3 partial statistics)
    o2, st2 = bn_relu_conv3x3(o1, s2, t2, w2, stride=stride)
    bo, ho, wo, _ = o2.shape
    s3, t3 = _scale_shift_from_stats(st2, bo * ho * wo,
                                     params["bn3_g"], params["bn3_b"])

    o3 = bn_relu_matmul(o2.reshape(bo * ho * wo, planes), s3, t3,
                        w3).reshape(bo, ho, wo, cout)

    # RSLayer attention chain + final gating, fused (single read of o3)
    has_att_conv = (cin != cout)
    if x1_nchw is None:
        mode, x1_map = "none", None
    elif has_att_conv:
        mode = "conv"
        x1_map = x1_nchw[:, 0, :, :].astype(jnp.float32)
        assert x1_map.shape[1:] == (2 * ho, 2 * wo)
    else:
        mode = "direct"
        x1_map = x1_nchw[:, 0, :, :].astype(jnp.float32)
        assert x1_map.shape[1:] == (ho, wo)

    out_x, all_att = rs_attention_fuse(o3, sc, x1_map, params, mode=mode)

    return {0: jnp.transpose(out_x, (0, 3, 1, 2)),            # NCHW like PyTorch
            1: all_att[:, None, :, :]}


def init_params(key, in_planes, planes):
    cout = 4 * planes
    ks = jax.random.split(key, 11)
    ka = jax.random.split(ks[10], 8)
    return {
        "bn1_g": 1.0 + 0.1 * jax.random.normal(ks[0], (in_planes,), jnp.float32),
        "bn1_b": 0.1 * jax.random.normal(ks[1], (in_planes,), jnp.float32),
        "bn2_g": 1.0 + 0.1 * jax.random.normal(ks[2], (planes,), jnp.float32),
        "bn2_b": 0.1 * jax.random.normal(ks[3], (planes,), jnp.float32),
        "bn3_g": 1.0 + 0.1 * jax.random.normal(ks[4], (planes,), jnp.float32),
        "bn3_b": 0.1 * jax.random.normal(ks[5], (planes,), jnp.float32),
        "conv1_w": 0.3 * jax.random.normal(ks[6], (in_planes, planes), jnp.float32),
        "conv2_w": 0.3 * jax.random.normal(ks[7], (3, 3, planes, planes), jnp.float32),
        "conv3_w": 0.3 * jax.random.normal(ks[8], (planes, cout), jnp.float32),
        "short_w": 0.3 * jax.random.normal(ks[9], (in_planes, cout), jnp.float32),
        "g5_w": 0.2 * jax.random.normal(ka[0], (5, 5), jnp.float32),
        "g5_b": 0.1 * jax.random.normal(ka[1], (1,), jnp.float32),
        "g3_w": 0.2 * jax.random.normal(ka[2], (3, 3), jnp.float32),
        "g3_b": 0.1 * jax.random.normal(ka[3], (1,), jnp.float32),
        "ex_w": 0.2 * jax.random.normal(ka[4], (3, 3), jnp.float32),
        "ex_b": 0.1 * jax.random.normal(ka[5], (1,), jnp.float32),
        "att_w": 0.2 * jax.random.normal(ka[6], (3, 3), jnp.float32),
        "att_b": 0.1 * jax.random.normal(ka[7], (1,), jnp.float32),
    }


# ----------------------------- pure-JAX reference ---------------------------

def _reference_forward(params, x0_nchw, x1_nchw, *, stride):
    eps = 1e-5
    x0 = x0_nchw.astype(jnp.float32)

    def bn_relu(x, g, b):
        mean = jnp.mean(x, axis=(0, 2, 3), keepdims=True)
        var = jnp.mean(jnp.square(x - mean), axis=(0, 2, 3), keepdims=True)
        xn = (x - mean) * jax.lax.rsqrt(var + eps)
        return jnp.maximum(xn * g.reshape(1, -1, 1, 1) + b.reshape(1, -1, 1, 1),
                           0.0)

    def conv(x, w_oihw, s, pad):
        return jax.lax.conv_general_dilated(
            x, w_oihw, (s, s), [(pad, pad), (pad, pad)],
            dimension_numbers=("NCHW", "OIHW", "NCHW"))

    cin = x0.shape[1]
    planes = params["conv1_w"].shape[1]
    cout = 4 * planes
    w1 = params["conv1_w"].T.reshape(planes, cin, 1, 1)
    w2 = jnp.transpose(params["conv2_w"], (3, 2, 0, 1))
    w3 = params["conv3_w"].T.reshape(cout, planes, 1, 1)

    a1 = bn_relu(x0, params["bn1_g"], params["bn1_b"])
    if stride != 1 or cin != cout:
        shortcut = conv(a1, params["short_w"].T.reshape(cout, cin, 1, 1),
                        stride, 0)
    else:
        shortcut = x0
    o1 = conv(a1, w1, 1, 0)
    o2 = conv(bn_relu(o1, params["bn2_g"], params["bn2_b"]), w2, stride, 1)
    o3 = conv(bn_relu(o2, params["bn3_g"], params["bn3_b"]), w3, 1, 0)

    cm = jnp.mean(o3, axis=1, keepdims=True)
    g1 = jnp.maximum(conv(cm, params["g5_w"].reshape(1, 1, 5, 5), 1, 2)
                     + params["g5_b"][0], 0.0)
    g2 = jnp.maximum(conv(g1, params["g3_w"].reshape(1, 1, 3, 3), 2, 1)
                     + params["g3_b"][0], 0.0)
    up = jnp.repeat(jnp.repeat(g2, 2, axis=2), 2, axis=3)
    y = conv(up, params["ex_w"].reshape(1, 1, 3, 3), 1, 1) + params["ex_b"][0]
    if x1_nchw is None:
        all_att = y
    elif cin != cout:
        pre = conv(x1_nchw.astype(jnp.float32),
                   params["att_w"].reshape(1, 1, 3, 3), 2, 1) + params["att_b"][0]
        all_att = y + pre
    else:
        all_att = y + x1_nchw.astype(jnp.float32)
    out_x = o3 * jax.nn.sigmoid(all_att) + shortcut
    return {0: out_x, 1: all_att}


# ------------------------------------ main -----------------------------------

if __name__ == "__main__":
    key = jax.random.PRNGKey(0)
    kp, kx0, kx1, kp2, kx0b, kp3, kx0c = jax.random.split(key, 7)
    fwd = jax.jit(preact_bottleneck_forward, static_argnames=("stride",))

    def check(out, ref, shapes):
        for k in (0, 1):
            assert out[k].shape == shapes[k], (out[k].shape, shapes[k])
            assert bool(jnp.all(jnp.isfinite(out[k]))), k
            m = float(jnp.max(jnp.abs(ref[k])))
            d = float(jnp.max(jnp.abs(out[k] - ref[k])))
            assert d < 0.05 + 0.02 * m, (k, d, m)

    B, H, W = 2, 16, 16

    # config 1: projection shortcut + att_conv, stride 2 (strided-tap conv path)
    params = init_params(kp, 4, 2)
    x0 = jax.random.normal(kx0, (B, 4, H, W), jnp.float32)
    x1 = jax.random.normal(kx1, (B, 1, H, W), jnp.float32)
    out = jax.block_until_ready(fwd(params, x0, x1, stride=2))
    ref = _reference_forward(params, x0, x1, stride=2)
    check(out, ref, {0: (B, 8, H // 2, W // 2), 1: (B, 1, H // 2, W // 2)})

    # config 2: identity shortcut, stride 1, x1 added directly (no att_conv)
    params2 = init_params(kp2, 8, 2)
    x0b = jax.random.normal(kx0b, (B, 8, H, W), jnp.float32)
    out2 = jax.block_until_ready(fwd(params2, x0b, x1, stride=1))
    ref2 = _reference_forward(params2, x0b, x1, stride=1)
    check(out2, ref2, {0: (B, 8, H, W), 1: (B, 1, H, W)})

    # config 3: x1=None, stride 1, 128 conv2 input channels -> exercises the
    # im2col (K = 3*cin) MXU path and the "none" attention mode.
    params3 = init_params(kp3, 128, 128)
    x0c = jax.random.normal(kx0c, (B, 128, H, W), jnp.float32)
    out3 = jax.block_until_ready(fwd(params3, x0c, None, stride=1))
    ref3 = _reference_forward(params3, x0c, None, stride=1)
    check(out3, ref3, {0: (B, 512, H, W), 1: (B, 1, H, W)})

    print("KERNEL_OK")
</pallas_src>

<mosaic_0001>
module attributes {stable_mosaic.version = 11 : i64} {
  func.func @_bn_relu_matmul_kernel(%arg0: i32, %arg1: memref<512x4xf32, #tpu.memory_space<vmem>>, %arg2: memref<1x4xf32, #tpu.memory_space<vmem>>, %arg3: memref<1x4xf32, #tpu.memory_space<vmem>>, %arg4: memref<4x2xbf16, #tpu.memory_space<vmem>>, %arg5: memref<512x2xf32, #tpu.memory_space<vmem>>, %arg6: memref<1x2x2xf32, #tpu.memory_space<vmem>>) attributes {dimension_semantics = [#tpu.dimension_semantics<parallel>], iteration_bounds = array<i64: 1>, scalar_prefetch = 0 : i64, scratch_operands = 0 : i64, tpu.core_type = #tpu.core_type<tc>, window_params = [{transform_indices = @transform_0, window_bounds = array<i64: 512, 4>}, {pipeline_mode = #tpu.pipeline_mode<synchronous>, transform_indices = @transform_1, window_bounds = array<i64: 1, 4>}, {pipeline_mode = #tpu.pipeline_mode<synchronous>, transform_indices = @transform_2, window_bounds = array<i64: 1, 4>}, {pipeline_mode = #tpu.pipeline_mode<synchronous>, transform_indices = @transform_3, window_bounds = array<i64: 4, 2>}, {transform_indices = @transform_4, window_bounds = array<i64: 512, 2>}, {transform_indices = @transform_5, window_bounds = array<i64: 1, 2, 2>}]} {
    %c0 = arith.constant 0 : index
    %c0_0 = arith.constant 0 : index
    %0 = vector.load %arg1[%c0, %c0_0] : memref<512x4xf32, #tpu.memory_space<vmem>>, vector<512x4xf32>
    %c0_1 = arith.constant 0 : index
    %c0_2 = arith.constant 0 : index
    %1 = vector.load %arg2[%c0_1, %c0_2] : memref<1x4xf32, #tpu.memory_space<vmem>>, vector<1x4xf32>
    %2 = vector.broadcast %1 : vector<1x4xf32> to vector<512x4xf32>
    %3 = arith.mulf %0, %2 : vector<512x4xf32>
    %c0_3 = arith.constant 0 : index
    %c0_4 = arith.constant 0 : index
    %4 = vector.load %arg3[%c0_3, %c0_4] : memref<1x4xf32, #tpu.memory_space<vmem>>, vector<1x4xf32>
    %5 = vector.broadcast %4 : vector<1x4xf32> to vector<512x4xf32>
    %6 = arith.addf %3, %5 : vector<512x4xf32>
    %cst = arith.constant 0.000000e+00 : f32
    %7 = vector.broadcast %cst : f32 to vector<512x4xf32>
    %8 = arith.maximumf %6, %7 : vector<512x4xf32>
    %9 = arith.truncf %8 : vector<512x4xf32> to vector<512x4xbf16>
    %c0_5 = arith.constant 0 : index
    %c0_6 = arith.constant 0 : index
    %10 = vector.load %arg4[%c0_5, %c0_6] : memref<4x2xbf16, #tpu.memory_space<vmem>>, vector<4x2xbf16>
    %cst_7 = arith.constant dense<0.000000e+00> : vector<512x2xf32>
    %11 = tpu.matmul %9, %10, %cst_7 {dimension_numbers = #tpu.dot_dimension_numbers<[1], [0], [0], [1], [0, 0, 1, 1], [], []>} : vector<512x4xbf16>, vector<4x2xbf16>, vector<512x2xf32> -> vector<512x2xf32>
    %c0_8 = arith.constant 0 : index
    %c0_9 = arith.constant 0 : index
    %12 = vector.load %arg5[%c0_8, %c0_9] : memref<512x2xf32, #tpu.memory_space<vmem>>, vector<512x2xf32>
    tpu.vector_store %arg5[%c0_8, %c0_9], %11 {strides = array<i32>} : memref<512x2xf32, #tpu.memory_space<vmem>>, vector<512x2xf32>,
    %cst_10 = arith.constant dense<0.000000e+00> : vector<2xf32>
    %13 = vector.multi_reduction <add>, %11, %cst_10 [0] : vector<512x2xf32> to vector<2xf32>
    %14 = vector.shape_cast %13 : vector<2xf32> to vector<1x2xf32>
    %15 = arith.mulf %11, %11 : vector<512x2xf32>
    %cst_11 = arith.constant dense<0.000000e+00> : vector<2xf32>
    %16 = vector.multi_reduction <add>, %15, %cst_11 [0] : vector<512x2xf32> to vector<2xf32>
    %17 = vector.shape_cast %16 : vector<2xf32> to vector<1x2xf32>
    %18 = tpu.concatenate %14, %17 in 0 : vector<1x2xf32>, vector<1x2xf32> -> vector<2x2xf32>
    %c0_12 = arith.constant 0 : index
    %c0_13 = arith.constant 0 : index
    %c0_14 = arith.constant 0 : index
    %19 = vector.load %arg6[%c0_12, %c0_13, %c0_14] : memref<1x2x2xf32, #tpu.memory_space<vmem>>, vector<1x2x2xf32>
    %20 = vector.shape_cast %19 : vector<1x2x2xf32> to vector<2x2xf32>
    %21 = vector.shape_cast %18 : vector<2x2xf32> to vector<1x2x2xf32>
    tpu.vector_store %arg6[%c0_12, %c0_13, %c0_14], %21 {strides = array<i32>} : memref<1x2x2xf32, #tpu.memory_space<vmem>>, vector<1x2x2xf32>,
    return
  }
  func.func @transform_0(%arg0: i32) -> (i32, i32) {
    %c0_i32 = arith.constant 0 : i32
    %c0_i32_0 = arith.constant 0 : i32
    return %arg0, %c0_i32 : i32, i32
  }
  func.func @transform_1(%arg0: i32) -> (i32, i32) {
    %c0_i32 = arith.constant 0 : i32
    %c0_i32_0 = arith.constant 0 : i32
    %c0_i32_1 = arith.constant 0 : i32
    return %c0_i32, %c0_i32_0 : i32, i32
  }
  func.func @transform_2(%arg0: i32) -> (i32, i32) {
    %c0_i32 = arith.constant 0 : i32
    %c0_i32_0 = arith.constant 0 : i32
    %c0_i32_1 = arith.constant 0 : i32
    return %c0_i32, %c0_i32_0 : i32, i32
  }
  func.func @transform_3(%arg0: i32) -> (i32, i32) {
    %c0_i32 = arith.constant 0 : i32
    %c0_i32_0 = arith.constant 0 : i32
    %c0_i32_1 = arith.constant 0 : i32
    return %c0_i32, %c0_i32_0 : i32, i32
  }
  func.func @transform_4(%arg0: i32) -> (i32, i32) {
    %c0_i32 = arith.constant 0 : i32
    %c0_i32_0 = arith.constant 0 : i32
    return %arg0, %c0_i32 : i32, i32
  }
  func.func @transform_5(%arg0: i32) -> (i32, i32, i32) {
    %c0_i32 = arith.constant 0 : i32
    %c0_i32_0 = arith.constant 0 : i32
    %c0_i32_1 = arith.constant 0 : i32
    return %arg0, %c0_i32, %c0_i32_0 : i32, i32, i32
  }
}

module attributes {stable_mosaic.version = 11 : i64} {
  func.func @_bn_relu_conv3x3_kernel(%arg0: i32, %arg1: memref<1x16x16x2xf32, #tpu.memory_space<vmem>>, %arg2: memref<1x1x2xf32, #tpu.memory_space<vmem>>, %arg3: memref<1x1x2xf32, #tpu.memory_space<vmem>>, %arg4: memref<3x3x2x2xbf16, #tpu.memory_space<vmem>>, %arg5: memref<1x8x8x2xf32, #tpu.memory_space<vmem>>, %arg6: memref<1x2x2xf32, #tpu.memory_space<vmem>>, %arg7: memref<18x18x2xf32, #tpu.memory_space<vmem>>) attributes {dimension_semantics = [#tpu.dimension_semantics<parallel>], iteration_bounds = array<i64: 2>, scalar_prefetch = 0 : i64, scratch_operands = 1 : i64, tpu.core_type = #tpu.core_type<tc>, window_params = [{transform_indices = @transform_0, window_bounds = array<i64: 1, 16, 16, 2>}, {pipeline_mode = #tpu.pipeline_mode<synchronous>, transform_indices = @transform_1, window_bounds = array<i64: 1, 1, 2>}, {pipeline_mode = #tpu.pipeline_mode<synchronous>, transform_indices = @transform_2, window_bounds = array<i64: 1, 1, 2>}, {pipeline_mode = #tpu.pipeline_mode<synchronous>, transform_indices = @transform_3, window_bounds = array<i64: 3, 3, 2, 2>}, {transform_indices = @transform_4, window_bounds = array<i64: 1, 8, 8, 2>}, {transform_indices = @transform_5, window_bounds = array<i64: 1, 2, 2>}]} {
    %cst = arith.constant 0.000000e+00 : f32
    %0 = vector.broadcast %cst : f32 to vector<1x18x2xf32>
    %cst_0 = arith.constant 0.000000e+00 : f32
    %1 = vector.broadcast %cst_0 : f32 to vector<16x1x2xf32>
    %c0 = arith.constant 0 : index
    %c0_1 = arith.constant 0 : index
    %c0_2 = arith.constant 0 : index
    %2 = vector.load %arg7[%c0, %c0_1, %c0_2] : memref<18x18x2xf32, #tpu.memory_space<vmem>>, vector<1x18x2xf32>
    tpu.vector_store %arg7[%c0, %c0_1, %c0_2], %0 {strides = array<i32>} : memref<18x18x2xf32, #tpu.memory_space<vmem>>, vector<1x18x2xf32>,
    %c17 = arith.constant 17 : index
    %c0_3 = arith.constant 0 : index
    %c0_4 = arith.constant 0 : index
    %3 = vector.load %arg7[%c17, %c0_3, %c0_4] : memref<18x18x2xf32, #tpu.memory_space<vmem>>, vector<1x18x2xf32>
    tpu.vector_store %arg7[%c17, %c0_3, %c0_4], %0 {strides = array<i32>} : memref<18x18x2xf32, #tpu.memory_space<vmem>>, vector<1x18x2xf32>,
    %c1 = arith.constant 1 : index
    %c0_5 = arith.constant 0 : index
    %c0_6 = arith.constant 0 : index
    %4 = vector.load %arg7[%c1, %c0_5, %c0_6] : memref<18x18x2xf32, #tpu.memory_space<vmem>>, vector<16x1x2xf32>
    tpu.vector_store %arg7[%c1, %c0_5, %c0_6], %1 {strides = array<i32>} : memref<18x18x2xf32, #tpu.memory_space<vmem>>, vector<16x1x2xf32>,
    %c1_7 = arith.constant 1 : index
    %c17_8 = arith.constant 17 : index
    %c0_9 = arith.constant 0 : index
    %5 = vector.load %arg7[%c1_7, %c17_8, %c0_9] : memref<18x18x2xf32, #tpu.memory_space<vmem>>, vector<16x1x2xf32>
    tpu.vector_store %arg7[%c1_7, %c17_8, %c0_9], %1 {strides = array<i32>} : memref<18x18x2xf32, #tpu.memory_space<vmem>>, vector<16x1x2xf32>,
    %c0_10 = arith.constant 0 : index
    %c0_11 = arith.constant 0 : index
    %c0_12 = arith.constant 0 : index
    %c0_13 = arith.constant 0 : index
    %6 = vector.load %arg1[%c0_10, %c0_11, %c0_12, %c0_13] : memref<1x16x16x2xf32, #tpu.memory_space<vmem>>, vector<1x16x16x2xf32>
    %7 = vector.shape_cast %6 : vector<1x16x16x2xf32> to vector<16x16x2xf32>
    %c0_14 = arith.constant 0 : index
    %c0_15 = arith.constant 0 : index
    %c0_16 = arith.constant 0 : index
    %8 = vector.load %arg2[%c0_14, %c0_15, %c0_16] : memref<1x1x2xf32, #tpu.memory_space<vmem>>, vector<1x1x2xf32>
    %9 = vector.shape_cast %8 : vector<1x1x2xf32> to vector<1x2xf32>
    %10 = vector.shape_cast %9 : vector<1x2xf32> to vector<1x1x2xf32>
    %11 = vector.broadcast %10 : vector<1x1x2xf32> to vector<16x16x2xf32>
    %12 = arith.mulf %7, %11 : vector<16x16x2xf32>
    %c0_17 = arith.constant 0 : index
    %c0_18 = arith.constant 0 : index
    %c0_19 = arith.constant 0 : index
    %13 = vector.load %arg3[%c0_17, %c0_18, %c0_19] : memref<1x1x2xf32, #tpu.memory_space<vmem>>, vector<1x1x2xf32>
    %14 = vector.shape_cast %13 : vector<1x1x2xf32> to vector<1x2xf32>
    %15 = vector.shape_cast %14 : vector<1x2xf32> to vector<1x1x2xf32>
    %16 = vector.broadcast %15 : vector<1x1x2xf32> to vector<16x16x2xf32>
    %17 = arith.addf %12, %16 : vector<16x16x2xf32>
    %cst_20 = arith.constant 0.000000e+00 : f32
    %18 = vector.broadcast %cst_20 : f32 to vector<16x16x2xf32>
    %19 = arith.maximumf %17, %18 : vector<16x16x2xf32>
    %c1_21 = arith.constant 1 : index
    %c1_22 = arith.constant 1 : index
    %c0_23 = arith.constant 0 : index
    %20 = vector.load %arg7[%c1_21, %c1_22, %c0_23] : memref<18x18x2xf32, #tpu.memory_space<vmem>>, vector<16x16x2xf32>
    tpu.vector_store %arg7[%c1_21, %c1_22, %c0_23], %19 {strides = array<i32>} : memref<18x18x2xf32, #tpu.memory_space<vmem>>, vector<16x16x2xf32>,
    %c0_24 = arith.constant 0 : index
    %c0_25 = arith.constant 0 : index
    %c0_26 = arith.constant 0 : index
    %21 = tpu.strided_load %arg7[%c0_24, %c0_25, %c0_26] {strides = array<i32: 2, 2, 1>} : memref<18x18x2xf32, #tpu.memory_space<vmem>>, vector<8x8x2xf32>
    %22 = arith.truncf %21 : vector<8x8x2xf32> to vector<8x8x2xbf16>
    %23 = vector.shape_cast %22 : vector<8x8x2xbf16> to vector<64x2xbf16>
    %c0_27 = arith.constant 0 : index
    %c0_28 = arith.constant 0 : index
    %c0_29 = arith.constant 0 : index
    %c0_30 = arith.constant 0 : index
    %24 = vector.load %arg4[%c0_27, %c0_28, %c0_29, %c0_30] : memref<3x3x2x2xbf16, #tpu.memory_space<vmem>>, vector<1x1x2x2xbf16>
    %25 = vector.shape_cast %24 : vector<1x1x2x2xbf16> to vector<2x2xbf16>
    %cst_31 = arith.constant dense<0.000000e+00> : vector<64x2xf32>
    %26 = tpu.matmul %23, %25, %cst_31 {dimension_numbers = #tpu.dot_dimension_numbers<[1], [0], [0], [1], [0, 0, 1, 1], [], []>} : vector<64x2xbf16>, vector<2x2xbf16>, vector<64x2xf32> -> vector<64x2xf32>
    %27 = vector.shape_cast %26 : vector<64x2xf32> to vector<8x8x2xf32>
    %c0_32 = arith.constant 0 : index
    %c0_33 = arith.constant 0 : index
    %c0_34 = arith.constant 0 : index
    %c0_35 = arith.constant 0 : index
    %28 = vector.load %arg5[%c0_32, %c0_33, %c0_34, %c0_35] : memref<1x8x8x2xf32, #tpu.memory_space<vmem>>, vector<1x8x8x2xf32>
    %29 = vector.shape_cast %28 : vector<1x8x8x2xf32> to vector<8x8x2xf32>
    %30 = vector.shape_cast %27 : vector<8x8x2xf32> to vector<1x8x8x2xf32>
    tpu.vector_store %arg5[%c0_32, %c0_33, %c0_34, %c0_35], %30 {strides = array<i32>} : memref<1x8x8x2xf32, #tpu.memory_space<vmem>>, vector<1x8x8x2xf32>,
    %c0_36 = arith.constant 0 : index
    %c1_37 = arith.constant 1 : index
    %c0_38 = arith.constant 0 : index
    %31 = tpu.strided_load %arg7[%c0_36, %c1_37, %c0_38] {strides = array<i32: 2, 2, 1>} : memref<18x18x2xf32, #tpu.memory_space<vmem>>, vector<8x8x2xf32>
    %32 = arith.truncf %31 : vector<8x8x2xf32> to vector<8x8x2xbf16>
    %33 = vector.shape_cast %32 : vector<8x8x2xbf16> to vector<64x2xbf16>
    %c0_39 = arith.constant 0 : index
    %c1_40 = arith.constant 1 : index
    %c0_41 = arith.constant 0 : index
    %c0_42 = arith.constant 0 : index
    %34 = vector.load %arg4[%c0_39, %c1_40, %c0_41, %c0_42] : memref<3x3x2x2xbf16, #tpu.memory_space<vmem>>, vector<1x1x2x2xbf16>
    %35 = vector.shape_cast %34 : vector<1x1x2x2xbf16> to vector<2x2xbf16>
    %cst_43 = arith.constant dense<0.000000e+00> : vector<64x2xf32>
    %36 = tpu.matmul %33, %35, %cst_43 {dimension_numbers = #tpu.dot_dimension_numbers<[1], [0], [0], [1], [0, 0, 1, 1], [], []>} : vector<64x2xbf16>, vector<2x2xbf16>, vector<64x2xf32> -> vector<64x2xf32>
    %37 = vector.shape_cast %36 : vector<64x2xf32> to vector<8x8x2xf32>
    %c0_44 = arith.constant 0 : index
    %c0_45 = arith.constant 0 : index
    %c0_46 = arith.constant 0 : index
    %c0_47 = arith.constant 0 : index
    %38 = vector.load %arg5[%c0_44, %c0_45, %c0_46, %c0_47] : memref<1x8x8x2xf32, #tpu.memory_space<vmem>>, vector<1x8x8x2xf32>
    %39 = vector.shape_cast %38 : vector<1x8x8x2xf32> to vector<8x8x2xf32>
    %40 = arith.addf %39, %37 : vector<8x8x2xf32>
    %c0_48 = arith.constant 0 : index
    %c0_49 = arith.constant 0 : index
    %c0_50 = arith.constant 0 : index
    %c0_51 = arith.constant 0 : index
    %41 = vector.load %arg5[%c0_48, %c0_49, %c0_50, %c0_51] : memref<1x8x8x2xf32, #tpu.memory_space<vmem>>, vector<1x8x8x2xf32>
    %42 = vector.shape_cast %41 : vector<1x8x8x2xf32> to vector<8x8x2xf32>
    %43 = vector.shape_cast %40 : vector<8x8x2xf32> to vector<1x8x8x2xf32>
    tpu.vector_store %arg5[%c0_48, %c0_49, %c0_50, %c0_51], %43 {strides = array<i32>} : memref<1x8x8x2xf32, #tpu.memory_space<vmem>>, vector<1x8x8x2xf32>,
    %c0_52 = arith.constant 0 : index
    %c2 = arith.constant 2 : index
    %c0_53 = arith.constant 0 : index
    %44 = tpu.strided_load %arg7[%c0_52, %c2, %c0_53] {strides = array<i32: 2, 2, 1>} : memref<18x18x2xf32, #tpu.memory_space<vmem>>, vector<8x8x2xf32>
    %45 = arith.truncf %44 : vector<8x8x2xf32> to vector<8x8x2xbf16>
    %46 = vector.shape_cast %45 : vector<8x8x2xbf16> to vector<64x2xbf16>
    %c0_54 = arith.constant 0 : index
    %c2_55 = arith.constant 2 : index
    %c0_56 = arith.constant 0 : index
    %c0_57 = arith.constant 0 : index
    %47 = vector.load %arg4[%c0_54, %c2_55, %c0_56, %c0_57] : memref<3x3x2x2xbf16, #tpu.memory_space<vmem>>, vector<1x1x2x2xbf16>
    %48 = vector.shape_cast %47 : vector<1x1x2x2xbf16> to vector<2x2xbf16>
    %cst_58 = arith.constant dense<0.000000e+00> : vector<64x2xf32>
    %49 = tpu.matmul %46, %48, %cst_58 {dimension_numbers = #tpu.dot_dimension_numbers<[1], [0], [0], [1], [0, 0, 1, 1], [], []>} : vector<64x2xbf16>, vector<2x2xbf16>, vector<64x2xf32> -> vector<64x2xf32>
    %50 = vector.shape_cast %49 : vector<64x2xf32> to vector<8x8x2xf32>
    %c0_59 = arith.constant 0 : index
    %c0_60 = arith.constant 0 : index
    %c0_61 = arith.constant 0 : index
    %c0_62 = arith.constant 0 : index
    %51 = vector.load %arg5[%c0_59, %c0_60, %c0_61, %c0_62] : memref<1x8x8x2xf32, #tpu.memory_space<vmem>>, vector<1x8x8x2xf32>
    %52 = vector.shape_cast %51 : vector<1x8x8x2xf32> to vector<8x8x2xf32>
    %53 = arith.addf %52, %50 : vector<8x8x2xf32>
    %c0_63 = arith.constant 0 : index
    %c0_64 = arith.constant 0 : index
    %c0_65 = arith.constant 0 : index
    %c0_66 = arith.constant 0 : index
    %54 = vector.load %arg5[%c0_63, %c0_64, %c0_65, %c0_66] : memref<1x8x8x2xf32, #tpu.memory_space<vmem>>, vector<1x8x8x2xf32>
    %55 = vector.shape_cast %54 : vector<1x8x8x2xf32> to vector<8x8x2xf32>
    %56 = vector.shape_cast %53 : vector<8x8x2xf32> to vector<1x8x8x2xf32>
    tpu.vector_store %arg5[%c0_63, %c0_64, %c0_65, %c0_66], %56 {strides = array<i32>} : memref<1x8x8x2xf32, #tpu.memory_space<vmem>>, vector<1x8x8x2xf32>,
    %c1_67 = arith.constant 1 : index
    %c0_68 = arith.constant 0 : index
    %c0_69 = arith.constant 0 : index
    %57 = tpu.strided_load %arg7[%c1_67, %c0_68, %c0_69] {strides = array<i32: 2, 2, 1>} : memref<18x18x2xf32, #tpu.memory_space<vmem>>, vector<8x8x2xf32>
    %58 = arith.truncf %57 : vector<8x8x2xf32> to vector<8x8x2xbf16>
    %59 = vector.shape_cast %58 : vector<8x8x2xbf16> to vector<64x2xbf16>
    %c1_70 = arith.constant 1 : index
    %c0_71 = arith.constant 0 : index
    %c0_72 = arith.constant 0 : index
    %c0_73 = arith.constant 0 : index
    %60 = vector.load %arg4[%c1_70, %c0_71, %c0_72, %c0_73] : memref<3x3x2x2xbf16, #tpu.memory_space<vmem>>, vector<1x1x2x2xbf16>
    %61 = vector.shape_cast %60 : vector<1x1x2x2xbf16> to vector<2x2xbf16>
    %cst_74 = arith.constant dense<0.000000e+00> : vector<64x2xf32>
    %62 = tpu.matmul %59, %61, %cst_74 {dimension_numbers = #tpu.dot_dimension_numbers<[1], [0], [0], [1], [0, 0, 1, 1], [], []>} : vector<64x2xbf16>, vector<2x2xbf16>, vector<64x2xf32> -> vector<64x2xf32>
    %63 = vector.shape_cast %62 : vector<64x2xf32> to vector<8x8x2xf32>
    %c0_75 = arith.constant 0 : index
    %c0_76 = arith.constant 0 : index
    %c0_77 = arith.constant 0 : index
    %c0_78 = arith.constant 0 : index
    %64 = vector.load %arg5[%c0_75, %c0_76, %c0_77, %c0_78] : memref<1x8x8x2xf32, #tpu.memory_space<vmem>>, vector<1x8x8x2xf32>
    %65 = vector.shape_cast %64 : vector<1x8x8x2xf32> to vector<8x8x2xf32>
    %66 = arith.addf %65, %63 : vector<8x8x2xf32>
    %c0_79 = arith.constant 0 : index
    %c0_80 = arith.constant 0 : index
    %c0_81 = arith.constant 0 : index
    %c0_82 = arith.constant 0 : index
    %67 = vector.load %arg5[%c0_79, %c0_80, %c0_81, %c0_82] : memref<1x8x8x2xf32, #tpu.memory_space<vmem>>, vector<1x8x8x2xf32>
    %68 = vector.shape_cast %67 : vector<1x8x8x2xf32> to vector<8x8x2xf32>
    %69 = vector.shape_cast %66 : vector<8x8x2xf32> to vector<1x8x8x2xf32>
    tpu.vector_store %arg5[%c0_79, %c0_80, %c0_81, %c0_82], %69 {strides = array<i32>} : memref<1x8x8x2xf32, #tpu.memory_space<vmem>>, vector<1x8x8x2xf32>,
    %c1_83 = arith.constant 1 : index
    %c1_84 = arith.constant 1 : index
    %c0_85 = arith.constant 0 : index
    %70 = tpu.strided_load %arg7[%c1_83, %c1_84, %c0_85] {strides = array<i32: 2, 2, 1>} : memref<18x18x2xf32, #tpu.memory_space<vmem>>, vector<8x8x2xf32>
    %71 = arith.truncf %70 : vector<8x8x2xf32> to vector<8x8x2xbf16>
    %72 = vector.shape_cast %71 : vector<8x8x2xbf16> to vector<64x2xbf16>
    %c1_86 = arith.constant 1 : index
    %c1_87 = arith.constant 1 : index
    %c0_88 = arith.constant 0 : index
    %c0_89 = arith.constant 0 : index
    %73 = vector.load %arg4[%c1_86, %c1_87, %c0_88, %c0_89] : memref<3x3x2x2xbf16, #tpu.memory_space<vmem>>, vector<1x1x2x2xbf16>
    %74 = vector.shape_cast %73 : vector<1x1x2x2xbf16> to vector<2x2xbf16>
    %cst_90 = arith.constant dense<0.000000e+00> : vector<64x2xf32>
    %75 = tpu.matmul %72, %74, %cst_90 {dimension_numbers = #tpu.dot_dimension_numbers<[1], [0], [0], [1], [0, 0, 1, 1], [], []>} : vector<64x2xbf16>, vector<2x2xbf16>, vector<64x2xf32> -> vector<64x2xf32>
    %76 = vector.shape_cast %75 : vector<64x2xf32> to vector<8x8x2xf32>
    %c0_91 = arith.constant 0 : index
    %c0_92 = arith.constant 0 : index
    %c0_93 = arith.constant 0 : index
    %c0_94 = arith.constant 0 : index
    %77 = vector.load %arg5[%c0_91, %c0_92, %c0_93, %c0_94] : memref<1x8x8x2xf32, #tpu.memory_space<vmem>>, vector<1x8x8x2xf32>
    %78 = vector.shape_cast %77 : vector<1x8x8x2xf32> to vector<8x8x2xf32>
    %79 = arith.addf %78, %76 : vector<8x8x2xf32>
    %c0_95 = arith.constant 0 : index
    %c0_96 = arith.constant 0 : index
    %c0_97 = arith.constant 0 : index
    %c0_98 = arith.constant 0 : index
    %80 = vector.load %arg5[%c0_95, %c0_96, %c0_97, %c0_98] : memref<1x8x8x2xf32, #tpu.memory_space<vmem>>, vector<1x8x8x2xf32>
    %81 = vector.shape_cast %80 : vector<1x8x8x2xf32> to vector<8x8x2xf32>
    %82 = vector.shape_cast %79 : vector<8x8x2xf32> to vector<1x8x8x2xf32>
    tpu.vector_store %arg5[%c0_95, %c0_96, %c0_97, %c0_98], %82 {strides = array<i32>} : memref<1x8x8x2xf32, #tpu.memory_space<vmem>>, vector<1x8x8x2xf32>,
    %c1_99 = arith.constant 1 : index
    %c2_100 = arith.constant 2 : index
    %c0_101 = arith.constant 0 : index
    %83 = tpu.strided_load %arg7[%c1_99, %c2_100, %c0_101] {strides = array<i32: 2, 2, 1>} : memref<18x18x2xf32, #tpu.memory_space<vmem>>, vector<8x8x2xf32>
    %84 = arith.truncf %83 : vector<8x8x2xf32> to vector<8x8x2xbf16>
    %85 = vector.shape_cast %84 : vector<8x8x2xbf16> to vector<64x2xbf16>
    %c1_102 = arith.constant 1 : index
    %c2_103 = arith.constant 2 : index
    %c0_104 = arith.constant 0 : index
    %c0_105 = arith.constant 0 : index
    %86 = vector.load %arg4[%c1_102, %c2_103, %c0_104, %c0_105] : memref<3x3x2x2xbf16, #tpu.memory_space<vmem>>, vector<1x1x2x2xbf16>
    %87 = vector.shape_cast %86 : vector<1x1x2x2xbf16> to vector<2x2xbf16>
    %cst_106 = arith.constant dense<0.000000e+00> : vector<64x2xf32>
    %88 = tpu.matmul %85, %87, %cst_106 {dimension_numbers = #tpu.dot_dimension_numbers<[1], [0], [0], [1], [0, 0, 1, 1], [], []>} : vector<64x2xbf16>, vector<2x2xbf16>, vector<64x2xf32> -> vector<64x2xf32>
    %89 = vector.shape_cast %88 : vector<64x2xf32> to vector<8x8x2xf32>
    %c0_107 = arith.constant 0 : index
    %c0_108 = arith.constant 0 : index
    %c0_109 = arith.constant 0 : index
    %c0_110 = arith.constant 0 : index
    %90 = vector.load %arg5[%c0_107, %c0_108, %c0_109, %c0_110] : memref<1x8x8x2xf32, #tpu.memory_space<vmem>>, vector<1x8x8x2xf32>
    %91 = vector.shape_cast %90 : vector<1x8x8x2xf32> to vector<8x8x2xf32>
    %92 = arith.addf %91, %89 : vector<8x8x2xf32>
    %c0_111 = arith.constant 0 : index
    %c0_112 = arith.constant 0 : index
    %c0_113 = arith.constant 0 : index
    %c0_114 = arith.constant 0 : index
    %93 = vector.load %arg5[%c0_111, %c0_112, %c0_113, %c0_114] : memref<1x8x8x2xf32, #tpu.memory_space<vmem>>, vector<1x8x8x2xf32>
    %94 = vector.shape_cast %93 : vector<1x8x8x2xf32> to vector<8x8x2xf32>
    %95 = vector.shape_cast %92 : vector<8x8x2xf32> to vector<1x8x8x2xf32>
    tpu.vector_store %arg5[%c0_111, %c0_112, %c0_113, %c0_114], %95 {strides = array<i32>} : memref<1x8x8x2xf32, #tpu.memory_space<vmem>>, vector<1x8x8x2xf32>,
    %c2_115 = arith.constant 2 : index
    %c0_116 = arith.constant 0 : index
    %c0_117 = arith.constant 0 : index
    %96 = tpu.strided_load %arg7[%c2_115, %c0_116, %c0_117] {strides = array<i32: 2, 2, 1>} : memref<18x18x2xf32, #tpu.memory_space<vmem>>, vector<8x8x2xf32>
    %97 = arith.truncf %96 : vector<8x8x2xf32> to vector<8x8x2xbf16>
    %98 = vector.shape_cast %97 : vector<8x8x2xbf16> to vector<64x2xbf16>
    %c2_118 = arith.constant 2 : index
    %c0_119 = arith.constant 0 : index
    %c0_120 = arith.constant 0 : index
    %c0_121 = arith.constant 0 : index
    %99 = vector.load %arg4[%c2_118, %c0_119, %c0_120, %c0_121] : memref<3x3x2x2xbf16, #tpu.memory_space<vmem>>, vector<1x1x2x2xbf16>
    %100 = vector.shape_cast %99 : vector<1x1x2x2xbf16> to vector<2x2xbf16>
    %cst_122 = arith.constant dense<0.000000e+00> : vector<64x2xf32>
    %101 = tpu.matmul %98, %100, %cst_122 {dimension_numbers = #tpu.dot_dimension_numbers<[1], [0], [0], [1], [0, 0, 1, 1], [], []>} : vector<64x2xbf16>, vector<2x2xbf16>, vector<64x2xf32> -> vector<64x2xf32>
    %102 = vector.shape_cast %101 : vector<64x2xf32> to vector<8x8x2xf32>
    %c0_123 = arith.constant 0 : index
    %c0_124 = arith.constant 0 : index
    %c0_125 = arith.constant 0 : index
    %c0_126 = arith.constant 0 : index
    %103 = vector.load %arg5[%c0_123, %c0_124, %c0_125, %c0_126] : memref<1x8x8x2xf32, #tpu.memory_space<vmem>>, vector<1x8x8x2xf32>
    %104 = vector.shape_cast %103 : vector<1x8x8x2xf32> to vector<8x8x2xf32>
    %105 = arith.addf %104, %102 : vector<8x8x2xf32>
    %c0_127 = arith.constant 0 : index
    %c0_128 = arith.constant 0 : index
    %c0_129 = arith.constant 0 : index
    %c0_130 = arith.constant 0 : index
    %106 = vector.load %arg5[%c0_127, %c0_128, %c0_129, %c0_130] : memref<1x8x8x2xf32, #tpu.memory_space<vmem>>, vector<1x8x8x2xf32>
    %107 = vector.shape_cast %106 : vector<1x8x8x2xf32> to vector<8x8x2xf32>
    %108 = vector.shape_cast %105 : vector<8x8x2xf32> to vector<1x8x8x2xf32>
    tpu.vector_store %arg5[%c0_127, %c0_128, %c0_129, %c0_130], %108 {strides = array<i32>} : memref<1x8x8x2xf32, #tpu.memory_space<vmem>>, vector<1x8x8x2xf32>,
    %c2_131 = arith.constant 2 : index
    %c1_132 = arith.constant 1 : index
    %c0_133 = arith.constant 0 : index
    %109 = tpu.strided_load %arg7[%c2_131, %c1_132, %c0_133] {strides = array<i32: 2, 2, 1>} : memref<18x18x2xf32, #tpu.memory_space<vmem>>, vector<8x8x2xf32>
    %110 = arith.truncf %109 : vector<8x8x2xf32> to vector<8x8x2xbf16>
    %111 = vector.shape_cast %110 : vector<8x8x2xbf16> to vector<64x2xbf16>
    %c2_134 = arith.constant 2 : index
    %c1_135 = arith.constant 1 : index
    %c0_136 = arith.constant 0 : index
    %c0_137 = arith.constant 0 : index
    %112 = vector.load %arg4[%c2_134, %c1_135, %c0_136, %c0_137] : memref<3x3x2x2xbf16, #tpu.memory_space<vmem>>, vector<1x1x2x2xbf16>
    %113 = vector.shape_cast %112 : vector<1x1x2x2xbf16> to vector<2x2xbf16>
    %cst_138 = arith.constant dense<0.000000e+00> : vector<64x2xf32>
    %114 = tpu.matmul %111, %113, %cst_138 {dimension_numbers = #tpu.dot_dimension_numbers<[1], [0], [0], [1], [0, 0, 1, 1], [], []>} : vector<64x2xbf16>, vector<2x2xbf16>, vector<64x2xf32> -> vector<64x2xf32>
    %115 = vector.shape_cast %114 : vector<64x2xf32> to vector<8x8x2xf32>
    %c0_139 = arith.constant 0 : index
    %c0_140 = arith.constant 0 : index
    %c0_141 = arith.constant 0 : index
    %c0_142 = arith.constant 0 : index
    %116 = vector.load %arg5[%c0_139, %c0_140, %c0_141, %c0_142] : memref<1x8x8x2xf32, #tpu.memory_space<vmem>>, vector<1x8x8x2xf32>
    %117 = vector.shape_cast %116 : vector<1x8x8x2xf32> to vector<8x8x2xf32>
    %118 = arith.addf %117, %115 : vector<8x8x2xf32>
    %c0_143 = arith.constant 0 : index
    %c0_144 = arith.constant 0 : index
    %c0_145 = arith.constant 0 : index
    %c0_146 = arith.constant 0 : index
    %119 = vector.load %arg5[%c0_143, %c0_144, %c0_145, %c0_146] : memref<1x8x8x2xf32, #tpu.memory_space<vmem>>, vector<1x8x8x2xf32>
    %120 = vector.shape_cast %119 : vector<1x8x8x2xf32> to vector<8x8x2xf32>
    %121 = vector.shape_cast %118 : vector<8x8x2xf32> to vector<1x8x8x2xf32>
    tpu.vector_store %arg5[%c0_143, %c0_144, %c0_145, %c0_146], %121 {strides = array<i32>} : memref<1x8x8x2xf32, #tpu.memory_space<vmem>>, vector<1x8x8x2xf32>,
    %c2_147 = arith.constant 2 : index
    %c2_148 = arith.constant 2 : index
    %c0_149 = arith.constant 0 : index
    %122 = tpu.strided_load %arg7[%c2_147, %c2_148, %c0_149] {strides = array<i32: 2, 2, 1>} : memref<18x18x2xf32, #tpu.memory_space<vmem>>, vector<8x8x2xf32>
    %123 = arith.truncf %122 : vector<8x8x2xf32> to vector<8x8x2xbf16>
    %124 = vector.shape_cast %123 : vector<8x8x2xbf16> to vector<64x2xbf16>
    %c2_150 = arith.constant 2 : index
    %c2_151 = arith.constant 2 : index
    %c0_152 = arith.constant 0 : index
    %c0_153 = arith.constant 0 : index
    %125 = vector.load %arg4[%c2_150, %c2_151, %c0_152, %c0_153] : memref<3x3x2x2xbf16, #tpu.memory_space<vmem>>, vector<1x1x2x2xbf16>
    %126 = vector.shape_cast %125 : vector<1x1x2x2xbf16> to vector<2x2xbf16>
    %cst_154 = arith.constant dense<0.000000e+00> : vector<64x2xf32>
    %127 = tpu.matmul %124, %126, %cst_154 {dimension_numbers = #tpu.dot_dimension_numbers<[1], [0], [0], [1], [0, 0, 1, 1], [], []>} : vector<64x2xbf16>, vector<2x2xbf16>, vector<64x2xf32> -> vector<64x2xf32>
    %128 = vector.shape_cast %127 : vector<64x2xf32> to vector<8x8x2xf32>
    %c0_155 = arith.constant 0 : index
    %c0_156 = arith.constant 0 : index
    %c0_157 = arith.constant 0 : index
    %c0_158 = arith.constant 0 : index
    %129 = vector.load %arg5[%c0_155, %c0_156, %c0_157, %c0_158] : memref<1x8x8x2xf32, #tpu.memory_space<vmem>>, vector<1x8x8x2xf32>
    %130 = vector.shape_cast %129 : vector<1x8x8x2xf32> to vector<8x8x2xf32>
    %131 = arith.addf %130, %128 : vector<8x8x2xf32>
    %c0_159 = arith.constant 0 : index
    %c0_160 = arith.constant 0 : index
    %c0_161 = arith.constant 0 : index
    %c0_162 = arith.constant 0 : index
    %132 = vector.load %arg5[%c0_159, %c0_160, %c0_161, %c0_162] : memref<1x8x8x2xf32, #tpu.memory_space<vmem>>, vector<1x8x8x2xf32>
    %133 = vector.shape_cast %132 : vector<1x8x8x2xf32> to vector<8x8x2xf32>
    %134 = vector.shape_cast %131 : vector<8x8x2xf32> to vector<1x8x8x2xf32>
    tpu.vector_store %arg5[%c0_159, %c0_160, %c0_161, %c0_162], %134 {strides = array<i32>} : memref<1x8x8x2xf32, #tpu.memory_space<vmem>>, vector<1x8x8x2xf32>,
    %c0_163 = arith.constant 0 : index
    %c0_164 = arith.constant 0 : index
    %c0_165 = arith.constant 0 : index
    %c0_166 = arith.constant 0 : index
    %135 = vector.load %arg5[%c0_163, %c0_164, %c0_165, %c0_166] : memref<1x8x8x2xf32, #tpu.memory_space<vmem>>, vector<1x8x8x2xf32>
    %136 = vector.shape_cast %135 : vector<1x8x8x2xf32> to vector<8x8x2xf32>
    %cst_167 = arith.constant dense<0.000000e+00> : vector<2xf32>
    %137 = vector.multi_reduction <add>, %136, %cst_167 [0, 1] : vector<8x8x2xf32> to vector<2xf32>
    %138 = vector.shape_cast %137 : vector<2xf32> to vector<1x2xf32>
    %139 = arith.mulf %136, %136 : vector<8x8x2xf32>
    %cst_168 = arith.constant dense<0.000000e+00> : vector<2xf32>
    %140 = vector.multi_reduction <add>, %139, %cst_168 [0, 1] : vector<8x8x2xf32> to vector<2xf32>
    %141 = vector.shape_cast %140 : vector<2xf32> to vector<1x2xf32>
    %142 = tpu.concatenate %138, %141 in 0 : vector<1x2xf32>, vector<1x2xf32> -> vector<2x2xf32>
    %c0_169 = arith.constant 0 : index
    %c0_170 = arith.constant 0 : index
    %c0_171 = arith.constant 0 : index
    %143 = vector.load %arg6[%c0_169, %c0_170, %c0_171] : memref<1x2x2xf32, #tpu.memory_space<vmem>>, vector<1x2x2xf32>
    %144 = vector.shape_cast %143 : vector<1x2x2xf32> to vector<2x2xf32>
    %145 = vector.shape_cast %142 : vector<2x2xf32> to vector<1x2x2xf32>
    tpu.vector_store %arg6[%c0_169, %c0_170, %c0_171], %145 {strides = array<i32>} : memref<1x2x2xf32, #tpu.memory_space<vmem>>, vector<1x2x2xf32>,
    return
  }
  func.func @transform_0(%arg0: i32) -> (i32, i32, i32, i32) {
    %c0_i32 = arith.constant 0 : i32
    %c0_i32_0 = arith.constant 0 : i32
    %c0_i32_1 = arith.constant 0 : i32
    %c0_i32_2 = arith.constant 0 : i32
    return %arg0, %c0_i32, %c0_i32_0, %c0_i32_1 : i32, i32, i32, i32
  }
  func.func @transform_1(%arg0: i32) -> (i32, i32, i32) {
    %c0_i32 = arith.constant 0 : i32
    %c0_i32_0 = arith.constant 0 : i32
    %c0_i32_1 = arith.constant 0 : i32
    %c0_i32_2 = arith.constant 0 : i32
    return %c0_i32, %c0_i32_0, %c0_i32_1 : i32, i32, i32
  }
  func.func @transform_2(%arg0: i32) -> (i32, i32, i32) {
    %c0_i32 = arith.constant 0 : i32
    %c0_i32_0 = arith.constant 0 : i32
    %c0_i32_1 = arith.constant 0 : i32
    %c0_i32_2 = arith.constant 0 : i32
    return %c0_i32, %c0_i32_0, %c0_i32_1 : i32, i32, i32
  }
  func.func @transform_3(%arg0: i32) -> (i32, i32, i32, i32) {
    %c0_i32 = arith.constant 0 : i32
    %c0_i32_0 = arith.constant 0 : i32
    %c0_i32_1 = arith.constant 0 : i32
    %c0_i32_2 = arith.constant 0 : i32
    %c0_i32_3 = arith.constant 0 : i32
    return %c0_i32, %c0_i32_0, %c0_i32_1, %c0_i32_2 : i32, i32, i32, i32
  }
  func.func @transform_4(%arg0: i32) -> (i32, i32, i32, i32) {
    %c0_i32 = arith.constant 0 : i32
    %c0_i32_0 = arith.constant 0 : i32
    %c0_i32_1 = arith.constant 0 : i32
    %c0_i32_2 = arith.constant 0 : i32
    return %arg0, %c0_i32, %c0_i32_0, %c0_i32_1 : i32, i32, i32, i32
  }
  func.func @transform_5(%arg0: i32) -> (i32, i32, i32) {
    %c0_i32 = arith.constant 0 : i32
    %c0_i32_0 = arith.constant 0 : i32
    %c0_i32_1 = arith.constant 0 : i32
    return %arg0, %c0_i32, %c0_i32_0 : i32, i32, i32
  }
}

module attributes {stable_mosaic.version = 11 : i64} {
  func.func @_bn_relu_matmul_kernel(%arg0: i32, %arg1: memref<128x2xf32, #tpu.memory_space<vmem>>, %arg2: memref<1x2xf32, #tpu.memory_space<vmem>>, %arg3: memref<1x2xf32, #tpu.memory_space<vmem>>, %arg4: memref<2x8xbf16, #tpu.memory_space<vmem>>, %arg5: memref<128x8xf32, #tpu.memory_space<vmem>>) attributes {dimension_semantics = [#tpu.dimension_semantics<parallel>], iteration_bounds = array<i64: 1>, scalar_prefetch = 0 : i64, scratch_operands = 0 : i64, tpu.core_type = #tpu.core_type<tc>, window_params = [{transform_indices = @transform_0, window_bounds = array<i64: 128, 2>}, {pipeline_mode = #tpu.pipeline_mode<synchronous>, transform_indices = @transform_1, window_bounds = array<i64: 1, 2>}, {pipeline_mode = #tpu.pipeline_mode<synchronous>, transform_indices = @transform_2, window_bounds = array<i64: 1, 2>}, {pipeline_mode = #tpu.pipeline_mode<synchronous>, transform_indices = @transform_3, window_bounds = array<i64: 2, 8>}, {transform_indices = @transform_4, window_bounds = array<i64: 128, 8>}]} {
    %c0 = arith.constant 0 : index
    %c0_0 = arith.constant 0 : index
    %0 = vector.load %arg1[%c0, %c0_0] : memref<128x2xf32, #tpu.memory_space<vmem>>, vector<128x2xf32>
    %c0_1 = arith.constant 0 : index
    %c0_2 = arith.constant 0 : index
    %1 = vector.load %arg2[%c0_1, %c0_2] : memref<1x2xf32, #tpu.memory_space<vmem>>, vector<1x2xf32>
    %2 = vector.broadcast %1 : vector<1x2xf32> to vector<128x2xf32>
    %3 = arith.mulf %0, %2 : vector<128x2xf32>
    %c0_3 = arith.constant 0 : index
    %c0_4 = arith.constant 0 : index
    %4 = vector.load %arg3[%c0_3, %c0_4] : memref<1x2xf32, #tpu.memory_space<vmem>>, vector<1x2xf32>
    %5 = vector.broadcast %4 : vector<1x2xf32> to vector<128x2xf32>
    %6 = arith.addf %3, %5 : vector<128x2xf32>
    %cst = arith.constant 0.000000e+00 : f32
    %7 = vector.broadcast %cst : f32 to vector<128x2xf32>
    %8 = arith.maximumf %6, %7 : vector<128x2xf32>
    %9 = arith.truncf %8 : vector<128x2xf32> to vector<128x2xbf16>
    %c0_5 = arith.constant 0 : index
    %c0_6 = arith.constant 0 : index
    %10 = vector.load %arg4[%c0_5, %c0_6] : memref<2x8xbf16, #tpu.memory_space<vmem>>, vector<2x8xbf16>
    %cst_7 = arith.constant dense<0.000000e+00> : vector<128x8xf32>
    %11 = tpu.matmul %9, %10, %cst_7 {dimension_numbers = #tpu.dot_dimension_numbers<[1], [0], [0], [1], [0, 0, 1, 1], [], []>} : vector<128x2xbf16>, vector<2x8xbf16>, vector<128x8xf32> -> vector<128x8xf32>
    %c0_8 = arith.constant 0 : index
    %c0_9 = arith.constant 0 : index
    %12 = vector.load %arg5[%c0_8, %c0_9] : memref<128x8xf32, #tpu.memory_space<vmem>>, vector<128x8xf32>
    tpu.vector_store %arg5[%c0_8, %c0_9], %11 {strides = array<i32>} : memref<128x8xf32, #tpu.memory_space<vmem>>, vector<128x8xf32>,
    return
  }
  func.func @transform_0(%arg0: i32) -> (i32, i32) {
    %c0_i32 = arith.constant 0 : i32
    %c0_i32_0 = arith.constant 0 : i32
    return %arg0, %c0_i32 : i32, i32
  }
  func.func @transform_1(%arg0: i32) -> (i32, i32) {
    %c0_i32 = arith.constant 0 : i32
    %c0_i32_0 = arith.constant 0 : i32
    %c0_i32_1 = arith.constant 0 : i32
    return %c0_i32, %c0_i32_0 : i32, i32
  }
  func.func @transform_2(%arg0: i32) -> (i32, i32) {
    %c0_i32 = arith.constant 0 : i32
    %c0_i32_0 = arith.constant 0 : i32
    %c0_i32_1 = arith.constant 0 : i32
    return %c0_i32, %c0_i32_0 : i32, i32
  }
  func.func @transform_3(%arg0: i32) -> (i32, i32) {
    %c0_i32 = arith.constant 0 : i32
    %c0_i32_0 = arith.constant 0 : i32
    %c0_i32_1 = arith.constant 0 : i32
    return %c0_i32, %c0_i32_0 : i32, i32
  }
  func.func @transform_4(%arg0: i32) -> (i32, i32) {
    %c0_i32 = arith.constant 0 : i32
    %c0_i32_0 = arith.constant 0 : i32
    return %arg0, %c0_i32 : i32, i32
  }
}

module attributes {stable_mosaic.version = 11 : i64} {
  func.func @_bn_relu_matmul_kernel(%arg0: i32, %arg1: memref<128x4xf32, #tpu.memory_space<vmem>>, %arg2: memref<1x4xf32, #tpu.memory_space<vmem>>, %arg3: memref<1x4xf32, #tpu.memory_space<vmem>>, %arg4: memref<4x8xbf16, #tpu.memory_space<vmem>>, %arg5: memref<128x8xf32, #tpu.memory_space<vmem>>) attributes {dimension_semantics = [#tpu.dimension_semantics<parallel>], iteration_bounds = array<i64: 1>, scalar_prefetch = 0 : i64, scratch_operands = 0 : i64, tpu.core_type = #tpu.core_type<tc>, window_params = [{transform_indices = @transform_0, window_bounds = array<i64: 128, 4>}, {pipeline_mode = #tpu.pipeline_mode<synchronous>, transform_indices = @transform_1, window_bounds = array<i64: 1, 4>}, {pipeline_mode = #tpu.pipeline_mode<synchronous>, transform_indices = @transform_2, window_bounds = array<i64: 1, 4>}, {pipeline_mode = #tpu.pipeline_mode<synchronous>, transform_indices = @transform_3, window_bounds = array<i64: 4, 8>}, {transform_indices = @transform_4, window_bounds = array<i64: 128, 8>}]} {
    %c0 = arith.constant 0 : index
    %c0_0 = arith.constant 0 : index
    %0 = vector.load %arg1[%c0, %c0_0] : memref<128x4xf32, #tpu.memory_space<vmem>>, vector<128x4xf32>
    %c0_1 = arith.constant 0 : index
    %c0_2 = arith.constant 0 : index
    %1 = vector.load %arg2[%c0_1, %c0_2] : memref<1x4xf32, #tpu.memory_space<vmem>>, vector<1x4xf32>
    %2 = vector.broadcast %1 : vector<1x4xf32> to vector<128x4xf32>
    %3 = arith.mulf %0, %2 : vector<128x4xf32>
    %c0_3 = arith.constant 0 : index
    %c0_4 = arith.constant 0 : index
    %4 = vector.load %arg3[%c0_3, %c0_4] : memref<1x4xf32, #tpu.memory_space<vmem>>, vector<1x4xf32>
    %5 = vector.broadcast %4 : vector<1x4xf32> to vector<128x4xf32>
    %6 = arith.addf %3, %5 : vector<128x4xf32>
    %cst = arith.constant 0.000000e+00 : f32
    %7 = vector.broadcast %cst : f32 to vector<128x4xf32>
    %8 = arith.maximumf %6, %7 : vector<128x4xf32>
    %9 = arith.truncf %8 : vector<128x4xf32> to vector<128x4xbf16>
    %c0_5 = arith.constant 0 : index
    %c0_6 = arith.constant 0 : index
    %10 = vector.load %arg4[%c0_5, %c0_6] : memref<4x8xbf16, #tpu.memory_space<vmem>>, vector<4x8xbf16>
    %cst_7 = arith.constant dense<0.000000e+00> : vector<128x8xf32>
    %11 = tpu.matmul %9, %10, %cst_7 {dimension_numbers = #tpu.dot_dimension_numbers<[1], [0], [0], [1], [0, 0, 1, 1], [], []>} : vector<128x4xbf16>, vector<4x8xbf16>, vector<128x8xf32> -> vector<128x8xf32>
    %c0_8 = arith.constant 0 : index
    %c0_9 = arith.constant 0 : index
    %12 = vector.load %arg5[%c0_8, %c0_9] : memref<128x8xf32, #tpu.memory_space<vmem>>, vector<128x8xf32>
    tpu.vector_store %arg5[%c0_8, %c0_9], %11 {strides = array<i32>} : memref<128x8xf32, #tpu.memory_space<vmem>>, vector<128x8xf32>,
    return
  }
  func.func @transform_0(%arg0: i32) -> (i32, i32) {
    %c0_i32 = arith.constant 0 : i32
    %c0_i32_0 = arith.constant 0 : i32
    return %arg0, %c0_i32 : i32, i32
  }
  func.func @transform_1(%arg0: i32) -> (i32, i32) {
    %c0_i32 = arith.constant 0 : i32
    %c0_i32_0 = arith.constant 0 : i32
    %c0_i32_1 = arith.constant 0 : i32
    return %c0_i32, %c0_i32_0 : i32, i32
  }
  func.func @transform_2(%arg0: i32) -> (i32, i32) {
    %c0_i32 = arith.constant 0 : i32
    %c0_i32_0 = arith.constant 0 : i32
    %c0_i32_1 = arith.constant 0 : i32
    return %c0_i32, %c0_i32_0 : i32, i32
  }
  func.func @transform_3(%arg0: i32) -> (i32, i32) {
    %c0_i32 = arith.constant 0 : i32
    %c0_i32_0 = arith.constant 0 : i32
    %c0_i32_1 = arith.constant 0 : i32
    return %c0_i32, %c0_i32_0 : i32, i32
  }
  func.func @transform_4(%arg0: i32) -> (i32, i32) {
    %c0_i32 = arith.constant 0 : i32
    %c0_i32_0 = arith.constant 0 : i32
    return %arg0, %c0_i32 : i32, i32
  }
}

module attributes {stable_mosaic.version = 11 : i64} {
  func.func @_rs_att_fuse_kernel(%arg0: i32, %arg1: memref<1x8x8x8xf32, #tpu.memory_space<vmem>>, %arg2: memref<1x8x8x8xf32, #tpu.memory_space<vmem>>, %arg3: memref<1x16x16xf32, #tpu.memory_space<vmem>>, %arg4: memref<8x8xf32, #tpu.memory_space<vmem>>, %arg5: memref<8x8xf32, #tpu.memory_space<vmem>>, %arg6: memref<8x16xf32, #tpu.memory_space<vmem>>, %arg7: memref<16x8xf32, #tpu.memory_space<vmem>>, %arg8: memref<5x5xf32, #tpu.memory_space<smem>>, %arg9: memref<1xf32, #tpu.memory_space<smem>>, %arg10: memref<3x3xf32, #tpu.memory_space<smem>>, %arg11: memref<1xf32, #tpu.memory_space<smem>>, %arg12: memref<3x3xf32, #tpu.memory_space<smem>>, %arg13: memref<1xf32, #tpu.memory_space<smem>>, %arg14: memref<3x3xf32, #tpu.memory_space<smem>>, %arg15: memref<1xf32, #tpu.memory_space<smem>>, %arg16: memref<1x8x8x8xf32, #tpu.memory_space<vmem>>, %arg17: memref<1x8x8xf32, #tpu.memory_space<vmem>>, %arg18: memref<12x12xf32, #tpu.memory_space<vmem>>, %arg19: memref<10x10xf32, #tpu.memory_space<vmem>>, %arg20: memref<18x18xf32, #tpu.memory_space<vmem>>) attributes {dimension_semantics = [#tpu.dimension_semantics<parallel>], iteration_bounds = array<i64: 2>, scalar_prefetch = 0 : i64, scratch_operands = 3 : i64, tpu.core_type = #tpu.core_type<tc>, window_params = [{transform_indices = @transform_0, window_bounds = array<i64: 1, 8, 8, 8>}, {transform_indices = @transform_1, window_bounds = array<i64: 1, 8, 8, 8>}, {transform_indices = @transform_2, window_bounds = array<i64: 1, 16, 16>}, {pipeline_mode = #tpu.pipeline_mode<synchronous>, transform_indices = @transform_3, window_bounds = array<i64: 8, 8>}, {pipeline_mode = #tpu.pipeline_mode<synchronous>, transform_indices = @transform_4, window_bounds = array<i64: 8, 8>}, {pipeline_mode = #tpu.pipeline_mode<synchronous>, transform_indices = @transform_5, window_bounds = array<i64: 8, 16>}, {pipeline_mode = #tpu.pipeline_mode<synchronous>, transform_indices = @transform_6, window_bounds = array<i64: 16, 8>}, {transform_indices = @transform_7, window_bounds = array<i64: 5, 5>}, {transform_indices = @transform_8, window_bounds = array<i64: 1>}, {transform_indices = @transform_9, window_bounds = array<i64: 3, 3>}, {transform_indices = @transform_10, window_bounds = array<i64: 1>}, {transform_indices = @transform_11, window_bounds = array<i64: 3, 3>}, {transform_indices = @transform_12, window_bounds = array<i64: 1>}, {transform_indices = @transform_13, window_bounds = array<i64: 3, 3>}, {transform_indices = @transform_14, window_bounds = array<i64: 1>}, {transform_indices = @transform_15, window_bounds = array<i64: 1, 8, 8, 8>}, {transform_indices = @transform_16, window_bounds = array<i64: 1, 8, 8>}]} {
    %c0 = arith.constant 0 : index
    %c0_0 = arith.constant 0 : index
    %c0_1 = arith.constant 0 : index
    %c0_2 = arith.constant 0 : index
    %0 = vector.load %arg1[%c0, %c0_0, %c0_1, %c0_2] : memref<1x8x8x8xf32, #tpu.memory_space<vmem>>, vector<1x8x8x8xf32>
    %1 = vector.shape_cast %0 : vector<1x8x8x8xf32> to vector<8x8x8xf32>
    %cst = arith.constant dense<0.000000e+00> : vector<8x8xf32>
    %2 = vector.multi_reduction <add>, %1, %cst [2] : vector<8x8x8xf32> to vector<8x8xf32>
    %cst_3 = arith.constant 8.000000e+00 : f32
    %3 = vector.broadcast %cst_3 : f32 to vector<8x8xf32>
    %4 = arith.divf %2, %3 : vector<8x8xf32>
    %cst_4 = arith.constant 0.000000e+00 : f32
    %5 = vector.broadcast %cst_4 : f32 to vector<12x12xf32>
    %c0_5 = arith.constant 0 : index
    %c0_6 = arith.constant 0 : index
    %6 = vector.load %arg18[%c0_5, %c0_6] : memref<12x12xf32, #tpu.memory_space<vmem>>, vector<12x12xf32>
    tpu.vector_store %arg18[%c0_5, %c0_6], %5 {strides = array<i32>} : memref<12x12xf32, #tpu.memory_space<vmem>>, vector<12x12xf32>,
    %c2 = arith.constant 2 : index
    %c2_7 = arith.constant 2 : index
    %7 = vector.load %arg18[%c2, %c2_7] : memref<12x12xf32, #tpu.memory_space<vmem>>, vector<8x8xf32>
    tpu.vector_store %arg18[%c2, %c2_7], %4 {strides = array<i32>} : memref<12x12xf32, #tpu.memory_space<vmem>>, vector<8x8xf32>,
    %cst_8 = arith.constant 0.000000e+00 : f32
    %8 = vector.broadcast %cst_8 : f32 to vector<8x8xf32>
    %c0_9 = arith.constant 0 : index
    %c0_10 = arith.constant 0 : index
    %9 = vector.load %arg18[%c0_9, %c0_10] : memref<12x12xf32, #tpu.memory_space<vmem>>, vector<8x8xf32>
    %c0_11 = arith.constant 0 : index
    %c0_12 = arith.constant 0 : index
    %10 = memref.load %arg8[%c0_11, %c0_12] : memref<5x5xf32, #tpu.memory_space<smem>>
    %11 = vector.broadcast %10 : f32 to vector<8x8xf32>
    %12 = arith.mulf %9, %11 : vector<8x8xf32>
    %13 = arith.addf %8, %12 : vector<8x8xf32>
    %c0_13 = arith.constant 0 : index
    %c1 = arith.constant 1 : index
    %14 = vector.load %arg18[%c0_13, %c1] : memref<12x12xf32, #tpu.memory_space<vmem>>, vector<8x8xf32>
    %c0_14 = arith.constant 0 : index
    %c1_15 = arith.constant 1 : index
    %15 = memref.load %arg8[%c0_14, %c1_15] : memref<5x5xf32, #tpu.memory_space<smem>>
    %16 = vector.broadcast %15 : f32 to vector<8x8xf32>
    %17 = arith.mulf %14, %16 : vector<8x8xf32>
    %18 = arith.addf %13, %17 : vector<8x8xf32>
    %c0_16 = arith.constant 0 : index
    %c2_17 = arith.constant 2 : index
    %19 = vector.load %arg18[%c0_16, %c2_17] : memref<12x12xf32, #tpu.memory_space<vmem>>, vector<8x8xf32>
    %c0_18 = arith.constant 0 : index
    %c2_19 = arith.constant 2 : index
    %20 = memref.load %arg8[%c0_18, %c2_19] : memref<5x5xf32, #tpu.memory_space<smem>>
    %21 = vector.broadcast %20 : f32 to vector<8x8xf32>
    %22 = arith.mulf %19, %21 : vector<8x8xf32>
    %23 = arith.addf %18, %22 : vector<8x8xf32>
    %c0_20 = arith.constant 0 : index
    %c3 = arith.constant 3 : index
    %24 = vector.load %arg18[%c0_20, %c3] : memref<12x12xf32, #tpu.memory_space<vmem>>, vector<8x8xf32>
    %c0_21 = arith.constant 0 : index
    %c3_22 = arith.constant 3 : index
    %25 = memref.load %arg8[%c0_21, %c3_22] : memref<5x5xf32, #tpu.memory_space<smem>>
    %26 = vector.broadcast %25 : f32 to vector<8x8xf32>
    %27 = arith.mulf %24, %26 : vector<8x8xf32>
    %28 = arith.addf %23, %27 : vector<8x8xf32>
    %c0_23 = arith.constant 0 : index
    %c4 = arith.constant 4 : index
    %29 = vector.load %arg18[%c0_23, %c4] : memref<12x12xf32, #tpu.memory_space<vmem>>, vector<8x8xf32>
    %c0_24 = arith.constant 0 : index
    %c4_25 = arith.constant 4 : index
    %30 = memref.load %arg8[%c0_24, %c4_25] : memref<5x5xf32, #tpu.memory_space<smem>>
    %31 = vector.broadcast %30 : f32 to vector<8x8xf32>
    %32 = arith.mulf %29, %31 : vector<8x8xf32>
    %33 = arith.addf %28, %32 : vector<8x8xf32>
    %c1_26 = arith.constant 1 : index
    %c0_27 = arith.constant 0 : index
    %34 = vector.load %arg18[%c1_26, %c0_27] : memref<12x12xf32, #tpu.memory_space<vmem>>, vector<8x8xf32>
    %c1_28 = arith.constant 1 : index
    %c0_29 = arith.constant 0 : index
    %35 = memref.load %arg8[%c1_28, %c0_29] : memref<5x5xf32, #tpu.memory_space<smem>>
    %36 = vector.broadcast %35 : f32 to vector<8x8xf32>
    %37 = arith.mulf %34, %36 : vector<8x8xf32>
    %38 = arith.addf %33, %37 : vector<8x8xf32>
    %c1_30 = arith.constant 1 : index
    %c1_31 = arith.constant 1 : index
    %39 = vector.load %arg18[%c1_30, %c1_31] : memref<12x12xf32, #tpu.memory_space<vmem>>, vector<8x8xf32>
    %c1_32 = arith.constant 1 : index
    %c1_33 = arith.constant 1 : index
    %40 = memref.load %arg8[%c1_32, %c1_33] : memref<5x5xf32, #tpu.memory_space<smem>>
    %41 = vector.broadcast %40 : f32 to vector<8x8xf32>
    %42 = arith.mulf %39, %41 : vector<8x8xf32>
    %43 = arith.addf %38, %42 : vector<8x8xf32>
    %c1_34 = arith.constant 1 : index
    %c2_35 = arith.constant 2 : index
    %44 = vector.load %arg18[%c1_34, %c2_35] : memref<12x12xf32, #tpu.memory_space<vmem>>, vector<8x8xf32>
    %c1_36 = arith.constant 1 : index
    %c2_37 = arith.constant 2 : index
    %45 = memref.load %arg8[%c1_36, %c2_37] : memref<5x5xf32, #tpu.memory_space<smem>>
    %46 = vector.broadcast %45 : f32 to vector<8x8xf32>
    %47 = arith.mulf %44, %46 : vector<8x8xf32>
    %48 = arith.addf %43, %47 : vector<8x8xf32>
    %c1_38 = arith.constant 1 : index
    %c3_39 = arith.constant 3 : index
    %49 = vector.load %arg18[%c1_38, %c3_39] : memref<12x12xf32, #tpu.memory_space<vmem>>, vector<8x8xf32>
    %c1_40 = arith.constant 1 : index
    %c3_41 = arith.constant 3 : index
    %50 = memref.load %arg8[%c1_40, %c3_41] : memref<5x5xf32, #tpu.memory_space<smem>>
    %51 = vector.broadcast %50 : f32 to vector<8x8xf32>
    %52 = arith.mulf %49, %51 : vector<8x8xf32>
    %53 = arith.addf %48, %52 : vector<8x8xf32>
    %c1_42 = arith.constant 1 : index
    %c4_43 = arith.constant 4 : index
    %54 = vector.load %arg18[%c1_42, %c4_43] : memref<12x12xf32, #tpu.memory_space<vmem>>, vector<8x8xf32>
    %c1_44 = arith.constant 1 : index
    %c4_45 = arith.constant 4 : index
    %55 = memref.load %arg8[%c1_44, %c4_45] : memref<5x5xf32, #tpu.memory_space<smem>>
    %56 = vector.broadcast %55 : f32 to vector<8x8xf32>
    %57 = arith.mulf %54, %56 : vector<8x8xf32>
    %58 = arith.addf %53, %57 : vector<8x8xf32>
    %c2_46 = arith.constant 2 : index
    %c0_47 = arith.constant 0 : index
    %59 = vector.load %arg18[%c2_46, %c0_47] : memref<12x12xf32, #tpu.memory_space<vmem>>, vector<8x8xf32>
    %c2_48 = arith.constant 2 : index
    %c0_49 = arith.constant 0 : index
    %60 = memref.load %arg8[%c2_48, %c0_49] : memref<5x5xf32, #tpu.memory_space<smem>>
    %61 = vector.broadcast %60 : f32 to vector<8x8xf32>
    %62 = arith.mulf %59, %61 : vector<8x8xf32>
    %63 = arith.addf %58, %62 : vector<8x8xf32>
    %c2_50 = arith.constant 2 : index
    %c1_51 = arith.constant 1 : index
    %64 = vector.load %arg18[%c2_50, %c1_51] : memref<12x12xf32, #tpu.memory_space<vmem>>, vector<8x8xf32>
    %c2_52 = arith.constant 2 : index
    %c1_53 = arith.constant 1 : index
    %65 = memref.load %arg8[%c2_52, %c1_53] : memref<5x5xf32, #tpu.memory_space<smem>>
    %66 = vector.broadcast %65 : f32 to vector<8x8xf32>
    %67 = arith.mulf %64, %66 : vector<8x8xf32>
    %68 = arith.addf %63, %67 : vector<8x8xf32>
    %c2_54 = arith.constant 2 : index
    %c2_55 = arith.constant 2 : index
    %69 = vector.load %arg18[%c2_54, %c2_55] : memref<12x12xf32, #tpu.memory_space<vmem>>, vector<8x8xf32>
    %c2_56 = arith.constant 2 : index
    %c2_57 = arith.constant 2 : index
    %70 = memref.load %arg8[%c2_56, %c2_57] : memref<5x5xf32, #tpu.memory_space<smem>>
    %71 = vector.broadcast %70 : f32 to vector<8x8xf32>
    %72 = arith.mulf %69, %71 : vector<8x8xf32>
    %73 = arith.addf %68, %72 : vector<8x8xf32>
    %c2_58 = arith.constant 2 : index
    %c3_59 = arith.constant 3 : index
    %74 = vector.load %arg18[%c2_58, %c3_59] : memref<12x12xf32, #tpu.memory_space<vmem>>, vector<8x8xf32>
    %c2_60 = arith.constant 2 : index
    %c3_61 = arith.constant 3 : index
    %75 = memref.load %arg8[%c2_60, %c3_61] : memref<5x5xf32, #tpu.memory_space<smem>>
    %76 = vector.broadcast %75 : f32 to vector<8x8xf32>
    %77 = arith.mulf %74, %76 : vector<8x8xf32>
    %78 = arith.addf %73, %77 : vector<8x8xf32>
    %c2_62 = arith.constant 2 : index
    %c4_63 = arith.constant 4 : index
    %79 = vector.load %arg18[%c2_62, %c4_63] : memref<12x12xf32, #tpu.memory_space<vmem>>, vector<8x8xf32>
    %c2_64 = arith.constant 2 : index
    %c4_65 = arith.constant 4 : index
    %80 = memref.load %arg8[%c2_64, %c4_65] : memref<5x5xf32, #tpu.memory_space<smem>>
    %81 = vector.broadcast %80 : f32 to vector<8x8xf32>
    %82 = arith.mulf %79, %81 : vector<8x8xf32>
    %83 = arith.addf %78, %82 : vector<8x8xf32>
    %c3_66 = arith.constant 3 : index
    %c0_67 = arith.constant 0 : index
    %84 = vector.load %arg18[%c3_66, %c0_67] : memref<12x12xf32, #tpu.memory_space<vmem>>, vector<8x8xf32>
    %c3_68 = arith.constant 3 : index
    %c0_69 = arith.constant 0 : index
    %85 = memref.load %arg8[%c3_68, %c0_69] : memref<5x5xf32, #tpu.memory_space<smem>>
    %86 = vector.broadcast %85 : f32 to vector<8x8xf32>
    %87 = arith.mulf %84, %86 : vector<8x8xf32>
    %88 = arith.addf %83, %87 : vector<8x8xf32>
    %c3_70 = arith.constant 3 : index
    %c1_71 = arith.constant 1 : index
    %89 = vector.load %arg18[%c3_70, %c1_71] : memref<12x12xf32, #tpu.memory_space<vmem>>, vector<8x8xf32>
    %c3_72 = arith.constant 3 : index
    %c1_73 = arith.constant 1 : index
    %90 = memref.load %arg8[%c3_72, %c1_73] : memref<5x5xf32, #tpu.memory_space<smem>>
    %91 = vector.broadcast %90 : f32 to vector<8x8xf32>
    %92 = arith.mulf %89, %91 : vector<8x8xf32>
    %93 = arith.addf %88, %92 : vector<8x8xf32>
    %c3_74 = arith.constant 3 : index
    %c2_75 = arith.constant 2 : index
    %94 = vector.load %arg18[%c3_74, %c2_75] : memref<12x12xf32, #tpu.memory_space<vmem>>, vector<8x8xf32>
    %c3_76 = arith.constant 3 : index
    %c2_77 = arith.constant 2 : index
    %95 = memref.load %arg8[%c3_76, %c2_77] : memref<5x5xf32, #tpu.memory_space<smem>>
    %96 = vector.broadcast %95 : f32 to vector<8x8xf32>
    %97 = arith.mulf %94, %96 : vector<8x8xf32>
    %98 = arith.addf %93, %97 : vector<8x8xf32>
    %c3_78 = arith.constant 3 : index
    %c3_79 = arith.constant 3 : index
    %99 = vector.load %arg18[%c3_78, %c3_79] : memref<12x12xf32, #tpu.memory_space<vmem>>, vector<8x8xf32>
    %c3_80 = arith.constant 3 : index
    %c3_81 = arith.constant 3 : index
    %100 = memref.load %arg8[%c3_80, %c3_81] : memref<5x5xf32, #tpu.memory_space<smem>>
    %101 = vector.broadcast %100 : f32 to vector<8x8xf32>
    %102 = arith.mulf %99, %101 : vector<8x8xf32>
    %103 = arith.addf %98, %102 : vector<8x8xf32>
    %c3_82 = arith.constant 3 : index
    %c4_83 = arith.constant 4 : index
    %104 = vector.load %arg18[%c3_82, %c4_83] : memref<12x12xf32, #tpu.memory_space<vmem>>, vector<8x8xf32>
    %c3_84 = arith.constant 3 : index
    %c4_85 = arith.constant 4 : index
    %105 = memref.load %arg8[%c3_84, %c4_85] : memref<5x5xf32, #tpu.memory_space<smem>>
    %106 = vector.broadcast %105 : f32 to vector<8x8xf32>
    %107 = arith.mulf %104, %106 : vector<8x8xf32>
    %108 = arith.addf %103, %107 : vector<8x8xf32>
    %c4_86 = arith.constant 4 : index
    %c0_87 = arith.constant 0 : index
    %109 = vector.load %arg18[%c4_86, %c0_87] : memref<12x12xf32, #tpu.memory_space<vmem>>, vector<8x8xf32>
    %c4_88 = arith.constant 4 : index
    %c0_89 = arith.constant 0 : index
    %110 = memref.load %arg8[%c4_88, %c0_89] : memref<5x5xf32, #tpu.memory_space<smem>>
    %111 = vector.broadcast %110 : f32 to vector<8x8xf32>
    %112 = arith.mulf %109, %111 : vector<8x8xf32>
    %113 = arith.addf %108, %112 : vector<8x8xf32>
    %c4_90 = arith.constant 4 : index
    %c1_91 = arith.constant 1 : index
    %114 = vector.load %arg18[%c4_90, %c1_91] : memref<12x12xf32, #tpu.memory_space<vmem>>, vector<8x8xf32>
    %c4_92 = arith.constant 4 : index
    %c1_93 = arith.constant 1 : index
    %115 = memref.load %arg8[%c4_92, %c1_93] : memref<5x5xf32, #tpu.memory_space<smem>>
    %116 = vector.broadcast %115 : f32 to vector<8x8xf32>
    %117 = arith.mulf %114, %116 : vector<8x8xf32>
    %118 = arith.addf %113, %117 : vector<8x8xf32>
    %c4_94 = arith.constant 4 : index
    %c2_95 = arith.constant 2 : index
    %119 = vector.load %arg18[%c4_94, %c2_95] : memref<12x12xf32, #tpu.memory_space<vmem>>, vector<8x8xf32>
    %c4_96 = arith.constant 4 : index
    %c2_97 = arith.constant 2 : index
    %120 = memref.load %arg8[%c4_96, %c2_97] : memref<5x5xf32, #tpu.memory_space<smem>>
    %121 = vector.broadcast %120 : f32 to vector<8x8xf32>
    %122 = arith.mulf %119, %121 : vector<8x8xf32>
    %123 = arith.addf %118, %122 : vector<8x8xf32>
    %c4_98 = arith.constant 4 : index
    %c3_99 = arith.constant 3 : index
    %124 = vector.load %arg18[%c4_98, %c3_99] : memref<12x12xf32, #tpu.memory_space<vmem>>, vector<8x8xf32>
    %c4_100 = arith.constant 4 : index
    %c3_101 = arith.constant 3 : index
    %125 = memref.load %arg8[%c4_100, %c3_101] : memref<5x5xf32, #tpu.memory_space<smem>>
    %126 = vector.broadcast %125 : f32 to vector<8x8xf32>
    %127 = arith.mulf %124, %126 : vector<8x8xf32>
    %128 = arith.addf %123, %127 : vector<8x8xf32>
    %c4_102 = arith.constant 4 : index
    %c4_103 = arith.constant 4 : index
    %129 = vector.load %arg18[%c4_102, %c4_103] : memref<12x12xf32, #tpu.memory_space<vmem>>, vector<8x8xf32>
    %c4_104 = arith.constant 4 : index
    %c4_105 = arith.constant 4 : index
    %130 = memref.load %arg8[%c4_104, %c4_105] : memref<5x5xf32, #tpu.memory_space<smem>>
    %131 = vector.broadcast %130 : f32 to vector<8x8xf32>
    %132 = arith.mulf %129, %131 : vector<8x8xf32>
    %133 = arith.addf %128, %132 : vector<8x8xf32>
    %c0_106 = arith.constant 0 : index
    %134 = memref.load %arg9[%c0_106] : memref<1xf32, #tpu.memory_space<smem>>
    %135 = vector.broadcast %134 : f32 to vector<8x8xf32>
    %136 = arith.addf %133, %135 : vector<8x8xf32>
    %cst_107 = arith.constant 0.000000e+00 : f32
    %137 = vector.broadcast %cst_107 : f32 to vector<8x8xf32>
    %138 = arith.maximumf %136, %137 : vector<8x8xf32>
    %cst_108 = arith.constant 0.000000e+00 : f32
    %139 = vector.broadcast %cst_108 : f32 to vector<10x10xf32>
    %c0_109 = arith.constant 0 : index
    %c0_110 = arith.constant 0 : index
    %140 = vector.load %arg19[%c0_109, %c0_110] : memref<10x10xf32, #tpu.memory_space<vmem>>, vector<10x10xf32>
    tpu.vector_store %arg19[%c0_109, %c0_110], %139 {strides = array<i32>} : memref<10x10xf32, #tpu.memory_space<vmem>>, vector<10x10xf32>,
    %c1_111 = arith.constant 1 : index
    %c1_112 = arith.constant 1 : index
    %141 = vector.load %arg19[%c1_111, %c1_112] : memref<10x10xf32, #tpu.memory_space<vmem>>, vector<8x8xf32>
    tpu.vector_store %arg19[%c1_111, %c1_112], %138 {strides = array<i32>} : memref<10x10xf32, #tpu.memory_space<vmem>>, vector<8x8xf32>,
    %cst_113 = arith.constant 0.000000e+00 : f32
    %142 = vector.broadcast %cst_113 : f32 to vector<8x8xf32>
    %c0_114 = arith.constant 0 : index
    %c0_115 = arith.constant 0 : index
    %143 = vector.load %arg19[%c0_114, %c0_115] : memref<10x10xf32, #tpu.memory_space<vmem>>, vector<8x8xf32>
    %c0_116 = arith.constant 0 : index
    %c0_117 = arith.constant 0 : index
    %144 = memref.load %arg10[%c0_116, %c0_117] : memref<3x3xf32, #tpu.memory_space<smem>>
    %145 = vector.broadcast %144 : f32 to vector<8x8xf32>
    %146 = arith.mulf %143, %145 : vector<8x8xf32>
    %147 = arith.addf %142, %146 : vector<8x8xf32>
    %c0_118 = arith.constant 0 : index
    %c1_119 = arith.constant 1 : index
    %148 = vector.load %arg19[%c0_118, %c1_119] : memref<10x10xf32, #tpu.memory_space<vmem>>, vector<8x8xf32>
    %c0_120 = arith.constant 0 : index
    %c1_121 = arith.constant 1 : index
    %149 = memref.load %arg10[%c0_120, %c1_121] : memref<3x3xf32, #tpu.memory_space<smem>>
    %150 = vector.broadcast %149 : f32 to vector<8x8xf32>
    %151 = arith.mulf %148, %150 : vector<8x8xf32>
    %152 = arith.addf %147, %151 : vector<8x8xf32>
    %c0_122 = arith.constant 0 : index
    %c2_123 = arith.constant 2 : index
    %153 = vector.load %arg19[%c0_122, %c2_123] : memref<10x10xf32, #tpu.memory_space<vmem>>, vector<8x8xf32>
    %c0_124 = arith.constant 0 : index
    %c2_125 = arith.constant 2 : index
    %154 = memref.load %arg10[%c0_124, %c2_125] : memref<3x3xf32, #tpu.memory_space<smem>>
    %155 = vector.broadcast %154 : f32 to vector<8x8xf32>
    %156 = arith.mulf %153, %155 : vector<8x8xf32>
    %157 = arith.addf %152, %156 : vector<8x8xf32>
    %c1_126 = arith.constant 1 : index
    %c0_127 = arith.constant 0 : index
    %158 = vector.load %arg19[%c1_126, %c0_127] : memref<10x10xf32, #tpu.memory_space<vmem>>, vector<8x8xf32>
    %c1_128 = arith.constant 1 : index
    %c0_129 = arith.constant 0 : index
    %159 = memref.load %arg10[%c1_128, %c0_129] : memref<3x3xf32, #tpu.memory_space<smem>>
    %160 = vector.broadcast %159 : f32 to vector<8x8xf32>
    %161 = arith.mulf %158, %160 : vector<8x8xf32>
    %162 = arith.addf %157, %161 : vector<8x8xf32>
    %c1_130 = arith.constant 1 : index
    %c1_131 = arith.constant 1 : index
    %163 = vector.load %arg19[%c1_130, %c1_131] : memref<10x10xf32, #tpu.memory_space<vmem>>, vector<8x8xf32>
    %c1_132 = arith.constant 1 : index
    %c1_133 = arith.constant 1 : index
    %164 = memref.load %arg10[%c1_132, %c1_133] : memref<3x3xf32, #tpu.memory_space<smem>>
    %165 = vector.broadcast %164 : f32 to vector<8x8xf32>
    %166 = arith.mulf %163, %165 : vector<8x8xf32>
    %167 = arith.addf %162, %166 : vector<8x8xf32>
    %c1_134 = arith.constant 1 : index
    %c2_135 = arith.constant 2 : index
    %168 = vector.load %arg19[%c1_134, %c2_135] : memref<10x10xf32, #tpu.memory_space<vmem>>, vector<8x8xf32>
    %c1_136 = arith.constant 1 : index
    %c2_137 = arith.constant 2 : index
    %169 = memref.load %arg10[%c1_136, %c2_137] : memref<3x3xf32, #tpu.memory_space<smem>>
    %170 = vector.broadcast %169 : f32 to vector<8x8xf32>
    %171 = arith.mulf %168, %170 : vector<8x8xf32>
    %172 = arith.addf %167, %171 : vector<8x8xf32>
    %c2_138 = arith.constant 2 : index
    %c0_139 = arith.constant 0 : index
    %173 = vector.load %arg19[%c2_138, %c0_139] : memref<10x10xf32, #tpu.memory_space<vmem>>, vector<8x8xf32>
    %c2_140 = arith.constant 2 : index
    %c0_141 = arith.constant 0 : index
    %174 = memref.load %arg10[%c2_140, %c0_141] : memref<3x3xf32, #tpu.memory_space<smem>>
    %175 = vector.broadcast %174 : f32 to vector<8x8xf32>
    %176 = arith.mulf %173, %175 : vector<8x8xf32>
    %177 = arith.addf %172, %176 : vector<8x8xf32>
    %c2_142 = arith.constant 2 : index
    %c1_143 = arith.constant 1 : index
    %178 = vector.load %arg19[%c2_142, %c1_143] : memref<10x10xf32, #tpu.memory_space<vmem>>, vector<8x8xf32>
    %c2_144 = arith.constant 2 : index
    %c1_145 = arith.constant 1 : index
    %179 = memref.load %arg10[%c2_144, %c1_145] : memref<3x3xf32, #tpu.memory_space<smem>>
    %180 = vector.broadcast %179 : f32 to vector<8x8xf32>
    %181 = arith.mulf %178, %180 : vector<8x8xf32>
    %182 = arith.addf %177, %181 : vector<8x8xf32>
    %c2_146 = arith.constant 2 : index
    %c2_147 = arith.constant 2 : index
    %183 = vector.load %arg19[%c2_146, %c2_147] : memref<10x10xf32, #tpu.memory_space<vmem>>, vector<8x8xf32>
    %c2_148 = arith.constant 2 : index
    %c2_149 = arith.constant 2 : index
    %184 = memref.load %arg10[%c2_148, %c2_149] : memref<3x3xf32, #tpu.memory_space<smem>>
    %185 = vector.broadcast %184 : f32 to vector<8x8xf32>
    %186 = arith.mulf %183, %185 : vector<8x8xf32>
    %187 = arith.addf %182, %186 : vector<8x8xf32>
    %c0_150 = arith.constant 0 : index
    %188 = memref.load %arg11[%c0_150] : memref<1xf32, #tpu.memory_space<smem>>
    %189 = vector.broadcast %188 : f32 to vector<8x8xf32>
    %190 = arith.addf %187, %189 : vector<8x8xf32>
    %cst_151 = arith.constant 0.000000e+00 : f32
    %191 = vector.broadcast %cst_151 : f32 to vector<8x8xf32>
    %192 = arith.maximumf %190, %191 : vector<8x8xf32>
    %c0_152 = arith.constant 0 : index
    %c0_153 = arith.constant 0 : index
    %193 = vector.load %arg4[%c0_152, %c0_153] : memref<8x8xf32, #tpu.memory_space<vmem>>, vector<8x8xf32>
    %cst_154 = arith.constant dense<0.000000e+00> : vector<8x8xf32>
    %194 = tpu.matmul %193, %192, %cst_154 {dimension_numbers = #tpu.dot_dimension_numbers<[1], [0], [0], [1], [0, 0, 1, 1], [], []>} : vector<8x8xf32>, vector<8x8xf32>, vector<8x8xf32> -> vector<8x8xf32>
    %c0_155 = arith.constant 0 : index
    %c0_156 = arith.constant 0 : index
    %195 = vector.load %arg5[%c0_155, %c0_156] : memref<8x8xf32, #tpu.memory_space<vmem>>, vector<8x8xf32>
    %cst_157 = arith.constant dense<0.000000e+00> : vector<8x8xf32>
    %196 = tpu.matmul %194, %195, %cst_157 {dimension_numbers = #tpu.dot_dimension_numbers<[1], [0], [0], [1], [0, 0, 1, 1], [], []>} : vector<8x8xf32>, vector<8x8xf32>, vector<8x8xf32> -> vector<8x8xf32>
    %cst_158 = arith.constant 0.000000e+00 : f32
    %197 = vector.broadcast %cst_158 : f32 to vector<10x10xf32>
    %c0_159 = arith.constant 0 : index
    %c0_160 = arith.constant 0 : index
    %198 = vector.load %arg19[%c0_159, %c0_160] : memref<10x10xf32, #tpu.memory_space<vmem>>, vector<10x10xf32>
    tpu.vector_store %arg19[%c0_159, %c0_160], %197 {strides = array<i32>} : memref<10x10xf32, #tpu.memory_space<vmem>>, vector<10x10xf32>,
    %c1_161 = arith.constant 1 : index
    %c1_162 = arith.constant 1 : index
    %199 = vector.load %arg19[%c1_161, %c1_162] : memref<10x10xf32, #tpu.memory_space<vmem>>, vector<8x8xf32>
    tpu.vector_store %arg19[%c1_161, %c1_162], %196 {strides = array<i32>} : memref<10x10xf32, #tpu.memory_space<vmem>>, vector<8x8xf32>,
    %cst_163 = arith.constant 0.000000e+00 : f32
    %200 = vector.broadcast %cst_163 : f32 to vector<8x8xf32>
    %c0_164 = arith.constant 0 : index
    %c0_165 = arith.constant 0 : index
    %201 = vector.load %arg19[%c0_164, %c0_165] : memref<10x10xf32, #tpu.memory_space<vmem>>, vector<8x8xf32>
    %c0_166 = arith.constant 0 : index
    %c0_167 = arith.constant 0 : index
    %202 = memref.load %arg12[%c0_166, %c0_167] : memref<3x3xf32, #tpu.memory_space<smem>>
    %203 = vector.broadcast %202 : f32 to vector<8x8xf32>
    %204 = arith.mulf %201, %203 : vector<8x8xf32>
    %205 = arith.addf %200, %204 : vector<8x8xf32>
    %c0_168 = arith.constant 0 : index
    %c1_169 = arith.constant 1 : index
    %206 = vector.load %arg19[%c0_168, %c1_169] : memref<10x10xf32, #tpu.memory_space<vmem>>, vector<8x8xf32>
    %c0_170 = arith.constant 0 : index
    %c1_171 = arith.constant 1 : index
    %207 = memref.load %arg12[%c0_170, %c1_171] : memref<3x3xf32, #tpu.memory_space<smem>>
    %208 = vector.broadcast %207 : f32 to vector<8x8xf32>
    %209 = arith.mulf %206, %208 : vector<8x8xf32>
    %210 = arith.addf %205, %209 : vector<8x8xf32>
    %c0_172 = arith.constant 0 : index
    %c2_173 = arith.constant 2 : index
    %211 = vector.load %arg19[%c0_172, %c2_173] : memref<10x10xf32, #tpu.memory_space<vmem>>, vector<8x8xf32>
    %c0_174 = arith.constant 0 : index
    %c2_175 = arith.constant 2 : index
    %212 = memref.load %arg12[%c0_174, %c2_175] : memref<3x3xf32, #tpu.memory_space<smem>>
    %213 = vector.broadcast %212 : f32 to vector<8x8xf32>
    %214 = arith.mulf %211, %213 : vector<8x8xf32>
    %215 = arith.addf %210, %214 : vector<8x8xf32>
    %c1_176 = arith.constant 1 : index
    %c0_177 = arith.constant 0 : index
    %216 = vector.load %arg19[%c1_176, %c0_177] : memref<10x10xf32, #tpu.memory_space<vmem>>, vector<8x8xf32>
    %c1_178 = arith.constant 1 : index
    %c0_179 = arith.constant 0 : index
    %217 = memref.load %arg12[%c1_178, %c0_179] : memref<3x3xf32, #tpu.memory_space<smem>>
    %218 = vector.broadcast %217 : f32 to vector<8x8xf32>
    %219 = arith.mulf %216, %218 : vector<8x8xf32>
    %220 = arith.addf %215, %219 : vector<8x8xf32>
    %c1_180 = arith.constant 1 : index
    %c1_181 = arith.constant 1 : index
    %221 = vector.load %arg19[%c1_180, %c1_181] : memref<10x10xf32, #tpu.memory_space<vmem>>, vector<8x8xf32>
    %c1_182 = arith.constant 1 : index
    %c1_183 = arith.constant 1 : index
    %222 = memref.load %arg12[%c1_182, %c1_183] : memref<3x3xf32, #tpu.memory_space<smem>>
    %223 = vector.broadcast %222 : f32 to vector<8x8xf32>
    %224 = arith.mulf %221, %223 : vector<8x8xf32>
    %225 = arith.addf %220, %224 : vector<8x8xf32>
    %c1_184 = arith.constant 1 : index
    %c2_185 = arith.constant 2 : index
    %226 = vector.load %arg19[%c1_184, %c2_185] : memref<10x10xf32, #tpu.memory_space<vmem>>, vector<8x8xf32>
    %c1_186 = arith.constant 1 : index
    %c2_187 = arith.constant 2 : index
    %227 = memref.load %arg12[%c1_186, %c2_187] : memref<3x3xf32, #tpu.memory_space<smem>>
    %228 = vector.broadcast %227 : f32 to vector<8x8xf32>
    %229 = arith.mulf %226, %228 : vector<8x8xf32>
    %230 = arith.addf %225, %229 : vector<8x8xf32>
    %c2_188 = arith.constant 2 : index
    %c0_189 = arith.constant 0 : index
    %231 = vector.load %arg19[%c2_188, %c0_189] : memref<10x10xf32, #tpu.memory_space<vmem>>, vector<8x8xf32>
    %c2_190 = arith.constant 2 : index
    %c0_191 = arith.constant 0 : index
    %232 = memref.load %arg12[%c2_190, %c0_191] : memref<3x3xf32, #tpu.memory_space<smem>>
    %233 = vector.broadcast %232 : f32 to vector<8x8xf32>
    %234 = arith.mulf %231, %233 : vector<8x8xf32>
    %235 = arith.addf %230, %234 : vector<8x8xf32>
    %c2_192 = arith.constant 2 : index
    %c1_193 = arith.constant 1 : index
    %236 = vector.load %arg19[%c2_192, %c1_193] : memref<10x10xf32, #tpu.memory_space<vmem>>, vector<8x8xf32>
    %c2_194 = arith.constant 2 : index
    %c1_195 = arith.constant 1 : index
    %237 = memref.load %arg12[%c2_194, %c1_195] : memref<3x3xf32, #tpu.memory_space<smem>>
    %238 = vector.broadcast %237 : f32 to vector<8x8xf32>
    %239 = arith.mulf %236, %238 : vector<8x8xf32>
    %240 = arith.addf %235, %239 : vector<8x8xf32>
    %c2_196 = arith.constant 2 : index
    %c2_197 = arith.constant 2 : index
    %241 = vector.load %arg19[%c2_196, %c2_197] : memref<10x10xf32, #tpu.memory_space<vmem>>, vector<8x8xf32>
    %c2_198 = arith.constant 2 : index
    %c2_199 = arith.constant 2 : index
    %242 = memref.load %arg12[%c2_198, %c2_199] : memref<3x3xf32, #tpu.memory_space<smem>>
    %243 = vector.broadcast %242 : f32 to vector<8x8xf32>
    %244 = arith.mulf %241, %243 : vector<8x8xf32>
    %245 = arith.addf %240, %244 : vector<8x8xf32>
    %c0_200 = arith.constant 0 : index
    %246 = memref.load %arg13[%c0_200] : memref<1xf32, #tpu.memory_space<smem>>
    %247 = vector.broadcast %246 : f32 to vector<8x8xf32>
    %248 = arith.addf %245, %247 : vector<8x8xf32>
    %c0_201 = arith.constant 0 : index
    %c0_202 = arith.constant 0 : index
    %c0_203 = arith.constant 0 : index
    %249 = vector.load %arg3[%c0_201, %c0_202, %c0_203] : memref<1x16x16xf32, #tpu.memory_space<vmem>>, vector<1x16x16xf32>
    %250 = vector.shape_cast %249 : vector<1x16x16xf32> to vector<16x16xf32>
    %cst_204 = arith.constant 0.000000e+00 : f32
    %251 = vector.broadcast %cst_204 : f32 to vector<18x18xf32>
    %c0_205 = arith.constant 0 : index
    %c0_206 = arith.constant 0 : index
    %252 = vector.load %arg20[%c0_205, %c0_206] : memref<18x18xf32, #tpu.memory_space<vmem>>, vector<18x18xf32>
    tpu.vector_store %arg20[%c0_205, %c0_206], %251 {strides = array<i32>} : memref<18x18xf32, #tpu.memory_space<vmem>>, vector<18x18xf32>,
    %c1_207 = arith.constant 1 : index
    %c1_208 = arith.constant 1 : index
    %253 = vector.load %arg20[%c1_207, %c1_208] : memref<18x18xf32, #tpu.memory_space<vmem>>, vector<16x16xf32>
    tpu.vector_store %arg20[%c1_207, %c1_208], %250 {strides = array<i32>} : memref<18x18xf32, #tpu.memory_space<vmem>>, vector<16x16xf32>,
    %cst_209 = arith.constant 0.000000e+00 : f32
    %254 = vector.broadcast %cst_209 : f32 to vector<16x16xf32>
    %c0_210 = arith.constant 0 : index
    %c0_211 = arith.constant 0 : index
    %255 = vector.load %arg20[%c0_210, %c0_211] : memref<18x18xf32, #tpu.memory_space<vmem>>, vector<16x16xf32>
    %c0_212 = arith.constant 0 : index
    %c0_213 = arith.constant 0 : index
    %256 = memref.load %arg14[%c0_212, %c0_213] : memref<3x3xf32, #tpu.memory_space<smem>>
    %257 = vector.broadcast %256 : f32 to vector<16x16xf32>
    %258 = arith.mulf %255, %257 : vector<16x16xf32>
    %259 = arith.addf %254, %258 : vector<16x16xf32>
    %c0_214 = arith.constant 0 : index
    %c1_215 = arith.constant 1 : index
    %260 = vector.load %arg20[%c0_214, %c1_215] : memref<18x18xf32, #tpu.memory_space<vmem>>, vector<16x16xf32>
    %c0_216 = arith.constant 0 : index
    %c1_217 = arith.constant 1 : index
    %261 = memref.load %arg14[%c0_216, %c1_217] : memref<3x3xf32, #tpu.memory_space<smem>>
    %262 = vector.broadcast %261 : f32 to vector<16x16xf32>
    %263 = arith.mulf %260, %262 : vector<16x16xf32>
    %264 = arith.addf %259, %263 : vector<16x16xf32>
    %c0_218 = arith.constant 0 : index
    %c2_219 = arith.constant 2 : index
    %265 = vector.load %arg20[%c0_218, %c2_219] : memref<18x18xf32, #tpu.memory_space<vmem>>, vector<16x16xf32>
    %c0_220 = arith.constant 0 : index
    %c2_221 = arith.constant 2 : index
    %266 = memref.load %arg14[%c0_220, %c2_221] : memref<3x3xf32, #tpu.memory_space<smem>>
    %267 = vector.broadcast %266 : f32 to vector<16x16xf32>
    %268 = arith.mulf %265, %267 : vector<16x16xf32>
    %269 = arith.addf %264, %268 : vector<16x16xf32>
    %c1_222 = arith.constant 1 : index
    %c0_223 = arith.constant 0 : index
    %270 = vector.load %arg20[%c1_222, %c0_223] : memref<18x18xf32, #tpu.memory_space<vmem>>, vector<16x16xf32>
    %c1_224 = arith.constant 1 : index
    %c0_225 = arith.constant 0 : index
    %271 = memref.load %arg14[%c1_224, %c0_225] : memref<3x3xf32, #tpu.memory_space<smem>>
    %272 = vector.broadcast %271 : f32 to vector<16x16xf32>
    %273 = arith.mulf %270, %272 : vector<16x16xf32>
    %274 = arith.addf %269, %273 : vector<16x16xf32>
    %c1_226 = arith.constant 1 : index
    %c1_227 = arith.constant 1 : index
    %275 = vector.load %arg20[%c1_226, %c1_227] : memref<18x18xf32, #tpu.memory_space<vmem>>, vector<16x16xf32>
    %c1_228 = arith.constant 1 : index
    %c1_229 = arith.constant 1 : index
    %276 = memref.load %arg14[%c1_228, %c1_229] : memref<3x3xf32, #tpu.memory_space<smem>>
    %277 = vector.broadcast %276 : f32 to vector<16x16xf32>
    %278 = arith.mulf %275, %277 : vector<16x16xf32>
    %279 = arith.addf %274, %278 : vector<16x16xf32>
    %c1_230 = arith.constant 1 : index
    %c2_231 = arith.constant 2 : index
    %280 = vector.load %arg20[%c1_230, %c2_231] : memref<18x18xf32, #tpu.memory_space<vmem>>, vector<16x16xf32>
    %c1_232 = arith.constant 1 : index
    %c2_233 = arith.constant 2 : index
    %281 = memref.load %arg14[%c1_232, %c2_233] : memref<3x3xf32, #tpu.memory_space<smem>>
    %282 = vector.broadcast %281 : f32 to vector<16x16xf32>
    %283 = arith.mulf %280, %282 : vector<16x16xf32>
    %284 = arith.addf %279, %283 : vector<16x16xf32>
    %c2_234 = arith.constant 2 : index
    %c0_235 = arith.constant 0 : index
    %285 = vector.load %arg20[%c2_234, %c0_235] : memref<18x18xf32, #tpu.memory_space<vmem>>, vector<16x16xf32>
    %c2_236 = arith.constant 2 : index
    %c0_237 = arith.constant 0 : index
    %286 = memref.load %arg14[%c2_236, %c0_237] : memref<3x3xf32, #tpu.memory_space<smem>>
    %287 = vector.broadcast %286 : f32 to vector<16x16xf32>
    %288 = arith.mulf %285, %287 : vector<16x16xf32>
    %289 = arith.addf %284, %288 : vector<16x16xf32>
    %c2_238 = arith.constant 2 : index
    %c1_239 = arith.constant 1 : index
    %290 = vector.load %arg20[%c2_238, %c1_239] : memref<18x18xf32, #tpu.memory_space<vmem>>, vector<16x16xf32>
    %c2_240 = arith.constant 2 : index
    %c1_241 = arith.constant 1 : index
    %291 = memref.load %arg14[%c2_240, %c1_241] : memref<3x3xf32, #tpu.memory_space<smem>>
    %292 = vector.broadcast %291 : f32 to vector<16x16xf32>
    %293 = arith.mulf %290, %292 : vector<16x16xf32>
    %294 = arith.addf %289, %293 : vector<16x16xf32>
    %c2_242 = arith.constant 2 : index
    %c2_243 = arith.constant 2 : index
    %295 = vector.load %arg20[%c2_242, %c2_243] : memref<18x18xf32, #tpu.memory_space<vmem>>, vector<16x16xf32>
    %c2_244 = arith.constant 2 : index
    %c2_245 = arith.constant 2 : index
    %296 = memref.load %arg14[%c2_244, %c2_245] : memref<3x3xf32, #tpu.memory_space<smem>>
    %297 = vector.broadcast %296 : f32 to vector<16x16xf32>
    %298 = arith.mulf %295, %297 : vector<16x16xf32>
    %299 = arith.addf %294, %298 : vector<16x16xf32>
    %c0_246 = arith.constant 0 : index
    %300 = memref.load %arg15[%c0_246] : memref<1xf32, #tpu.memory_space<smem>>
    %301 = vector.broadcast %300 : f32 to vector<16x16xf32>
    %302 = arith.addf %299, %301 : vector<16x16xf32>
    %c0_247 = arith.constant 0 : index
    %c0_248 = arith.constant 0 : index
    %303 = vector.load %arg6[%c0_247, %c0_248] : memref<8x16xf32, #tpu.memory_space<vmem>>, vector<8x16xf32>
    %cst_249 = arith.constant dense<0.000000e+00> : vector<8x16xf32>
    %304 = tpu.matmul %303, %302, %cst_249 {dimension_numbers = #tpu.dot_dimension_numbers<[1], [0], [0], [1], [0, 0, 1, 1], [], []>} : vector<8x16xf32>, vector<16x16xf32>, vector<8x16xf32> -> vector<8x16xf32>
    %c0_250 = arith.constant 0 : index
    %c0_251 = arith.constant 0 : index
    %305 = vector.load %arg7[%c0_250, %c0_251] : memref<16x8xf32, #tpu.memory_space<vmem>>, vector<16x8xf32>
    %cst_252 = arith.constant dense<0.000000e+00> : vector<8x8xf32>
    %306 = tpu.matmul %304, %305, %cst_252 {dimension_numbers = #tpu.dot_dimension_numbers<[1], [0], [0], [1], [0, 0, 1, 1], [], []>} : vector<8x16xf32>, vector<16x8xf32>, vector<8x8xf32> -> vector<8x8xf32>
    %307 = arith.addf %248, %306 : vector<8x8xf32>
    %c0_253 = arith.constant 0 : index
    %c0_254 = arith.constant 0 : index
    %c0_255 = arith.constant 0 : index
    %308 = vector.load %arg17[%c0_253, %c0_254, %c0_255] : memref<1x8x8xf32, #tpu.memory_space<vmem>>, vector<1x8x8xf32>
    %309 = vector.shape_cast %308 : vector<1x8x8xf32> to vector<8x8xf32>
    %310 = vector.shape_cast %307 : vector<8x8xf32> to vector<1x8x8xf32>
    tpu.vector_store %arg17[%c0_253, %c0_254, %c0_255], %310 {strides = array<i32>} : memref<1x8x8xf32, #tpu.memory_space<vmem>>, vector<1x8x8xf32>,
    %cst_256 = arith.constant 0.000000e+00 : f32
    %311 = vector.broadcast %cst_256 : f32 to vector<8x8xf32>
    %312 = arith.subf %311, %307 : vector<8x8xf32>
    %313 = math.exp %312 : vector<8x8xf32>
    %cst_257 = arith.constant 1.000000e+00 : f32
    %314 = vector.broadcast %cst_257 : f32 to vector<8x8xf32>
    %315 = arith.addf %314, %313 : vector<8x8xf32>
    %cst_258 = arith.constant 1.000000e+00 : f32
    %316 = vector.broadcast %cst_258 : f32 to vector<8x8xf32>
    %317 = arith.divf %316, %315 : vector<8x8xf32>
    %c0_259 = arith.constant 0 : index
    %c0_260 = arith.constant 0 : index
    %c0_261 = arith.constant 0 : index
    %c0_262 = arith.constant 0 : index
    %318 = vector.load %arg1[%c0_259, %c0_260, %c0_261, %c0_262] : memref<1x8x8x8xf32, #tpu.memory_space<vmem>>, vector<1x8x8x8xf32>
    %319 = vector.shape_cast %318 : vector<1x8x8x8xf32> to vector<8x8x8xf32>
    %320 = vector.shape_cast %317 : vector<8x8xf32> to vector<8x8x1xf32>
    %321 = vector.broadcast %320 : vector<8x8x1xf32> to vector<8x8x8xf32>
    %322 = arith.mulf %319, %321 : vector<8x8x8xf32>
    %c0_263 = arith.constant 0 : index
    %c0_264 = arith.constant 0 : index
    %c0_265 = arith.constant 0 : index
    %c0_266 = arith.constant 0 : index
    %323 = vector.load %arg2[%c0_263, %c0_264, %c0_265, %c0_266] : memref<1x8x8x8xf32, #tpu.memory_space<vmem>>, vector<1x8x8x8xf32>
    %324 = vector.shape_cast %323 : vector<1x8x8x8xf32> to vector<8x8x8xf32>
    %325 = arith.addf %322, %324 : vector<8x8x8xf32>
    %c0_267 = arith.constant 0 : index
    %c0_268 = arith.constant 0 : index
    %c0_269 = arith.constant 0 : index
    %c0_270 = arith.constant 0 : index
    %326 = vector.load %arg16[%c0_267, %c0_268, %c0_269, %c0_270] : memref<1x8x8x8xf32, #tpu.memory_space<vmem>>, vector<1x8x8x8xf32>
    %327 = vector.shape_cast %326 : vector<1x8x8x8xf32> to vector<8x8x8xf32>
    %328 = vector.shape_cast %325 : vector<8x8x8xf32> to vector<1x8x8x8xf32>
    tpu.vector_store %arg16[%c0_267, %c0_268, %c0_269, %c0_270], %328 {strides = array<i32>} : memref<1x8x8x8xf32, #tpu.memory_space<vmem>>, vector<1x8x8x8xf32>,
    return
  }
  func.func @transform_0(%arg0: i32) -> (i32, i32, i32, i32) {
    %c0_i32 = arith.constant 0 : i32
    %c0_i32_0 = arith.constant 0 : i32
    %c0_i32_1 = arith.constant 0 : i32
    %c0_i32_2 = arith.constant 0 : i32
    return %arg0, %c0_i32, %c0_i32_0, %c0_i32_1 : i32, i32, i32, i32
  }
  func.func @transform_1(%arg0: i32) -> (i32, i32, i32, i32) {
    %c0_i32 = arith.constant 0 : i32
    %c0_i32_0 = arith.constant 0 : i32
    %c0_i32_1 = arith.constant 0 : i32
    %c0_i32_2 = arith.constant 0 : i32
    return %arg0, %c0_i32, %c0_i32_0, %c0_i32_1 : i32, i32, i32, i32
  }
  func.func @transform_2(%arg0: i32) -> (i32, i32, i32) {
    %c0_i32 = arith.constant 0 : i32
    %c0_i32_0 = arith.constant 0 : i32
    %c0_i32_1 = arith.constant 0 : i32
    return %arg0, %c0_i32, %c0_i32_0 : i32, i32, i32
  }
  func.func @transform_3(%arg0: i32) -> (i32, i32) {
    %c0_i32 = arith.constant 0 : i32
    %c0_i32_0 = arith.constant 0 : i32
    %c0_i32_1 = arith.constant 0 : i32
    return %c0_i32, %c0_i32_0 : i32, i32
  }
  func.func @transform_4(%arg0: i32) -> (i32, i32) {
    %c0_i32 = arith.constant 0 : i32
    %c0_i32_0 = arith.constant 0 : i32
    %c0_i32_1 = arith.constant 0 : i32
    return %c0_i32, %c0_i32_0 : i32, i32
  }
  func.func @transform_5(%arg0: i32) -> (i32, i32) {
    %c0_i32 = arith.constant 0 : i32
    %c0_i32_0 = arith.constant 0 : i32
    %c0_i32_1 = arith.constant 0 : i32
    return %c0_i32, %c0_i32_0 : i32, i32
  }
  func.func @transform_6(%arg0: i32) -> (i32, i32) {
    %c0_i32 = arith.constant 0 : i32
    %c0_i32_0 = arith.constant 0 : i32
    %c0_i32_1 = arith.constant 0 : i32
    return %c0_i32, %c0_i32_0 : i32, i32
  }
  func.func @transform_7(%arg0: i32) -> (i32, i32) {
    %c0_i32 = arith.constant 0 : i32
    %c0_i32_0 = arith.constant 0 : i32
    %c0_i32_1 = arith.constant 0 : i32
    return %c0_i32, %c0_i32_0 : i32, i32
  }
  func.func @transform_8(%arg0: i32) -> i32 {
    %c0_i32 = arith.constant 0 : i32
    %c0_i32_0 = arith.constant 0 : i32
    return %c0_i32 : i32
  }
  func.func @transform_9(%arg0: i32) -> (i32, i32) {
    %c0_i32 = arith.constant 0 : i32
    %c0_i32_0 = arith.constant 0 : i32
    %c0_i32_1 = arith.constant 0 : i32
    return %c0_i32, %c0_i32_0 : i32, i32
  }
  func.func @transform_10(%arg0: i32) -> i32 {
    %c0_i32 = arith.constant 0 : i32
    %c0_i32_0 = arith.constant 0 : i32
    return %c0_i32 : i32
  }
  func.func @transform_11(%arg0: i32) -> (i32, i32) {
    %c0_i32 = arith.constant 0 : i32
    %c0_i32_0 = arith.constant 0 : i32
    %c0_i32_1 = arith.constant 0 : i32
    return %c0_i32, %c0_i32_0 : i32, i32
  }
  func.func @transform_12(%arg0: i32) -> i32 {
    %c0_i32 = arith.constant 0 : i32
    %c0_i32_0 = arith.constant 0 : i32
    return %c0_i32 : i32
  }
  func.func @transform_13(%arg0: i32) -> (i32, i32) {
    %c0_i32 = arith.constant 0 : i32
    %c0_i32_0 = arith.constant 0 : i32
    %c0_i32_1 = arith.constant 0 : i32
    return %c0_i32, %c0_i32_0 : i32, i32
  }
  func.func @transform_14(%arg0: i32) -> i32 {
    %c0_i32 = arith.constant 0 : i32
    %c0_i32_0 = arith.constant 0 : i32
    return %c0_i32 : i32
  }
  func.func @transform_15(%arg0: i32) -> (i32, i32, i32, i32) {
    %c0_i32 = arith.constant 0 : i32
    %c0_i32_0 = arith.constant 0 : i32
    %c0_i32_1 = arith.constant 0 : i32
    %c0_i32_2 = arith.constant 0 : i32
    return %arg0, %c0_i32, %c0_i32_0, %c0_i32_1 : i32, i32, i32, i32
  }
  func.func @transform_16(%arg0: i32) -> (i32, i32, i32) {
    %c0_i32 = arith.constant 0 : i32
    %c0_i32_0 = arith.constant 0 : i32
    %c0_i32_1 = arith.constant 0 : i32
    return %arg0, %c0_i32, %c0_i32_0 : i32, i32, i32
  }
}

</mosaic_0001>

<llo_original>
// kernel: preact_bottleneck_forward.8
$region0: #{preact_bottleneck_forward.8}
  #allocation0 [shape = 'u32[]', space=smem, size = 0x4, offset = 0x4, fixed_abs, tag = 'smem constant byte address 0x4 - core index']
  #allocation1 [shape = 'u32[144,128]{1,0:T(1,128)}', space=vmem, size = 0x12000, scoped, tag = 'internal scratch']
  %s0 = inlined_call_operand.vmem [shape: f32[128,2], index: 0, kind: input, shape index: {}]
  %s1 = inlined_call_operand.vmem [shape: f32[1,2], index: 1, kind: input, shape index: {}]
  %s2 = inlined_call_operand.vmem [shape: f32[1,2], index: 2, kind: input, shape index: {}]
  %s3 = inlined_call_operand.vmem [shape: bf16[2,8], index: 3, kind: input, shape index: {}]
  %s4 = inlined_call_operand.vmem [shape: f32[128,8], index: 4, kind: output, shape index: {}]
  %s5 = sld [smem:[#allocation0]]
  $region26: #{preact_bottleneck_forward.8} parent=0
    _
  %s7 = ssub.s32 1, %s5
  %s8 = scalar_select 0, %s7, %s5
  // Predicated region
  $region2: #{preact_bottleneck_forward.8} parent=0 // pred_check
    _
  $region3: #{preact_bottleneck_forward.8} parent=0 // pred_check_branch
    %10 = sbr.rel (0) target = $region5
  $region4: #{preact_bottleneck_forward.8} parent=0 // pred_region
    _
  $region5: #{preact_bottleneck_forward.8} parent=0 // pred_fallthru
    _
  // Predicated region
  $region6: #{preact_bottleneck_forward.8} parent=0 // pred_check
    _
  $region7: #{preact_bottleneck_forward.8} parent=0 // pred_check_branch
    %12 = sbr.rel (0) target = $region9
  $region8: #{preact_bottleneck_forward.8} parent=0 // pred_region
    _
  $region9: #{preact_bottleneck_forward.8} parent=0 // pred_fallthru
    _
  // Predicated region
  $region10: #{preact_bottleneck_forward.8} parent=0 // pred_check
    _
  $region11: #{preact_bottleneck_forward.8} parent=0 // pred_check_branch
    %14 = sbr.rel (0) target = $region13
  $region12: #{preact_bottleneck_forward.8} parent=0 // pred_region
    _
  $region13: #{preact_bottleneck_forward.8} parent=0 // pred_fallthru
    _
  // Predicated region
  $region14: #{preact_bottleneck_forward.8} parent=0 // pred_check
    _
  $region15: #{preact_bottleneck_forward.8} parent=0 // pred_check_branch
    %16 = sbr.rel (0) target = $region17
  $region16: #{preact_bottleneck_forward.8} parent=0 // pred_region
    _
  $region17: #{preact_bottleneck_forward.8} parent=0 // pred_fallthru
    _
  %v18 = vld [vmem:[%s0] sm:$0xff]
  %v19 = vld [vmem:[%s0 + $0x8] sm:$0xff]
  %v20 = vld [vmem:[%s0 + $0x10] sm:$0xff]
  %v21 = vld [vmem:[%s0 + $0x18] sm:$0xff]
  %v22 = vld [vmem:[%s0 + $0x20] sm:$0xff]
  %v23 = vld [vmem:[%s0 + $0x28] sm:$0xff]
  %v24 = vld [vmem:[%s0 + $0x30] sm:$0xff]
  %v25 = vld [vmem:[%s0 + $0x38] sm:$0xff]
  %v26 = vld [vmem:[%s0 + $0x40] sm:$0xff]
  %v27 = vld [vmem:[%s0 + $0x48] sm:$0xff]
  %v28 = vld [vmem:[%s0 + $0x50] sm:$0xff]
  %v29 = vld [vmem:[%s0 + $0x58] sm:$0xff]
  %v30 = vld [vmem:[%s0 + $0x60] sm:$0xff]
  %v31 = vld [vmem:[%s0 + $0x68] sm:$0xff]
  %v32 = vld [vmem:[%s0 + $0x70] sm:$0xff]
  %v33 = vld [vmem:[%s0 + $0x78] sm:$0xff]
  %v34 = vld [vmem:[%s1] sm:$0x1]
  %v36 = vlaneseq
  %v37 = vshrl.u32 %v36, 7
  %v38 = vsub.s32 0, %v37
  %v39 = vrot.slane %v34, %v38
  %v41 = vmul.f32 %v18, %v39
  %v42 = vmul.f32 %v19, %v39
  %v43 = vmul.f32 %v20, %v39
  %v44 = vmul.f32 %v21, %v39
  %v45 = vmul.f32 %v22, %v39
  %v46 = vmul.f32 %v23, %v39
  %v47 = vmul.f32 %v24, %v39
  %v48 = vmul.f32 %v25, %v39
  %v49 = vmul.f32 %v26, %v39
  %v50 = vmul.f32 %v27, %v39
  %v51 = vmul.f32 %v28, %v39
  %v52 = vmul.f32 %v29, %v39
  %v53 = vmul.f32 %v30, %v39
  %v54 = vmul.f32 %v31, %v39
  %v55 = vmul.f32 %v32, %v39
  %v56 = vmul.f32 %v33, %v39
  %v57 = vld [vmem:[%s2] sm:$0x1]
  %v59 = vlaneseq
  %v60 = vshrl.u32 %v59, 7
  %v61 = vsub.s32 0, %v60
  %v62 = vrot.slane %v57, %v61
  %v64 = vadd.f32 %v41, %v62
  %v65 = vadd.f32 %v42, %v62
  %v66 = vadd.f32 %v43, %v62
  %v67 = vadd.f32 %v44, %v62
  %v68 = vadd.f32 %v45, %v62
  %v69 = vadd.f32 %v46, %v62
  %v70 = vadd.f32 %v47, %v62
  %v71 = vadd.f32 %v48, %v62
  %v72 = vadd.f32 %v49, %v62
  %v73 = vadd.f32 %v50, %v62
  %v74 = vadd.f32 %v51, %v62
  %v75 = vadd.f32 %v52, %v62
  %v76 = vadd.f32 %v53, %v62
  %v77 = vadd.f32 %v54, %v62
  %v78 = vadd.f32 %v55, %v62
  %v79 = vadd.f32 %v56, %v62
  %v80 = vmax.f32 %v64, 0.0
  %v81 = vmax.f32 %v65, 0.0
  %v82 = vmax.f32 %v66, 0.0
  %v83 = vmax.f32 %v67, 0.0
  %v84 = vmax.f32 %v68, 0.0
  %v85 = vmax.f32 %v69, 0.0
  %v86 = vmax.f32 %v70, 0.0
  %v87 = vmax.f32 %v71, 0.0
  %v88 = vmax.f32 %v72, 0.0
  %v89 = vmax.f32 %v73, 0.0
  %v90 = vmax.f32 %v74, 0.0
  %v91 = vmax.f32 %v75, 0.0
  %v92 = vmax.f32 %v76, 0.0
  %v93 = vmax.f32 %v77, 0.0
  %v94 = vmax.f32 %v78, 0.0
  %v95 = vmax.f32 %v79, 0.0
  %v96 = vpack.c.bf16 %v81, %v80
  %v97 = vpack.c.bf16 %v83, %v82
  %v98 = vpack.c.bf16 %v85, %v84
  %v99 = vpack.c.bf16 %v87, %v86
  %v100 = vpack.c.bf16 %v89, %v88
  %v101 = vpack.c.bf16 %v91, %v90
  %v102 = vpack.c.bf16 %v93, %v92
  %v103 = vpack.c.bf16 %v95, %v94
  %v104 = vld [vmem:[%s3] sm:$0x1]
  %vm105 = vcmask 15360
  %v107 = vsel %vm105, %v96, 0
  %v110 = vsel %vm105, %v97, 0
  %v113 = vsel %vm105, %v98, 0
  %v116 = vsel %vm105, %v99, 0
  %v119 = vsel %vm105, %v100, 0
  %v122 = vsel %vm105, %v101, 0
  %v125 = vsel %vm105, %v102, 0
  %v128 = vsel %vm105, %v103, 0
  %vm130 = vcmask 1040384
  %v132 = vsel %vm130, %v104, 0
  %134 = vmatprep.subr.bf16.mxu0 0
  %135 = vmatpush1.bf16.msra.mxu0 0
  %136 = vmatprep.subr.bf16.mxu0 0
  %137 = vmatpush1.bf16.msra.mxu0 0
  %138 = vmatprep.subr.bf16.mxu0 0
  %139 = vmatpush1.bf16.msra.mxu0 0
  %140 = vmatprep.subr.bf16.mxu0 0
  %141 = vmatpush1.bf16.msra.mxu0 0
  %142 = vmatprep.subr.bf16.mxu0 0
  %143 = vmatpush1.bf16.msra.mxu0 0
  %144 = vmatprep.subr.bf16.mxu0 0
  %145 = vmatpush1.bf16.msra.mxu0 0
  %146 = vmatprep.subr.bf16.mxu0 0
  %147 = vmatpush1.bf16.msra.mxu0 0
  %148 = vmatprep.subr.bf16.mxu0 0
  %149 = vmatpush1.bf16.msra.mxu0 %v132
  %150 = vmatprep.subr.bf16.mxu0 0
  %151 = vmatpush2.bf16.msra.mxu0 0
  %152 = vmatprep.subr.bf16.mxu0 0
  %153 = vmatpush2.bf16.msra.mxu0 0
  %154 = vmatprep.subr.bf16.mxu0 0
  %155 = vmatpush2.bf16.msra.mxu0 0
  %156 = vmatprep.subr.bf16.mxu0 0
  %157 = vmatpush2.bf16.msra.mxu0 0
  %158 = vmatprep.subr.bf16.mxu0 0
  %159 = vmatpush2.bf16.msra.mxu0 0
  %160 = vmatprep.subr.bf16.mxu0 0
  %161 = vmatpush2.bf16.msra.mxu0 0
  %162 = vmatprep.subr.bf16.mxu0 0
  %163 = vmatpush2.bf16.msra.mxu0 0
  %164 = vmatprep.subr.bf16.mxu0 0
  %165 = vmatpush2.bf16.msra.mxu0 0
  %166 = vmatprep.mubr.bf16.mxu0 0
  %167 = vmatmul.mubr.bf16.gmra.mxu0 %v107
  %v168 = vpop.f32.mrf.mxu0
  %v169 = vadd.f32 0.0, %v168
  %v170 = vpop.f32.mrf.mxu0
  %v171 = vpop.f32.mrf.mxu0
  %v172 = vadd.f32 0.0, %v171
  %v173 = vpop.f32.mrf.mxu0
  %174 = vmatprep.mubr.bf16.mxu0 0
  %175 = vmatmul.mubr.bf16.gmra.mxu0 %v110
  %v176 = vpop.f32.mrf.mxu0
  %v177 = vadd.f32 0.0, %v176
  %v178 = vpop.f32.mrf.mxu0
  %v179 = vpop.f32.mrf.mxu0
  %v180 = vadd.f32 0.0, %v179
  %v181 = vpop.f32.mrf.mxu0
  %182 = vmatprep.mubr.bf16.mxu0 0
  %183 = vmatmul.mubr.bf16.gmra.mxu0 %v113
  %v184 = vpop.f32.mrf.mxu0
  %v185 = vadd.f32 0.0, %v184
  %v186 = vpop.f32.mrf.mxu0
  %v187 = vpop.f32.mrf.mxu0
  %v188 = vadd.f32 0.0, %v187
  %v189 = vpop.f32.mrf.mxu0
  %190 = vmatprep.mubr.bf16.mxu0 0
  %191 = vmatmul.mubr.bf16.gmra.mxu0 %v116
  %v192 = vpop.f32.mrf.mxu0
  %v193 = vadd.f32 0.0, %v192
  %v194 = vpop.f32.mrf.mxu0
  %v195 = vpop.f32.mrf.mxu0
  %v196 = vadd.f32 0.0, %v195
  %v197 = vpop.f32.mrf.mxu0
  %198 = vmatprep.mubr.bf16.mxu0 0
  %199 = vmatmul.mubr.bf16.gmra.mxu0 %v119
  %v200 = vpop.f32.mrf.mxu0
  %v201 = vadd.f32 0.0, %v200
  %v202 = vpop.f32.mrf.mxu0
  %v203 = vpop.f32.mrf.mxu0
  %v204 = vadd.f32 0.0, %v203
  %v205 = vpop.f32.mrf.mxu0
  %206 = vmatprep.mubr.bf16.mxu0 0
  %207 = vmatmul.mubr.bf16.gmra.mxu0 %v122
  %v208 = vpop.f32.mrf.mxu0
  %v209 = vadd.f32 0.0, %v208
  %v210 = vpop.f32.mrf.mxu0
  %v211 = vpop.f32.mrf.mxu0
  %v212 = vadd.f32 0.0, %v211
  %v213 = vpop.f32.mrf.mxu0
  %214 = vmatprep.mubr.bf16.mxu0 0
  %215 = vmatmul.mubr.bf16.gmra.mxu0 %v125
  %v216 = vpop.f32.mrf.mxu0
  %v217 = vadd.f32 0.0, %v216
  %v218 = vpop.f32.mrf.mxu0
  %v219 = vpop.f32.mrf.mxu0
  %v220 = vadd.f32 0.0, %v219
  %v221 = vpop.f32.mrf.mxu0
  %222 = vmatprep.mubr.bf16.mxu0 0
  %223 = vmatmul.mubr.bf16.gmra.mxu0 %v128
  %v224 = vpop.f32.mrf.mxu0
  %v225 = vadd.f32 0.0, %v224
  %v226 = vpop.f32.mrf.mxu0
  %v227 = vpop.f32.mrf.mxu0
  %v228 = vadd.f32 0.0, %v227
  %v229 = vpop.f32.mrf.mxu0
  %230 = vdwg.mxu0
  %vm231 = vcmask 64512
  %232 = vst.msk [vmem:[%s4] sm:$0xff] %vm231, %v169
  %233 = vst.msk [vmem:[%s4 + $0x8] sm:$0xff] %vm231, %v172
  %234 = vst.msk [vmem:[%s4 + $0x10] sm:$0xff] %vm231, %v177
  %235 = vst.msk [vmem:[%s4 + $0x18] sm:$0xff] %vm231, %v180
  %236 = vst.msk [vmem:[%s4 + $0x20] sm:$0xff] %vm231, %v185
  %237 = vst.msk [vmem:[%s4 + $0x28] sm:$0xff] %vm231, %v188
  %238 = vst.msk [vmem:[%s4 + $0x30] sm:$0xff] %vm231, %v193
  %239 = vst.msk [vmem:[%s4 + $0x38] sm:$0xff] %vm231, %v196
  %240 = vst.msk [vmem:[%s4 + $0x40] sm:$0xff] %vm231, %v201
  %241 = vst.msk [vmem:[%s4 + $0x48] sm:$0xff] %vm231, %v204
  %242 = vst.msk [vmem:[%s4 + $0x50] sm:$0xff] %vm231, %v209
  %243 = vst.msk [vmem:[%s4 + $0x58] sm:$0xff] %vm231, %v212
  %244 = vst.msk [vmem:[%s4 + $0x60] sm:$0xff] %vm231, %v217
  %245 = vst.msk [vmem:[%s4 + $0x68] sm:$0xff] %vm231, %v220
  %246 = vst.msk [vmem:[%s4 + $0x70] sm:$0xff] %vm231, %v225
  %247 = vst.msk [vmem:[%s4 + $0x78] sm:$0xff] %vm231, %v228
  // Predicated region
  $region18: #{preact_bottleneck_forward.8} parent=0 // pred_check
    _
  $region19: #{preact_bottleneck_forward.8} parent=0 // pred_check_branch
    %249 = sbr.rel (0) target = $region21
  $region20: #{preact_bottleneck_forward.8} parent=0 // pred_region
    _
  $region21: #{preact_bottleneck_forward.8} parent=0 // pred_fallthru
    _
  // Predicated region
  $region22: #{preact_bottleneck_forward.8} parent=0 // pred_check
    _
  $region23: #{preact_bottleneck_forward.8} parent=0 // pred_check_branch
    %251 = sbr.rel (0) target = $region25
  $region24: #{preact_bottleneck_forward.8} parent=0 // pred_region
    _
  $region25: #{preact_bottleneck_forward.8} parent=0 // pred_fallthru
    _

// kernel: preact_bottleneck_forward.5
$region0: #{preact_bottleneck_forward.5}
  #allocation0 [shape = 'u32[]', space=smem, size = 0x4, offset = 0x4, fixed_abs, tag = 'smem constant byte address 0x4 - core index']
  #allocation1 [shape = 'u32[144,128]{1,0:T(1,128)}', space=vmem, size = 0x12000, scoped, tag = 'internal scratch']
  %s0 = inlined_call_operand.vmem [shape: f32[128,4], index: 0, kind: input, shape index: {}]
  %s1 = inlined_call_operand.vmem [shape: f32[1,4], index: 1, kind: input, shape index: {}]
  %s2 = inlined_call_operand.vmem [shape: f32[1,4], index: 2, kind: input, shape index: {}]
  %s3 = inlined_call_operand.vmem [shape: bf16[4,8], index: 3, kind: input, shape index: {}]
  %s4 = inlined_call_operand.vmem [shape: f32[128,8], index: 4, kind: output, shape index: {}]
  %s5 = sld [smem:[#allocation0]]
  $region26: #{preact_bottleneck_forward.5} parent=0
    _
  %s7 = ssub.s32 1, %s5
  %s8 = scalar_select 0, %s7, %s5
  // Predicated region
  $region2: #{preact_bottleneck_forward.5} parent=0 // pred_check
    _
  $region3: #{preact_bottleneck_forward.5} parent=0 // pred_check_branch
    %10 = sbr.rel (0) target = $region5
  $region4: #{preact_bottleneck_forward.5} parent=0 // pred_region
    _
  $region5: #{preact_bottleneck_forward.5} parent=0 // pred_fallthru
    _
  // Predicated region
  $region6: #{preact_bottleneck_forward.5} parent=0 // pred_check
    _
  $region7: #{preact_bottleneck_forward.5} parent=0 // pred_check_branch
    %12 = sbr.rel (0) target = $region9
  $region8: #{preact_bottleneck_forward.5} parent=0 // pred_region
    _
  $region9: #{preact_bottleneck_forward.5} parent=0 // pred_fallthru
    _
  // Predicated region
  $region10: #{preact_bottleneck_forward.5} parent=0 // pred_check
    _
  $region11: #{preact_bottleneck_forward.5} parent=0 // pred_check_branch
    %14 = sbr.rel (0) target = $region13
  $region12: #{preact_bottleneck_forward.5} parent=0 // pred_region
    _
  $region13: #{preact_bottleneck_forward.5} parent=0 // pred_fallthru
    _
  // Predicated region
  $region14: #{preact_bottleneck_forward.5} parent=0 // pred_check
    _
  $region15: #{preact_bottleneck_forward.5} parent=0 // pred_check_branch
    %16 = sbr.rel (0) target = $region17
  $region16: #{preact_bottleneck_forward.5} parent=0 // pred_region
    _
  $region17: #{preact_bottleneck_forward.5} parent=0 // pred_fallthru
    _
  %v18 = vld [vmem:[%s0] sm:$0xff]
  %v19 = vld [vmem:[%s0 + $0x8] sm:$0xff]
  %v20 = vld [vmem:[%s0 + $0x10] sm:$0xff]
  %v21 = vld [vmem:[%s0 + $0x18] sm:$0xff]
  %v22 = vld [vmem:[%s0 + $0x20] sm:$0xff]
  %v23 = vld [vmem:[%s0 + $0x28] sm:$0xff]
  %v24 = vld [vmem:[%s0 + $0x30] sm:$0xff]
  %v25 = vld [vmem:[%s0 + $0x38] sm:$0xff]
  %v26 = vld [vmem:[%s0 + $0x40] sm:$0xff]
  %v27 = vld [vmem:[%s0 + $0x48] sm:$0xff]
  %v28 = vld [vmem:[%s0 + $0x50] sm:$0xff]
  %v29 = vld [vmem:[%s0 + $0x58] sm:$0xff]
  %v30 = vld [vmem:[%s0 + $0x60] sm:$0xff]
  %v31 = vld [vmem:[%s0 + $0x68] sm:$0xff]
  %v32 = vld [vmem:[%s0 + $0x70] sm:$0xff]
  %v33 = vld [vmem:[%s0 + $0x78] sm:$0xff]
  %v34 = vld [vmem:[%s1] sm:$0x1]
  %v36 = vlaneseq
  %v37 = vshrl.u32 %v36, 7
  %v38 = vsub.s32 0, %v37
  %v39 = vrot.slane %v34, %v38
  %v41 = vmul.f32 %v18, %v39
  %v42 = vmul.f32 %v19, %v39
  %v43 = vmul.f32 %v20, %v39
  %v44 = vmul.f32 %v21, %v39
  %v45 = vmul.f32 %v22, %v39
  %v46 = vmul.f32 %v23, %v39
  %v47 = vmul.f32 %v24, %v39
  %v48 = vmul.f32 %v25, %v39
  %v49 = vmul.f32 %v26, %v39
  %v50 = vmul.f32 %v27, %v39
  %v51 = vmul.f32 %v28, %v39
  %v52 = vmul.f32 %v29, %v39
  %v53 = vmul.f32 %v30, %v39
  %v54 = vmul.f32 %v31, %v39
  %v55 = vmul.f32 %v32, %v39
  %v56 = vmul.f32 %v33, %v39
  %v57 = vld [vmem:[%s2] sm:$0x1]
  %v59 = vlaneseq
  %v60 = vshrl.u32 %v59, 7
  %v61 = vsub.s32 0, %v60
  %v62 = vrot.slane %v57, %v61
  %v64 = vadd.f32 %v41, %v62
  %v65 = vadd.f32 %v42, %v62
  %v66 = vadd.f32 %v43, %v62
  %v67 = vadd.f32 %v44, %v62
  %v68 = vadd.f32 %v45, %v62
  %v69 = vadd.f32 %v46, %v62
  %v70 = vadd.f32 %v47, %v62
  %v71 = vadd.f32 %v48, %v62
  %v72 = vadd.f32 %v49, %v62
  %v73 = vadd.f32 %v50, %v62
  %v74 = vadd.f32 %v51, %v62
  %v75 = vadd.f32 %v52, %v62
  %v76 = vadd.f32 %v53, %v62
  %v77 = vadd.f32 %v54, %v62
  %v78 = vadd.f32 %v55, %v62
  %v79 = vadd.f32 %v56, %v62
  %v80 = vmax.f32 %v64, 0.0
  %v81 = vmax.f32 %v65, 0.0
  %v82 = vmax.f32 %v66, 0.0
  %v83 = vmax.f32 %v67, 0.0
  %v84 = vmax.f32 %v68, 0.0
  %v85 = vmax.f32 %v69, 0.0
  %v86 = vmax.f32 %v70, 0.0
  %v87 = vmax.f32 %v71, 0.0
  %v88 = vmax.f32 %v72, 0.0
  %v89 = vmax.f32 %v73, 0.0
  %v90 = vmax.f32 %v74, 0.0
  %v91 = vmax.f32 %v75, 0.0
  %v92 = vmax.f32 %v76, 0.0
  %v93 = vmax.f32 %v77, 0.0
  %v94 = vmax.f32 %v78, 0.0
  %v95 = vmax.f32 %v79, 0.0
  %v96 = vpack.c.bf16 %v81, %v80
  %v97 = vpack.c.bf16 %v83, %v82
  %v98 = vpack.c.bf16 %v85, %v84
  %v99 = vpack.c.bf16 %v87, %v86
  %v100 = vpack.c.bf16 %v89, %v88
  %v101 = vpack.c.bf16 %v91, %v90
  %v102 = vpack.c.bf16 %v93, %v92
  %v103 = vpack.c.bf16 %v95, %v94
  %v104 = vld [vmem:[%s3] sm:$0x3]
  %vm105 = vcmask 31744
  %v107 = vsel %vm105, %v96, 0
  %v110 = vsel %vm105, %v97, 0
  %v113 = vsel %vm105, %v98, 0
  %v116 = vsel %vm105, %v99, 0
  %v119 = vsel %vm105, %v100, 0
  %v122 = vsel %vm105, %v101, 0
  %v125 = vsel %vm105, %v102, 0
  %v128 = vsel %vm105, %v103, 0
  %vm130 = vcmask 1041408
  %v132 = vsel %vm130, %v104, 0
  %134 = vmatprep.subr.bf16.mxu0 0
  %135 = vmatpush1.bf16.msra.mxu0 0
  %136 = vmatprep.subr.bf16.mxu0 0
  %137 = vmatpush1.bf16.msra.mxu0 0
  %138 = vmatprep.subr.bf16.mxu0 0
  %139 = vmatpush1.bf16.msra.mxu0 0
  %140 = vmatprep.subr.bf16.mxu0 0
  %141 = vmatpush1.bf16.msra.mxu0 0
  %142 = vmatprep.subr.bf16.mxu0 0
  %143 = vmatpush1.bf16.msra.mxu0 0
  %144 = vmatprep.subr.bf16.mxu0 0
  %145 = vmatpush1.bf16.msra.mxu0 0
  %146 = vmatprep.subr.bf16.mxu0 0
  %147 = vmatpush1.bf16.msra.mxu0 0
  %148 = vmatprep.subr.bf16.mxu0 0
  %149 = vmatpush1.bf16.msra.mxu0 %v132
  %150 = vmatprep.subr.bf16.mxu0 0
  %151 = vmatpush2.bf16.msra.mxu0 0
  %152 = vmatprep.subr.bf16.mxu0 0
  %153 = vmatpush2.bf16.msra.mxu0 0
  %154 = vmatprep.subr.bf16.mxu0 0
  %155 = vmatpush2.bf16.msra.mxu0 0
  %156 = vmatprep.subr.bf16.mxu0 0
  %157 = vmatpush2.bf16.msra.mxu0 0
  %158 = vmatprep.subr.bf16.mxu0 0
  %159 = vmatpush2.bf16.msra.mxu0 0
  %160 = vmatprep.subr.bf16.mxu0 0
  %161 = vmatpush2.bf16.msra.mxu0 0
  %162 = vmatprep.subr.bf16.mxu0 0
  %163 = vmatpush2.bf16.msra.mxu0 0
  %164 = vmatprep.subr.bf16.mxu0 0
  %165 = vmatpush2.bf16.msra.mxu0 0
  %166 = vmatprep.mubr.bf16.mxu0 0
  %167 = vmatmul.mubr.bf16.gmra.mxu0 %v107
  %v168 = vpop.f32.mrf.mxu0
  %v169 = vadd.f32 0.0, %v168
  %v170 = vpop.f32.mrf.mxu0
  %v171 = vpop.f32.mrf.mxu0
  %v172 = vadd.f32 0.0, %v171
  %v173 = vpop.f32.mrf.mxu0
  %174 = vmatprep.mubr.bf16.mxu0 0
  %175 = vmatmul.mubr.bf16.gmra.mxu0 %v110
  %v176 = vpop.f32.mrf.mxu0
  %v177 = vadd.f32 0.0, %v176
  %v178 = vpop.f32.mrf.mxu0
  %v179 = vpop.f32.mrf.mxu0
  %v180 = vadd.f32 0.0, %v179
  %v181 = vpop.f32.mrf.mxu0
  %182 = vmatprep.mubr.bf16.mxu0 0
  %183 = vmatmul.mubr.bf16.gmra.mxu0 %v113
  %v184 = vpop.f32.mrf.mxu0
  %v185 = vadd.f32 0.0, %v184
  %v186 = vpop.f32.mrf.mxu0
  %v187 = vpop.f32.mrf.mxu0
  %v188 = vadd.f32 0.0, %v187
  %v189 = vpop.f32.mrf.mxu0
  %190 = vmatprep.mubr.bf16.mxu0 0
  %191 = vmatmul.mubr.bf16.gmra.mxu0 %v116
  %v192 = vpop.f32.mrf.mxu0
  %v193 = vadd.f32 0.0, %v192
  %v194 = vpop.f32.mrf.mxu0
  %v195 = vpop.f32.mrf.mxu0
  %v196 = vadd.f32 0.0, %v195
  %v197 = vpop.f32.mrf.mxu0
  %198 = vmatprep.mubr.bf16.mxu0 0
  %199 = vmatmul.mubr.bf16.gmra.mxu0 %v119
  %v200 = vpop.f32.mrf.mxu0
  %v201 = vadd.f32 0.0, %v200
  %v202 = vpop.f32.mrf.mxu0
  %v203 = vpop.f32.mrf.mxu0
  %v204 = vadd.f32 0.0, %v203
  %v205 = vpop.f32.mrf.mxu0
  %206 = vmatprep.mubr.bf16.mxu0 0
  %207 = vmatmul.mubr.bf16.gmra.mxu0 %v122
  %v208 = vpop.f32.mrf.mxu0
  %v209 = vadd.f32 0.0, %v208
  %v210 = vpop.f32.mrf.mxu0
  %v211 = vpop.f32.mrf.mxu0
  %v212 = vadd.f32 0.0, %v211
  %v213 = vpop.f32.mrf.mxu0
  %214 = vmatprep.mubr.bf16.mxu0 0
  %215 = vmatmul.mubr.bf16.gmra.mxu0 %v125
  %v216 = vpop.f32.mrf.mxu0
  %v217 = vadd.f32 0.0, %v216
  %v218 = vpop.f32.mrf.mxu0
  %v219 = vpop.f32.mrf.mxu0
  %v220 = vadd.f32 0.0, %v219
  %v221 = vpop.f32.mrf.mxu0
  %222 = vmatprep.mubr.bf16.mxu0 0
  %223 = vmatmul.mubr.bf16.gmra.mxu0 %v128
  %v224 = vpop.f32.mrf.mxu0
  %v225 = vadd.f32 0.0, %v224
  %v226 = vpop.f32.mrf.mxu0
  %v227 = vpop.f32.mrf.mxu0
  %v228 = vadd.f32 0.0, %v227
  %v229 = vpop.f32.mrf.mxu0
  %230 = vdwg.mxu0
  %vm231 = vcmask 64512
  %232 = vst.msk [vmem:[%s4] sm:$0xff] %vm231, %v169
  %233 = vst.msk [vmem:[%s4 + $0x8] sm:$0xff] %vm231, %v172
  %234 = vst.msk [vmem:[%s4 + $0x10] sm:$0xff] %vm231, %v177
  %235 = vst.msk [vmem:[%s4 + $0x18] sm:$0xff] %vm231, %v180
  %236 = vst.msk [vmem:[%s4 + $0x20] sm:$0xff] %vm231, %v185
  %237 = vst.msk [vmem:[%s4 + $0x28] sm:$0xff] %vm231, %v188
  %238 = vst.msk [vmem:[%s4 + $0x30] sm:$0xff] %vm231, %v193
  %239 = vst.msk [vmem:[%s4 + $0x38] sm:$0xff] %vm231, %v196
  %240 = vst.msk [vmem:[%s4 + $0x40] sm:$0xff] %vm231, %v201
  %241 = vst.msk [vmem:[%s4 + $0x48] sm:$0xff] %vm231, %v204
  %242 = vst.msk [vmem:[%s4 + $0x50] sm:$0xff] %vm231, %v209
  %243 = vst.msk [vmem:[%s4 + $0x58] sm:$0xff] %vm231, %v212
  %244 = vst.msk [vmem:[%s4 + $0x60] sm:$0xff] %vm231, %v217
  %245 = vst.msk [vmem:[%s4 + $0x68] sm:$0xff] %vm231, %v220
  %246 = vst.msk [vmem:[%s4 + $0x70] sm:$0xff] %vm231, %v225
  %247 = vst.msk [vmem:[%s4 + $0x78] sm:$0xff] %vm231, %v228
  // Predicated region
  $region18: #{preact_bottleneck_forward.5} parent=0 // pred_check
    _
  $region19: #{preact_bottleneck_forward.5} parent=0 // pred_check_branch
    %249 = sbr.rel (0) target = $region21
  $region20: #{preact_bottleneck_forward.5} parent=0 // pred_region
    _
  $region21: #{preact_bottleneck_forward.5} parent=0 // pred_fallthru
    _
  // Predicated region
  $region22: #{preact_bottleneck_forward.5} parent=0 // pred_check
    _
  $region23: #{preact_bottleneck_forward.5} parent=0 // pred_check_branch
    %251 = sbr.rel (0) target = $region25
  $region24: #{preact_bottleneck_forward.5} parent=0 // pred_region
    _
  $region25: #{preact_bottleneck_forward.5} parent=0 // pred_fallthru
    _

// kernel: preact_bottleneck_forward.6
$region0: #{preact_bottleneck_forward.6}
  #allocation0 [shape = 'u32[]', space=smem, size = 0x4, offset = 0x4, fixed_abs, tag = 'smem constant byte address 0x4 - core index']
  #allocation1 [shape = 'u32[144,128]{1,0:T(1,128)}', space=vmem, size = 0x12000, scoped, tag = 'internal scratch']
  %s0 = inlined_call_operand.vmem [shape: f32[512,4], index: 0, kind: input, shape index: {}]
  %s1 = inlined_call_operand.vmem [shape: f32[1,4], index: 1, kind: input, shape index: {}]
  %s2 = inlined_call_operand.vmem [shape: f32[1,4], index: 2, kind: input, shape index: {}]
  %s3 = inlined_call_operand.vmem [shape: bf16[4,2], index: 3, kind: input, shape index: {}]
  %s4 = inlined_call_operand.vmem [shape: f32[512,2], index: 4, kind: output, shape index: {0}]
  %s5 = inlined_call_operand.vmem [shape: f32[1,2,2], index: 5, kind: output, shape index: {1}]
  %6 = xla_tuple %s4, %s5
  %s7 = sld [smem:[#allocation0]]
  $region34: #{preact_bottleneck_forward.6} parent=0
    _
  %s9 = ssub.s32 1, %s7
  %s10 = scalar_select 0, %s9, %s7
  // Predicated region
  $region2: #{preact_bottleneck_forward.6} parent=0 // pred_check
    _
  $region3: #{preact_bottleneck_forward.6} parent=0 // pred_check_branch
    %12 = sbr.rel (0) target = $region5
  $region4: #{preact_bottleneck_forward.6} parent=0 // pred_region
    _
  $region5: #{preact_bottleneck_forward.6} parent=0 // pred_fallthru
    _
  // Predicated region
  $region6: #{preact_bottleneck_forward.6} parent=0 // pred_check
    _
  $region7: #{preact_bottleneck_forward.6} parent=0 // pred_check_branch
    %14 = sbr.rel (0) target = $region9
  $region8: #{preact_bottleneck_forward.6} parent=0 // pred_region
    _
  $region9: #{preact_bottleneck_forward.6} parent=0 // pred_fallthru
    _
  // Predicated region
  $region10: #{preact_bottleneck_forward.6} parent=0 // pred_check
    _
  $region11: #{preact_bottleneck_forward.6} parent=0 // pred_check_branch
    %16 = sbr.rel (0) target = $region13
  $region12: #{preact_bottleneck_forward.6} parent=0 // pred_region
    _
  $region13: #{preact_bottleneck_forward.6} parent=0 // pred_fallthru
    _
  // Predicated region
  $region14: #{preact_bottleneck_forward.6} parent=0 // pred_check
    _
  $region15: #{preact_bottleneck_forward.6} parent=0 // pred_check_branch
    %18 = sbr.rel (0) target = $region17
  $region16: #{preact_bottleneck_forward.6} parent=0 // pred_region
    _
  $region17: #{preact_bottleneck_forward.6} parent=0 // pred_fallthru
    _
  %v20 = vld [vmem:[%s0] sm:$0xff]
  %v21 = vld [vmem:[%s0 + $0x8] sm:$0xff]
  %v22 = vld [vmem:[%s0 + $0x10] sm:$0xff]
  %v23 = vld [vmem:[%s0 + $0x18] sm:$0xff]
  %v24 = vld [vmem:[%s0 + $0x20] sm:$0xff]
  %v25 = vld [vmem:[%s0 + $0x28] sm:$0xff]
  %v26 = vld [vmem:[%s0 + $0x30] sm:$0xff]
  %v27 = vld [vmem:[%s0 + $0x38] sm:$0xff]
  %v28 = vld [vmem:[%s0 + $0x40] sm:$0xff]
  %v29 = vld [vmem:[%s0 + $0x48] sm:$0xff]
  %v30 = vld [vmem:[%s0 + $0x50] sm:$0xff]
  %v31 = vld [vmem:[%s0 + $0x58] sm:$0xff]
  %v32 = vld [vmem:[%s0 + $0x60] sm:$0xff]
  %v33 = vld [vmem:[%s0 + $0x68] sm:$0xff]
  %v34 = vld [vmem:[%s0 + $0x70] sm:$0xff]
  %v35 = vld [vmem:[%s0 + $0x78] sm:$0xff]
  %v36 = vld [vmem:[%s0 + $0x80] sm:$0xff]
  %v37 = vld [vmem:[%s0 + $0x88] sm:$0xff]
  %v38 = vld [vmem:[%s0 + $0x90] sm:$0xff]
  %v39 = vld [vmem:[%s0 + $0x98] sm:$0xff]
  %v40 = vld [vmem:[%s0 + $0xa0] sm:$0xff]
  %v41 = vld [vmem:[%s0 + $0xa8] sm:$0xff]
  %v42 = vld [vmem:[%s0 + $0xb0] sm:$0xff]
  %v43 = vld [vmem:[%s0 + $0xb8] sm:$0xff]
  %v44 = vld [vmem:[%s0 + $0xc0] sm:$0xff]
  %v45 = vld [vmem:[%s0 + $0xc8] sm:$0xff]
  %v46 = vld [vmem:[%s0 + $0xd0] sm:$0xff]
  %v47 = vld [vmem:[%s0 + $0xd8] sm:$0xff]
  %v48 = vld [vmem:[%s0 + $0xe0] sm:$0xff]
  %v49 = vld [vmem:[%s0 + $0xe8] sm:$0xff]
  %v50 = vld [vmem:[%s0 + $0xf0] sm:$0xff]
  %v51 = vld [vmem:[%s0 + $0xf8] sm:$0xff]
  %v52 = vld [vmem:[%s0 + $0x100] sm:$0xff]
  %v53 = vld [vmem:[%s0 + $0x108] sm:$0xff]
  %v54 = vld [vmem:[%s0 + $0x110] sm:$0xff]
  %v55 = vld [vmem:[%s0 + $0x118] sm:$0xff]
  %v56 = vld [vmem:[%s0 + $0x120] sm:$0xff]
  %v57 = vld [vmem:[%s0 + $0x128] sm:$0xff]
  %v58 = vld [vmem:[%s0 + $0x130] sm:$0xff]
  %v59 = vld [vmem:[%s0 + $0x138] sm:$0xff]
  %v60 = vld [vmem:[%s0 + $0x140] sm:$0xff]
  %v61 = vld [vmem:[%s0 + $0x148] sm:$0xff]
  %v62 = vld [vmem:[%s0 + $0x150] sm:$0xff]
  %v63 = vld [vmem:[%s0 + $0x158] sm:$0xff]
  %v64 = vld [vmem:[%s0 + $0x160] sm:$0xff]
  %v65 = vld [vmem:[%s0 + $0x168] sm:$0xff]
  %v66 = vld [vmem:[%s0 + $0x170] sm:$0xff]
  %v67 = vld [vmem:[%s0 + $0x178] sm:$0xff]
  %v68 = vld [vmem:[%s0 + $0x180] sm:$0xff]
  %v69 = vld [vmem:[%s0 + $0x188] sm:$0xff]
  %v70 = vld [vmem:[%s0 + $0x190] sm:$0xff]
  %v71 = vld [vmem:[%s0 + $0x198] sm:$0xff]
  %v72 = vld [vmem:[%s0 + $0x1a0] sm:$0xff]
  %v73 = vld [vmem:[%s0 + $0x1a8] sm:$0xff]
  %v74 = vld [vmem:[%s0 + $0x1b0] sm:$0xff]
  %v75 = vld [vmem:[%s0 + $0x1b8] sm:$0xff]
  %v76 = vld [vmem:[%s0 + $0x1c0] sm:$0xff]
  %v77 = vld [vmem:[%s0 + $0x1c8] sm:$0xff]
  %v78 = vld [vmem:[%s0 + $0x1d0] sm:$0xff]
  %v79 = vld [vmem:[%s0 + $0x1d8] sm:$0xff]
  %v80 = vld [vmem:[%s0 + $0x1e0] sm:$0xff]
  %v81 = vld [vmem:[%s0 + $0x1e8] sm:$0xff]
  %v82 = vld [vmem:[%s0 + $0x1f0] sm:$0xff]
  %v83 = vld [vmem:[%s0 + $0x1f8] sm:$0xff]
  %v84 = vld [vmem:[%s1] sm:$0x1]
  %v86 = vlaneseq
  %v87 = vshrl.u32 %v86, 7
  %v88 = vsub.s32 0, %v87
  %v89 = vrot.slane %v84, %v88
  %v91 = vmul.f32 %v20, %v89
  %v92 = vmul.f32 %v21, %v89
  %v93 = vmul.f32 %v22, %v89
  %v94 = vmul.f32 %v23, %v89
  %v95 = vmul.f32 %v24, %v89
  %v96 = vmul.f32 %v25, %v89
  %v97 = vmul.f32 %v26, %v89
  %v98 = vmul.f32 %v27, %v89
  %v99 = vmul.f32 %v28, %v89
  %v100 = vmul.f32 %v29, %v89
  %v101 = vmul.f32 %v30, %v89
  %v102 = vmul.f32 %v31, %v89
  %v103 = vmul.f32 %v32, %v89
  %v104 = vmul.f32 %v33, %v89
  %v105 = vmul.f32 %v34, %v89
  %v106 = vmul.f32 %v35, %v89
  %v107 = vmul.f32 %v36, %v89
  %v108 = vmul.f32 %v37, %v89
  %v109 = vmul.f32 %v38, %v89
  %v110 = vmul.f32 %v39, %v89
  %v111 = vmul.f32 %v40, %v89
  %v112 = vmul.f32 %v41, %v89
  %v113 = vmul.f32 %v42, %v89
  %v114 = vmul.f32 %v43, %v89
  %v115 = vmul.f32 %v44, %v89
  %v116 = vmul.f32 %v45, %v89
  %v117 = vmul.f32 %v46, %v89
  %v118 = vmul.f32 %v47, %v89
  %v119 = vmul.f32 %v48, %v89
  %v120 = vmul.f32 %v49, %v89
  %v121 = vmul.f32 %v50, %v89
  %v122 = vmul.f32 %v51, %v89
  %v123 = vmul.f32 %v52, %v89
  %v124 = vmul.f32 %v53, %v89
  %v125 = vmul.f32 %v54, %v89
  %v126 = vmul.f32 %v55, %v89
  %v127 = vmul.f32 %v56, %v89
  %v128 = vmul.f32 %v57, %v89
  %v129 = vmul.f32 %v58, %v89
  %v130 = vmul.f32 %v59, %v89
  %v131 = vmul.f32 %v60, %v89
  %v132 = vmul.f32 %v61, %v89
  %v133 = vmul.f32 %v62, %v89
  %v134 = vmul.f32 %v63, %v89
  %v135 = vmul.f32 %v64, %v89
  %v136 = vmul.f32 %v65, %v89
  %v137 = vmul.f32 %v66, %v89
  %v138 = vmul.f32 %v67, %v89
  %v139 = vmul.f32 %v68, %v89
  %v140 = vmul.f32 %v69, %v89
  %v141 = vmul.f32 %v70, %v89
  %v142 = vmul.f32 %v71, %v89
  %v143 = vmul.f32 %v72, %v89
  %v144 = vmul.f32 %v73, %v89
  %v145 = vmul.f32 %v74, %v89
  %v146 = vmul.f32 %v75, %v89
  %v147 = vmul.f32 %v76, %v89
  %v148 = vmul.f32 %v77, %v89
  %v149 = vmul.f32 %v78, %v89
  %v150 = vmul.f32 %v79, %v89
  %v151 = vmul.f32 %v80, %v89
  %v152 = vmul.f32 %v81, %v89
  %v153 = vmul.f32 %v82, %v89
  %v154 = vmul.f32 %v83, %v89
  %v155 = vld [vmem:[%s2] sm:$0x1]
  %v157 = vlaneseq
  %v158 = vshrl.u32 %v157, 7
  %v159 = vsub.s32 0, %v158
  %v160 = vrot.slane %v155, %v159
  %v162 = vadd.f32 %v91, %v160
  %v163 = vadd.f32 %v92, %v160
  %v164 = vadd.f32 %v93, %v160
  %v165 = vadd.f32 %v94, %v160
  %v166 = vadd.f32 %v95, %v160
  %v167 = vadd.f32 %v96, %v160
  %v168 = vadd.f32 %v97, %v160
  %v169 = vadd.f32 %v98, %v160
  %v170 = vadd.f32 %v99, %v160
  %v171 = vadd.f32 %v100, %v160
  %v172 = vadd.f32 %v101, %v160
  %v173 = vadd.f32 %v102, %v160
  %v174 = vadd.f32 %v103, %v160
  %v175 = vadd.f32 %v104, %v160
  %v176 = vadd.f32 %v105, %v160
  %v177 = vadd.f32 %v106, %v160
  %v178 = vadd.f32 %v107, %v160
  %v179 = vadd.f32 %v108, %v160
  %v180 = vadd.f32 %v109, %v160
  %v181 = vadd.f32 %v110, %v160
  %v182 = vadd.f32 %v111, %v160
  %v183 = vadd.f32 %v112, %v160
  %v184 = vadd.f32 %v113, %v160
  %v185 = vadd.f32 %v114, %v160
  %v186 = vadd.f32 %v115, %v160
  %v187 = vadd.f32 %v116, %v160
  %v188 = vadd.f32 %v117, %v160
  %v189 = vadd.f32 %v118, %v160
  %v190 = vadd.f32 %v119, %v160
  %v191 = vadd.f32 %v120, %v160
  %v192 = vadd.f32 %v121, %v160
  %v193 = vadd.f32 %v122, %v160
  %v194 = vadd.f32 %v123, %v160
  %v195 = vadd.f32 %v124, %v160
  %v196 = vadd.f32 %v125, %v160
  %v197 = vadd.f32 %v126, %v160
  %v198 = vadd.f32 %v127, %v160
  %v199 = vadd.f32 %v128, %v160
  %v200 = vadd.f32 %v129, %v160
  %v201 = vadd.f32 %v130, %v160
  %v202 = vadd.f32 %v131, %v160
  %v203 = vadd.f32 %v132, %v160
  %v204 = vadd.f32 %v133, %v160
  %v205 = vadd.f32 %v134, %v160
  %v206 = vadd.f32 %v135, %v160
  %v207 = vadd.f32 %v136, %v160
  %v208 = vadd.f32 %v137, %v160
  %v209 = vadd.f32 %v138, %v160
  %v210 = vadd.f32 %v139, %v160
  %v211 = vadd.f32 %v140, %v160
  %v212 = vadd.f32 %v141, %v160
  %v213 = vadd.f32 %v142, %v160
  %v214 = vadd.f32 %v143, %v160
  %v215 = vadd.f32 %v144, %v160
  %v216 = vadd.f32 %v145, %v160
  %v217 = vadd.f32 %v146, %v160
  %v218 = vadd.f32 %v147, %v160
  %v219 = vadd.f32 %v148, %v160
  %v220 = vadd.f32 %v149, %v160
  %v221 = vadd.f32 %v150, %v160
  %v222 = vadd.f32 %v151, %v160
  %v223 = vadd.f32 %v152, %v160
  %v224 = vadd.f32 %v153, %v160
  %v225 = vadd.f32 %v154, %v160
  %v226 = vmax.f32 %v162, 0.0
  %v227 = vmax.f32 %v163, 0.0
  %v228 = vmax.f32 %v164, 0.0
  %v229 = vmax.f32 %v165, 0.0
  %v230 = vmax.f32 %v166, 0.0
  %v231 = vmax.f32 %v167, 0.0
  %v232 = vmax.f32 %v168, 0.0
  %v233 = vmax.f32 %v169, 0.0
  %v234 = vmax.f32 %v170, 0.0
  %v235 = vmax.f32 %v171, 0.0
  %v236 = vmax.f32 %v172, 0.0
  %v237 = vmax.f32 %v173, 0.0
  %v238 = vmax.f32 %v174, 0.0
  %v239 = vmax.f32 %v175, 0.0
  %v240 = vmax.f32 %v176, 0.0
  %v241 = vmax.f32 %v177, 0.0
  %v242 = vmax.f32 %v178, 0.0
  %v243 = vmax.f32 %v179, 0.0
  %v244 = vmax.f32 %v180, 0.0
  %v245 = vmax.f32 %v181, 0.0
  %v246 = vmax.f32 %v182, 0.0
  %v247 = vmax.f32 %v183, 0.0
  %v248 = vmax.f32 %v184, 0.0
  %v249 = vmax.f32 %v185, 0.0
  %v250 = vmax.f32 %v186, 0.0
  %v251 = vmax.f32 %v187, 0.0
  %v252 = vmax.f32 %v188, 0.0
  %v253 = vmax.f32 %v189, 0.0
  %v254 = vmax.f32 %v190, 0.0
  %v255 = vmax.f32 %v191, 0.0
  %v256 = vmax.f32 %v192, 0.0
  %v257 = vmax.f32 %v193, 0.0
  %v258 = vmax.f32 %v194, 0.0
  %v259 = vmax.f32 %v195, 0.0
  %v260 = vmax.f32 %v196, 0.0
  %v261 = vmax.f32 %v197, 0.0
  %v262 = vmax.f32 %v198, 0.0
  %v263 = vmax.f32 %v199, 0.0
  %v264 = vmax.f32 %v200, 0.0
  %v265 = vmax.f32 %v201, 0.0
  %v266 = vmax.f32 %v202, 0.0
  %v267 = vmax.f32 %v203, 0.0
  %v268 = vmax.f32 %v204, 0.0
  %v269 = vmax.f32 %v205, 0.0
  %v270 = vmax.f32 %v206, 0.0
  %v271 = vmax.f32 %v207, 0.0
  %v272 = vmax.f32 %v208, 0.0
  %v273 = vmax.f32 %v209, 0.0
  %v274 = vmax.f32 %v210, 0.0
  %v275 = vmax.f32 %v211, 0.0
  %v276 = vmax.f32 %v212, 0.0
  %v277 = vmax.f32 %v213, 0.0
  %v278 = vmax.f32 %v214, 0.0
  %v279 = vmax.f32 %v215, 0.0
  %v280 = vmax.f32 %v216, 0.0
  %v281 = vmax.f32 %v217, 0.0
  %v282 = vmax.f32 %v218, 0.0
  %v283 = vmax.f32 %v219, 0.0
  %v284 = vmax.f32 %v220, 0.0
  %v285 = vmax.f32 %v221, 0.0
  %v286 = vmax.f32 %v222, 0.0
  %v287 = vmax.f32 %v223, 0.0
  %v288 = vmax.f32 %v224, 0.0
  %v289 = vmax.f32 %v225, 0.0
  %v290 = vpack.c.bf16 %v227, %v226
  %v291 = vpack.c.bf16 %v229, %v228
  %v292 = vpack.c.bf16 %v231, %v230
  %v293 = vpack.c.bf16 %v233, %v232
  %v294 = vpack.c.bf16 %v235, %v234
  %v295 = vpack.c.bf16 %v237, %v236
  %v296 = vpack.c.bf16 %v239, %v238
  %v297 = vpack.c.bf16 %v241, %v240
  %v298 = vpack.c.bf16 %v243, %v242
  %v299 = vpack.c.bf16 %v245, %v244
  %v300 = vpack.c.bf16 %v247, %v246
  %v301 = vpack.c.bf16 %v249, %v248
  %v302 = vpack.c.bf16 %v251, %v250
  %v303 = vpack.c.bf16 %v253, %v252
  %v304 = vpack.c.bf16 %v255, %v254
  %v305 = vpack.c.bf16 %v257, %v256
  %v306 = vpack.c.bf16 %v259, %v258
  %v307 = vpack.c.bf16 %v261, %v260
  %v308 = vpack.c.bf16 %v263, %v262
  %v309 = vpack.c.bf16 %v265, %v264
  %v310 = vpack.c.bf16 %v267, %v266
  %v311 = vpack.c.bf16 %v269, %v268
  %v312 = vpack.c.bf16 %v271, %v270
  %v313 = vpack.c.bf16 %v273, %v272
  %v314 = vpack.c.bf16 %v275, %v274
  %v315 = vpack.c.bf16 %v277, %v276
  %v316 = vpack.c.bf16 %v279, %v278
  %v317 = vpack.c.bf16 %v281, %v280
  %v318 = vpack.c.bf16 %v283, %v282
  %v319 = vpack.c.bf16 %v285, %v284
  %v320 = vpack.c.bf16 %v287, %v286
  %v321 = vpack.c.bf16 %v289, %v288
  %v322 = vld [vmem:[%s3] sm:$0x3]
  %vm323 = vcmask 31744
  %v325 = vsel %vm323, %v290, 0
  %v328 = vsel %vm323, %v291, 0
  %v331 = vsel %vm323, %v292, 0
  %v334 = vsel %vm323, %v293, 0
  %v337 = vsel %vm323, %v294, 0
  %v340 = vsel %vm323, %v295, 0
  %v343 = vsel %vm323, %v296, 0
  %v346 = vsel %vm323, %v297, 0
  %v349 = vsel %vm323, %v298, 0
  %v352 = vsel %vm323, %v299, 0
  %v355 = vsel %vm323, %v300, 0
  %v358 = vsel %vm323, %v301, 0
  %v361 = vsel %vm323, %v302, 0
  %v364 = vsel %vm323, %v303, 0
  %v367 = vsel %vm323, %v304, 0
  %v370 = vsel %vm323, %v305, 0
  %v373 = vsel %vm323, %v306, 0
  %v376 = vsel %vm323, %v307, 0
  %v379 = vsel %vm323, %v308, 0
  %v382 = vsel %vm323, %v309, 0
  %v385 = vsel %vm323, %v310, 0
  %v388 = vsel %vm323, %v311, 0
  %v391 = vsel %vm323, %v312, 0
  %v394 = vsel %vm323, %v313, 0
  %v397 = vsel %vm323, %v314, 0
  %v400 = vsel %vm323, %v315, 0
  %v403 = vsel %vm323, %v316, 0
  %v406 = vsel %vm323, %v317, 0
  %v409 = vsel %vm323, %v318, 0
  %v412 = vsel %vm323, %v319, 0
  %v415 = vsel %vm323, %v320, 0
  %v418 = vsel %vm323, %v321, 0
  %vm420 = vcmask 1041408
  %v422 = vsel %vm420, %v322, 0
  %424 = vmatprep.subr.bf16.mxu0 0
  %425 = vmatpush1.bf16.msra.mxu0 0
  %426 = vmatprep.subr.bf16.mxu0 0
  %427 = vmatpush1.bf16.msra.mxu0 0
  %428 = vmatprep.subr.bf16.mxu0 0
  %429 = vmatpush1.bf16.msra.mxu0 0
  %430 = vmatprep.subr.bf16.mxu0 0
  %431 = vmatpush1.bf16.msra.mxu0 0
  %432 = vmatprep.subr.bf16.mxu0 0
  %433 = vmatpush1.bf16.msra.mxu0 0
  %434 = vmatprep.subr.bf16.mxu0 0
  %435 = vmatpush1.bf16.msra.mxu0 0
  %436 = vmatprep.subr.bf16.mxu0 0
  %437 = vmatpush1.bf16.msra.mxu0 0
  %438 = vmatprep.subr.bf16.mxu0 0
  %439 = vmatpush1.bf16.msra.mxu0 %v422
  %440 = vmatprep.subr.bf16.mxu0 0
  %441 = vmatpush2.bf16.msra.mxu0 0
  %442 = vmatprep.subr.bf16.mxu0 0
  %443 = vmatpush2.bf16.msra.mxu0 0
  %444 = vmatprep.subr.bf16.mxu0 0
  %445 = vmatpush2.bf16.msra.mxu0 0
  %446 = vmatprep.subr.bf16.mxu0 0
  %447 = vmatpush2.bf16.msra.mxu0 0
  %448 = vmatprep.subr.bf16.mxu0 0
  %449 = vmatpush2.bf16.msra.mxu0 0
  %450 = vmatprep.subr.bf16.mxu0 0
  %451 = vmatpush2.bf16.msra.mxu0 0
  %452 = vmatprep.subr.bf16.mxu0 0
  %453 = vmatpush2.bf16.msra.mxu0 0
  %454 = vmatprep.subr.bf16.mxu0 0
  %455 = vmatpush2.bf16.msra.mxu0 0
  %456 = vmatprep.mubr.bf16.mxu0 0
  %457 = vmatmul.mubr.bf16.gmra.mxu0 %v325
  %v458 = vpop.f32.mrf.mxu0
  %v459 = vadd.f32 0.0, %v458
  %v460 = vpop.f32.mrf.mxu0
  %v461 = vpop.f32.mrf.mxu0
  %v462 = vadd.f32 0.0, %v461
  %v463 = vpop.f32.mrf.mxu0
  %464 = vmatprep.mubr.bf16.mxu0 0
  %465 = vmatmul.mubr.bf16.gmra.mxu0 %v328
  %v466 = vpop.f32.mrf.mxu0
  %v467 = vadd.f32 0.0, %v466
  %v468 = vpop.f32.mrf.mxu0
  %v469 = vpop.f32.mrf.mxu0
  %v470 = vadd.f32 0.0, %v469
  %v471 = vpop.f32.mrf.mxu0
  %472 = vmatprep.mubr.bf16.mxu0 0
  %473 = vmatmul.mubr.bf16.gmra.mxu0 %v331
  %v474 = vpop.f32.mrf.mxu0
  %v475 = vadd.f32 0.0, %v474
  %v476 = vpop.f32.mrf.mxu0
  %v477 = vpop.f32.mrf.mxu0
  %v478 = vadd.f32 0.0, %v477
  %v479 = vpop.f32.mrf.mxu0
  %480 = vmatprep.mubr.bf16.mxu0 0
  %481 = vmatmul.mubr.bf16.gmra.mxu0 %v334
  %v482 = vpop.f32.mrf.mxu0
  %v483 = vadd.f32 0.0, %v482
  %v484 = vpop.f32.mrf.mxu0
  %v485 = vpop.f32.mrf.mxu0
  %v486 = vadd.f32 0.0, %v485
  %v487 = vpop.f32.mrf.mxu0
  %488 = vmatprep.mubr.bf16.mxu0 0
  %489 = vmatmul.mubr.bf16.gmra.mxu0 %v337
  %v490 = vpop.f32.mrf.mxu0
  %v491 = vadd.f32 0.0, %v490
  %v492 = vpop.f32.mrf.mxu0
  %v493 = vpop.f32.mrf.mxu0
  %v494 = vadd.f32 0.0, %v493
  %v495 = vpop.f32.mrf.mxu0
  %496 = vmatprep.mubr.bf16.mxu0 0
  %497 = vmatmul.mubr.bf16.gmra.mxu0 %v340
  %v498 = vpop.f32.mrf.mxu0
  %v499 = vadd.f32 0.0, %v498
  %v500 = vpop.f32.mrf.mxu0
  %v501 = vpop.f32.mrf.mxu0
  %v502 = vadd.f32 0.0, %v501
  %v503 = vpop.f32.mrf.mxu0
  %504 = vmatprep.mubr.bf16.mxu0 0
  %505 = vmatmul.mubr.bf16.gmra.mxu0 %v343
  %v506 = vpop.f32.mrf.mxu0
  %v507 = vadd.f32 0.0, %v506
  %v508 = vpop.f32.mrf.mxu0
  %v509 = vpop.f32.mrf.mxu0
  %v510 = vadd.f32 0.0, %v509
  %v511 = vpop.f32.mrf.mxu0
  %512 = vmatprep.mubr.bf16.mxu0 0
  %513 = vmatmul.mubr.bf16.gmra.mxu0 %v346
  %v514 = vpop.f32.mrf.mxu0
  %v515 = vadd.f32 0.0, %v514
  %v516 = vpop.f32.mrf.mxu0
  %v517 = vpop.f32.mrf.mxu0
  %v518 = vadd.f32 0.0, %v517
  %v519 = vpop.f32.mrf.mxu0
  %520 = vmatprep.mubr.bf16.mxu0 0
  %521 = vmatmul.mubr.bf16.gmra.mxu0 %v349
  %v522 = vpop.f32.mrf.mxu0
  %v523 = vadd.f32 0.0, %v522
  %v524 = vpop.f32.mrf.mxu0
  %v525 = vpop.f32.mrf.mxu0
  %v526 = vadd.f32 0.0, %v525
  %v527 = vpop.f32.mrf.mxu0
  %528 = vmatprep.mubr.bf16.mxu0 0
  %529 = vmatmul.mubr.bf16.gmra.mxu0 %v352
  %v530 = vpop.f32.mrf.mxu0
  %v531 = vadd.f32 0.0, %v530
  %v532 = vpop.f32.mrf.mxu0
  %v533 = vpop.f32.mrf.mxu0
  %v534 = vadd.f32 0.0, %v533
  %v535 = vpop.f32.mrf.mxu0
  %536 = vmatprep.mubr.bf16.mxu0 0
  %537 = vmatmul.mubr.bf16.gmra.mxu0 %v355
  %v538 = vpop.f32.mrf.mxu0
  %v539 = vadd.f32 0.0, %v538
  %v540 = vpop.f32.mrf.mxu0
  %v541 = vpop.f32.mrf.mxu0
  %v542 = vadd.f32 0.0, %v541
  %v543 = vpop.f32.mrf.mxu0
  %544 = vmatprep.mubr.bf16.mxu0 0
  %545 = vmatmul.mubr.bf16.gmra.mxu0 %v358
  %v546 = vpop.f32.mrf.mxu0
  %v547 = vadd.f32 0.0, %v546
  %v548 = vpop.f32.mrf.mxu0
  %v549 = vpop.f32.mrf.mxu0
  %v550 = vadd.f32 0.0, %v549
  %v551 = vpop.f32.mrf.mxu0
  %552 = vmatprep.mubr.bf16.mxu0 0
  %553 = vmatmul.mubr.bf16.gmra.mxu0 %v361
  %v554 = vpop.f32.mrf.mxu0
  %v555 = vadd.f32 0.0, %v554
  %v556 = vpop.f32.mrf.mxu0
  %v557 = vpop.f32.mrf.mxu0
  %v558 = vadd.f32 0.0, %v557
  %v559 = vpop.f32.mrf.mxu0
  %560 = vmatprep.mubr.bf16.mxu0 0
  %561 = vmatmul.mubr.bf16.gmra.mxu0 %v364
  %v562 = vpop.f32.mrf.mxu0
  %v563 = vadd.f32 0.0, %v562
  %v564 = vpop.f32.mrf.mxu0
  %v565 = vpop.f32.mrf.mxu0
  %v566 = vadd.f32 0.0, %v565
  %v567 = vpop.f32.mrf.mxu0
  %568 = vmatprep.mubr.bf16.mxu0 0
  %569 = vmatmul.mubr.bf16.gmra.mxu0 %v367
  %v570 = vpop.f32.mrf.mxu0
  %v571 = vadd.f32 0.0, %v570
  %v572 = vpop.f32.mrf.mxu0
  %v573 = vpop.f32.mrf.mxu0
  %v574 = vadd.f32 0.0, %v573
  %v575 = vpop.f32.mrf.mxu0
  %576 = vmatprep.mubr.bf16.mxu0 0
  %577 = vmatmul.mubr.bf16.gmra.mxu0 %v370
  %v578 = vpop.f32.mrf.mxu0
  %v579 = vadd.f32 0.0, %v578
  %v580 = vpop.f32.mrf.mxu0
  %v581 = vpop.f32.mrf.mxu0
  %v582 = vadd.f32 0.0, %v581
  %v583 = vpop.f32.mrf.mxu0
  %584 = vmatprep.mubr.bf16.mxu0 0
  %585 = vmatmul.mubr.bf16.gmra.mxu0 %v373
  %v586 = vpop.f32.mrf.mxu0
  %v587 = vadd.f32 0.0, %v586
  %v588 = vpop.f32.mrf.mxu0
  %v589 = vpop.f32.mrf.mxu0
  %v590 = vadd.f32 0.0, %v589
  %v591 = vpop.f32.mrf.mxu0
  %592 = vmatprep.mubr.bf16.mxu0 0
  %593 = vmatmul.mubr.bf16.gmra.mxu0 %v376
  %v594 = vpop.f32.mrf.mxu0
  %v595 = vadd.f32 0.0, %v594
  %v596 = vpop.f32.mrf.mxu0
  %v597 = vpop.f32.mrf.mxu0
  %v598 = vadd.f32 0.0, %v597
  %v599 = vpop.f32.mrf.mxu0
  %600 = vmatprep.mubr.bf16.mxu0 0
  %601 = vmatmul.mubr.bf16.gmra.mxu0 %v379
  %v602 = vpop.f32.mrf.mxu0
  %v603 = vadd.f32 0.0, %v602
  %v604 = vpop.f32.mrf.mxu0
  %v605 = vpop.f32.mrf.mxu0
  %v606 = vadd.f32 0.0, %v605
  %v607 = vpop.f32.mrf.mxu0
  %608 = vmatprep.mubr.bf16.mxu0 0
  %609 = vmatmul.mubr.bf16.gmra.mxu0 %v382
  %v610 = vpop.f32.mrf.mxu0
  %v611 = vadd.f32 0.0, %v610
  %v612 = vpop.f32.mrf.mxu0
  %v613 = vpop.f32.mrf.mxu0
  %v614 = vadd.f32 0.0, %v613
  %v615 = vpop.f32.mrf.mxu0
  %616 = vmatprep.mubr.bf16.mxu0 0
  %617 = vmatmul.mubr.bf16.gmra.mxu0 %v385
  %v618 = vpop.f32.mrf.mxu0
  %v619 = vadd.f32 0.0, %v618
  %v620 = vpop.f32.mrf.mxu0
  %v621 = vpop.f32.mrf.mxu0
  %v622 = vadd.f32 0.0, %v621
  %v623 = vpop.f32.mrf.mxu0
  %624 = vmatprep.mubr.bf16.mxu0 0
  %625 = vmatmul.mubr.bf16.gmra.mxu0 %v388
  %v626 = vpop.f32.mrf.mxu0
  %v627 = vadd.f32 0.0, %v626
  %v628 = vpop.f32.mrf.mxu0
  %v629 = vpop.f32.mrf.mxu0
  %v630 = vadd.f32 0.0, %v629
  %v631 = vpop.f32.mrf.mxu0
  %632 = vmatprep.mubr.bf16.mxu0 0
  %633 = vmatmul.mubr.bf16.gmra.mxu0 %v391
  %v634 = vpop.f32.mrf.mxu0
  %v635 = vadd.f32 0.0, %v634
  %v636 = vpop.f32.mrf.mxu0
  %v637 = vpop.f32.mrf.mxu0
  %v638 = vadd.f32 0.0, %v637
  %v639 = vpop.f32.mrf.mxu0
  %640 = vmatprep.mubr.bf16.mxu0 0
  %641 = vmatmul.mubr.bf16.gmra.mxu0 %v394
  %v642 = vpop.f32.mrf.mxu0
  %v643 = vadd.f32 0.0, %v642
  %v644 = vpop.f32.mrf.mxu0
  %v645 = vpop.f32.mrf.mxu0
  %v646 = vadd.f32 0.0, %v645
  %v647 = vpop.f32.mrf.mxu0
  %648 = vmatprep.mubr.bf16.mxu0 0
  %649 = vmatmul.mubr.bf16.gmra.mxu0 %v397
  %v650 = vpop.f32.mrf.mxu0
  %v651 = vadd.f32 0.0, %v650
  %v652 = vpop.f32.mrf.mxu0
  %v653 = vpop.f32.mrf.mxu0
  %v654 = vadd.f32 0.0, %v653
  %v655 = vpop.f32.mrf.mxu0
  %656 = vmatprep.mubr.bf16.mxu0 0
  %657 = vmatmul.mubr.bf16.gmra.mxu0 %v400
  %v658 = vpop.f32.mrf.mxu0
  %v659 = vadd.f32 0.0, %v658
  %v660 = vpop.f32.mrf.mxu0
  %v661 = vpop.f32.mrf.mxu0
  %v662 = vadd.f32 0.0, %v661
  %v663 = vpop.f32.mrf.mxu0
  %664 = vmatprep.mubr.bf16.mxu0 0
  %665 = vmatmul.mubr.bf16.gmra.mxu0 %v403
  %v666 = vpop.f32.mrf.mxu0
  %v667 = vadd.f32 0.0, %v666
  %v668 = vpop.f32.mrf.mxu0
  %v669 = vpop.f32.mrf.mxu0
  %v670 = vadd.f32 0.0, %v669
  %v671 = vpop.f32.mrf.mxu0
  %672 = vmatprep.mubr.bf16.mxu0 0
  %673 = vmatmul.mubr.bf16.gmra.mxu0 %v406
  %v674 = vpop.f32.mrf.mxu0
  %v675 = vadd.f32 0.0, %v674
  %v676 = vpop.f32.mrf.mxu0
  %v677 = vpop.f32.mrf.mxu0
  %v678 = vadd.f32 0.0, %v677
  %v679 = vpop.f32.mrf.mxu0
  %680 = vmatprep.mubr.bf16.mxu0 0
  %681 = vmatmul.mubr.bf16.gmra.mxu0 %v409
  %v682 = vpop.f32.mrf.mxu0
  %v683 = vadd.f32 0.0, %v682
  %v684 = vpop.f32.mrf.mxu0
  %v685 = vpop.f32.mrf.mxu0
  %v686 = vadd.f32 0.0, %v685
  %v687 = vpop.f32.mrf.mxu0
  %688 = vmatprep.mubr.bf16.mxu0 0
  %689 = vmatmul.mubr.bf16.gmra.mxu0 %v412
  %v690 = vpop.f32.mrf.mxu0
  %v691 = vadd.f32 0.0, %v690
  %v692 = vpop.f32.mrf.mxu0
  %v693 = vpop.f32.mrf.mxu0
  %v694 = vadd.f32 0.0, %v693
  %v695 = vpop.f32.mrf.mxu0
  %696 = vmatprep.mubr.bf16.mxu0 0
  %697 = vmatmul.mubr.bf16.gmra.mxu0 %v415
  %v698 = vpop.f32.mrf.mxu0
  %v699 = vadd.f32 0.0, %v698
  %v700 = vpop.f32.mrf.mxu0
  %v701 = vpop.f32.mrf.mxu0
  %v702 = vadd.f32 0.0, %v701
  %v703 = vpop.f32.mrf.mxu0
  %704 = vmatprep.mubr.bf16.mxu0 0
  %705 = vmatmul.mubr.bf16.gmra.mxu0 %v418
  %v706 = vpop.f32.mrf.mxu0
  %v707 = vadd.f32 0.0, %v706
  %v708 = vpop.f32.mrf.mxu0
  %v709 = vpop.f32.mrf.mxu0
  %v710 = vadd.f32 0.0, %v709
  %v711 = vpop.f32.mrf.mxu0
  %712 = vdwg.mxu0
  %vm713 = vcmask 15360
  %714 = vst.msk [vmem:[%s4] sm:$0xff] %vm713, %v459
  %715 = vst.msk [vmem:[%s4 + $0x8] sm:$0xff] %vm713, %v462
  %716 = vst.msk [vmem:[%s4 + $0x10] sm:$0xff] %vm713, %v467
  %717 = vst.msk [vmem:[%s4 + $0x18] sm:$0xff] %vm713, %v470
  %718 = vst.msk [vmem:[%s4 + $0x20] sm:$0xff] %vm713, %v475
  %719 = vst.msk [vmem:[%s4 + $0x28] sm:$0xff] %vm713, %v478
  %720 = vst.msk [vmem:[%s4 + $0x30] sm:$0xff] %vm713, %v483
  %721 = vst.msk [vmem:[%s4 + $0x38] sm:$0xff] %vm713, %v486
  %722 = vst.msk [vmem:[%s4 + $0x40] sm:$0xff] %vm713, %v491
  %723 = vst.msk [vmem:[%s4 + $0x48] sm:$0xff] %vm713, %v494
  %724 = vst.msk [vmem:[%s4 + $0x50] sm:$0xff] %vm713, %v499
  %725 = vst.msk [vmem:[%s4 + $0x58] sm:$0xff] %vm713, %v502
  %726 = vst.msk [vmem:[%s4 + $0x60] sm:$0xff] %vm713, %v507
  %727 = vst.msk [vmem:[%s4 + $0x68] sm:$0xff] %vm713, %v510
  %728 = vst.msk [vmem:[%s4 + $0x70] sm:$0xff] %vm713, %v515
  %729 = vst.msk [vmem:[%s4 + $0x78] sm:$0xff] %vm713, %v518
  %730 = vst.msk [vmem:[%s4 + $0x80] sm:$0xff] %vm713, %v523
  %731 = vst.msk [vmem:[%s4 + $0x88] sm:$0xff] %vm713, %v526
  %732 = vst.msk [vmem:[%s4 + $0x90] sm:$0xff] %vm713, %v531
  %733 = vst.msk [vmem:[%s4 + $0x98] sm:$0xff] %vm713, %v534
  %734 = vst.msk [vmem:[%s4 + $0xa0] sm:$0xff] %vm713, %v539
  %735 = vst.msk [vmem:[%s4 + $0xa8] sm:$0xff] %vm713, %v542
  %736 = vst.msk [vmem:[%s4 + $0xb0] sm:$0xff] %vm713, %v547
  %737 = vst.msk [vmem:[%s4 + $0xb8] sm:$0xff] %vm713, %v550
  %738 = vst.msk [vmem:[%s4 + $0xc0] sm:$0xff] %vm713, %v555
  %739 = vst.msk [vmem:[%s4 + $0xc8] sm:$0xff] %vm713, %v558
  %740 = vst.msk [vmem:[%s4 + $0xd0] sm:$0xff] %vm713, %v563
  %741 = vst.msk [vmem:[%s4 + $0xd8] sm:$0xff] %vm713, %v566
  %742 = vst.msk [vmem:[%s4 + $0xe0] sm:$0xff] %vm713, %v571
  %743 = vst.msk [vmem:[%s4 + $0xe8] sm:$0xff] %vm713, %v574
  %744 = vst.msk [vmem:[%s4 + $0xf0] sm:$0xff] %vm713, %v579
  %745 = vst.msk [vmem:[%s4 + $0xf8] sm:$0xff] %vm713, %v582
  %746 = vst.msk [vmem:[%s4 + $0x100] sm:$0xff] %vm713, %v587
  %747 = vst.msk [vmem:[%s4 + $0x108] sm:$0xff] %vm713, %v590
  %748 = vst.msk [vmem:[%s4 + $0x110] sm:$0xff] %vm713, %v595
  %749 = vst.msk [vmem:[%s4 + $0x118] sm:$0xff] %vm713, %v598
  %750 = vst.msk [vmem:[%s4 + $0x120] sm:$0xff] %vm713, %v603
  %751 = vst.msk [vmem:[%s4 + $0x128] sm:$0xff] %vm713, %v606
  %752 = vst.msk [vmem:[%s4 + $0x130] sm:$0xff] %vm713, %v611
  %753 = vst.msk [vmem:[%s4 + $0x138] sm:$0xff] %vm713, %v614
  %754 = vst.msk [vmem:[%s4 + $0x140] sm:$0xff] %vm713, %v619
  %755 = vst.msk [vmem:[%s4 + $0x148] sm:$0xff] %vm713, %v622
  %756 = vst.msk [vmem:[%s4 + $0x150] sm:$0xff] %vm713, %v627
  %757 = vst.msk [vmem:[%s4 + $0x158] sm:$0xff] %vm713, %v630
  %758 = vst.msk [vmem:[%s4 + $0x160] sm:$0xff] %vm713, %v635
  %759 = vst.msk [vmem:[%s4 + $0x168] sm:$0xff] %vm713, %v638
  %760 = vst.msk [vmem:[%s4 + $0x170] sm:$0xff] %vm713, %v643
  %761 = vst.msk [vmem:[%s4 + $0x178] sm:$0xff] %vm713, %v646
  %762 = vst.msk [vmem:[%s4 + $0x180] sm:$0xff] %vm713, %v651
  %763 = vst.msk [vmem:[%s4 + $0x188] sm:$0xff] %vm713, %v654
  %764 = vst.msk [vmem:[%s4 + $0x190] sm:$0xff] %vm713, %v659
  %765 = vst.msk [vmem:[%s4 + $0x198] sm:$0xff] %vm713, %v662
  %766 = vst.msk [vmem:[%s4 + $0x1a0] sm:$0xff] %vm713, %v667
  %767 = vst.msk [vmem:[%s4 + $0x1a8] sm:$0xff] %vm713, %v670
  %768 = vst.msk [vmem:[%s4 + $0x1b0] sm:$0xff] %vm713, %v675
  %769 = vst.msk [vmem:[%s4 + $0x1b8] sm:$0xff] %vm713, %v678
  %770 = vst.msk [vmem:[%s4 + $0x1c0] sm:$0xff] %vm713, %v683
  %771 = vst.msk [vmem:[%s4 + $0x1c8] sm:$0xff] %vm713, %v686
  %772 = vst.msk [vmem:[%s4 + $0x1d0] sm:$0xff] %vm713, %v691
  %773 = vst.msk [vmem:[%s4 + $0x1d8] sm:$0xff] %vm713, %v694
  %774 = vst.msk [vmem:[%s4 + $0x1e0] sm:$0xff] %vm713, %v699
  %775 = vst.msk [vmem:[%s4 + $0x1e8] sm:$0xff] %vm713, %v702
  %776 = vst.msk [vmem:[%s4 + $0x1f0] sm:$0xff] %vm713, %v707
  %777 = vst.msk [vmem:[%s4 + $0x1f8] sm:$0xff] %vm713, %v710
  %v778 = vsel %vm713, %v459, 0.0
  %v779 = vsel %vm713, %v462, 0.0
  %v780 = vadd.f32 %v778, %v779
  %v781 = vsel %vm713, %v467, 0.0
  %v782 = vadd.f32 %v780, %v781
  %v783 = vsel %vm713, %v470, 0.0
  %v784 = vadd.f32 %v782, %v783
  %v785 = vsel %vm713, %v475, 0.0
  %v786 = vadd.f32 %v784, %v785
  %v787 = vsel %vm713, %v478, 0.0
  %v788 = vadd.f32 %v786, %v787
  %v789 = vsel %vm713, %v483, 0.0
  %v790 = vadd.f32 %v788, %v789
  %v791 = vsel %vm713, %v486, 0.0
  %v792 = vadd.f32 %v790, %v791
  %v793 = vsel %vm713, %v491, 0.0
  %v794 = vadd.f32 %v792, %v793
  %v795 = vsel %vm713, %v494, 0.0
  %v796 = vadd.f32 %v794, %v795
  %v797 = vsel %vm713, %v499, 0.0
  %v798 = vadd.f32 %v796, %v797
  %v799 = vsel %vm713, %v502, 0.0
  %v800 = vadd.f32 %v798, %v799
  %v801 = vsel %vm713, %v507, 0.0
  %v802 = vadd.f32 %v800, %v801
  %v803 = vsel %vm713, %v510, 0.0
  %v804 = vadd.f32 %v802, %v803
  %v805 = vsel %vm713, %v515, 0.0
  %v806 = vadd.f32 %v804, %v805
  %v807 = vsel %vm713, %v518, 0.0
  %v808 = vadd.f32 %v806, %v807
  %v809 = vsel %vm713, %v523, 0.0
  %v810 = vadd.f32 %v808, %v809
  %v811 = vsel %vm713, %v526, 0.0
  %v812 = vadd.f32 %v810, %v811
  %v813 = vsel %vm713, %v531, 0.0
  %v814 = vadd.f32 %v812, %v813
  %v815 = vsel %vm713, %v534, 0.0
  %v816 = vadd.f32 %v814, %v815
  %v817 = vsel %vm713, %v539, 0.0
  %v818 = vadd.f32 %v816, %v817
  %v819 = vsel %vm713, %v542, 0.0
  %v820 = vadd.f32 %v818, %v819
  %v821 = vsel %vm713, %v547, 0.0
  %v822 = vadd.f32 %v820, %v821
  %v823 = vsel %vm713, %v550, 0.0
  %v824 = vadd.f32 %v822, %v823
  %v825 = vsel %vm713, %v555, 0.0
  %v826 = vadd.f32 %v824, %v825
  %v827 = vsel %vm713, %v558, 0.0
  %v828 = vadd.f32 %v826, %v827
  %v829 = vsel %vm713, %v563, 0.0
  %v830 = vadd.f32 %v828, %v829
  %v831 = vsel %vm713, %v566, 0.0
  %v832 = vadd.f32 %v830, %v831
  %v833 = vsel %vm713, %v571, 0.0
  %v834 = vadd.f32 %v832, %v833
  %v835 = vsel %vm713, %v574, 0.0
  %v836 = vadd.f32 %v834, %v835
  %v837 = vsel %vm713, %v579, 0.0
  %v838 = vadd.f32 %v836, %v837
  %v839 = vsel %vm713, %v582, 0.0
  %v840 = vadd.f32 %v838, %v839
  %v841 = vsel %vm713, %v587, 0.0
  %v842 = vadd.f32 %v840, %v841
  %v843 = vsel %vm713, %v590, 0.0
  %v844 = vadd.f32 %v842, %v843
  %v845 = vsel %vm713, %v595, 0.0
  %v846 = vadd.f32 %v844, %v845
  %v847 = vsel %vm713, %v598, 0.0
  %v848 = vadd.f32 %v846, %v847
  %v849 = vsel %vm713, %v603, 0.0
  %v850 = vadd.f32 %v848, %v849
  %v851 = vsel %vm713, %v606, 0.0
  %v852 = vadd.f32 %v850, %v851
  %v853 = vsel %vm713, %v611, 0.0
  %v854 = vadd.f32 %v852, %v853
  %v855 = vsel %vm713, %v614, 0.0
  %v856 = vadd.f32 %v854, %v855
  %v857 = vsel %vm713, %v619, 0.0
  %v858 = vadd.f32 %v856, %v857
  %v859 = vsel %vm713, %v622, 0.0
  %v860 = vadd.f32 %v858, %v859
  %v861 = vsel %vm713, %v627, 0.0
  %v862 = vadd.f32 %v860, %v861
  %v863 = vsel %vm713, %v630, 0.0
  %v864 = vadd.f32 %v862, %v863
  %v865 = vsel %vm713, %v635, 0.0
  %v866 = vadd.f32 %v864, %v865
  %v867 = vsel %vm713, %v638, 0.0
  %v868 = vadd.f32 %v866, %v867
  %v869 = vsel %vm713, %v643, 0.0
  %v870 = vadd.f32 %v868, %v869
  %v871 = vsel %vm713, %v646, 0.0
  %v872 = vadd.f32 %v870, %v871
  %v873 = vsel %vm713, %v651, 0.0
  %v874 = vadd.f32 %v872, %v873
  %v875 = vsel %vm713, %v654, 0.0
  %v876 = vadd.f32 %v874, %v875
  %v877 = vsel %vm713, %v659, 0.0
  %v878 = vadd.f32 %v876, %v877
  %v879 = vsel %vm713, %v662, 0.0
  %v880 = vadd.f32 %v878, %v879
  %v881 = vsel %vm713, %v667, 0.0
  %v882 = vadd.f32 %v880, %v881
  %v883 = vsel %vm713, %v670, 0.0
  %v884 = vadd.f32 %v882, %v883
  %v885 = vsel %vm713, %v675, 0.0
  %v886 = vadd.f32 %v884, %v885
  %v887 = vsel %vm713, %v678, 0.0
  %v888 = vadd.f32 %v886, %v887
  %v889 = vsel %vm713, %v683, 0.0
  %v890 = vadd.f32 %v888, %v889
  %v891 = vsel %vm713, %v686, 0.0
  %v892 = vadd.f32 %v890, %v891
  %v893 = vsel %vm713, %v691, 0.0
  %v894 = vadd.f32 %v892, %v893
  %v895 = vsel %vm713, %v694, 0.0
  %v896 = vadd.f32 %v894, %v895
  %v897 = vsel %vm713, %v699, 0.0
  %v898 = vadd.f32 %v896, %v897
  %v899 = vsel %vm713, %v702, 0.0
  %v900 = vadd.f32 %v898, %v899
  %v901 = vsel %vm713, %v707, 0.0
  %v902 = vadd.f32 %v900, %v901
  %v903 = vsel %vm713, %v710, 0.0
  %v904 = vadd.f32 %v902, %v903
  %v905 = vrot.slane %v904, 4
  %v906 = vadd.f32 %v904, %v905
  %v907 = vrot.slane %v906, 2
  %v908 = vadd.f32 %v906, %v907
  %v909 = vrot.slane %v908, 1
  %v910 = vadd.f32 %v908, %v909
  %v911 = vmul.f32 %v459, %v459
  %v912 = vmul.f32 %v462, %v462
  %v913 = vmul.f32 %v467, %v467
  %v914 = vmul.f32 %v470, %v470
  %v915 = vmul.f32 %v475, %v475
  %v916 = vmul.f32 %v478, %v478
  %v917 = vmul.f32 %v483, %v483
  %v918 = vmul.f32 %v486, %v486
  %v919 = vmul.f32 %v491, %v491
  %v920 = vmul.f32 %v494, %v494
  %v921 = vmul.f32 %v499, %v499
  %v922 = vmul.f32 %v502, %v502
  %v923 = vmul.f32 %v507, %v507
  %v924 = vmul.f32 %v510, %v510
  %v925 = vmul.f32 %v515, %v515
  %v926 = vmul.f32 %v518, %v518
  %v927 = vmul.f32 %v523, %v523
  %v928 = vmul.f32 %v526, %v526
  %v929 = vmul.f32 %v531, %v531
  %v930 = vmul.f32 %v534, %v534
  %v931 = vmul.f32 %v539, %v539
  %v932 = vmul.f32 %v542, %v542
  %v933 = vmul.f32 %v547, %v547
  %v934 = vmul.f32 %v550, %v550
  %v935 = vmul.f32 %v555, %v555
  %v936 = vmul.f32 %v558, %v558
  %v937 = vmul.f32 %v563, %v563
  %v938 = vmul.f32 %v566, %v566
  %v939 = vmul.f32 %v571, %v571
  %v940 = vmul.f32 %v574, %v574
  %v941 = vmul.f32 %v579, %v579
  %v942 = vmul.f32 %v582, %v582
  %v943 = vmul.f32 %v587, %v587
  %v944 = vmul.f32 %v590, %v590
  %v945 = vmul.f32 %v595, %v595
  %v946 = vmul.f32 %v598, %v598
  %v947 = vmul.f32 %v603, %v603
  %v948 = vmul.f32 %v606, %v606
  %v949 = vmul.f32 %v611, %v611
  %v950 = vmul.f32 %v614, %v614
  %v951 = vmul.f32 %v619, %v619
  %v952 = vmul.f32 %v622, %v622
  %v953 = vmul.f32 %v627, %v627
  %v954 = vmul.f32 %v630, %v630
  %v955 = vmul.f32 %v635, %v635
  %v956 = vmul.f32 %v638, %v638
  %v957 = vmul.f32 %v643, %v643
  %v958 = vmul.f32 %v646, %v646
  %v959 = vmul.f32 %v651, %v651
  %v960 = vmul.f32 %v654, %v654
  %v961 = vmul.f32 %v659, %v659
  %v962 = vmul.f32 %v662, %v662
  %v963 = vmul.f32 %v667, %v667
  %v964 = vmul.f32 %v670, %v670
  %v965 = vmul.f32 %v675, %v675
  %v966 = vmul.f32 %v678, %v678
  %v967 = vmul.f32 %v683, %v683
  %v968 = vmul.f32 %v686, %v686
  %v969 = vmul.f32 %v691, %v691
  %v970 = vmul.f32 %v694, %v694
  %v971 = vmul.f32 %v699, %v699
  %v972 = vmul.f32 %v702, %v702
  %v973 = vmul.f32 %v707, %v707
  %v974 = vmul.f32 %v710, %v710
  %v975 = vsel %vm713, %v911, 0.0
  %v976 = vsel %vm713, %v912, 0.0
  %v977 = vadd.f32 %v975, %v976
  %v978 = vsel %vm713, %v913, 0.0
  %v979 = vadd.f32 %v977, %v978
  %v980 = vsel %vm713, %v914, 0.0
  %v981 = vadd.f32 %v979, %v980
  %v982 = vsel %vm713, %v915, 0.0
  %v983 = vadd.f32 %v981, %v982
  %v984 = vsel %vm713, %v916, 0.0
  %v985 = vadd.f32 %v983, %v984
  %v986 = vsel %vm713, %v917, 0.0
  %v987 = vadd.f32 %v985, %v986
  %v988 = vsel %vm713, %v918, 0.0
  %v989 = vadd.f32 %v987, %v988
  %v990 = vsel %vm713, %v919, 0.0
  %v991 = vadd.f32 %v989, %v990
  %v992 = vsel %vm713, %v920, 0.0
  %v993 = vadd.f32 %v991, %v992
  %v994 = vsel %vm713, %v921, 0.0
  %v995 = vadd.f32 %v993, %v994
  %v996 = vsel %vm713, %v922, 0.0
  %v997 = vadd.f32 %v995, %v996
  %v998 = vsel %vm713, %v923, 0.0
  %v999 = vadd.f32 %v997, %v998
  %v1000 = vsel %vm713, %v924, 0.0
  %v1001 = vadd.f32 %v999, %v1000
  %v1002 = vsel %vm713, %v925, 0.0
  %v1003 = vadd.f32 %v1001, %v1002
  %v1004 = vsel %vm713, %v926, 0.0
  %v1005 = vadd.f32 %v1003, %v1004
  %v1006 = vsel %vm713, %v927, 0.0
  %v1007 = vadd.f32 %v1005, %v1006
  %v1008 = vsel %vm713, %v928, 0.0
  %v1009 = vadd.f32 %v1007, %v1008
  %v1010 = vsel %vm713, %v929, 0.0
  %v1011 = vadd.f32 %v1009, %v1010
  %v1012 = vsel %vm713, %v930, 0.0
  %v1013 = vadd.f32 %v1011, %v1012
  %v1014 = vsel %vm713, %v931, 0.0
  %v1015 = vadd.f32 %v1013, %v1014
  %v1016 = vsel %vm713, %v932, 0.0
  %v1017 = vadd.f32 %v1015, %v1016
  %v1018 = vsel %vm713, %v933, 0.0
  %v1019 = vadd.f32 %v1017, %v1018
  %v1020 = vsel %vm713, %v934, 0.0
  %v1021 = vadd.f32 %v1019, %v1020
  %v1022 = vsel %vm713, %v935, 0.0
  %v1023 = vadd.f32 %v1021, %v1022
  %v1024 = vsel %vm713, %v936, 0.0
  %v1025 = vadd.f32 %v1023, %v1024
  %v1026 = vsel %vm713, %v937, 0.0
  %v1027 = vadd.f32 %v1025, %v1026
  %v1028 = vsel %vm713, %v938, 0.0
  %v1029 = vadd.f32 %v1027, %v1028
  %v1030 = vsel %vm713, %v939, 0.0
  %v1031 = vadd.f32 %v1029, %v1030
  %v1032 = vsel %vm713, %v940, 0.0
  %v1033 = vadd.f32 %v1031, %v1032
  %v1034 = vsel %vm713, %v941, 0.0
  %v1035 = vadd.f32 %v1033, %v1034
  %v1036 = vsel %vm713, %v942, 0.0
  %v1037 = vadd.f32 %v1035, %v1036
  %v1038 = vsel %vm713, %v943, 0.0
  %v1039 = vadd.f32 %v1037, %v1038
  %v1040 = vsel %vm713, %v944, 0.0
  %v1041 = vadd.f32 %v1039, %v1040
  %v1042 = vsel %vm713, %v945, 0.0
  %v1043 = vadd.f32 %v1041, %v1042
  %v1044 = vsel %vm713, %v946, 0.0
  %v1045 = vadd.f32 %v1043, %v1044
  %v1046 = vsel %vm713, %v947, 0.0
  %v1047 = vadd.f32 %v1045, %v1046
  %v1048 = vsel %vm713, %v948, 0.0
  %v1049 = vadd.f32 %v1047, %v1048
  %v1050 = vsel %vm713, %v949, 0.0
  %v1051 = vadd.f32 %v1049, %v1050
  %v1052 = vsel %vm713, %v950, 0.0
  %v1053 = vadd.f32 %v1051, %v1052
  %v1054 = vsel %vm713, %v951, 0.0
  %v1055 = vadd.f32 %v1053, %v1054
  %v1056 = vsel %vm713, %v952, 0.0
  %v1057 = vadd.f32 %v1055, %v1056
  %v1058 = vsel %vm713, %v953, 0.0
  %v1059 = vadd.f32 %v1057, %v1058
  %v1060 = vsel %vm713, %v954, 0.0
  %v1061 = vadd.f32 %v1059, %v1060
  %v1062 = vsel %vm713, %v955, 0.0
  %v1063 = vadd.f32 %v1061, %v1062
  %v1064 = vsel %vm713, %v956, 0.0
  %v1065 = vadd.f32 %v1063, %v1064
  %v1066 = vsel %vm713, %v957, 0.0
  %v1067 = vadd.f32 %v1065, %v1066
  %v1068 = vsel %vm713, %v958, 0.0
  %v1069 = vadd.f32 %v1067, %v1068
  %v1070 = vsel %vm713, %v959, 0.0
  %v1071 = vadd.f32 %v1069, %v1070
  %v1072 = vsel %vm713, %v960, 0.0
  %v1073 = vadd.f32 %v1071, %v1072
  %v1074 = vsel %vm713, %v961, 0.0
  %v1075 = vadd.f32 %v1073, %v1074
  %v1076 = vsel %vm713, %v962, 0.0
  %v1077 = vadd.f32 %v1075, %v1076
  %v1078 = vsel %vm713, %v963, 0.0
  %v1079 = vadd.f32 %v1077, %v1078
  %v1080 = vsel %vm713, %v964, 0.0
  %v1081 = vadd.f32 %v1079, %v1080
  %v1082 = vsel %vm713, %v965, 0.0
  %v1083 = vadd.f32 %v1081, %v1082
  %v1084 = vsel %vm713, %v966, 0.0
  %v1085 = vadd.f32 %v1083, %v1084
  %v1086 = vsel %vm713, %v967, 0.0
  %v1087 = vadd.f32 %v1085, %v1086
  %v1088 = vsel %vm713, %v968, 0.0
  %v1089 = vadd.f32 %v1087, %v1088
  %v1090 = vsel %vm713, %v969, 0.0
  %v1091 = vadd.f32 %v1089, %v1090
  %v1092 = vsel %vm713, %v970, 0.0
  %v1093 = vadd.f32 %v1091, %v1092
  %v1094 = vsel %vm713, %v971, 0.0
  %v1095 = vadd.f32 %v1093, %v1094
  %v1096 = vsel %vm713, %v972, 0.0
  %v1097 = vadd.f32 %v1095, %v1096
  %v1098 = vsel %vm713, %v973, 0.0
  %v1099 = vadd.f32 %v1097, %v1098
  %v1100 = vsel %vm713, %v974, 0.0
  %v1101 = vadd.f32 %v1099, %v1100
  %v1102 = vrot.slane %v1101, 4
  %v1103 = vadd.f32 %v1101, %v1102
  %v1104 = vrot.slane %v1103, 2
  %v1105 = vadd.f32 %v1103, %v1104
  %v1106 = vrot.slane %v1105, 1
  %v1107 = vadd.f32 %v1105, %v1106
  %vm1108 = vcmask 1040384
  %v1109 = vsel %vm1108, %v910, %v1107
  %vm1110 = vcmask 9216
  %1111 = vst.msk [vmem:[%s5] sm:$0x3] %vm1110, %v1109
  // Predicated region
  $region18: #{preact_bottleneck_forward.6} parent=0 // pred_check
    _
  $region19: #{preact_bottleneck_forward.6} parent=0 // pred_check_branch
    %1113 = sbr.rel (0) target = $region21
  $region20: #{preact_bottleneck_forward.6} parent=0 // pred_region
    _
  $region21: #{preact_bottleneck_forward.6} parent=0 // pred_fallthru
    _
  // Predicated region
  $region22: #{preact_bottleneck_forward.6} parent=0 // pred_check
    _
  $region23: #{preact_bottleneck_forward.6} parent=0 // pred_check_branch
    %1115 = sbr.rel (0) target = $region25
  $region24: #{preact_bottleneck_forward.6} parent=0 // pred_region
    _
  $region25: #{preact_bottleneck_forward.6} parent=0 // pred_fallthru
    _
  // Predicated region
  $region26: #{preact_bottleneck_forward.6} parent=0 // pred_check
    _
  $region27: #{preact_bottleneck_forward.6} parent=0 // pred_check_branch
    %1117 = sbr.rel (0) target = $region29
  $region28: #{preact_bottleneck_forward.6} parent=0 // pred_region
    _
  $region29: #{preact_bottleneck_forward.6} parent=0 // pred_fallthru
    _
  // Predicated region
  $region30: #{preact_bottleneck_forward.6} parent=0 // pred_check
    _
  $region31: #{preact_bottleneck_forward.6} parent=0 // pred_check_branch
    %1119 = sbr.rel (0) target = $region33
  $region32: #{preact_bottleneck_forward.6} parent=0 // pred_region
    _
  $region33: #{preact_bottleneck_forward.6} parent=0 // pred_fallthru
    _

// kernel: preact_bottleneck_forward.7
$region0: #{preact_bottleneck_forward.7}
  #allocation0 [shape = 'u32[]', space=smem, size = 0x4, offset = 0x4, fixed_abs, tag = 'smem constant byte address 0x4 - core index']
  #allocation1 [shape = 'u32[144,128]{1,0:T(1,128)}', space=vmem, size = 0x12000, scoped, tag = 'internal scratch']
  #allocation2 [shape = 'f32[18,18,2]{2,1,0:T(8,128)}', space=vmem, size = 0x36000, scoped, tag = 'scratch operand']
  %s0 = inlined_call_operand.vmem [shape: f32[2,16,16,2], index: 0, kind: input, shape index: {}]
  %s1 = inlined_call_operand.vmem [shape: f32[1,1,2], index: 1, kind: input, shape index: {}]
  %s2 = inlined_call_operand.vmem [shape: f32[1,1,2], index: 2, kind: input, shape index: {}]
  %s3 = inlined_call_operand.vmem [shape: bf16[3,3,2,2], index: 3, kind: input, shape index: {}]
  %s4 = inlined_call_operand.vmem [shape: f32[2,8,8,2], index: 4, kind: output, shape index: {0}]
  %s5 = inlined_call_operand.vmem [shape: f32[2,2,2], index: 5, kind: output, shape index: {1}]
  %6 = xla_tuple %s4, %s5
  %s7 = sld [smem:[#allocation0]]
  $region57: #{preact_bottleneck_forward.7} parent=0
    _
  %s9 = ssub.s32 1, %s7
  %s10 = scalar_select 0, %s9, %s7
  loop: start=0, step=1, limit=4
  $region2: #{preact_bottleneck_forward.7} parent=0 // loop_pre_header
    _
  $region3: #{preact_bottleneck_forward.7} parent=0 // loop_header
    %s12 = sphi 0, %s16
    %p13 = scmp.ge.s32.totalorder %s12, 4
    %s22 = sphi 0, %s24
    %s25 = sphi 0, %s22
    %s26 = sphi 0, %s25
    %s42 = sphi 0, %s26
    %s46 = sphi 0, %s46
    %s48 = sphi 0, %s46
    %s49 = sphi 0, %s48
    %s63 = sphi 0, %s49
    %s67 = sphi 0, %s67
    %s69 = sphi 0, %s67
    %s70 = sphi 0, %s69
    %s84 = sphi 0, %s70
    %s88 = sphi 0, %s88
    %s90 = sphi 0, %s88
    %s91 = sphi 0, %s90
    %s105 = sphi 0, %s91
    %s111 = sphi 0, %s113
    %s114 = sphi 0, %s111
    %s115 = sphi 0, %s114
    %s131 = sphi 0, %s115
    %s137 = sphi 0, %s139
    %s140 = sphi 0, %s137
    %s141 = sphi 0, %s140
    %s157 = sphi 0, %s141
  $region4: #{preact_bottleneck_forward.7} parent=0 // loop_header_branch
    %15 = sbr.rel (%p13) target = $region8
  $region5: #{preact_bottleneck_forward.7} parent=0 // loop_body
    %s17 = ssub.s32 %s12, 1
    %s18 = ssub.s32 %s12, 2
    %s19 = sadd.s32 %s12, 1
    %s20 = ssub.s32 %s12, %s19
    %p21 = scmp.eq.s32.totalorder %s20, 0
    %s23 = sadd.s32 %s22, 1
    %s24 = scalar_select %p21, %s22, %s23
    %p27 = pneg %p21
    %p28 = scmp.eq.s32.totalorder %s12, 1
    %p29 = por %p27, %p28
    %p30 = scmp.ne.s32.totalorder %s22, %s25
    %p31 = scmp.eq.s32.totalorder %s12, 0
    %p32 = por %p30, %p31
    %p33 = scmp.ne.s32.totalorder %s22, %s25
    %p34 = scmp.eq.s32.totalorder %s17, 1
    %p35 = por %p33, %p34
    %p36 = scmp.ne.s32.totalorder %s25, %s26
    %p37 = scmp.eq.s32.totalorder %s17, 0
    %p38 = por %p36, %p37
    %p39 = scmp.ne.s32.totalorder %s25, %s26
    %p40 = scmp.eq.s32.totalorder %s18, 1
    %p41 = por %p39, %p40
    %p43 = scmp.ne.s32.totalorder %s26, %s42
    %p44 = scmp.eq.s32.totalorder %s18, 0
    %p45 = por %p43, %p44
    %s47 = sadd.s32 %s46, 1
    %p50 = scmp.eq.s32.totalorder %s12, 1
    %p51 = scmp.ne.s32.totalorder %s46, %s48
    %p52 = scmp.eq.s32.totalorder %s12, 0
    %p53 = por %p51, %p52
    %p54 = scmp.ne.s32.totalorder %s46, %s48
    %p55 = scmp.eq.s32.totalorder %s17, 1
    %p56 = por %p54, %p55
    %p57 = scmp.ne.s32.totalorder %s48, %s49
    %p58 = scmp.eq.s32.totalorder %s17, 0
    %p59 = por %p57, %p58
    %p60 = scmp.ne.s32.totalorder %s48, %s49
    %p61 = scmp.eq.s32.totalorder %s18, 1
    %p62 = por %p60, %p61
    %p64 = scmp.ne.s32.totalorder %s49, %s63
    %p65 = scmp.eq.s32.totalorder %s18, 0
    %p66 = por %p64, %p65
    %s68 = sadd.s32 %s67, 1
    %p71 = scmp.eq.s32.totalorder %s12, 1
    %p72 = scmp.ne.s32.totalorder %s67, %s69
    %p73 = scmp.eq.s32.totalorder %s12, 0
    %p74 = por %p72, %p73
    %p75 = scmp.ne.s32.totalorder %s67, %s69
    %p76 = scmp.eq.s32.totalorder %s17, 1
    %p77 = por %p75, %p76
    %p78 = scmp.ne.s32.totalorder %s69, %s70
    %p79 = scmp.eq.s32.totalorder %s17, 0
    %p80 = por %p78, %p79
    %p81 = scmp.ne.s32.totalorder %s69, %s70
    %p82 = scmp.eq.s32.totalorder %s18, 1
    %p83 = por %p81, %p82
    %p85 = scmp.ne.s32.totalorder %s70, %s84
    %p86 = scmp.eq.s32.totalorder %s18, 0
    %p87 = por %p85, %p86
    %s89 = sadd.s32 %s88, 1
    %p92 = scmp.eq.s32.totalorder %s12, 1
    %p93 = scmp.ne.s32.totalorder %s88, %s90
    %p94 = scmp.eq.s32.totalorder %s12, 0
    %p95 = por %p93, %p94
    %p96 = scmp.ne.s32.totalorder %s88, %s90
    %p97 = scmp.eq.s32.totalorder %s17, 1
    %p98 = por %p96, %p97
    %p99 = scmp.ne.s32.totalorder %s90, %s91
    %p100 = scmp.eq.s32.totalorder %s17, 0
    %p101 = por %p99, %p100
    %p102 = scmp.ne.s32.totalorder %s90, %s91
    %p103 = scmp.eq.s32.totalorder %s18, 1
    %p104 = por %p102, %p103
    %p106 = scmp.ne.s32.totalorder %s91, %s105
    %p107 = scmp.eq.s32.totalorder %s18, 0
    %p108 = por %p106, %p107
    %s109 = ssub.s32 %s12, %s19
    %p110 = scmp.eq.s32.totalorder %s109, 0
    %s112 = sadd.s32 %s111, 1
    %s113 = scalar_select %p110, %s111, %s112
    %p116 = pneg %p110
    %p117 = scmp.eq.s32.totalorder %s12, 1
    %p118 = por %p116, %p117
    %p119 = scmp.ne.s32.totalorder %s111, %s114
    %p120 = scmp.eq.s32.totalorder %s12, 0
    %p121 = por %p119, %p120
    %p122 = scmp.ne.s32.totalorder %s111, %s114
    %p123 = scmp.eq.s32.totalorder %s17, 1
    %p124 = por %p122, %p123
    %p125 = scmp.ne.s32.totalorder %s114, %s115
    %p126 = scmp.eq.s32.totalorder %s17, 0
    %p127 = por %p125, %p126
    %p128 = scmp.ne.s32.totalorder %s114, %s115
    %p129 = scmp.eq.s32.totalorder %s18, 1
    %p130 = por %p128, %p129
    %p132 = scmp.ne.s32.totalorder %s115, %s131
    %p133 = scmp.eq.s32.totalorder %s18, 0
    %p134 = por %p132, %p133
    %s135 = ssub.s32 %s12, %s19
    %p136 = scmp.eq.s32.totalorder %s135, 0
    %s138 = sadd.s32 %s137, 1
    %s139 = scalar_select %p136, %s137, %s138
    %p142 = pneg %p136
    %p143 = scmp.eq.s32.totalorder %s12, 1
    %p144 = por %p142, %p143
    %p145 = scmp.ne.s32.totalorder %s137, %s140
    %p146 = scmp.eq.s32.totalorder %s12, 0
    %p147 = por %p145, %p146
    %p148 = scmp.ne.s32.totalorder %s137, %s140
    %p149 = scmp.eq.s32.totalorder %s17, 1
    %p150 = por %p148, %p149
    %p151 = scmp.ne.s32.totalorder %s140, %s141
    %p152 = scmp.eq.s32.totalorder %s17, 0
    %p153 = por %p151, %p152
    %p154 = scmp.ne.s32.totalorder %s140, %s141
    %p155 = scmp.eq.s32.totalorder %s18, 1
    %p156 = por %p154, %p155
    %p158 = scmp.ne.s32.totalorder %s141, %s157
    %p159 = scmp.eq.s32.totalorder %s18, 0
    %p160 = por %p158, %p159
    %p161 = scmp.le.s32.totalorder 1, %s12
    %p162 = scmp.lt.s32.totalorder %s12, 3
    %p163 = pnand %p161, %p162
    %p164 = pneg %p163
    // Predicated region
    $region9: #{preact_bottleneck_forward.7} parent=5 // pred_check
      _
    $region10: #{preact_bottleneck_forward.7} parent=5 // pred_check_branch
      %166 = sbr.rel (%p163) target = $region12
    $region11: #{preact_bottleneck_forward.7} parent=5 // pred_region
      %s167 = ssub.s32 %s12, 1
      // Predicated region
      $region13: #{preact_bottleneck_forward.7} parent=11 // pred_check
        %p168 = pneg %p59
      $region14: #{preact_bottleneck_forward.7} parent=11 // pred_check_branch
        %170 = sbr.rel (%p168) target = $region16
      $region15: #{preact_bottleneck_forward.7} parent=11 // pred_region
        _
      $region16: #{preact_bottleneck_forward.7} parent=11 // pred_fallthru
        _
      // Predicated region
      $region17: #{preact_bottleneck_forward.7} parent=11 // pred_check
        %p171 = pneg %p80
      $region18: #{preact_bottleneck_forward.7} parent=11 // pred_check_branch
        %173 = sbr.rel (%p171) target = $region20
      $region19: #{preact_bottleneck_forward.7} parent=11 // pred_region
        _
      $region20: #{preact_bottleneck_forward.7} parent=11 // pred_fallthru
        _
      // Predicated region
      $region21: #{preact_bottleneck_forward.7} parent=11 // pred_check
        %p174 = pneg %p101
      $region22: #{preact_bottleneck_forward.7} parent=11 // pred_check_branch
        %176 = sbr.rel (%p174) target = $region24
      $region23: #{preact_bottleneck_forward.7} parent=11 // pred_region
        _
      $region24: #{preact_bottleneck_forward.7} parent=11 // pred_fallthru
        _
    $region12: #{preact_bottleneck_forward.7} parent=5 // pred_fallthru
      _
    %p177 = scmp.lt.s32.totalorder %s12, 2
    // Predicated region
    $region25: #{preact_bottleneck_forward.7} parent=5 // pred_check
      %p178 = pneg %p177
    $region26: #{preact_bottleneck_forward.7} parent=5 // pred_check_branch
      %180 = sbr.rel (%p178) target = $region28
    $region27: #{preact_bottleneck_forward.7} parent=5 // pred_region
      // Predicated region
      $region29: #{preact_bottleneck_forward.7} parent=27 // pred_check
        %p181 = pneg %p32
      $region30: #{preact_bottleneck_forward.7} parent=27 // pred_check_branch
        %183 = sbr.rel (%p181) target = $region32
      $region31: #{preact_bottleneck_forward.7} parent=27 // pred_region
        %p184 = scmp.lt.s32.totalorder %s12, 1
        %s185 = scalar_select %p184, %s12, 1
        %s186 = smul.addr %s185, 32
        %s187 = smul.addr %s186, 8
        %s188 = scalar_lea.vmem %s0, %s187
      $region32: #{preact_bottleneck_forward.7} parent=27 // pred_fallthru
        _
    $region28: #{preact_bottleneck_forward.7} parent=5 // pred_fallthru
      _
    %p189 = scmp.le.s32.totalorder 1, %s12
    %p190 = scmp.lt.s32.totalorder %s12, 3
    %p191 = pnand %p189, %p190
    %p192 = pneg %p191
    // Predicated region
    $region33: #{preact_bottleneck_forward.7} parent=5 // pred_check
      _
    $region34: #{preact_bottleneck_forward.7} parent=5 // pred_check_branch
      %194 = sbr.rel (%p191) target = $region36
    $region35: #{preact_bottleneck_forward.7} parent=5 // pred_region
      %s195 = ssub.s32 %s12, 1
      %p196 = scmp.lt.s32.totalorder %s17, 1
      %s197 = scalar_select %p196, %s17, 1
      %s198 = smul.addr %s197, 32
      %s199 = smul.addr %s198, 8
      %s200 = scalar_lea.vmem %s0, %s199
      %p201 = pneg %p38
      %p202 = pneg %p35
      %p203 = pneg %p59
      %p204 = pneg %p56
      %p205 = pneg %p80
      %p206 = pneg %p77
      %p207 = pneg %p101
      %p208 = pneg %p98
      %p209 = pneg %p127
      %p210 = pneg %p124
      %p211 = scmp.lt.s32.totalorder %s17, 1
      %s212 = scalar_select %p211, %s17, 1
      %s213 = smul.addr %s212, 8
      %s214 = smul.addr %s213, 8
      %s215 = scalar_lea.vmem %s4, %s214
      %p216 = pneg %p153
      %p217 = pneg %p150
      %p218 = scmp.lt.s32.totalorder %s17, 1
      %s219 = scalar_select %p218, %s17, 1
      %s220 = smul.addr %s219, 2
      %s221 = scalar_lea.vmem %s5, %s220
      %p222 = scmp.lt.s32.totalorder %s17, 1
      %s223 = scalar_select %p222, %s17, 1
      %s224 = smul.addr %s223, 32
      %s225 = smul.addr %s224, 8
      %s226 = scalar_lea.vmem %s0, %s225
      %p227 = scmp.lt.s32.totalorder %s17, 1
      %s228 = scalar_select %p227, %s17, 1
      %s229 = smul.addr %s228, 8
      %s230 = smul.addr %s229, 8
      %s231 = scalar_lea.vmem %s4, %s230
      %p232 = scmp.lt.s32.totalorder %s17, 1
      %s233 = scalar_select %p232, %s17, 1
      %s234 = smul.addr %s233, 2
      %s235 = scalar_lea.vmem %s5, %s234
      %vm237 = vcmask 15360
      %238 = vst.msk [vmem:[#allocation2] sm:$0xff] %vm237, 0.0
      %239 = vst.msk [vmem:[#allocation2 + $0x8] sm:$0xff] %vm237, 0.0
      %vm240 = vcmask 9216
      %241 = vst.msk [vmem:[#allocation2 + $0x10] sm:$0x3] %vm240, 0.0
      %s242 = scalar_lea.vmem [#allocation2], 408
      %243 = vst.msk [vmem:[%s242] sm:$0xff] %vm237, 0.0
      %244 = vst.msk [vmem:[%s242 + $0x8] sm:$0xff] %vm237, 0.0
      %245 = vst.msk [vmem:[%s242 + $0x10] sm:$0x3] %vm240, 0.0
      %s246 = scalar_lea.vmem [#allocation2], 24
      %vm247 = vcmask 8192
      %248 = vst.msk [vmem:[%s246] sm:$0x1] %vm247, 0.0
      %249 = vst.msk [vmem:[%s246 + $0x18] sm:$0x1] %vm247, 0.0
      %250 = vst.msk [vmem:[%s246 + $0x30] sm:$0x1] %vm247, 0.0
      %251 = vst.msk [vmem:[%s246 + $0x48] sm:$0x1] %vm247, 0.0
      %252 = vst.msk [vmem:[%s246 + $0x60] sm:$0x1] %vm247, 0.0
      %253 = vst.msk [vmem:[%s246 + $0x78] sm:$0x1] %vm247, 0.0
      %254 = vst.msk [vmem:[%s246 + $0x90] sm:$0x1] %vm247, 0.0
      %255 = vst.msk [vmem:[%s246 + $0xa8] sm:$0x1] %vm247, 0.0
      %256 = vst.msk [vmem:[%s246 + $0xc0] sm:$0x1] %vm247, 0.0
      %257 = vst.msk [vmem:[%s246 + $0xd8] sm:$0x1] %vm247, 0.0
      %258 = vst.msk [vmem:[%s246 + $0xf0] sm:$0x1] %vm247, 0.0
      %259 = vst.msk [vmem:[%s246 + $0x108] sm:$0x1] %vm247, 0.0
      %260 = vst.msk [vmem:[%s246 + $0x120] sm:$0x1] %vm247, 0.0
      %261 = vst.msk [vmem:[%s246 + $0x138] sm:$0x1] %vm247, 0.0
      %262 = vst.msk [vmem:[%s246 + $0x150] sm:$0x1] %vm247, 0.0
      %263 = vst.msk [vmem:[%s246 + $0x168] sm:$0x1] %vm247, 0.0
      %264 = vst.msk [vmem:[%s246 + $0x11] sm:$0x1] %vm247, 0.0
      %265 = vst.msk [vmem:[%s246 + $0x29] sm:$0x1] %vm247, 0.0
      %266 = vst.msk [vmem:[%s246 + $0x41] sm:$0x1] %vm247, 0.0
      %267 = vst.msk [vmem:[%s246 + $0x59] sm:$0x1] %vm247, 0.0
      %268 = vst.msk [vmem:[%s246 + $0x71] sm:$0x1] %vm247, 0.0
      %269 = vst.msk [vmem:[%s246 + $0x89] sm:$0x1] %vm247, 0.0
      %270 = vst.msk [vmem:[%s246 + $0xa1] sm:$0x1] %vm247, 0.0
      %271 = vst.msk [vmem:[%s246 + $0xb9] sm:$0x1] %vm247, 0.0
      %272 = vst.msk [vmem:[%s246 + $0xd1] sm:$0x1] %vm247, 0.0
      %273 = vst.msk [vmem:[%s246 + $0xe9] sm:$0x1] %vm247, 0.0
      %274 = vst.msk [vmem:[%s246 + $0x101] sm:$0x1] %vm247, 0.0
      %275 = vst.msk [vmem:[%s246 + $0x119] sm:$0x1] %vm247, 0.0
      %276 = vst.msk [vmem:[%s246 + $0x131] sm:$0x1] %vm247, 0.0
      %277 = vst.msk [vmem:[%s246 + $0x149] sm:$0x1] %vm247, 0.0
      %278 = vst.msk [vmem:[%s246 + $0x161] sm:$0x1] %vm247, 0.0
      %279 = vst.msk [vmem:[%s246 + $0x179] sm:$0x1] %vm247, 0.0
      %v280 = vld [vmem:[%s226] sm:$0xff]
      %v281 = vld [vmem:[%s226 + $0x8] sm:$0xff]
      %v282 = vld [vmem:[%s226 + $0x10] sm:$0xff]
      %v283 = vld [vmem:[%s226 + $0x18] sm:$0xff]
      %v284 = vld [vmem:[%s226 + $0x20] sm:$0xff]
      %v285 = vld [vmem:[%s226 + $0x28] sm:$0xff]
      %v286 = vld [vmem:[%s226 + $0x30] sm:$0xff]
      %v287 = vld [vmem:[%s226 + $0x38] sm:$0xff]
      %v288 = vld [vmem:[%s226 + $0x40] sm:$0xff]
      %v289 = vld [vmem:[%s226 + $0x48] sm:$0xff]
      %v290 = vld [vmem:[%s226 + $0x50] sm:$0xff]
      %v291 = vld [vmem:[%s226 + $0x58] sm:$0xff]
      %v292 = vld [vmem:[%s226 + $0x60] sm:$0xff]
      %v293 = vld [vmem:[%s226 + $0x68] sm:$0xff]
      %v294 = vld [vmem:[%s226 + $0x70] sm:$0xff]
      %v295 = vld [vmem:[%s226 + $0x78] sm:$0xff]
      %v296 = vld [vmem:[%s226 + $0x80] sm:$0xff]
      %v297 = vld [vmem:[%s226 + $0x88] sm:$0xff]
      %v298 = vld [vmem:[%s226 + $0x90] sm:$0xff]
      %v299 = vld [vmem:[%s226 + $0x98] sm:$0xff]
      %v300 = vld [vmem:[%s226 + $0xa0] sm:$0xff]
      %v301 = vld [vmem:[%s226 + $0xa8] sm:$0xff]
      %v302 = vld [vmem:[%s226 + $0xb0] sm:$0xff]
      %v303 = vld [vmem:[%s226 + $0xb8] sm:$0xff]
      %v304 = vld [vmem:[%s226 + $0xc0] sm:$0xff]
      %v305 = vld [vmem:[%s226 + $0xc8] sm:$0xff]
      %v306 = vld [vmem:[%s226 + $0xd0] sm:$0xff]
      %v307 = vld [vmem:[%s226 + $0xd8] sm:$0xff]
      %v308 = vld [vmem:[%s226 + $0xe0] sm:$0xff]
      %v309 = vld [vmem:[%s226 + $0xe8] sm:$0xff]
      %v310 = vld [vmem:[%s226 + $0xf0] sm:$0xff]
      %v311 = vld [vmem:[%s226 + $0xf8] sm:$0xff]
      %v312 = vld [vmem:[%s1] sm:$0x1]
      %v314 = vlaneseq
      %v315 = vshrl.u32 %v314, 7
      %v316 = vsub.s32 0, %v315
      %v317 = vrot.slane %v312, %v316
      %v319 = vmul.f32 %v280, %v317
      %v320 = vmul.f32 %v281, %v317
      %v321 = vmul.f32 %v282, %v317
      %v322 = vmul.f32 %v283, %v317
      %v323 = vmul.f32 %v284, %v317
      %v324 = vmul.f32 %v285, %v317
      %v325 = vmul.f32 %v286, %v317
      %v326 = vmul.f32 %v287, %v317
      %v327 = vmul.f32 %v288, %v317
      %v328 = vmul.f32 %v289, %v317
      %v329 = vmul.f32 %v290, %v317
      %v330 = vmul.f32 %v291, %v317
      %v331 = vmul.f32 %v292, %v317
      %v332 = vmul.f32 %v293, %v317
      %v333 = vmul.f32 %v294, %v317
      %v334 = vmul.f32 %v295, %v317
      %v335 = vmul.f32 %v296, %v317
      %v336 = vmul.f32 %v297, %v317
      %v337 = vmul.f32 %v298, %v317
      %v338 = vmul.f32 %v299, %v317
      %v339 = vmul.f32 %v300, %v317
      %v340 = vmul.f32 %v301, %v317
      %v341 = vmul.f32 %v302, %v317
      %v342 = vmul.f32 %v303, %v317
      %v343 = vmul.f32 %v304, %v317
      %v344 = vmul.f32 %v305, %v317
      %v345 = vmul.f32 %v306, %v317
      %v346 = vmul.f32 %v307, %v317
      %v347 = vmul.f32 %v308, %v317
      %v348 = vmul.f32 %v309, %v317
      %v349 = vmul.f32 %v310, %v317
      %v350 = vmul.f32 %v311, %v317
      %v351 = vld [vmem:[%s2] sm:$0x1]
      %v353 = vlaneseq
      %v354 = vshrl.u32 %v353, 7
      %v355 = vsub.s32 0, %v354
      %v356 = vrot.slane %v351, %v355
      %v358 = vadd.f32 %v319, %v356
      %v359 = vadd.f32 %v320, %v356
      %v360 = vadd.f32 %v321, %v356
      %v361 = vadd.f32 %v322, %v356
      %v362 = vadd.f32 %v323, %v356
      %v363 = vadd.f32 %v324, %v356
      %v364 = vadd.f32 %v325, %v356
      %v365 = vadd.f32 %v326, %v356
      %v366 = vadd.f32 %v327, %v356
      %v367 = vadd.f32 %v328, %v356
      %v368 = vadd.f32 %v329, %v356
      %v369 = vadd.f32 %v330, %v356
      %v370 = vadd.f32 %v331, %v356
      %v371 = vadd.f32 %v332, %v356
      %v372 = vadd.f32 %v333, %v356
      %v373 = vadd.f32 %v334, %v356
      %v374 = vadd.f32 %v335, %v356
      %v375 = vadd.f32 %v336, %v356
      %v376 = vadd.f32 %v337, %v356
      %v377 = vadd.f32 %v338, %v356
      %v378 = vadd.f32 %v339, %v356
      %v379 = vadd.f32 %v340, %v356
      %v380 = vadd.f32 %v341, %v356
      %v381 = vadd.f32 %v342, %v356
      %v382 = vadd.f32 %v343, %v356
      %v383 = vadd.f32 %v344, %v356
      %v384 = vadd.f32 %v345, %v356
      %v385 = vadd.f32 %v346, %v356
      %v386 = vadd.f32 %v347, %v356
      %v387 = vadd.f32 %v348, %v356
      %v388 = vadd.f32 %v349, %v356
      %v389 = vadd.f32 %v350, %v356
      %v390 = vmax.f32 %v358, 0.0
      %v391 = vmax.f32 %v359, 0.0
      %v392 = vmax.f32 %v360, 0.0
      %v393 = vmax.f32 %v361, 0.0
      %v394 = vmax.f32 %v362, 0.0
      %v395 = vmax.f32 %v363, 0.0
      %v396 = vmax.f32 %v364, 0.0
      %v397 = vmax.f32 %v365, 0.0
      %v398 = vmax.f32 %v366, 0.0
      %v399 = vmax.f32 %v367, 0.0
      %v400 = vmax.f32 %v368, 0.0
      %v401 = vmax.f32 %v369, 0.0
      %v402 = vmax.f32 %v370, 0.0
      %v403 = vmax.f32 %v371, 0.0
      %v404 = vmax.f32 %v372, 0.0
      %v405 = vmax.f32 %v373, 0.0
      %v406 = vmax.f32 %v374, 0.0
      %v407 = vmax.f32 %v375, 0.0
      %v408 = vmax.f32 %v376, 0.0
      %v409 = vmax.f32 %v377, 0.0
      %v410 = vmax.f32 %v378, 0.0
      %v411 = vmax.f32 %v379, 0.0
      %v412 = vmax.f32 %v380, 0.0
      %v413 = vmax.f32 %v381, 0.0
      %v414 = vmax.f32 %v382, 0.0
      %v415 = vmax.f32 %v383, 0.0
      %v416 = vmax.f32 %v384, 0.0
      %v417 = vmax.f32 %v385, 0.0
      %v418 = vmax.f32 %v386, 0.0
      %v419 = vmax.f32 %v387, 0.0
      %v420 = vmax.f32 %v388, 0.0
      %v421 = vmax.f32 %v389, 0.0
      %422 = vst.msk [vmem:[%s246 + $0x1] sm:$0xff] %vm237, %v390
      %423 = vst.msk [vmem:[%s246 + $0x9] sm:$0xff] %vm237, %v391
      %424 = vst.msk [vmem:[%s246 + $0x19] sm:$0xff] %vm237, %v392
      %425 = vst.msk [vmem:[%s246 + $0x21] sm:$0xff] %vm237, %v393
      %426 = vst.msk [vmem:[%s246 + $0x31] sm:$0xff] %vm237, %v394
      %427 = vst.msk [vmem:[%s246 + $0x39] sm:$0xff] %vm237, %v395
      %428 = vst.msk [vmem:[%s246 + $0x49] sm:$0xff] %vm237, %v396
      %429 = vst.msk [vmem:[%s246 + $0x51] sm:$0xff] %vm237, %v397
      %430 = vst.msk [vmem:[%s246 + $0x61] sm:$0xff] %vm237, %v398
      %431 = vst.msk [vmem:[%s246 + $0x69] sm:$0xff] %vm237, %v399
      %432 = vst.msk [vmem:[%s246 + $0x79] sm:$0xff] %vm237, %v400
      %433 = vst.msk [vmem:[%s246 + $0x81] sm:$0xff] %vm237, %v401
      %434 = vst.msk [vmem:[%s246 + $0x91] sm:$0xff] %vm237, %v402
      %435 = vst.msk [vmem:[%s246 + $0x99] sm:$0xff] %vm237, %v403
      %436 = vst.msk [vmem:[%s246 + $0xa9] sm:$0xff] %vm237, %v404
      %437 = vst.msk [vmem:[%s246 + $0xb1] sm:$0xff] %vm237, %v405
      %438 = vst.msk [vmem:[%s246 + $0xc1] sm:$0xff] %vm237, %v406
      %439 = vst.msk [vmem:[%s246 + $0xc9] sm:$0xff] %vm237, %v407
      %440 = vst.msk [vmem:[%s246 + $0xd9] sm:$0xff] %vm237, %v408
      %441 = vst.msk [vmem:[%s246 + $0xe1] sm:$0xff] %vm237, %v409
      %442 = vst.msk [vmem:[%s246 + $0xf1] sm:$0xff] %vm237, %v410
      %443 = vst.msk [vmem:[%s246 + $0xf9] sm:$0xff] %vm237, %v411
      %444 = vst.msk [vmem:[%s246 + $0x109] sm:$0xff] %vm237, %v412
      %445 = vst.msk [vmem:[%s246 + $0x111] sm:$0xff] %vm237, %v413
      %446 = vst.msk [vmem:[%s246 + $0x121] sm:$0xff] %vm237, %v414
      %447 = vst.msk [vmem:[%s246 + $0x129] sm:$0xff] %vm237, %v415
      %448 = vst.msk [vmem:[%s246 + $0x139] sm:$0xff] %vm237, %v416
      %449 = vst.msk [vmem:[%s246 + $0x141] sm:$0xff] %vm237, %v417
      %450 = vst.msk [vmem:[%s246 + $0x151] sm:$0xff] %vm237, %v418
      %451 = vst.msk [vmem:[%s246 + $0x159] sm:$0xff] %vm237, %v419
      %452 = vst.msk [vmem:[%s246 + $0x169] sm:$0xff] %vm237, %v420
      %453 = vst.msk [vmem:[%s246 + $0x171] sm:$0xff] %vm237, %v421
      %v454 = vld [vmem:[#allocation2] ss:$2 sm:$0xff]
      %s455 = scalar_lea.vmem [#allocation2], 48
      %v456 = vld [vmem:[%s455] ss:$2 sm:$0xff]
      %s457 = scalar_lea.vmem [#allocation2], 96
      %v458 = vld [vmem:[%s457] ss:$2 sm:$0xff]
      %s459 = scalar_lea.vmem [#allocation2], 144
      %v460 = vld [vmem:[%s459] ss:$2 sm:$0xff]
      %s461 = scalar_lea.vmem [#allocation2], 192
      %v462 = vld [vmem:[%s461] ss:$2 sm:$0xff]
      %s463 = scalar_lea.vmem [#allocation2], 240
      %v464 = vld [vmem:[%s463] ss:$2 sm:$0xff]
      %s465 = scalar_lea.vmem [#allocation2], 288
      %v466 = vld [vmem:[%s465] ss:$2 sm:$0xff]
      %s467 = scalar_lea.vmem [#allocation2], 336
      %v468 = vld [vmem:[%s467] ss:$2 sm:$0xff]
      %v469 = vpack.c.bf16 %v454, %v454
      %v470 = vpack.c.bf16 %v456, %v456
      %v471 = vpack.c.bf16 %v458, %v458
      %v472 = vpack.c.bf16 %v460, %v460
      %v473 = vpack.c.bf16 %v462, %v462
      %v474 = vpack.c.bf16 %v464, %v464
      %v475 = vpack.c.bf16 %v466, %v466
      %v476 = vpack.c.bf16 %v468, %v468
      %v477 = vld [vmem:[%s3] sm:$0x1]
      %v486 = vunpack.c.l.b16 %v469
      %v487 = vunpack.c.l.b16 %v470
      %v488 = vunpack.c.l.b16 %v471
      %v489 = vunpack.c.l.b16 %v472
      %v490 = vunpack.c.l.b16 %v473
      %v491 = vunpack.c.l.b16 %v474
      %v492 = vunpack.c.l.b16 %v475
      %v493 = vunpack.c.l.b16 %v476
      %v494 = vpack.c.b16 %v487, %v486
      %v495 = vpack.c.b16 %v489, %v488
      %v496 = vpack.c.b16 %v491, %v490
      %v497 = vpack.c.b16 %v493, %v492
      %v499 = vsel %vm237, %v494, 0
      %v502 = vsel %vm237, %v495, 0
      %v505 = vsel %vm237, %v496, 0
      %v508 = vsel %vm237, %v497, 0
      %vm510 = vcmask 1040384
      %v512 = vsel %vm510, %v477, 0
      %514 = vmatprep.subr.bf16.mxu0 0
      %515 = vmatpush1.bf16.msra.mxu0 0
      %516 = vmatprep.subr.bf16.mxu0 0
      %517 = vmatpush1.bf16.msra.mxu0 0
      %518 = vmatprep.subr.bf16.mxu0 0
      %519 = vmatpush1.bf16.msra.mxu0 0
      %520 = vmatprep.subr.bf16.mxu0 0
      %521 = vmatpush1.bf16.msra.mxu0 0
      %522 = vmatprep.subr.bf16.mxu0 0
      %523 = vmatpush1.bf16.msra.mxu0 0
      %524 = vmatprep.subr.bf16.mxu0 0
      %525 = vmatpush1.bf16.msra.mxu0 0
      %526 = vmatprep.subr.bf16.mxu0 0
      %527 = vmatpush1.bf16.msra.mxu0 0
      %528 = vmatprep.subr.bf16.mxu0 0
      %529 = vmatpush1.bf16.msra.mxu0 %v512
      %530 = vmatprep.subr.bf16.mxu0 0
      %531 = vmatpush2.bf16.msra.mxu0 0
      %532 = vmatprep.subr.bf16.mxu0 0
      %533 = vmatpush2.bf16.msra.mxu0 0
      %534 = vmatprep.subr.bf16.mxu0 0
      %535 = vmatpush2.bf16.msra.mxu0 0
      %536 = vmatprep.subr.bf16.mxu0 0
      %537 = vmatpush2.bf16.msra.mxu0 0
      %538 = vmatprep.subr.bf16.mxu0 0
      %539 = vmatpush2.bf16.msra.mxu0 0
      %540 = vmatprep.subr.bf16.mxu0 0
      %541 = vmatpush2.bf16.msra.mxu0 0
      %542 = vmatprep.subr.bf16.mxu0 0
      %543 = vmatpush2.bf16.msra.mxu0 0
      %544 = vmatprep.subr.bf16.mxu0 0
      %545 = vmatpush2.bf16.msra.mxu0 0
      %546 = vmatprep.mubr.bf16.mxu0 0
      %547 = vmatmul.mubr.bf16.gmra.mxu0 %v499
      %v548 = vpop.f32.mrf.mxu0
      %v549 = vadd.f32 0.0, %v548
      %v550 = vpop.f32.mrf.mxu0
      %v551 = vpop.f32.mrf.mxu0
      %v552 = vadd.f32 0.0, %v551
      %v553 = vpop.f32.mrf.mxu0
      %554 = vmatprep.mubr.bf16.mxu0 0
      %555 = vmatmul.mubr.bf16.gmra.mxu0 %v502
      %v556 = vpop.f32.mrf.mxu0
      %v557 = vadd.f32 0.0, %v556
      %v558 = vpop.f32.mrf.mxu0
      %v559 = vpop.f32.mrf.mxu0
      %v560 = vadd.f32 0.0, %v559
      %v561 = vpop.f32.mrf.mxu0
      %562 = vmatprep.mubr.bf16.mxu0 0
      %563 = vmatmul.mubr.bf16.gmra.mxu0 %v505
      %v564 = vpop.f32.mrf.mxu0
      %v565 = vadd.f32 0.0, %v564
      %v566 = vpop.f32.mrf.mxu0
      %v567 = vpop.f32.mrf.mxu0
      %v568 = vadd.f32 0.0, %v567
      %v569 = vpop.f32.mrf.mxu0
      %570 = vmatprep.mubr.bf16.mxu0 0
      %571 = vmatmul.mubr.bf16.gmra.mxu0 %v508
      %v572 = vpop.f32.mrf.mxu0
      %v573 = vadd.f32 0.0, %v572
      %v574 = vpop.f32.mrf.mxu0
      %v575 = vpop.f32.mrf.mxu0
      %v576 = vadd.f32 0.0, %v575
      %v577 = vpop.f32.mrf.mxu0
      %578 = vdwg.mxu0
      %579 = vst.msk [vmem:[%s231] sm:$0xff] %vm237, %v549
      %580 = vst.msk [vmem:[%s231 + $0x8] sm:$0xff] %vm237, %v552
      %581 = vst.msk [vmem:[%s231 + $0x10] sm:$0xff] %vm237, %v557
      %582 = vst.msk [vmem:[%s231 + $0x18] sm:$0xff] %vm237, %v560
      %583 = vst.msk [vmem:[%s231 + $0x20] sm:$0xff] %vm237, %v565
      %584 = vst.msk [vmem:[%s231 + $0x28] sm:$0xff] %vm237, %v568
      %585 = vst.msk [vmem:[%s231 + $0x30] sm:$0xff] %vm237, %v573
      %586 = vst.msk [vmem:[%s231 + $0x38] sm:$0xff] %vm237, %v576
      %s587 = scalar_lea.vmem [#allocation2], 1
      %v588 = vld [vmem:[%s587] ss:$2 sm:$0xff]
      %s589 = scalar_lea.vmem [#allocation2], 49
      %v590 = vld [vmem:[%s589] ss:$2 sm:$0xff]
      %s591 = scalar_lea.vmem [#allocation2], 97
      %v592 = vld [vmem:[%s591] ss:$2 sm:$0xff]
      %s593 = scalar_lea.vmem [#allocation2], 145
      %v594 = vld [vmem:[%s593] ss:$2 sm:$0xff]
      %s595 = scalar_lea.vmem [#allocation2], 193
      %v596 = vld [vmem:[%s595] ss:$2 sm:$0xff]
      %s597 = scalar_lea.vmem [#allocation2], 241
      %v598 = vld [vmem:[%s597] ss:$2 sm:$0xff]
      %s599 = scalar_lea.vmem [#allocation2], 289
      %v600 = vld [vmem:[%s599] ss:$2 sm:$0xff]
      %s601 = scalar_lea.vmem [#allocation2], 337
      %v602 = vld [vmem:[%s601] ss:$2 sm:$0xff]
      %v603 = vpack.c.bf16 %v588, %v588
      %v604 = vpack.c.bf16 %v590, %v590
      %v605 = vpack.c.bf16 %v592, %v592
      %v606 = vpack.c.bf16 %v594, %v594
      %v607 = vpack.c.bf16 %v596, %v596
      %v608 = vpack.c.bf16 %v598, %v598
      %v609 = vpack.c.bf16 %v600, %v600
      %v610 = vpack.c.bf16 %v602, %v602
      %s611 = scalar_lea.vmem %s3, 1
      %v612 = vld [vmem:[%s611] sm:$0x1]
      %v621 = vunpack.c.l.b16 %v603
      %v622 = vunpack.c.l.b16 %v604
      %v623 = vunpack.c.l.b16 %v605
      %v624 = vunpack.c.l.b16 %v606
      %v625 = vunpack.c.l.b16 %v607
      %v626 = vunpack.c.l.b16 %v608
      %v627 = vunpack.c.l.b16 %v609
      %v628 = vunpack.c.l.b16 %v610
      %v629 = vpack.c.b16 %v622, %v621
      %v630 = vpack.c.b16 %v624, %v623
      %v631 = vpack.c.b16 %v626, %v625
      %v632 = vpack.c.b16 %v628, %v627
      %v634 = vsel %vm237, %v629, 0
      %v637 = vsel %vm237, %v630, 0
      %v640 = vsel %vm237, %v631, 0
      %v643 = vsel %vm237, %v632, 0
      %v646 = vsel %vm510, %v612, 0
      %648 = vmatprep.subr.bf16.mxu0 0
      %649 = vmatpush1.bf16.msra.mxu0 0
      %650 = vmatprep.subr.bf16.mxu0 0
      %651 = vmatpush1.bf16.msra.mxu0 0
      %652 = vmatprep.subr.bf16.mxu0 0
      %653 = vmatpush1.bf16.msra.mxu0 0
      %654 = vmatprep.subr.bf16.mxu0 0
      %655 = vmatpush1.bf16.msra.mxu0 0
      %656 = vmatprep.subr.bf16.mxu0 0
      %657 = vmatpush1.bf16.msra.mxu0 0
      %658 = vmatprep.subr.bf16.mxu0 0
      %659 = vmatpush1.bf16.msra.mxu0 0
      %660 = vmatprep.subr.bf16.mxu0 0
      %661 = vmatpush1.bf16.msra.mxu0 0
      %662 = vmatprep.subr.bf16.mxu0 0
      %663 = vmatpush1.bf16.msra.mxu0 %v646
      %664 = vmatprep.subr.bf16.mxu0 0
      %665 = vmatpush2.bf16.msra.mxu0 0
      %666 = vmatprep.subr.bf16.mxu0 0
      %667 = vmatpush2.bf16.msra.mxu0 0
      %668 = vmatprep.subr.bf16.mxu0 0
      %669 = vmatpush2.bf16.msra.mxu0 0
      %670 = vmatprep.subr.bf16.mxu0 0
      %671 = vmatpush2.bf16.msra.mxu0 0
      %672 = vmatprep.subr.bf16.mxu0 0
      %673 = vmatpush2.bf16.msra.mxu0 0
      %674 = vmatprep.subr.bf16.mxu0 0
      %675 = vmatpush2.bf16.msra.mxu0 0
      %676 = vmatprep.subr.bf16.mxu0 0
      %677 = vmatpush2.bf16.msra.mxu0 0
      %678 = vmatprep.subr.bf16.mxu0 0
      %679 = vmatpush2.bf16.msra.mxu0 0
      %680 = vmatprep.mubr.bf16.mxu0 0
      %681 = vmatmul.mubr.bf16.gmra.mxu0 %v634
      %v682 = vpop.f32.mrf.mxu0
      %v683 = vadd.f32 0.0, %v682
      %v684 = vpop.f32.mrf.mxu0
      %v685 = vpop.f32.mrf.mxu0
      %v686 = vadd.f32 0.0, %v685
      %v687 = vpop.f32.mrf.mxu0
      %688 = vmatprep.mubr.bf16.mxu0 0
      %689 = vmatmul.mubr.bf16.gmra.mxu0 %v637
      %v690 = vpop.f32.mrf.mxu0
      %v691 = vadd.f32 0.0, %v690
      %v692 = vpop.f32.mrf.mxu0
      %v693 = vpop.f32.mrf.mxu0
      %v694 = vadd.f32 0.0, %v693
      %v695 = vpop.f32.mrf.mxu0
      %696 = vmatprep.mubr.bf16.mxu0 0
      %697 = vmatmul.mubr.bf16.gmra.mxu0 %v640
      %v698 = vpop.f32.mrf.mxu0
      %v699 = vadd.f32 0.0, %v698
      %v700 = vpop.f32.mrf.mxu0
      %v701 = vpop.f32.mrf.mxu0
      %v702 = vadd.f32 0.0, %v701
      %v703 = vpop.f32.mrf.mxu0
      %704 = vmatprep.mubr.bf16.mxu0 0
      %705 = vmatmul.mubr.bf16.gmra.mxu0 %v643
      %v706 = vpop.f32.mrf.mxu0
      %v707 = vadd.f32 0.0, %v706
      %v708 = vpop.f32.mrf.mxu0
      %v709 = vpop.f32.mrf.mxu0
      %v710 = vadd.f32 0.0, %v709
      %v711 = vpop.f32.mrf.mxu0
      %712 = vdwg.mxu0
      %v713 = vld [vmem:[%s231] sm:$0xff]
      %v714 = vld [vmem:[%s231 + $0x8] sm:$0xff]
      %v715 = vld [vmem:[%s231 + $0x10] sm:$0xff]
      %v716 = vld [vmem:[%s231 + $0x18] sm:$0xff]
      %v717 = vld [vmem:[%s231 + $0x20] sm:$0xff]
      %v718 = vld [vmem:[%s231 + $0x28] sm:$0xff]
      %v719 = vld [vmem:[%s231 + $0x30] sm:$0xff]
      %v720 = vld [vmem:[%s231 + $0x38] sm:$0xff]
      %v721 = vadd.f32 %v713, %v683
      %v722 = vadd.f32 %v714, %v686
      %v723 = vadd.f32 %v715, %v691
      %v724 = vadd.f32 %v716, %v694
      %v725 = vadd.f32 %v717, %v699
      %v726 = vadd.f32 %v718, %v702
      %v727 = vadd.f32 %v719, %v707
      %v728 = vadd.f32 %v720, %v710
      %729 = vst.msk [vmem:[%s231] sm:$0xff] %vm237, %v721
      %730 = vst.msk [vmem:[%s231 + $0x8] sm:$0xff] %vm237, %v722
      %731 = vst.msk [vmem:[%s231 + $0x10] sm:$0xff] %vm237, %v723
      %732 = vst.msk [vmem:[%s231 + $0x18] sm:$0xff] %vm237, %v724
      %733 = vst.msk [vmem:[%s231 + $0x20] sm:$0xff] %vm237, %v725
      %734 = vst.msk [vmem:[%s231 + $0x28] sm:$0xff] %vm237, %v726
      %735 = vst.msk [vmem:[%s231 + $0x30] sm:$0xff] %vm237, %v727
      %736 = vst.msk [vmem:[%s231 + $0x38] sm:$0xff] %vm237, %v728
      %s737 = scalar_lea.vmem [#allocation2], 2
      %v738 = vld [vmem:[%s737] ss:$2 sm:$0xff]
      %s739 = scalar_lea.vmem [#allocation2], 50
      %v740 = vld [vmem:[%s739] ss:$2 sm:$0xff]
      %s741 = scalar_lea.vmem [#allocation2], 98
      %v742 = vld [vmem:[%s741] ss:$2 sm:$0xff]
      %s743 = scalar_lea.vmem [#allocation2], 146
      %v744 = vld [vmem:[%s743] ss:$2 sm:$0xff]
      %s745 = scalar_lea.vmem [#allocation2], 194
      %v746 = vld [vmem:[%s745] ss:$2 sm:$0xff]
      %s747 = scalar_lea.vmem [#allocation2], 242
      %v748 = vld [vmem:[%s747] ss:$2 sm:$0xff]
      %s749 = scalar_lea.vmem [#allocation2], 290
      %v750 = vld [vmem:[%s749] ss:$2 sm:$0xff]
      %s751 = scalar_lea.vmem [#allocation2], 338
      %v752 = vld [vmem:[%s751] ss:$2 sm:$0xff]
      %v753 = vpack.c.bf16 %v738, %v738
      %v754 = vpack.c.bf16 %v740, %v740
      %v755 = vpack.c.bf16 %v742, %v742
      %v756 = vpack.c.bf16 %v744, %v744
      %v757 = vpack.c.bf16 %v746, %v746
      %v758 = vpack.c.bf16 %v748, %v748
      %v759 = vpack.c.bf16 %v750, %v750
      %v760 = vpack.c.bf16 %v752, %v752
      %s761 = scalar_lea.vmem %s3, 2
      %v762 = vld [vmem:[%s761] sm:$0x1]
      %v771 = vunpack.c.l.b16 %v753
      %v772 = vunpack.c.l.b16 %v754
      %v773 = vunpack.c.l.b16 %v755
      %v774 = vunpack.c.l.b16 %v756
      %v775 = vunpack.c.l.b16 %v757
      %v776 = vunpack.c.l.b16 %v758
      %v777 = vunpack.c.l.b16 %v759
      %v778 = vunpack.c.l.b16 %v760
      %v779 = vpack.c.b16 %v772, %v771
      %v780 = vpack.c.b16 %v774, %v773
      %v781 = vpack.c.b16 %v776, %v775
      %v782 = vpack.c.b16 %v778, %v777
      %v784 = vsel %vm237, %v779, 0
      %v787 = vsel %vm237, %v780, 0
      %v790 = vsel %vm237, %v781, 0
      %v793 = vsel %vm237, %v782, 0
      %v796 = vsel %vm510, %v762, 0
      %798 = vmatprep.subr.bf16.mxu0 0
      %799 = vmatpush1.bf16.msra.mxu0 0
      %800 = vmatprep.subr.bf16.mxu0 0
      %801 = vmatpush1.bf16.msra.mxu0 0
      %802 = vmatprep.subr.bf16.mxu0 0
      %803 = vmatpush1.bf16.msra.mxu0 0
      %804 = vmatprep.subr.bf16.mxu0 0
      %805 = vmatpush1.bf16.msra.mxu0 0
      %806 = vmatprep.subr.bf16.mxu0 0
      %807 = vmatpush1.bf16.msra.mxu0 0
      %808 = vmatprep.subr.bf16.mxu0 0
      %809 = vmatpush1.bf16.msra.mxu0 0
      %810 = vmatprep.subr.bf16.mxu0 0
      %811 = vmatpush1.bf16.msra.mxu0 0
      %812 = vmatprep.subr.bf16.mxu0 0
      %813 = vmatpush1.bf16.msra.mxu0 %v796
      %814 = vmatprep.subr.bf16.mxu0 0
      %815 = vmatpush2.bf16.msra.mxu0 0
      %816 = vmatprep.subr.bf16.mxu0 0
      %817 = vmatpush2.bf16.msra.mxu0 0
      %818 = vmatprep.subr.bf16.mxu0 0
      %819 = vmatpush2.bf16.msra.mxu0 0
      %820 = vmatprep.subr.bf16.mxu0 0
      %821 = vmatpush2.bf16.msra.mxu0 0
      %822 = vmatprep.subr.bf16.mxu0 0
      %823 = vmatpush2.bf16.msra.mxu0 0
      %824 = vmatprep.subr.bf16.mxu0 0
      %825 = vmatpush2.bf16.msra.mxu0 0
      %826 = vmatprep.subr.bf16.mxu0 0
      %827 = vmatpush2.bf16.msra.mxu0 0
      %828 = vmatprep.subr.bf16.mxu0 0
      %829 = vmatpush2.bf16.msra.mxu0 0
      %830 = vmatprep.mubr.bf16.mxu0 0
      %831 = vmatmul.mubr.bf16.gmra.mxu0 %v784
      %v832 = vpop.f32.mrf.mxu0
      %v833 = vadd.f32 0.0, %v832
      %v834 = vpop.f32.mrf.mxu0
      %v835 = vpop.f32.mrf.mxu0
      %v836 = vadd.f32 0.0, %v835
      %v837 = vpop.f32.mrf.mxu0
      %838 = vmatprep.mubr.bf16.mxu0 0
      %839 = vmatmul.mubr.bf16.gmra.mxu0 %v787
      %v840 = vpop.f32.mrf.mxu0
      %v841 = vadd.f32 0.0, %v840
      %v842 = vpop.f32.mrf.mxu0
      %v843 = vpop.f32.mrf.mxu0
      %v844 = vadd.f32 0.0, %v843
      %v845 = vpop.f32.mrf.mxu0
      %846 = vmatprep.mubr.bf16.mxu0 0
      %847 = vmatmul.mubr.bf16.gmra.mxu0 %v790
      %v848 = vpop.f32.mrf.mxu0
      %v849 = vadd.f32 0.0, %v848
      %v850 = vpop.f32.mrf.mxu0
      %v851 = vpop.f32.mrf.mxu0
      %v852 = vadd.f32 0.0, %v851
      %v853 = vpop.f32.mrf.mxu0
      %854 = vmatprep.mubr.bf16.mxu0 0
      %855 = vmatmul.mubr.bf16.gmra.mxu0 %v793
      %v856 = vpop.f32.mrf.mxu0
      %v857 = vadd.f32 0.0, %v856
      %v858 = vpop.f32.mrf.mxu0
      %v859 = vpop.f32.mrf.mxu0
      %v860 = vadd.f32 0.0, %v859
      %v861 = vpop.f32.mrf.mxu0
      %862 = vdwg.mxu0
      %v863 = vld [vmem:[%s231] sm:$0xff]
      %v864 = vld [vmem:[%s231 + $0x8] sm:$0xff]
      %v865 = vld [vmem:[%s231 + $0x10] sm:$0xff]
      %v866 = vld [vmem:[%s231 + $0x18] sm:$0xff]
      %v867 = vld [vmem:[%s231 + $0x20] sm:$0xff]
      %v868 = vld [vmem:[%s231 + $0x28] sm:$0xff]
      %v869 = vld [vmem:[%s231 + $0x30] sm:$0xff]
      %v870 = vld [vmem:[%s231 + $0x38] sm:$0xff]
      %v871 = vadd.f32 %v863, %v833
      %v872 = vadd.f32 %v864, %v836
      %v873 = vadd.f32 %v865, %v841
      %v874 = vadd.f32 %v866, %v844
      %v875 = vadd.f32 %v867, %v849
      %v876 = vadd.f32 %v868, %v852
      %v877 = vadd.f32 %v869, %v857
      %v878 = vadd.f32 %v870, %v860
      %879 = vst.msk [vmem:[%s231] sm:$0xff] %vm237, %v871
      %880 = vst.msk [vmem:[%s231 + $0x8] sm:$0xff] %vm237, %v872
      %881 = vst.msk [vmem:[%s231 + $0x10] sm:$0xff] %vm237, %v873
      %882 = vst.msk [vmem:[%s231 + $0x18] sm:$0xff] %vm237, %v874
      %883 = vst.msk [vmem:[%s231 + $0x20] sm:$0xff] %vm237, %v875
      %884 = vst.msk [vmem:[%s231 + $0x28] sm:$0xff] %vm237, %v876
      %885 = vst.msk [vmem:[%s231 + $0x30] sm:$0xff] %vm237, %v877
      %886 = vst.msk [vmem:[%s231 + $0x38] sm:$0xff] %vm237, %v878
      %v887 = vld [vmem:[%s246] ss:$2 sm:$0xff]
      %s888 = scalar_lea.vmem %s246, 48 [#allocation2]
      %v889 = vld [vmem:[%s888] ss:$2 sm:$0xff]
      %s890 = scalar_lea.vmem %s246, 96 [#allocation2]
      %v891 = vld [vmem:[%s890] ss:$2 sm:$0xff]
      %s892 = scalar_lea.vmem %s246, 144 [#allocation2]
      %v893 = vld [vmem:[%s892] ss:$2 sm:$0xff]
      %s894 = scalar_lea.vmem %s246, 192 [#allocation2]
      %v895 = vld [vmem:[%s894] ss:$2 sm:$0xff]
      %s896 = scalar_lea.vmem %s246, 240 [#allocation2]
      %v897 = vld [vmem:[%s896] ss:$2 sm:$0xff]
      %s898 = scalar_lea.vmem %s246, 288 [#allocation2]
      %v899 = vld [vmem:[%s898] ss:$2 sm:$0xff]
      %s900 = scalar_lea.vmem %s246, 336 [#allocation2]
      %v901 = vld [vmem:[%s900] ss:$2 sm:$0xff]
      %v902 = vpack.c.bf16 %v887, %v887
      %v903 = vpack.c.bf16 %v889, %v889
      %v904 = vpack.c.bf16 %v891, %v891
      %v905 = vpack.c.bf16 %v893, %v893
      %v906 = vpack.c.bf16 %v895, %v895
      %v907 = vpack.c.bf16 %v897, %v897
      %v908 = vpack.c.bf16 %v899, %v899
      %v909 = vpack.c.bf16 %v901, %v901
      %s910 = scalar_lea.vmem %s3, 3
      %v911 = vld [vmem:[%s910] sm:$0x1]
      %v920 = vunpack.c.l.b16 %v902
      %v921 = vunpack.c.l.b16 %v903
      %v922 = vunpack.c.l.b16 %v904
      %v923 = vunpack.c.l.b16 %v905
      %v924 = vunpack.c.l.b16 %v906
      %v925 = vunpack.c.l.b16 %v907
      %v926 = vunpack.c.l.b16 %v908
      %v927 = vunpack.c.l.b16 %v909
      %v928 = vpack.c.b16 %v921, %v920
      %v929 = vpack.c.b16 %v923, %v922
      %v930 = vpack.c.b16 %v925, %v924
      %v931 = vpack.c.b16 %v927, %v926
      %v933 = vsel %vm237, %v928, 0
      %v936 = vsel %vm237, %v929, 0
      %v939 = vsel %vm237, %v930, 0
      %v942 = vsel %vm237, %v931, 0
      %v945 = vsel %vm510, %v911, 0
      %947 = vmatprep.subr.bf16.mxu0 0
      %948 = vmatpush1.bf16.msra.mxu0 0
      %949 = vmatprep.subr.bf16.mxu0 0
      %950 = vmatpush1.bf16.msra.mxu0 0
      %951 = vmatprep.subr.bf16.mxu0 0
      %952 = vmatpush1.bf16.msra.mxu0 0
      %953 = vmatprep.subr.bf16.mxu0 0
      %954 = vmatpush1.bf16.msra.mxu0 0
      %955 = vmatprep.subr.bf16.mxu0 0
      %956 = vmatpush1.bf16.msra.mxu0 0
      %957 = vmatprep.subr.bf16.mxu0 0
      %958 = vmatpush1.bf16.msra.mxu0 0
      %959 = vmatprep.subr.bf16.mxu0 0
      %960 = vmatpush1.bf16.msra.mxu0 0
      %961 = vmatprep.subr.bf16.mxu0 0
      %962 = vmatpush1.bf16.msra.mxu0 %v945
      %963 = vmatprep.subr.bf16.mxu0 0
      %964 = vmatpush2.bf16.msra.mxu0 0
      %965 = vmatprep.subr.bf16.mxu0 0
      %966 = vmatpush2.bf16.msra.mxu0 0
      %967 = vmatprep.subr.bf16.mxu0 0
      %968 = vmatpush2.bf16.msra.mxu0 0
      %969 = vmatprep.subr.bf16.mxu0 0
      %970 = vmatpush2.bf16.msra.mxu0 0
      %971 = vmatprep.subr.bf16.mxu0 0
      %972 = vmatpush2.bf16.msra.mxu0 0
      %973 = vmatprep.subr.bf16.mxu0 0
      %974 = vmatpush2.bf16.msra.mxu0 0
      %975 = vmatprep.subr.bf16.mxu0 0
      %976 = vmatpush2.bf16.msra.mxu0 0
      %977 = vmatprep.subr.bf16.mxu0 0
      %978 = vmatpush2.bf16.msra.mxu0 0
      %979 = vmatprep.mubr.bf16.mxu0 0
      %980 = vmatmul.mubr.bf16.gmra.mxu0 %v933
      %v981 = vpop.f32.mrf.mxu0
      %v982 = vadd.f32 0.0, %v981
      %v983 = vpop.f32.mrf.mxu0
      %v984 = vpop.f32.mrf.mxu0
      %v985 = vadd.f32 0.0, %v984
      %v986 = vpop.f32.mrf.mxu0
      %987 = vmatprep.mubr.bf16.mxu0 0
      %988 = vmatmul.mubr.bf16.gmra.mxu0 %v936
      %v989 = vpop.f32.mrf.mxu0
      %v990 = vadd.f32 0.0, %v989
      %v991 = vpop.f32.mrf.mxu0
      %v992 = vpop.f32.mrf.mxu0
      %v993 = vadd.f32 0.0, %v992
      %v994 = vpop.f32.mrf.mxu0
      %995 = vmatprep.mubr.bf16.mxu0 0
      %996 = vmatmul.mubr.bf16.gmra.mxu0 %v939
      %v997 = vpop.f32.mrf.mxu0
      %v998 = vadd.f32 0.0, %v997
      %v999 = vpop.f32.mrf.mxu0
      %v1000 = vpop.f32.mrf.mxu0
      %v1001 = vadd.f32 0.0, %v1000
      %v1002 = vpop.f32.mrf.mxu0
      %1003 = vmatprep.mubr.bf16.mxu0 0
      %1004 = vmatmul.mubr.bf16.gmra.mxu0 %v942
      %v1005 = vpop.f32.mrf.mxu0
      %v1006 = vadd.f32 0.0, %v1005
      %v1007 = vpop.f32.mrf.mxu0
      %v1008 = vpop.f32.mrf.mxu0
      %v1009 = vadd.f32 0.0, %v1008
      %v1010 = vpop.f32.mrf.mxu0
      %1011 = vdwg.mxu0
      %v1012 = vld [vmem:[%s231] sm:$0xff]
      %v1013 = vld [vmem:[%s231 + $0x8] sm:$0xff]
      %v1014 = vld [vmem:[%s231 + $0x10] sm:$0xff]
      %v1015 = vld [vmem:[%s231 + $0x18] sm:$0xff]
      %v1016 = vld [vmem:[%s231 + $0x20] sm:$0xff]
      %v1017 = vld [vmem:[%s231 + $0x28] sm:$0xff]
      %v1018 = vld [vmem:[%s231 + $0x30] sm:$0xff]
      %v1019 = vld [vmem:[%s231 + $0x38] sm:$0xff]
      %v1020 = vadd.f32 %v1012, %v982
      %v1021 = vadd.f32 %v1013, %v985
      %v1022 = vadd.f32 %v1014, %v990
      %v1023 = vadd.f32 %v1015, %v993
      %v1024 = vadd.f32 %v1016, %v998
      %v1025 = vadd.f32 %v1017, %v1001
      %v1026 = vadd.f32 %v1018, %v1006
      %v1027 = vadd.f32 %v1019, %v1009
      %1028 = vst.msk [vmem:[%s231] sm:$0xff] %vm237, %v1020
      %1029 = vst.msk [vmem:[%s231 + $0x8] sm:$0xff] %vm237, %v1021
      %1030 = vst.msk [vmem:[%s231 + $0x10] sm:$0xff] %vm237, %v1022
      %1031 = vst.msk [vmem:[%s231 + $0x18] sm:$0xff] %vm237, %v1023
      %1032 = vst.msk [vmem:[%s231 + $0x20] sm:$0xff] %vm237, %v1024
      %1033 = vst.msk [vmem:[%s231 + $0x28] sm:$0xff] %vm237, %v1025
      %1034 = vst.msk [vmem:[%s231 + $0x30] sm:$0xff] %vm237, %v1026
      %1035 = vst.msk [vmem:[%s231 + $0x38] sm:$0xff] %vm237, %v1027
      %s1036 = scalar_lea.vmem %s246, 1 [#allocation2]
      %v1037 = vld [vmem:[%s1036] ss:$2 sm:$0xff]
      %s1038 = scalar_lea.vmem %s246, 49 [#allocation2]
      %v1039 = vld [vmem:[%s1038] ss:$2 sm:$0xff]
      %s1040 = scalar_lea.vmem %s246, 97 [#allocation2]
      %v1041 = vld [vmem:[%s1040] ss:$2 sm:$0xff]
      %s1042 = scalar_lea.vmem %s246, 145 [#allocation2]
      %v1043 = vld [vmem:[%s1042] ss:$2 sm:$0xff]
      %s1044 = scalar_lea.vmem %s246, 193 [#allocation2]
      %v1045 = vld [vmem:[%s1044] ss:$2 sm:$0xff]
      %s1046 = scalar_lea.vmem %s246, 241 [#allocation2]
      %v1047 = vld [vmem:[%s1046] ss:$2 sm:$0xff]
      %s1048 = scalar_lea.vmem %s246, 289 [#allocation2]
      %v1049 = vld [vmem:[%s1048] ss:$2 sm:$0xff]
      %s1050 = scalar_lea.vmem %s246, 337 [#allocation2]
      %v1051 = vld [vmem:[%s1050] ss:$2 sm:$0xff]
      %v1052 = vpack.c.bf16 %v1037, %v1037
      %v1053 = vpack.c.bf16 %v1039, %v1039
      %v1054 = vpack.c.bf16 %v1041, %v1041
      %v1055 = vpack.c.bf16 %v1043, %v1043
      %v1056 = vpack.c.bf16 %v1045, %v1045
      %v1057 = vpack.c.bf16 %v1047, %v1047
      %v1058 = vpack.c.bf16 %v1049, %v1049
      %v1059 = vpack.c.bf16 %v1051, %v1051
      %s1060 = scalar_lea.vmem %s3, 4
      %v1061 = vld [vmem:[%s1060] sm:$0x1]
      %v1070 = vunpack.c.l.b16 %v1052
      %v1071 = vunpack.c.l.b16 %v1053
      %v1072 = vunpack.c.l.b16 %v1054
      %v1073 = vunpack.c.l.b16 %v1055
      %v1074 = vunpack.c.l.b16 %v1056
      %v1075 = vunpack.c.l.b16 %v1057
      %v1076 = vunpack.c.l.b16 %v1058
      %v1077 = vunpack.c.l.b16 %v1059
      %v1078 = vpack.c.b16 %v1071, %v1070
      %v1079 = vpack.c.b16 %v1073, %v1072
      %v1080 = vpack.c.b16 %v1075, %v1074
      %v1081 = vpack.c.b16 %v1077, %v1076
      %v1083 = vsel %vm237, %v1078, 0
      %v1086 = vsel %vm237, %v1079, 0
      %v1089 = vsel %vm237, %v1080, 0
      %v1092 = vsel %vm237, %v1081, 0
      %v1095 = vsel %vm510, %v1061, 0
      %1097 = vmatprep.subr.bf16.mxu0 0
      %1098 = vmatpush1.bf16.msra.mxu0 0
      %1099 = vmatprep.subr.bf16.mxu0 0
      %1100 = vmatpush1.bf16.msra.mxu0 0
      %1101 = vmatprep.subr.bf16.mxu0 0
      %1102 = vmatpush1.bf16.msra.mxu0 0
      %1103 = vmatprep.subr.bf16.mxu0 0
      %1104 = vmatpush1.bf16.msra.mxu0 0
      %1105 = vmatprep.subr.bf16.mxu0 0
      %1106 = vmatpush1.bf16.msra.mxu0 0
      %1107 = vmatprep.subr.bf16.mxu0 0
      %1108 = vmatpush1.bf16.msra.mxu0 0
      %1109 = vmatprep.subr.bf16.mxu0 0
      %1110 = vmatpush1.bf16.msra.mxu0 0
      %1111 = vmatprep.subr.bf16.mxu0 0
      %1112 = vmatpush1.bf16.msra.mxu0 %v1095
      %1113 = vmatprep.subr.bf16.mxu0 0
      %1114 = vmatpush2.bf16.msra.mxu0 0
      %1115 = vmatprep.subr.bf16.mxu0 0
      %1116 = vmatpush2.bf16.msra.mxu0 0
      %1117 = vmatprep.subr.bf16.mxu0 0
      %1118 = vmatpush2.bf16.msra.mxu0 0
      %1119 = vmatprep.subr.bf16.mxu0 0
      %1120 = vmatpush2.bf16.msra.mxu0 0
      %1121 = vmatprep.subr.bf16.mxu0 0
      %1122 = vmatpush2.bf16.msra.mxu0 0
      %1123 = vmatprep.subr.bf16.mxu0 0
      %1124 = vmatpush2.bf16.msra.mxu0 0
      %1125 = vmatprep.subr.bf16.mxu0 0
      %1126 = vmatpush2.bf16.msra.mxu0 0
      %1127 = vmatprep.subr.bf16.mxu0 0
      %1128 = vmatpush2.bf16.msra.mxu0 0
      %1129 = vmatprep.mubr.bf16.mxu0 0
      %1130 = vmatmul.mubr.bf16.gmra.mxu0 %v1083
      %v1131 = vpop.f32.mrf.mxu0
      %v1132 = vadd.f32 0.0, %v1131
      %v1133 = vpop.f32.mrf.mxu0
      %v1134 = vpop.f32.mrf.mxu0
      %v1135 = vadd.f32 0.0, %v1134
      %v1136 = vpop.f32.mrf.mxu0
      %1137 = vmatprep.mubr.bf16.mxu0 0
      %1138 = vmatmul.mubr.bf16.gmra.mxu0 %v1086
      %v1139 = vpop.f32.mrf.mxu0
      %v1140 = vadd.f32 0.0, %v1139
      %v1141 = vpop.f32.mrf.mxu0
      %v1142 = vpop.f32.mrf.mxu0
      %v1143 = vadd.f32 0.0, %v1142
      %v1144 = vpop.f32.mrf.mxu0
      %1145 = vmatprep.mubr.bf16.mxu0 0
      %1146 = vmatmul.mubr.bf16.gmra.mxu0 %v1089
      %v1147 = vpop.f32.mrf.mxu0
      %v1148 = vadd.f32 0.0, %v1147
      %v1149 = vpop.f32.mrf.mxu0
      %v1150 = vpop.f32.mrf.mxu0
      %v1151 = vadd.f32 0.0, %v1150
      %v1152 = vpop.f32.mrf.mxu0
      %1153 = vmatprep.mubr.bf16.mxu0 0
      %1154 = vmatmul.mubr.bf16.gmra.mxu0 %v1092
      %v1155 = vpop.f32.mrf.mxu0
      %v1156 = vadd.f32 0.0, %v1155
      %v1157 = vpop.f32.mrf.mxu0
      %v1158 = vpop.f32.mrf.mxu0
      %v1159 = vadd.f32 0.0, %v1158
      %v1160 = vpop.f32.mrf.mxu0
      %1161 = vdwg.mxu0
      %v1162 = vld [vmem:[%s231] sm:$0xff]
      %v1163 = vld [vmem:[%s231 + $0x8] sm:$0xff]
      %v1164 = vld [vmem:[%s231 + $0x10] sm:$0xff]
      %v1165 = vld [vmem:[%s231 + $0x18] sm:$0xff]
      %v1166 = vld [vmem:[%s231 + $0x20] sm:$0xff]
      %v1167 = vld [vmem:[%s231 + $0x28] sm:$0xff]
      %v1168 = vld [vmem:[%s231 + $0x30] sm:$0xff]
      %v1169 = vld [vmem:[%s231 + $0x38] sm:$0xff]
      %v1170 = vadd.f32 %v1162, %v1132
      %v1171 = vadd.f32 %v1163, %v1135
      %v1172 = vadd.f32 %v1164, %v1140
      %v1173 = vadd.f32 %v1165, %v1143
      %v1174 = vadd.f32 %v1166, %v1148
      %v1175 = vadd.f32 %v1167, %v1151
      %v1176 = vadd.f32 %v1168, %v1156
      %v1177 = vadd.f32 %v1169, %v1159
      %1178 = vst.msk [vmem:[%s231] sm:$0xff] %vm237, %v1170
      %1179 = vst.msk [vmem:[%s231 + $0x8] sm:$0xff] %vm237, %v1171
      %1180 = vst.msk [vmem:[%s231 + $0x10] sm:$0xff] %vm237, %v1172
      %1181 = vst.msk [vmem:[%s231 + $0x18] sm:$0xff] %vm237, %v1173
      %1182 = vst.msk [vmem:[%s231 + $0x20] sm:$0xff] %vm237, %v1174
      %1183 = vst.msk [vmem:[%s231 + $0x28] sm:$0xff] %vm237, %v1175
      %1184 = vst.msk [vmem:[%s231 + $0x30] sm:$0xff] %vm237, %v1176
      %1185 = vst.msk [vmem:[%s231 + $0x38] sm:$0xff] %vm237, %v1177
      %s1186 = scalar_lea.vmem %s246, 2 [#allocation2]
      %v1187 = vld [vmem:[%s1186] ss:$2 sm:$0xff]
      %s1188 = scalar_lea.vmem %s246, 50 [#allocation2]
      %v1189 = vld [vmem:[%s1188] ss:$2 sm:$0xff]
      %s1190 = scalar_lea.vmem %s246, 98 [#allocation2]
      %v1191 = vld [vmem:[%s1190] ss:$2 sm:$0xff]
      %s1192 = scalar_lea.vmem %s246, 146 [#allocation2]
      %v1193 = vld [vmem:[%s1192] ss:$2 sm:$0xff]
      %s1194 = scalar_lea.vmem %s246, 194 [#allocation2]
      %v1195 = vld [vmem:[%s1194] ss:$2 sm:$0xff]
      %s1196 = scalar_lea.vmem %s246, 242 [#allocation2]
      %v1197 = vld [vmem:[%s1196] ss:$2 sm:$0xff]
      %s1198 = scalar_lea.vmem %s246, 290 [#allocation2]
      %v1199 = vld [vmem:[%s1198] ss:$2 sm:$0xff]
      %s1200 = scalar_lea.vmem %s246, 338 [#allocation2]
      %v1201 = vld [vmem:[%s1200] ss:$2 sm:$0xff]
      %v1202 = vpack.c.bf16 %v1187, %v1187
      %v1203 = vpack.c.bf16 %v1189, %v1189
      %v1204 = vpack.c.bf16 %v1191, %v1191
      %v1205 = vpack.c.bf16 %v1193, %v1193
      %v1206 = vpack.c.bf16 %v1195, %v1195
      %v1207 = vpack.c.bf16 %v1197, %v1197
      %v1208 = vpack.c.bf16 %v1199, %v1199
      %v1209 = vpack.c.bf16 %v1201, %v1201
      %s1210 = scalar_lea.vmem %s3, 5
      %v1211 = vld [vmem:[%s1210] sm:$0x1]
      %v1220 = vunpack.c.l.b16 %v1202
      %v1221 = vunpack.c.l.b16 %v1203
      %v1222 = vunpack.c.l.b16 %v1204
      %v1223 = vunpack.c.l.b16 %v1205
      %v1224 = vunpack.c.l.b16 %v1206
      %v1225 = vunpack.c.l.b16 %v1207
      %v1226 = vunpack.c.l.b16 %v1208
      %v1227 = vunpack.c.l.b16 %v1209
      %v1228 = vpack.c.b16 %v1221, %v1220
      %v1229 = vpack.c.b16 %v1223, %v1222
      %v1230 = vpack.c.b16 %v1225, %v1224
      %v1231 = vpack.c.b16 %v1227, %v1226
      %v1233 = vsel %vm237, %v1228, 0
      %v1236 = vsel %vm237, %v1229, 0
      %v1239 = vsel %vm237, %v1230, 0
      %v1242 = vsel %vm237, %v1231, 0
      %v1245 = vsel %vm510, %v1211, 0
      %1247 = vmatprep.subr.bf16.mxu0 0
      %1248 = vmatpush1.bf16.msra.mxu0 0
      %1249 = vmatprep.subr.bf16.mxu0 0
      %1250 = vmatpush1.bf16.msra.mxu0 0
      %1251 = vmatprep.subr.bf16.mxu0 0
      %1252 = vmatpush1.bf16.msra.mxu0 0
      %1253 = vmatprep.subr.bf16.mxu0 0
      %1254 = vmatpush1.bf16.msra.mxu0 0
      %1255 = vmatprep.subr.bf16.mxu0 0
      %1256 = vmatpush1.bf16.msra.mxu0 0
      %1257 = vmatprep.subr.bf16.mxu0 0
      %1258 = vmatpush1.bf16.msra.mxu0 0
      %1259 = vmatprep.subr.bf16.mxu0 0
      %1260 = vmatpush1.bf16.msra.mxu0 0
      %1261 = vmatprep.subr.bf16.mxu0 0
      %1262 = vmatpush1.bf16.msra.mxu0 %v1245
      %1263 = vmatprep.subr.bf16.mxu0 0
      %1264 = vmatpush2.bf16.msra.mxu0 0
      %1265 = vmatprep.subr.bf16.mxu0 0
      %1266 = vmatpush2.bf16.msra.mxu0 0
      %1267 = vmatprep.subr.bf16.mxu0 0
      %1268 = vmatpush2.bf16.msra.mxu0 0
      %1269 = vmatprep.subr.bf16.mxu0 0
      %1270 = vmatpush2.bf16.msra.mxu0 0
      %1271 = vmatprep.subr.bf16.mxu0 0
      %1272 = vmatpush2.bf16.msra.mxu0 0
      %1273 = vmatprep.subr.bf16.mxu0 0
      %1274 = vmatpush2.bf16.msra.mxu0 0
      %1275 = vmatprep.subr.bf16.mxu0 0
      %1276 = vmatpush2.bf16.msra.mxu0 0
      %1277 = vmatprep.subr.bf16.mxu0 0
      %1278 = vmatpush2.bf16.msra.mxu0 0
      %1279 = vmatprep.mubr.bf16.mxu0 0
      %1280 = vmatmul.mubr.bf16.gmra.mxu0 %v1233
      %v1281 = vpop.f32.mrf.mxu0
      %v1282 = vadd.f32 0.0, %v1281
      %v1283 = vpop.f32.mrf.mxu0
      %v1284 = vpop.f32.mrf.mxu0
      %v1285 = vadd.f32 0.0, %v1284
      %v1286 = vpop.f32.mrf.mxu0
      %1287 = vmatprep.mubr.bf16.mxu0 0
      %1288 = vmatmul.mubr.bf16.gmra.mxu0 %v1236
      %v1289 = vpop.f32.mrf.mxu0
      %v1290 = vadd.f32 0.0, %v1289
      %v1291 = vpop.f32.mrf.mxu0
      %v1292 = vpop.f32.mrf.mxu0
      %v1293 = vadd.f32 0.0, %v1292
      %v1294 = vpop.f32.mrf.mxu0
      %1295 = vmatprep.mubr.bf16.mxu0 0
      %1296 = vmatmul.mubr.bf16.gmra.mxu0 %v1239
      %v1297 = vpop.f32.mrf.mxu0
      %v1298 = vadd.f32 0.0, %v1297
      %v1299 = vpop.f32.mrf.mxu0
      %v1300 = vpop.f32.mrf.mxu0
      %v1301 = vadd.f32 0.0, %v1300
      %v1302 = vpop.f32.mrf.mxu0
      %1303 = vmatprep.mubr.bf16.mxu0 0
      %1304 = vmatmul.mubr.bf16.gmra.mxu0 %v1242
      %v1305 = vpop.f32.mrf.mxu0
      %v1306 = vadd.f32 0.0, %v1305
      %v1307 = vpop.f32.mrf.mxu0
      %v1308 = vpop.f32.mrf.mxu0
      %v1309 = vadd.f32 0.0, %v1308
      %v1310 = vpop.f32.mrf.mxu0
      %1311 = vdwg.mxu0
      %v1312 = vld [vmem:[%s231] sm:$0xff]
      %v1313 = vld [vmem:[%s231 + $0x8] sm:$0xff]
      %v1314 = vld [vmem:[%s231 + $0x10] sm:$0xff]
      %v1315 = vld [vmem:[%s231 + $0x18] sm:$0xff]
      %v1316 = vld [vmem:[%s231 + $0x20] sm:$0xff]
      %v1317 = vld [vmem:[%s231 + $0x28] sm:$0xff]
      %v1318 = vld [vmem:[%s231 + $0x30] sm:$0xff]
      %v1319 = vld [vmem:[%s231 + $0x38] sm:$0xff]
      %v1320 = vadd.f32 %v1312, %v1282
      %v1321 = vadd.f32 %v1313, %v1285
      %v1322 = vadd.f32 %v1314, %v1290
      %v1323 = vadd.f32 %v1315, %v1293
      %v1324 = vadd.f32 %v1316, %v1298
      %v1325 = vadd.f32 %v1317, %v1301
      %v1326 = vadd.f32 %v1318, %v1306
      %v1327 = vadd.f32 %v1319, %v1309
      %1328 = vst.msk [vmem:[%s231] sm:$0xff] %vm237, %v1320
      %1329 = vst.msk [vmem:[%s231 + $0x8] sm:$0xff] %vm237, %v1321
      %1330 = vst.msk [vmem:[%s231 + $0x10] sm:$0xff] %vm237, %v1322
      %1331 = vst.msk [vmem:[%s231 + $0x18] sm:$0xff] %vm237, %v1323
      %1332 = vst.msk [vmem:[%s231 + $0x20] sm:$0xff] %vm237, %v1324
      %1333 = vst.msk [vmem:[%s231 + $0x28] sm:$0xff] %vm237, %v1325
      %1334 = vst.msk [vmem:[%s231 + $0x30] sm:$0xff] %vm237, %v1326
      %1335 = vst.msk [vmem:[%s231 + $0x38] sm:$0xff] %vm237, %v1327
      %s1336 = scalar_lea.vmem [#allocation2], 48
      %v1337 = vld [vmem:[%s1336] ss:$2 sm:$0xff]
      %s1338 = scalar_lea.vmem %s1336, 48 [#allocation2]
      %v1339 = vld [vmem:[%s1338] ss:$2 sm:$0xff]
      %s1340 = scalar_lea.vmem %s1336, 96 [#allocation2]
      %v1341 = vld [vmem:[%s1340] ss:$2 sm:$0xff]
      %s1342 = scalar_lea.vmem %s1336, 144 [#allocation2]
      %v1343 = vld [vmem:[%s1342] ss:$2 sm:$0xff]
      %s1344 = scalar_lea.vmem %s1336, 192 [#allocation2]
      %v1345 = vld [vmem:[%s1344] ss:$2 sm:$0xff]
      %s1346 = scalar_lea.vmem %s1336, 240 [#allocation2]
      %v1347 = vld [vmem:[%s1346] ss:$2 sm:$0xff]
      %s1348 = scalar_lea.vmem %s1336, 288 [#allocation2]
      %v1349 = vld [vmem:[%s1348] ss:$2 sm:$0xff]
      %s1350 = scalar_lea.vmem %s1336, 336 [#allocation2]
      %v1351 = vld [vmem:[%s1350] ss:$2 sm:$0xff]
      %v1352 = vpack.c.bf16 %v1337, %v1337
      %v1353 = vpack.c.bf16 %v1339, %v1339
      %v1354 = vpack.c.bf16 %v1341, %v1341
      %v1355 = vpack.c.bf16 %v1343, %v1343
      %v1356 = vpack.c.bf16 %v1345, %v1345
      %v1357 = vpack.c.bf16 %v1347, %v1347
      %v1358 = vpack.c.bf16 %v1349, %v1349
      %v1359 = vpack.c.bf16 %v1351, %v1351
      %s1360 = scalar_lea.vmem %s3, 6
      %v1361 = vld [vmem:[%s1360] sm:$0x1]
      %v1370 = vunpack.c.l.b16 %v1352
      %v1371 = vunpack.c.l.b16 %v1353
      %v1372 = vunpack.c.l.b16 %v1354
      %v1373 = vunpack.c.l.b16 %v1355
      %v1374 = vunpack.c.l.b16 %v1356
      %v1375 = vunpack.c.l.b16 %v1357
      %v1376 = vunpack.c.l.b16 %v1358
      %v1377 = vunpack.c.l.b16 %v1359
      %v1378 = vpack.c.b16 %v1371, %v1370
      %v1379 = vpack.c.b16 %v1373, %v1372
      %v1380 = vpack.c.b16 %v1375, %v1374
      %v1381 = vpack.c.b16 %v1377, %v1376
      %v1383 = vsel %vm237, %v1378, 0
      %v1386 = vsel %vm237, %v1379, 0
      %v1389 = vsel %vm237, %v1380, 0
      %v1392 = vsel %vm237, %v1381, 0
      %v1395 = vsel %vm510, %v1361, 0
      %1397 = vmatprep.subr.bf16.mxu0 0
      %1398 = vmatpush1.bf16.msra.mxu0 0
      %1399 = vmatprep.subr.bf16.mxu0 0
      %1400 = vmatpush1.bf16.msra.mxu0 0
      %1401 = vmatprep.subr.bf16.mxu0 0
      %1402 = vmatpush1.bf16.msra.mxu0 0
      %1403 = vmatprep.subr.bf16.mxu0 0
      %1404 = vmatpush1.bf16.msra.mxu0 0
      %1405 = vmatprep.subr.bf16.mxu0 0
      %1406 = vmatpush1.bf16.msra.mxu0 0
      %1407 = vmatprep.subr.bf16.mxu0 0
      %1408 = vmatpush1.bf16.msra.mxu0 0
      %1409 = vmatprep.subr.bf16.mxu0 0
      %1410 = vmatpush1.bf16.msra.mxu0 0
      %1411 = vmatprep.subr.bf16.mxu0 0
      %1412 = vmatpush1.bf16.msra.mxu0 %v1395
      %1413 = vmatprep.subr.bf16.mxu0 0
      %1414 = vmatpush2.bf16.msra.mxu0 0
      %1415 = vmatprep.subr.bf16.mxu0 0
      %1416 = vmatpush2.bf16.msra.mxu0 0
      %1417 = vmatprep.subr.bf16.mxu0 0
      %1418 = vmatpush2.bf16.msra.mxu0 0
      %1419 = vmatprep.subr.bf16.mxu0 0
      %1420 = vmatpush2.bf16.msra.mxu0 0
      %1421 = vmatprep.subr.bf16.mxu0 0
      %1422 = vmatpush2.bf16.msra.mxu0 0
      %1423 = vmatprep.subr.bf16.mxu0 0
      %1424 = vmatpush2.bf16.msra.mxu0 0
      %1425 = vmatprep.subr.bf16.mxu0 0
      %1426 = vmatpush2.bf16.msra.mxu0 0
      %1427 = vmatprep.subr.bf16.mxu0 0
      %1428 = vmatpush2.bf16.msra.mxu0 0
      %1429 = vmatprep.mubr.bf16.mxu0 0
      %1430 = vmatmul.mubr.bf16.gmra.mxu0 %v1383
      %v1431 = vpop.f32.mrf.mxu0
      %v1432 = vadd.f32 0.0, %v1431
      %v1433 = vpop.f32.mrf.mxu0
      %v1434 = vpop.f32.mrf.mxu0
      %v1435 = vadd.f32 0.0, %v1434
      %v1436 = vpop.f32.mrf.mxu0
      %1437 = vmatprep.mubr.bf16.mxu0 0
      %1438 = vmatmul.mubr.bf16.gmra.mxu0 %v1386
      %v1439 = vpop.f32.mrf.mxu0
      %v1440 = vadd.f32 0.0, %v1439
      %v1441 = vpop.f32.mrf.mxu0
      %v1442 = vpop.f32.mrf.mxu0
      %v1443 = vadd.f32 0.0, %v1442
      %v1444 = vpop.f32.mrf.mxu0
      %1445 = vmatprep.mubr.bf16.mxu0 0
      %1446 = vmatmul.mubr.bf16.gmra.mxu0 %v1389
      %v1447 = vpop.f32.mrf.mxu0
      %v1448 = vadd.f32 0.0, %v1447
      %v1449 = vpop.f32.mrf.mxu0
      %v1450 = vpop.f32.mrf.mxu0
      %v1451 = vadd.f32 0.0, %v1450
      %v1452 = vpop.f32.mrf.mxu0
      %1453 = vmatprep.mubr.bf16.mxu0 0
      %1454 = vmatmul.mubr.bf16.gmra.mxu0 %v1392
      %v1455 = vpop.f32.mrf.mxu0
      %v1456 = vadd.f32 0.0, %v1455
      %v1457 = vpop.f32.mrf.mxu0
      %v1458 = vpop.f32.mrf.mxu0
      %v1459 = vadd.f32 0.0, %v1458
      %v1460 = vpop.f32.mrf.mxu0
      %1461 = vdwg.mxu0
      %v1462 = vld [vmem:[%s231] sm:$0xff]
      %v1463 = vld [vmem:[%s231 + $0x8] sm:$0xff]
      %v1464 = vld [vmem:[%s231 + $0x10] sm:$0xff]
      %v1465 = vld [vmem:[%s231 + $0x18] sm:$0xff]
      %v1466 = vld [vmem:[%s231 + $0x20] sm:$0xff]
      %v1467 = vld [vmem:[%s231 + $0x28] sm:$0xff]
      %v1468 = vld [vmem:[%s231 + $0x30] sm:$0xff]
      %v1469 = vld [vmem:[%s231 + $0x38] sm:$0xff]
      %v1470 = vadd.f32 %v1462, %v1432
      %v1471 = vadd.f32 %v1463, %v1435
      %v1472 = vadd.f32 %v1464, %v1440
      %v1473 = vadd.f32 %v1465, %v1443
      %v1474 = vadd.f32 %v1466, %v1448
      %v1475 = vadd.f32 %v1467, %v1451
      %v1476 = vadd.f32 %v1468, %v1456
      %v1477 = vadd.f32 %v1469, %v1459
      %1478 = vst.msk [vmem:[%s231] sm:$0xff] %vm237, %v1470
      %1479 = vst.msk [vmem:[%s231 + $0x8] sm:$0xff] %vm237, %v1471
      %1480 = vst.msk [vmem:[%s231 + $0x10] sm:$0xff] %vm237, %v1472
      %1481 = vst.msk [vmem:[%s231 + $0x18] sm:$0xff] %vm237, %v1473
      %1482 = vst.msk [vmem:[%s231 + $0x20] sm:$0xff] %vm237, %v1474
      %1483 = vst.msk [vmem:[%s231 + $0x28] sm:$0xff] %vm237, %v1475
      %1484 = vst.msk [vmem:[%s231 + $0x30] sm:$0xff] %vm237, %v1476
      %1485 = vst.msk [vmem:[%s231 + $0x38] sm:$0xff] %vm237, %v1477
      %s1486 = scalar_lea.vmem %s1336, 1 [#allocation2]
      %v1487 = vld [vmem:[%s1486] ss:$2 sm:$0xff]
      %s1488 = scalar_lea.vmem %s1336, 49 [#allocation2]
      %v1489 = vld [vmem:[%s1488] ss:$2 sm:$0xff]
      %s1490 = scalar_lea.vmem %s1336, 97 [#allocation2]
      %v1491 = vld [vmem:[%s1490] ss:$2 sm:$0xff]
      %s1492 = scalar_lea.vmem %s1336, 145 [#allocation2]
      %v1493 = vld [vmem:[%s1492] ss:$2 sm:$0xff]
      %s1494 = scalar_lea.vmem %s1336, 193 [#allocation2]
      %v1495 = vld [vmem:[%s1494] ss:$2 sm:$0xff]
      %s1496 = scalar_lea.vmem %s1336, 241 [#allocation2]
      %v1497 = vld [vmem:[%s1496] ss:$2 sm:$0xff]
      %s1498 = scalar_lea.vmem %s1336, 289 [#allocation2]
      %v1499 = vld [vmem:[%s1498] ss:$2 sm:$0xff]
      %s1500 = scalar_lea.vmem %s1336, 337 [#allocation2]
      %v1501 = vld [vmem:[%s1500] ss:$2 sm:$0xff]
      %v1502 = vpack.c.bf16 %v1487, %v1487
      %v1503 = vpack.c.bf16 %v1489, %v1489
      %v1504 = vpack.c.bf16 %v1491, %v1491
      %v1505 = vpack.c.bf16 %v1493, %v1493
      %v1506 = vpack.c.bf16 %v1495, %v1495
      %v1507 = vpack.c.bf16 %v1497, %v1497
      %v1508 = vpack.c.bf16 %v1499, %v1499
      %v1509 = vpack.c.bf16 %v1501, %v1501
      %s1510 = scalar_lea.vmem %s3, 7
      %v1511 = vld [vmem:[%s1510] sm:$0x1]
      %v1520 = vunpack.c.l.b16 %v1502
      %v1521 = vunpack.c.l.b16 %v1503
      %v1522 = vunpack.c.l.b16 %v1504
      %v1523 = vunpack.c.l.b16 %v1505
      %v1524 = vunpack.c.l.b16 %v1506
      %v1525 = vunpack.c.l.b16 %v1507
      %v1526 = vunpack.c.l.b16 %v1508
      %v1527 = vunpack.c.l.b16 %v1509
      %v1528 = vpack.c.b16 %v1521, %v1520
      %v1529 = vpack.c.b16 %v1523, %v1522
      %v1530 = vpack.c.b16 %v1525, %v1524
      %v1531 = vpack.c.b16 %v1527, %v1526
      %v1533 = vsel %vm237, %v1528, 0
      %v1536 = vsel %vm237, %v1529, 0
      %v1539 = vsel %vm237, %v1530, 0
      %v1542 = vsel %vm237, %v1531, 0
      %v1545 = vsel %vm510, %v1511, 0
      %1547 = vmatprep.subr.bf16.mxu0 0
      %1548 = vmatpush1.bf16.msra.mxu0 0
      %1549 = vmatprep.subr.bf16.mxu0 0
      %1550 = vmatpush1.bf16.msra.mxu0 0
      %1551 = vmatprep.subr.bf16.mxu0 0
      %1552 = vmatpush1.bf16.msra.mxu0 0
      %1553 = vmatprep.subr.bf16.mxu0 0
      %1554 = vmatpush1.bf16.msra.mxu0 0
      %1555 = vmatprep.subr.bf16.mxu0 0
      %1556 = vmatpush1.bf16.msra.mxu0 0
      %1557 = vmatprep.subr.bf16.mxu0 0
      %1558 = vmatpush1.bf16.msra.mxu0 0
      %1559 = vmatprep.subr.bf16.mxu0 0
      %1560 = vmatpush1.bf16.msra.mxu0 0
      %1561 = vmatprep.subr.bf16.mxu0 0
      %1562 = vmatpush1.bf16.msra.mxu0 %v1545
      %1563 = vmatprep.subr.bf16.mxu0 0
      %1564 = vmatpush2.bf16.msra.mxu0 0
      %1565 = vmatprep.subr.bf16.mxu0 0
      %1566 = vmatpush2.bf16.msra.mxu0 0
      %1567 = vmatprep.subr.bf16.mxu0 0
      %1568 = vmatpush2.bf16.msra.mxu0 0
      %1569 = vmatprep.subr.bf16.mxu0 0
      %1570 = vmatpush2.bf16.msra.mxu0 0
      %1571 = vmatprep.subr.bf16.mxu0 0
      %1572 = vmatpush2.bf16.msra.mxu0 0
      %1573 = vmatprep.subr.bf16.mxu0 0
      %1574 = vmatpush2.bf16.msra.mxu0 0
      %1575 = vmatprep.subr.bf16.mxu0 0
      %1576 = vmatpush2.bf16.msra.mxu0 0
      %1577 = vmatprep.subr.bf16.mxu0 0
      %1578 = vmatpush2.bf16.msra.mxu0 0
      %1579 = vmatprep.mubr.bf16.mxu0 0
      %1580 = vmatmul.mubr.bf16.gmra.mxu0 %v1533
      %v1581 = vpop.f32.mrf.mxu0
      %v1582 = vadd.f32 0.0, %v1581
      %v1583 = vpop.f32.mrf.mxu0
      %v1584 = vpop.f32.mrf.mxu0
      %v1585 = vadd.f32 0.0, %v1584
      %v1586 = vpop.f32.mrf.mxu0
      %1587 = vmatprep.mubr.bf16.mxu0 0
      %1588 = vmatmul.mubr.bf16.gmra.mxu0 %v1536
      %v1589 = vpop.f32.mrf.mxu0
      %v1590 = vadd.f32 0.0, %v1589
      %v1591 = vpop.f32.mrf.mxu0
      %v1592 = vpop.f32.mrf.mxu0
      %v1593 = vadd.f32 0.0, %v1592
      %v1594 = vpop.f32.mrf.mxu0
      %1595 = vmatprep.mubr.bf16.mxu0 0
      %1596 = vmatmul.mubr.bf16.gmra.mxu0 %v1539
      %v1597 = vpop.f32.mrf.mxu0
      %v1598 = vadd.f32 0.0, %v1597
      %v1599 = vpop.f32.mrf.mxu0
      %v1600 = vpop.f32.mrf.mxu0
      %v1601 = vadd.f32 0.0, %v1600
      %v1602 = vpop.f32.mrf.mxu0
      %1603 = vmatprep.mubr.bf16.mxu0 0
      %1604 = vmatmul.mubr.bf16.gmra.mxu0 %v1542
      %v1605 = vpop.f32.mrf.mxu0
      %v1606 = vadd.f32 0.0, %v1605
      %v1607 = vpop.f32.mrf.mxu0
      %v1608 = vpop.f32.mrf.mxu0
      %v1609 = vadd.f32 0.0, %v1608
      %v1610 = vpop.f32.mrf.mxu0
      %1611 = vdwg.mxu0
      %v1612 = vld [vmem:[%s231] sm:$0xff]
      %v1613 = vld [vmem:[%s231 + $0x8] sm:$0xff]
      %v1614 = vld [vmem:[%s231 + $0x10] sm:$0xff]
      %v1615 = vld [vmem:[%s231 + $0x18] sm:$0xff]
      %v1616 = vld [vmem:[%s231 + $0x20] sm:$0xff]
      %v1617 = vld [vmem:[%s231 + $0x28] sm:$0xff]
      %v1618 = vld [vmem:[%s231 + $0x30] sm:$0xff]
      %v1619 = vld [vmem:[%s231 + $0x38] sm:$0xff]
      %v1620 = vadd.f32 %v1612, %v1582
      %v1621 = vadd.f32 %v1613, %v1585
      %v1622 = vadd.f32 %v1614, %v1590
      %v1623 = vadd.f32 %v1615, %v1593
      %v1624 = vadd.f32 %v1616, %v1598
      %v1625 = vadd.f32 %v1617, %v1601
      %v1626 = vadd.f32 %v1618, %v1606
      %v1627 = vadd.f32 %v1619, %v1609
      %1628 = vst.msk [vmem:[%s231] sm:$0xff] %vm237, %v1620
      %1629 = vst.msk [vmem:[%s231 + $0x8] sm:$0xff] %vm237, %v1621
      %1630 = vst.msk [vmem:[%s231 + $0x10] sm:$0xff] %vm237, %v1622
      %1631 = vst.msk [vmem:[%s231 + $0x18] sm:$0xff] %vm237, %v1623
      %1632 = vst.msk [vmem:[%s231 + $0x20] sm:$0xff] %vm237, %v1624
      %1633 = vst.msk [vmem:[%s231 + $0x28] sm:$0xff] %vm237, %v1625
      %1634 = vst.msk [vmem:[%s231 + $0x30] sm:$0xff] %vm237, %v1626
      %1635 = vst.msk [vmem:[%s231 + $0x38] sm:$0xff] %vm237, %v1627
      %s1636 = scalar_lea.vmem %s1336, 2 [#allocation2]
      %v1637 = vld [vmem:[%s1636] ss:$2 sm:$0xff]
      %s1638 = scalar_lea.vmem %s1336, 50 [#allocation2]
      %v1639 = vld [vmem:[%s1638] ss:$2 sm:$0xff]
      %s1640 = scalar_lea.vmem %s1336, 98 [#allocation2]
      %v1641 = vld [vmem:[%s1640] ss:$2 sm:$0xff]
      %s1642 = scalar_lea.vmem %s1336, 146 [#allocation2]
      %v1643 = vld [vmem:[%s1642] ss:$2 sm:$0xff]
      %s1644 = scalar_lea.vmem %s1336, 194 [#allocation2]
      %v1645 = vld [vmem:[%s1644] ss:$2 sm:$0xff]
      %s1646 = scalar_lea.vmem %s1336, 242 [#allocation2]
      %v1647 = vld [vmem:[%s1646] ss:$2 sm:$0xff]
      %s1648 = scalar_lea.vmem %s1336, 290 [#allocation2]
      %v1649 = vld [vmem:[%s1648] ss:$2 sm:$0xff]
      %s1650 = scalar_lea.vmem %s1336, 338 [#allocation2]
      %v1651 = vld [vmem:[%s1650] ss:$2 sm:$0xff]
      %v1652 = vpack.c.bf16 %v1637, %v1637
      %v1653 = vpack.c.bf16 %v1639, %v1639
      %v1654 = vpack.c.bf16 %v1641, %v1641
      %v1655 = vpack.c.bf16 %v1643, %v1643
      %v1656 = vpack.c.bf16 %v1645, %v1645
      %v1657 = vpack.c.bf16 %v1647, %v1647
      %v1658 = vpack.c.bf16 %v1649, %v1649
      %v1659 = vpack.c.bf16 %v1651, %v1651
      %s1660 = scalar_lea.vmem %s3, 8
      %v1661 = vld [vmem:[%s1660] sm:$0x1]
      %v1670 = vunpack.c.l.b16 %v1652
      %v1671 = vunpack.c.l.b16 %v1653
      %v1672 = vunpack.c.l.b16 %v1654
      %v1673 = vunpack.c.l.b16 %v1655
      %v1674 = vunpack.c.l.b16 %v1656
      %v1675 = vunpack.c.l.b16 %v1657
      %v1676 = vunpack.c.l.b16 %v1658
      %v1677 = vunpack.c.l.b16 %v1659
      %v1678 = vpack.c.b16 %v1671, %v1670
      %v1679 = vpack.c.b16 %v1673, %v1672
      %v1680 = vpack.c.b16 %v1675, %v1674
      %v1681 = vpack.c.b16 %v1677, %v1676
      %v1683 = vsel %vm237, %v1678, 0
      %v1686 = vsel %vm237, %v1679, 0
      %v1689 = vsel %vm237, %v1680, 0
      %v1692 = vsel %vm237, %v1681, 0
      %v1695 = vsel %vm510, %v1661, 0
      %1697 = vmatprep.subr.bf16.mxu0 0
      %1698 = vmatpush1.bf16.msra.mxu0 0
      %1699 = vmatprep.subr.bf16.mxu0 0
      %1700 = vmatpush1.bf16.msra.mxu0 0
      %1701 = vmatprep.subr.bf16.mxu0 0
      %1702 = vmatpush1.bf16.msra.mxu0 0
      %1703 = vmatprep.subr.bf16.mxu0 0
      %1704 = vmatpush1.bf16.msra.mxu0 0
      %1705 = vmatprep.subr.bf16.mxu0 0
      %1706 = vmatpush1.bf16.msra.mxu0 0
      %1707 = vmatprep.subr.bf16.mxu0 0
      %1708 = vmatpush1.bf16.msra.mxu0 0
      %1709 = vmatprep.subr.bf16.mxu0 0
      %1710 = vmatpush1.bf16.msra.mxu0 0
      %1711 = vmatprep.subr.bf16.mxu0 0
      %1712 = vmatpush1.bf16.msra.mxu0 %v1695
      %1713 = vmatprep.subr.bf16.mxu0 0
      %1714 = vmatpush2.bf16.msra.mxu0 0
      %1715 = vmatprep.subr.bf16.mxu0 0
      %1716 = vmatpush2.bf16.msra.mxu0 0
      %1717 = vmatprep.subr.bf16.mxu0 0
      %1718 = vmatpush2.bf16.msra.mxu0 0
      %1719 = vmatprep.subr.bf16.mxu0 0
      %1720 = vmatpush2.bf16.msra.mxu0 0
      %1721 = vmatprep.subr.bf16.mxu0 0
      %1722 = vmatpush2.bf16.msra.mxu0 0
      %1723 = vmatprep.subr.bf16.mxu0 0
      %1724 = vmatpush2.bf16.msra.mxu0 0
      %1725 = vmatprep.subr.bf16.mxu0 0
      %1726 = vmatpush2.bf16.msra.mxu0 0
      %1727 = vmatprep.subr.bf16.mxu0 0
      %1728 = vmatpush2.bf16.msra.mxu0 0
      %1729 = vmatprep.mubr.bf16.mxu0 0
      %1730 = vmatmul.mubr.bf16.gmra.mxu0 %v1683
      %v1731 = vpop.f32.mrf.mxu0
      %v1732 = vadd.f32 0.0, %v1731
      %v1733 = vpop.f32.mrf.mxu0
      %v1734 = vpop.f32.mrf.mxu0
      %v1735 = vadd.f32 0.0, %v1734
      %v1736 = vpop.f32.mrf.mxu0
      %1737 = vmatprep.mubr.bf16.mxu0 0
      %1738 = vmatmul.mubr.bf16.gmra.mxu0 %v1686
      %v1739 = vpop.f32.mrf.mxu0
      %v1740 = vadd.f32 0.0, %v1739
      %v1741 = vpop.f32.mrf.mxu0
      %v1742 = vpop.f32.mrf.mxu0
      %v1743 = vadd.f32 0.0, %v1742
      %v1744 = vpop.f32.mrf.mxu0
      %1745 = vmatprep.mubr.bf16.mxu0 0
      %1746 = vmatmul.mubr.bf16.gmra.mxu0 %v1689
      %v1747 = vpop.f32.mrf.mxu0
      %v1748 = vadd.f32 0.0, %v1747
      %v1749 = vpop.f32.mrf.mxu0
      %v1750 = vpop.f32.mrf.mxu0
      %v1751 = vadd.f32 0.0, %v1750
      %v1752 = vpop.f32.mrf.mxu0
      %1753 = vmatprep.mubr.bf16.mxu0 0
      %1754 = vmatmul.mubr.bf16.gmra.mxu0 %v1692
      %v1755 = vpop.f32.mrf.mxu0
      %v1756 = vadd.f32 0.0, %v1755
      %v1757 = vpop.f32.mrf.mxu0
      %v1758 = vpop.f32.mrf.mxu0
      %v1759 = vadd.f32 0.0, %v1758
      %v1760 = vpop.f32.mrf.mxu0
      %1761 = vdwg.mxu0
      %v1762 = vld [vmem:[%s231] sm:$0xff]
      %v1763 = vld [vmem:[%s231 + $0x8] sm:$0xff]
      %v1764 = vld [vmem:[%s231 + $0x10] sm:$0xff]
      %v1765 = vld [vmem:[%s231 + $0x18] sm:$0xff]
      %v1766 = vld [vmem:[%s231 + $0x20] sm:$0xff]
      %v1767 = vld [vmem:[%s231 + $0x28] sm:$0xff]
      %v1768 = vld [vmem:[%s231 + $0x30] sm:$0xff]
      %v1769 = vld [vmem:[%s231 + $0x38] sm:$0xff]
      %v1770 = vadd.f32 %v1762, %v1732
      %v1771 = vadd.f32 %v1763, %v1735
      %v1772 = vadd.f32 %v1764, %v1740
      %v1773 = vadd.f32 %v1765, %v1743
      %v1774 = vadd.f32 %v1766, %v1748
      %v1775 = vadd.f32 %v1767, %v1751
      %v1776 = vadd.f32 %v1768, %v1756
      %v1777 = vadd.f32 %v1769, %v1759
      %1778 = vst.msk [vmem:[%s231] sm:$0xff] %vm237, %v1770
      %1779 = vst.msk [vmem:[%s231 + $0x8] sm:$0xff] %vm237, %v1771
      %1780 = vst.msk [vmem:[%s231 + $0x10] sm:$0xff] %vm237, %v1772
      %1781 = vst.msk [vmem:[%s231 + $0x18] sm:$0xff] %vm237, %v1773
      %1782 = vst.msk [vmem:[%s231 + $0x20] sm:$0xff] %vm237, %v1774
      %1783 = vst.msk [vmem:[%s231 + $0x28] sm:$0xff] %vm237, %v1775
      %1784 = vst.msk [vmem:[%s231 + $0x30] sm:$0xff] %vm237, %v1776
      %1785 = vst.msk [vmem:[%s231 + $0x38] sm:$0xff] %vm237, %v1777
      %v1786 = vld [vmem:[%s231] sm:$0xff]
      %v1787 = vld [vmem:[%s231 + $0x8] sm:$0xff]
      %v1788 = vld [vmem:[%s231 + $0x10] sm:$0xff]
      %v1789 = vld [vmem:[%s231 + $0x18] sm:$0xff]
      %v1790 = vld [vmem:[%s231 + $0x20] sm:$0xff]
      %v1791 = vld [vmem:[%s231 + $0x28] sm:$0xff]
      %v1792 = vld [vmem:[%s231 + $0x30] sm:$0xff]
      %v1793 = vld [vmem:[%s231 + $0x38] sm:$0xff]
      %v1794 = vsel %vm237, %v1786, 0.0
      %v1795 = vsel %vm237, %v1787, 0.0
      %v1796 = vadd.f32 %v1794, %v1795
      %v1797 = vsel %vm237, %v1788, 0.0
      %v1798 = vadd.f32 %v1796, %v1797
      %v1799 = vsel %vm237, %v1789, 0.0
      %v1800 = vadd.f32 %v1798, %v1799
      %v1801 = vsel %vm237, %v1790, 0.0
      %v1802 = vadd.f32 %v1800, %v1801
      %v1803 = vsel %vm237, %v1791, 0.0
      %v1804 = vadd.f32 %v1802, %v1803
      %v1805 = vsel %vm237, %v1792, 0.0
      %v1806 = vadd.f32 %v1804, %v1805
      %v1807 = vsel %vm237, %v1793, 0.0
      %v1808 = vadd.f32 %v1806, %v1807
      %v1809 = vrot.slane %v1808, 4
      %v1810 = vadd.f32 %v1808, %v1809
      %v1811 = vrot.slane %v1810, 2
      %v1812 = vadd.f32 %v1810, %v1811
      %v1813 = vrot.slane %v1812, 1
      %v1814 = vadd.f32 %v1812, %v1813
      %v1815 = vmul.f32 %v1786, %v1786
      %v1816 = vmul.f32 %v1787, %v1787
      %v1817 = vmul.f32 %v1788, %v1788
      %v1818 = vmul.f32 %v1789, %v1789
      %v1819 = vmul.f32 %v1790, %v1790
      %v1820 = vmul.f32 %v1791, %v1791
      %v1821 = vmul.f32 %v1792, %v1792
      %v1822 = vmul.f32 %v1793, %v1793
      %v1823 = vsel %vm237, %v1815, 0.0
      %v1824 = vsel %vm237, %v1816, 0.0
      %v1825 = vadd.f32 %v1823, %v1824
      %v1826 = vsel %vm237, %v1817, 0.0
      %v1827 = vadd.f32 %v1825, %v1826
      %v1828 = vsel %vm237, %v1818, 0.0
      %v1829 = vadd.f32 %v1827, %v1828
      %v1830 = vsel %vm237, %v1819, 0.0
      %v1831 = vadd.f32 %v1829, %v1830
      %v1832 = vsel %vm237, %v1820, 0.0
      %v1833 = vadd.f32 %v1831, %v1832
      %v1834 = vsel %vm237, %v1821, 0.0
      %v1835 = vadd.f32 %v1833, %v1834
      %v1836 = vsel %vm237, %v1822, 0.0
      %v1837 = vadd.f32 %v1835, %v1836
      %v1838 = vrot.slane %v1837, 4
      %v1839 = vadd.f32 %v1837, %v1838
      %v1840 = vrot.slane %v1839, 2
      %v1841 = vadd.f32 %v1839, %v1840
      %v1842 = vrot.slane %v1841, 1
      %v1843 = vadd.f32 %v1841, %v1842
      %v1844 = vsel %vm510, %v1814, %v1843
      %1845 = vst.msk [vmem:[%s235] sm:$0x3] %vm240, %v1844
      %p1846 = scmp.lt.s32.totalorder %s17, 1
      %s1847 = scalar_select %p1846, %s17, 1
      %s1848 = smul.addr %s1847, 8
      %s1849 = smul.addr %s1848, 8
      %s1850 = scalar_lea.vmem %s4, %s1849
      %p1851 = scmp.lt.s32.totalorder %s17, 1
      %s1852 = scalar_select %p1851, %s17, 1
      %s1853 = smul.addr %s1852, 2
      %s1854 = scalar_lea.vmem %s5, %s1853
      // Predicated region
      $region37: #{preact_bottleneck_forward.7} parent=35 // pred_check
        %p1855 = pneg %p124
      $region38: #{preact_bottleneck_forward.7} parent=35 // pred_check_branch
        %1857 = sbr.rel (%p1855) target = $region40
      $region39: #{preact_bottleneck_forward.7} parent=35 // pred_region
        _
      $region40: #{preact_bottleneck_forward.7} parent=35 // pred_fallthru
        _
      // Predicated region
      $region41: #{preact_bottleneck_forward.7} parent=35 // pred_check
        %p1858 = pneg %p150
      $region42: #{preact_bottleneck_forward.7} parent=35 // pred_check_branch
        %1860 = sbr.rel (%p1858) target = $region44
      $region43: #{preact_bottleneck_forward.7} parent=35 // pred_region
        _
      $region44: #{preact_bottleneck_forward.7} parent=35 // pred_fallthru
        _
    $region36: #{preact_bottleneck_forward.7} parent=5 // pred_fallthru
      _
    %p1861 = scmp.le.s32.totalorder 2, %s12
    // Predicated region
    $region45: #{preact_bottleneck_forward.7} parent=5 // pred_check
      %p1862 = pneg %p1861
    $region46: #{preact_bottleneck_forward.7} parent=5 // pred_check_branch
      %1864 = sbr.rel (%p1862) target = $region48
    $region47: #{preact_bottleneck_forward.7} parent=5 // pred_region
      %s1865 = ssub.s32 %s12, 2
      // Predicated region
      $region49: #{preact_bottleneck_forward.7} parent=47 // pred_check
        %p1866 = pneg %p130
      $region50: #{preact_bottleneck_forward.7} parent=47 // pred_check_branch
        %1868 = sbr.rel (%p1866) target = $region52
      $region51: #{preact_bottleneck_forward.7} parent=47 // pred_region
        %p1869 = scmp.lt.s32.totalorder %s18, 1
        %s1870 = scalar_select %p1869, %s18, 1
        %s1871 = smul.addr %s1870, 8
        %s1872 = smul.addr %s1871, 8
        %s1873 = scalar_lea.vmem %s4, %s1872
      $region52: #{preact_bottleneck_forward.7} parent=47 // pred_fallthru
        _
      // Predicated region
      $region53: #{preact_bottleneck_forward.7} parent=47 // pred_check
        %p1874 = pneg %p156
      $region54: #{preact_bottleneck_forward.7} parent=47 // pred_check_branch
        %1876 = sbr.rel (%p1874) target = $region56
      $region55: #{preact_bottleneck_forward.7} parent=47 // pred_region
        %p1877 = scmp.lt.s32.totalorder %s18, 1
        %s1878 = scalar_select %p1877, %s18, 1
        %s1879 = smul.addr %s1878, 2
        %s1880 = scalar_lea.vmem %s5, %s1879
      $region56: #{preact_bottleneck_forward.7} parent=47 // pred_fallthru
        _
    $region48: #{preact_bottleneck_forward.7} parent=5 // pred_fallthru
      _
  $region6: #{preact_bottleneck_forward.7} parent=0 // loop_footer
    %s16 = sadd.s32 1, %s12
  $region7: #{preact_bottleneck_forward.7} parent=0 // loop_footer_branch
    %11 = sbr.rel target = $region3
  $region8: #{preact_bottleneck_forward.7} parent=0 // loop_exit
    _

// kernel: preact_bottleneck_forward.9
$region0: #{preact_bottleneck_forward.9}
  #allocation0 [shape = 'u32[]', space=smem, size = 0x4, offset = 0x4, fixed_abs, tag = 'smem constant byte address 0x4 - core index']
  #allocation1 [shape = 'u32[144,128]{1,0:T(1,128)}', space=vmem, size = 0x12000, scoped, tag = 'internal scratch']
  #allocation2 [shape = 'f32[12,12]{1,0:T(8,128)}', space=vmem, size = 0x2000, scoped, tag = 'scratch operand']
  #allocation3 [shape = 'f32[10,10]{1,0:T(8,128)}', space=vmem, size = 0x2000, scoped, tag = 'scratch operand']
  #allocation4 [shape = 'f32[18,18]{1,0:T(8,128)}', space=vmem, size = 0x3000, scoped, tag = 'scratch operand']
  #allocation5 [shape = 'f32[1]{0:T(128)S(6)}', space=smem, size = 0x200, scoped, tag = 'scoped memory for preact_bottleneck_forward.9']
  #allocation6 [shape = 'f32[1]{0:T(128)S(6)}', space=smem, size = 0x200, scoped, tag = 'scoped memory for preact_bottleneck_forward.9']
  #allocation7 [shape = 'f32[1]{0:T(128)S(6)}', space=smem, size = 0x200, scoped, tag = 'scoped memory for preact_bottleneck_forward.9']
  #allocation8 [shape = 'f32[1]{0:T(128)S(6)}', space=smem, size = 0x200, scoped, tag = 'scoped memory for preact_bottleneck_forward.9']
  %s0 = inlined_call_operand.vmem [shape: f32[2,8,8,8], index: 0, kind: input, shape index: {}]
  %s1 = inlined_call_operand.vmem [shape: f32[2,8,8,8], index: 1, kind: input, shape index: {}]
  %s2 = inlined_call_operand.vmem [shape: f32[2,16,16], index: 2, kind: input, shape index: {}]
  %s3 = inlined_call_operand.vmem [shape: f32[8,8], index: 3, kind: input, shape index: {}]
  %s4 = inlined_call_operand.vmem [shape: f32[8,8], index: 4, kind: input, shape index: {}]
  %s5 = inlined_call_operand.vmem [shape: f32[8,16], index: 5, kind: input, shape index: {}]
  %s6 = inlined_call_operand.vmem [shape: f32[16,8], index: 6, kind: input, shape index: {}]
  %s7 = inlined_call_operand.vmem [shape: f32[5,5], index: 7, kind: input, shape index: {}]
  %s8 = inlined_call_operand.<no memory space> [shape: f32[1], index: 8, kind: input, shape index: {}]
  %s9 = inlined_call_operand.vmem [shape: f32[3,3], index: 9, kind: input, shape index: {}]
  %s10 = inlined_call_operand.<no memory space> [shape: f32[1], index: 10, kind: input, shape index: {}]
  %s11 = inlined_call_operand.vmem [shape: f32[3,3], index: 11, kind: input, shape index: {}]
  %s12 = inlined_call_operand.<no memory space> [shape: f32[1], index: 12, kind: input, shape index: {}]
  %s13 = inlined_call_operand.vmem [shape: f32[3,3], index: 13, kind: input, shape index: {}]
  %s14 = inlined_call_operand.<no memory space> [shape: f32[1], index: 14, kind: input, shape index: {}]
  %s15 = inlined_call_operand.vmem [shape: f32[2,8,8,8], index: 15, kind: output, shape index: {0}]
  %s16 = inlined_call_operand.hbm [shape: f32[2,8,8], index: 16, kind: output, shape index: {1}]
  %17 = xla_tuple %s15, %s16
  %s18 = sld [smem:[#allocation0]]
  $region117: #{preact_bottleneck_forward.9} parent=0
    _
  %s20 = ssub.s32 1, %s18
  %s21 = scalar_select 0, %s20, %s18
  %22 = sst [smem:[#allocation5]] %s8
  %23 = sst [smem:[#allocation6]] %s10
  %24 = sst [smem:[#allocation7]] %s12
  %25 = sst [smem:[#allocation8]] %s14
  $region1: #{preact_bottleneck_forward.9} parent=0
    #allocation9 [shape = 'u8[4096]{0}', space=smem, size = 0x1000, scoped, tag = 'input window, operand 7, single buffered']
    #allocation10 [shape = 's32[2]{0}', space=sflag, size = 0x8, scoped, tag = 'scoped memory for preact_bottleneck_forward.9']
    #allocation11 [shape = 's32[2]{0}', space=sflag, size = 0x8, scoped, tag = 'scoped memory for preact_bottleneck_forward.9']
    #allocation12 [shape = 'u8[2048]{0}', space=smem, size = 0x800, scoped, tag = 'input window, operand 9, single buffered']
    #allocation13 [shape = 's32[1]{0}', space=sflag, size = 0x4, scoped, tag = 'scoped memory for preact_bottleneck_forward.9']
    #allocation14 [shape = 'u8[2048]{0}', space=smem, size = 0x800, scoped, tag = 'input window, operand 11, single buffered']
    #allocation15 [shape = 'u8[2048]{0}', space=smem, size = 0x800, scoped, tag = 'input window, operand 13, single buffered']
    #allocation16 [shape = 's32[1]{0}', space=sflag, size = 0x4, scoped, tag = 'scoped memory for preact_bottleneck_forward.9']
    #allocation17 [shape = 'u8[8192]{0}', space=vmem, size = 0x2000, scoped, tag = 'output window, operand 1']
    %26 = vsyncpa [#allocation11], 0
    %27 = vsyncpa [#allocation13], 0
    %28 = vsyncpa [#allocation16], 0
    %29 = vsyncpa [#allocation10], 0
    %s30 = scalar_lea.sflag [#allocation10], 1
    %31 = vsyncpa %s30, 0
    loop: start=0, step=1, limit=4
    $region2: #{preact_bottleneck_forward.9} parent=1 // loop_pre_header
      _
    $region3: #{preact_bottleneck_forward.9} parent=1 // loop_header
      %s33 = sphi 0, %s37
      %p34 = scmp.ge.s32.totalorder %s33, 4
      %s43 = sphi 0, %s45
      %s46 = sphi 0, %s43
      %s47 = sphi 0, %s46
      %s63 = sphi 0, %s47
      %s69 = sphi 0, %s71
      %s72 = sphi 0, %s69
      %s73 = sphi 0, %s72
      %s89 = sphi 0, %s73
      %s95 = sphi 0, %s97
      %s98 = sphi 0, %s95
      %s99 = sphi 0, %s98
      %s115 = sphi 0, %s99
      %s119 = sphi 0, %s119
      %s121 = sphi 0, %s119
      %s122 = sphi 0, %s121
      %s136 = sphi 0, %s122
      %s140 = sphi 0, %s140
      %s142 = sphi 0, %s140
      %s143 = sphi 0, %s142
      %s157 = sphi 0, %s143
      %s161 = sphi 0, %s161
      %s163 = sphi 0, %s161
      %s164 = sphi 0, %s163
      %s178 = sphi 0, %s164
      %s182 = sphi 0, %s182
      %s184 = sphi 0, %s182
      %s185 = sphi 0, %s184
      %s199 = sphi 0, %s185
      %s203 = sphi 0, %s203
      %s205 = sphi 0, %s203
      %s206 = sphi 0, %s205
      %s220 = sphi 0, %s206
      %s224 = sphi 0, %s224
      %s226 = sphi 0, %s224
      %s227 = sphi 0, %s226
      %s241 = sphi 0, %s227
      %s245 = sphi 0, %s245
      %s247 = sphi 0, %s245
      %s248 = sphi 0, %s247
      %s262 = sphi 0, %s248
      %s266 = sphi 0, %s266
      %s268 = sphi 0, %s266
      %s269 = sphi 0, %s268
      %s283 = sphi 0, %s269
      %s287 = sphi 0, %s287
      %s289 = sphi 0, %s287
      %s290 = sphi 0, %s289
      %s304 = sphi 0, %s290
      %s308 = sphi 0, %s308
      %s310 = sphi 0, %s308
      %s311 = sphi 0, %s310
      %s325 = sphi 0, %s311
      %s329 = sphi 0, %s329
      %s331 = sphi 0, %s329
      %s332 = sphi 0, %s331
      %s346 = sphi 0, %s332
      %s350 = sphi 0, %s350
      %s352 = sphi 0, %s350
      %s353 = sphi 0, %s352
      %s367 = sphi 0, %s353
      %s373 = sphi 0, %s375
      %s376 = sphi 0, %s373
      %s377 = sphi 0, %s376
      %s393 = sphi 0, %s377
      %s399 = sphi 0, %s401
      %s402 = sphi 0, %s399
      %s403 = sphi 0, %s402
      %s419 = sphi 0, %s403
    $region4: #{preact_bottleneck_forward.9} parent=1 // loop_header_branch
      %36 = sbr.rel (%p34) target = $region8
    $region5: #{preact_bottleneck_forward.9} parent=1 // loop_body
      %s38 = ssub.s32 %s33, 1
      %s39 = ssub.s32 %s33, 2
      %s40 = sadd.s32 %s33, 1
      %s41 = ssub.s32 %s33, %s40
      %p42 = scmp.eq.s32.totalorder %s41, 0
      %s44 = sadd.s32 %s43, 1
      %s45 = scalar_select %p42, %s43, %s44
      %p48 = pneg %p42
      %p49 = scmp.eq.s32.totalorder %s33, 1
      %p50 = por %p48, %p49
      %p51 = scmp.ne.s32.totalorder %s43, %s46
      %p52 = scmp.eq.s32.totalorder %s33, 0
      %p53 = por %p51, %p52
      %p54 = scmp.ne.s32.totalorder %s43, %s46
      %p55 = scmp.eq.s32.totalorder %s38, 1
      %p56 = por %p54, %p55
      %p57 = scmp.ne.s32.totalorder %s46, %s47
      %p58 = scmp.eq.s32.totalorder %s38, 0
      %p59 = por %p57, %p58
      %p60 = scmp.ne.s32.totalorder %s46, %s47
      %p61 = scmp.eq.s32.totalorder %s39, 1
      %p62 = por %p60, %p61
      %p64 = scmp.ne.s32.totalorder %s47, %s63
      %p65 = scmp.eq.s32.totalorder %s39, 0
      %p66 = por %p64, %p65
      %s67 = ssub.s32 %s33, %s40
      %p68 = scmp.eq.s32.totalorder %s67, 0
      %s70 = sadd.s32 %s69, 1
      %s71 = scalar_select %p68, %s69, %s70
      %p74 = pneg %p68
      %p75 = scmp.eq.s32.totalorder %s33, 1
      %p76 = por %p74, %p75
      %p77 = scmp.ne.s32.totalorder %s69, %s72
      %p78 = scmp.eq.s32.totalorder %s33, 0
      %p79 = por %p77, %p78
      %p80 = scmp.ne.s32.totalorder %s69, %s72
      %p81 = scmp.eq.s32.totalorder %s38, 1
      %p82 = por %p80, %p81
      %p83 = scmp.ne.s32.totalorder %s72, %s73
      %p84 = scmp.eq.s32.totalorder %s38, 0
      %p85 = por %p83, %p84
      %p86 = scmp.ne.s32.totalorder %s72, %s73
      %p87 = scmp.eq.s32.totalorder %s39, 1
      %p88 = por %p86, %p87
      %p90 = scmp.ne.s32.totalorder %s73, %s89
      %p91 = scmp.eq.s32.totalorder %s39, 0
      %p92 = por %p90, %p91
      %s93 = ssub.s32 %s33, %s40
      %p94 = scmp.eq.s32.totalorder %s93, 0
      %s96 = sadd.s32 %s95, 1
      %s97 = scalar_select %p94, %s95, %s96
      %p100 = pneg %p94
      %p101 = scmp.eq.s32.totalorder %s33, 1
      %p102 = por %p100, %p101
      %p103 = scmp.ne.s32.totalorder %s95, %s98
      %p104 = scmp.eq.s32.totalorder %s33, 0
      %p105 = por %p103, %p104
      %p106 = scmp.ne.s32.totalorder %s95, %s98
      %p107 = scmp.eq.s32.totalorder %s38, 1
      %p108 = por %p106, %p107
      %p109 = scmp.ne.s32.totalorder %s98, %s99
      %p110 = scmp.eq.s32.totalorder %s38, 0
      %p111 = por %p109, %p110
      %p112 = scmp.ne.s32.totalorder %s98, %s99
      %p113 = scmp.eq.s32.totalorder %s39, 1
      %p114 = por %p112, %p113
      %p116 = scmp.ne.s32.totalorder %s99, %s115
      %p117 = scmp.eq.s32.totalorder %s39, 0
      %p118 = por %p116, %p117
      %s120 = sadd.s32 %s119, 1
      %p123 = scmp.eq.s32.totalorder %s33, 1
      %p124 = scmp.ne.s32.totalorder %s119, %s121
      %p125 = scmp.eq.s32.totalorder %s33, 0
      %p126 = por %p124, %p125
      %p127 = scmp.ne.s32.totalorder %s119, %s121
      %p128 = scmp.eq.s32.totalorder %s38, 1
      %p129 = por %p127, %p128
      %p130 = scmp.ne.s32.totalorder %s121, %s122
      %p131 = scmp.eq.s32.totalorder %s38, 0
      %p132 = por %p130, %p131
      %p133 = scmp.ne.s32.totalorder %s121, %s122
      %p134 = scmp.eq.s32.totalorder %s39, 1
      %p135 = por %p133, %p134
      %p137 = scmp.ne.s32.totalorder %s122, %s136
      %p138 = scmp.eq.s32.totalorder %s39, 0
      %p139 = por %p137, %p138
      %s141 = sadd.s32 %s140, 1
      %p144 = scmp.eq.s32.totalorder %s33, 1
      %p145 = scmp.ne.s32.totalorder %s140, %s142
      %p146 = scmp.eq.s32.totalorder %s33, 0
      %p147 = por %p145, %p146
      %p148 = scmp.ne.s32.totalorder %s140, %s142
      %p149 = scmp.eq.s32.totalorder %s38, 1
      %p150 = por %p148, %p149
      %p151 = scmp.ne.s32.totalorder %s142, %s143
      %p152 = scmp.eq.s32.totalorder %s38, 0
      %p153 = por %p151, %p152
      %p154 = scmp.ne.s32.totalorder %s142, %s143
      %p155 = scmp.eq.s32.totalorder %s39, 1
      %p156 = por %p154, %p155
      %p158 = scmp.ne.s32.totalorder %s143, %s157
      %p159 = scmp.eq.s32.totalorder %s39, 0
      %p160 = por %p158, %p159
      %s162 = sadd.s32 %s161, 1
      %p165 = scmp.eq.s32.totalorder %s33, 1
      %p166 = scmp.ne.s32.totalorder %s161, %s163
      %p167 = scmp.eq.s32.totalorder %s33, 0
      %p168 = por %p166, %p167
      %p169 = scmp.ne.s32.totalorder %s161, %s163
      %p170 = scmp.eq.s32.totalorder %s38, 1
      %p171 = por %p169, %p170
      %p172 = scmp.ne.s32.totalorder %s163, %s164
      %p173 = scmp.eq.s32.totalorder %s38, 0
      %p174 = por %p172, %p173
      %p175 = scmp.ne.s32.totalorder %s163, %s164
      %p176 = scmp.eq.s32.totalorder %s39, 1
      %p177 = por %p175, %p176
      %p179 = scmp.ne.s32.totalorder %s164, %s178
      %p180 = scmp.eq.s32.totalorder %s39, 0
      %p181 = por %p179, %p180
      %s183 = sadd.s32 %s182, 1
      %p186 = scmp.eq.s32.totalorder %s33, 1
      %p187 = scmp.ne.s32.totalorder %s182, %s184
      %p188 = scmp.eq.s32.totalorder %s33, 0
      %p189 = por %p187, %p188
      %p190 = scmp.ne.s32.totalorder %s182, %s184
      %p191 = scmp.eq.s32.totalorder %s38, 1
      %p192 = por %p190, %p191
      %p193 = scmp.ne.s32.totalorder %s184, %s185
      %p194 = scmp.eq.s32.totalorder %s38, 0
      %p195 = por %p193, %p194
      %p196 = scmp.ne.s32.totalorder %s184, %s185
      %p197 = scmp.eq.s32.totalorder %s39, 1
      %p198 = por %p196, %p197
      %p200 = scmp.ne.s32.totalorder %s185, %s199
      %p201 = scmp.eq.s32.totalorder %s39, 0
      %p202 = por %p200, %p201
      %s204 = sadd.s32 %s203, 1
      %p207 = scmp.eq.s32.totalorder %s33, 1
      %p208 = scmp.ne.s32.totalorder %s203, %s205
      %p209 = scmp.eq.s32.totalorder %s33, 0
      %p210 = por %p208, %p209
      %p211 = scmp.ne.s32.totalorder %s203, %s205
      %p212 = scmp.eq.s32.totalorder %s38, 1
      %p213 = por %p211, %p212
      %p214 = scmp.ne.s32.totalorder %s205, %s206
      %p215 = scmp.eq.s32.totalorder %s38, 0
      %p216 = por %p214, %p215
      %p217 = scmp.ne.s32.totalorder %s205, %s206
      %p218 = scmp.eq.s32.totalorder %s39, 1
      %p219 = por %p217, %p218
      %p221 = scmp.ne.s32.totalorder %s206, %s220
      %p222 = scmp.eq.s32.totalorder %s39, 0
      %p223 = por %p221, %p222
      %s225 = sadd.s32 %s224, 1
      %p228 = scmp.eq.s32.totalorder %s33, 1
      %p229 = scmp.ne.s32.totalorder %s224, %s226
      %p230 = scmp.eq.s32.totalorder %s33, 0
      %p231 = por %p229, %p230
      %p232 = scmp.ne.s32.totalorder %s224, %s226
      %p233 = scmp.eq.s32.totalorder %s38, 1
      %p234 = por %p232, %p233
      %p235 = scmp.ne.s32.totalorder %s226, %s227
      %p236 = scmp.eq.s32.totalorder %s38, 0
      %p237 = por %p235, %p236
      %p238 = scmp.ne.s32.totalorder %s226, %s227
      %p239 = scmp.eq.s32.totalorder %s39, 1
      %p240 = por %p238, %p239
      %p242 = scmp.ne.s32.totalorder %s227, %s241
      %p243 = scmp.eq.s32.totalorder %s39, 0
      %p244 = por %p242, %p243
      %s246 = sadd.s32 %s245, 1
      %p249 = scmp.eq.s32.totalorder %s33, 1
      %p250 = scmp.ne.s32.totalorder %s245, %s247
      %p251 = scmp.eq.s32.totalorder %s33, 0
      %p252 = por %p250, %p251
      %p253 = scmp.ne.s32.totalorder %s245, %s247
      %p254 = scmp.eq.s32.totalorder %s38, 1
      %p255 = por %p253, %p254
      %p256 = scmp.ne.s32.totalorder %s247, %s248
      %p257 = scmp.eq.s32.totalorder %s38, 0
      %p258 = por %p256, %p257
      %p259 = scmp.ne.s32.totalorder %s247, %s248
      %p260 = scmp.eq.s32.totalorder %s39, 1
      %p261 = por %p259, %p260
      %p263 = scmp.ne.s32.totalorder %s248, %s262
      %p264 = scmp.eq.s32.totalorder %s39, 0
      %p265 = por %p263, %p264
      %s267 = sadd.s32 %s266, 1
      %p270 = scmp.eq.s32.totalorder %s33, 1
      %p271 = scmp.ne.s32.totalorder %s266, %s268
      %p272 = scmp.eq.s32.totalorder %s33, 0
      %p273 = por %p271, %p272
      %p274 = scmp.ne.s32.totalorder %s266, %s268
      %p275 = scmp.eq.s32.totalorder %s38, 1
      %p276 = por %p274, %p275
      %p277 = scmp.ne.s32.totalorder %s268, %s269
      %p278 = scmp.eq.s32.totalorder %s38, 0
      %p279 = por %p277, %p278
      %p280 = scmp.ne.s32.totalorder %s268, %s269
      %p281 = scmp.eq.s32.totalorder %s39, 1
      %p282 = por %p280, %p281
      %p284 = scmp.ne.s32.totalorder %s269, %s283
      %p285 = scmp.eq.s32.totalorder %s39, 0
      %p286 = por %p284, %p285
      %s288 = sadd.s32 %s287, 1
      %p291 = scmp.eq.s32.totalorder %s33, 1
      %p292 = scmp.ne.s32.totalorder %s287, %s289
      %p293 = scmp.eq.s32.totalorder %s33, 0
      %p294 = por %p292, %p293
      %p295 = scmp.ne.s32.totalorder %s287, %s289
      %p296 = scmp.eq.s32.totalorder %s38, 1
      %p297 = por %p295, %p296
      %p298 = scmp.ne.s32.totalorder %s289, %s290
      %p299 = scmp.eq.s32.totalorder %s38, 0
      %p300 = por %p298, %p299
      %p301 = scmp.ne.s32.totalorder %s289, %s290
      %p302 = scmp.eq.s32.totalorder %s39, 1
      %p303 = por %p301, %p302
      %p305 = scmp.ne.s32.totalorder %s290, %s304
      %p306 = scmp.eq.s32.totalorder %s39, 0
      %p307 = por %p305, %p306
      %s309 = sadd.s32 %s308, 1
      %p312 = scmp.eq.s32.totalorder %s33, 1
      %p313 = scmp.ne.s32.totalorder %s308, %s310
      %p314 = scmp.eq.s32.totalorder %s33, 0
      %p315 = por %p313, %p314
      %p316 = scmp.ne.s32.totalorder %s308, %s310
      %p317 = scmp.eq.s32.totalorder %s38, 1
      %p318 = por %p316, %p317
      %p319 = scmp.ne.s32.totalorder %s310, %s311
      %p320 = scmp.eq.s32.totalorder %s38, 0
      %p321 = por %p319, %p320
      %p322 = scmp.ne.s32.totalorder %s310, %s311
      %p323 = scmp.eq.s32.totalorder %s39, 1
      %p324 = por %p322, %p323
      %p326 = scmp.ne.s32.totalorder %s311, %s325
      %p327 = scmp.eq.s32.totalorder %s39, 0
      %p328 = por %p326, %p327
      %s330 = sadd.s32 %s329, 1
      %p333 = scmp.eq.s32.totalorder %s33, 1
      %p334 = scmp.ne.s32.totalorder %s329, %s331
      %p335 = scmp.eq.s32.totalorder %s33, 0
      %p336 = por %p334, %p335
      %p337 = scmp.ne.s32.totalorder %s329, %s331
      %p338 = scmp.eq.s32.totalorder %s38, 1
      %p339 = por %p337, %p338
      %p340 = scmp.ne.s32.totalorder %s331, %s332
      %p341 = scmp.eq.s32.totalorder %s38, 0
      %p342 = por %p340, %p341
      %p343 = scmp.ne.s32.totalorder %s331, %s332
      %p344 = scmp.eq.s32.totalorder %s39, 1
      %p345 = por %p343, %p344
      %p347 = scmp.ne.s32.totalorder %s332, %s346
      %p348 = scmp.eq.s32.totalorder %s39, 0
      %p349 = por %p347, %p348
      %s351 = sadd.s32 %s350, 1
      %p354 = scmp.eq.s32.totalorder %s33, 1
      %p355 = scmp.ne.s32.totalorder %s350, %s352
      %p356 = scmp.eq.s32.totalorder %s33, 0
      %p357 = por %p355, %p356
      %p358 = scmp.ne.s32.totalorder %s350, %s352
      %p359 = scmp.eq.s32.totalorder %s38, 1
      %p360 = por %p358, %p359
      %p361 = scmp.ne.s32.totalorder %s352, %s353
      %p362 = scmp.eq.s32.totalorder %s38, 0
      %p363 = por %p361, %p362
      %p364 = scmp.ne.s32.totalorder %s352, %s353
      %p365 = scmp.eq.s32.totalorder %s39, 1
      %p366 = por %p364, %p365
      %p368 = scmp.ne.s32.totalorder %s353, %s367
      %p369 = scmp.eq.s32.totalorder %s39, 0
      %p370 = por %p368, %p369
      %s371 = ssub.s32 %s33, %s40
      %p372 = scmp.eq.s32.totalorder %s371, 0
      %s374 = sadd.s32 %s373, 1
      %s375 = scalar_select %p372, %s373, %s374
      %p378 = pneg %p372
      %p379 = scmp.eq.s32.totalorder %s33, 1
      %p380 = por %p378, %p379
      %p381 = scmp.ne.s32.totalorder %s373, %s376
      %p382 = scmp.eq.s32.totalorder %s33, 0
      %p383 = por %p381, %p382
      %p384 = scmp.ne.s32.totalorder %s373, %s376
      %p385 = scmp.eq.s32.totalorder %s38, 1
      %p386 = por %p384, %p385
      %p387 = scmp.ne.s32.totalorder %s376, %s377
      %p388 = scmp.eq.s32.totalorder %s38, 0
      %p389 = por %p387, %p388
      %p390 = scmp.ne.s32.totalorder %s376, %s377
      %p391 = scmp.eq.s32.totalorder %s39, 1
      %p392 = por %p390, %p391
      %p394 = scmp.ne.s32.totalorder %s377, %s393
      %p395 = scmp.eq.s32.totalorder %s39, 0
      %p396 = por %p394, %p395
      %s397 = ssub.s32 %s33, %s40
      %p398 = scmp.eq.s32.totalorder %s397, 0
      %s400 = sadd.s32 %s399, 1
      %s401 = scalar_select %p398, %s399, %s400
      %p404 = pneg %p398
      %p405 = scmp.eq.s32.totalorder %s33, 1
      %p406 = por %p404, %p405
      %p407 = scmp.ne.s32.totalorder %s399, %s402
      %p408 = scmp.eq.s32.totalorder %s33, 0
      %p409 = por %p407, %p408
      %p410 = scmp.ne.s32.totalorder %s399, %s402
      %p411 = scmp.eq.s32.totalorder %s38, 1
      %p412 = por %p410, %p411
      %p413 = scmp.ne.s32.totalorder %s402, %s403
      %p414 = scmp.eq.s32.totalorder %s38, 0
      %p415 = por %p413, %p414
      %p416 = scmp.ne.s32.totalorder %s402, %s403
      %p417 = scmp.eq.s32.totalorder %s39, 1
      %p418 = por %p416, %p417
      %p420 = scmp.ne.s32.totalorder %s403, %s419
      %p421 = scmp.eq.s32.totalorder %s39, 0
      %p422 = por %p420, %p421
      %p423 = scmp.le.s32.totalorder 1, %s33
      %p424 = scmp.lt.s32.totalorder %s33, 3
      %p425 = pnand %p423, %p424
      %p426 = pneg %p425
      // Predicated region
      $region9: #{preact_bottleneck_forward.9} parent=5 // pred_check
        _
      $region10: #{preact_bottleneck_forward.9} parent=5 // pred_check_branch
        %428 = sbr.rel (%p425) target = $region12
      $region11: #{preact_bottleneck_forward.9} parent=5 // pred_region
        %s429 = ssub.s32 %s33, 1
        // Predicated region
        $region13: #{preact_bottleneck_forward.9} parent=11 // pred_check
          %p430 = pneg %p132
        $region14: #{preact_bottleneck_forward.9} parent=11 // pred_check_branch
          %432 = sbr.rel (%p430) target = $region16
        $region15: #{preact_bottleneck_forward.9} parent=11 // pred_region
          _
        $region16: #{preact_bottleneck_forward.9} parent=11 // pred_fallthru
          _
        // Predicated region
        $region17: #{preact_bottleneck_forward.9} parent=11 // pred_check
          %p433 = pneg %p153
        $region18: #{preact_bottleneck_forward.9} parent=11 // pred_check_branch
          %435 = sbr.rel (%p433) target = $region20
        $region19: #{preact_bottleneck_forward.9} parent=11 // pred_region
          _
        $region20: #{preact_bottleneck_forward.9} parent=11 // pred_fallthru
          _
        // Predicated region
        $region21: #{preact_bottleneck_forward.9} parent=11 // pred_check
          %p436 = pneg %p174
        $region22: #{preact_bottleneck_forward.9} parent=11 // pred_check_branch
          %438 = sbr.rel (%p436) target = $region24
        $region23: #{preact_bottleneck_forward.9} parent=11 // pred_region
          _
        $region24: #{preact_bottleneck_forward.9} parent=11 // pred_fallthru
          _
        // Predicated region
        $region25: #{preact_bottleneck_forward.9} parent=11 // pred_check
          %p439 = pneg %p195
        $region26: #{preact_bottleneck_forward.9} parent=11 // pred_check_branch
          %441 = sbr.rel (%p439) target = $region28
        $region27: #{preact_bottleneck_forward.9} parent=11 // pred_region
          _
        $region28: #{preact_bottleneck_forward.9} parent=11 // pred_fallthru
          _
        // Predicated region
        $region29: #{preact_bottleneck_forward.9} parent=11 // pred_check
          %p442 = pneg %p216
        $region30: #{preact_bottleneck_forward.9} parent=11 // pred_check_branch
          %444 = sbr.rel (%p442) target = $region32
        $region31: #{preact_bottleneck_forward.9} parent=11 // pred_region
          %s446 = ssub.s32 128, 128
          %447 = vsyncadd [#allocation11], %s446
          %s449 = sshll.u32 %s7, 4
          %s450 = int_to_ptr.vmem [resolvable:$true] %s449
          %452 = dma.vmem_to_smem %s450, 128, [#allocation9], [#allocation11]
        $region32: #{preact_bottleneck_forward.9} parent=11 // pred_fallthru
          _
        // Predicated region
        $region33: #{preact_bottleneck_forward.9} parent=11 // pred_check
          %p453 = pneg %p237
        $region34: #{preact_bottleneck_forward.9} parent=11 // pred_check_branch
          %455 = sbr.rel (%p453) target = $region36
        $region35: #{preact_bottleneck_forward.9} parent=11 // pred_region
          _
        $region36: #{preact_bottleneck_forward.9} parent=11 // pred_fallthru
          _
        // Predicated region
        $region37: #{preact_bottleneck_forward.9} parent=11 // pred_check
          %p456 = pneg %p258
        $region38: #{preact_bottleneck_forward.9} parent=11 // pred_check_branch
          %458 = sbr.rel (%p456) target = $region40
        $region39: #{preact_bottleneck_forward.9} parent=11 // pred_region
          %s460 = ssub.s32 64, 64
          %461 = vsyncadd [#allocation13], %s460
          %s463 = sshll.u32 %s9, 4
          %s464 = int_to_ptr.vmem [resolvable:$true] %s463
          %466 = dma.vmem_to_smem %s464, 64, [#allocation12], [#allocation13]
        $region40: #{preact_bottleneck_forward.9} parent=11 // pred_fallthru
          _
        // Predicated region
        $region41: #{preact_bottleneck_forward.9} parent=11 // pred_check
          %p467 = pneg %p279
        $region42: #{preact_bottleneck_forward.9} parent=11 // pred_check_branch
          %469 = sbr.rel (%p467) target = $region44
        $region43: #{preact_bottleneck_forward.9} parent=11 // pred_region
          _
        $region44: #{preact_bottleneck_forward.9} parent=11 // pred_fallthru
          _
        // Predicated region
        $region45: #{preact_bottleneck_forward.9} parent=11 // pred_check
          %p470 = pneg %p300
        $region46: #{preact_bottleneck_forward.9} parent=11 // pred_check_branch
          %472 = sbr.rel (%p470) target = $region48
        $region47: #{preact_bottleneck_forward.9} parent=11 // pred_region
          %s474 = ssub.s32 64, 64
          %475 = vsyncadd [#allocation13], %s474
          %s477 = sshll.u32 %s11, 4
          %s478 = int_to_ptr.vmem [resolvable:$true] %s477
          %480 = dma.vmem_to_smem %s478, 64, [#allocation14], [#allocation13]
        $region48: #{preact_bottleneck_forward.9} parent=11 // pred_fallthru
          _
        // Predicated region
        $region49: #{preact_bottleneck_forward.9} parent=11 // pred_check
          %p481 = pneg %p321
        $region50: #{preact_bottleneck_forward.9} parent=11 // pred_check_branch
          %483 = sbr.rel (%p481) target = $region52
        $region51: #{preact_bottleneck_forward.9} parent=11 // pred_region
          _
        $region52: #{preact_bottleneck_forward.9} parent=11 // pred_fallthru
          _
        // Predicated region
        $region53: #{preact_bottleneck_forward.9} parent=11 // pred_check
          %p484 = pneg %p342
        $region54: #{preact_bottleneck_forward.9} parent=11 // pred_check_branch
          %486 = sbr.rel (%p484) target = $region56
        $region55: #{preact_bottleneck_forward.9} parent=11 // pred_region
          %s488 = ssub.s32 64, 64
          %489 = vsyncadd [#allocation16], %s488
          %s491 = sshll.u32 %s13, 4
          %s492 = int_to_ptr.vmem [resolvable:$true] %s491
          %494 = dma.vmem_to_smem %s492, 64, [#allocation15], [#allocation16]
        $region56: #{preact_bottleneck_forward.9} parent=11 // pred_fallthru
          _
        // Predicated region
        $region57: #{preact_bottleneck_forward.9} parent=11 // pred_check
          %p495 = pneg %p363
        $region58: #{preact_bottleneck_forward.9} parent=11 // pred_check_branch
          %497 = sbr.rel (%p495) target = $region60
        $region59: #{preact_bottleneck_forward.9} parent=11 // pred_region
          _
        $region60: #{preact_bottleneck_forward.9} parent=11 // pred_fallthru
          _
      $region12: #{preact_bottleneck_forward.9} parent=5 // pred_fallthru
        _
      %p498 = scmp.lt.s32.totalorder %s33, 2
      // Predicated region
      $region61: #{preact_bottleneck_forward.9} parent=5 // pred_check
        %p499 = pneg %p498
      $region62: #{preact_bottleneck_forward.9} parent=5 // pred_check_branch
        %501 = sbr.rel (%p499) target = $region64
      $region63: #{preact_bottleneck_forward.9} parent=5 // pred_region
        // Predicated region
        $region65: #{preact_bottleneck_forward.9} parent=63 // pred_check
          %p502 = pneg %p53
        $region66: #{preact_bottleneck_forward.9} parent=63 // pred_check_branch
          %504 = sbr.rel (%p502) target = $region68
        $region67: #{preact_bottleneck_forward.9} parent=63 // pred_region
          %p505 = scmp.lt.s32.totalorder %s33, 1
          %s506 = scalar_select %p505, %s33, 1
          %s507 = smul.addr %s506, 8
          %s508 = smul.addr %s507, 8
          %s509 = scalar_lea.vmem %s0, %s508
        $region68: #{preact_bottleneck_forward.9} parent=63 // pred_fallthru
          _
        // Predicated region
        $region69: #{preact_bottleneck_forward.9} parent=63 // pred_check
          %p510 = pneg %p79
        $region70: #{preact_bottleneck_forward.9} parent=63 // pred_check_branch
          %512 = sbr.rel (%p510) target = $region72
        $region71: #{preact_bottleneck_forward.9} parent=63 // pred_region
          %p513 = scmp.lt.s32.totalorder %s33, 1
          %s514 = scalar_select %p513, %s33, 1
          %s515 = smul.addr %s514, 8
          %s516 = smul.addr %s515, 8
          %s517 = scalar_lea.vmem %s1, %s516
        $region72: #{preact_bottleneck_forward.9} parent=63 // pred_fallthru
          _
        // Predicated region
        $region73: #{preact_bottleneck_forward.9} parent=63 // pred_check
          %p518 = pneg %p105
        $region74: #{preact_bottleneck_forward.9} parent=63 // pred_check_branch
          %520 = sbr.rel (%p518) target = $region76
        $region75: #{preact_bottleneck_forward.9} parent=63 // pred_region
          %p521 = scmp.lt.s32.totalorder %s33, 1
          %s522 = scalar_select %p521, %s33, 1
          %s523 = smul.addr %s522, 2
          %s524 = smul.addr %s523, 8
          %s525 = scalar_lea.vmem %s2, %s524
        $region76: #{preact_bottleneck_forward.9} parent=63 // pred_fallthru
          _
      $region64: #{preact_bottleneck_forward.9} parent=5 // pred_fallthru
        _
      %p526 = scmp.le.s32.totalorder 1, %s33
      %p527 = scmp.lt.s32.totalorder %s33, 3
      %p528 = pnand %p526, %p527
      %p529 = pneg %p528
      // Predicated region
      $region77: #{preact_bottleneck_forward.9} parent=5 // pred_check
        _
      $region78: #{preact_bottleneck_forward.9} parent=5 // pred_check_branch
        %531 = sbr.rel (%p528) target = $region80
      $region79: #{preact_bottleneck_forward.9} parent=5 // pred_region
        %s532 = ssub.s32 %s33, 1
        // Predicated region
        $region81: #{preact_bottleneck_forward.9} parent=79 // pred_check
          %p533 = pneg %p216
        $region82: #{preact_bottleneck_forward.9} parent=79 // pred_check_branch
          %535 = sbr.rel (%p533) target = $region84
        $region83: #{preact_bottleneck_forward.9} parent=79 // pred_region
          %536 = dma.done [#allocation11], 128
        $region84: #{preact_bottleneck_forward.9} parent=79 // pred_fallthru
          _
        // Predicated region
        $region85: #{preact_bottleneck_forward.9} parent=79 // pred_check
          %p537 = pneg %p258
        $region86: #{preact_bottleneck_forward.9} parent=79 // pred_check_branch
          %539 = sbr.rel (%p537) target = $region88
        $region87: #{preact_bottleneck_forward.9} parent=79 // pred_region
          %540 = dma.done [#allocation13], 64
        $region88: #{preact_bottleneck_forward.9} parent=79 // pred_fallthru
          _
        // Predicated region
        $region89: #{preact_bottleneck_forward.9} parent=79 // pred_check
          %p541 = pneg %p300
        $region90: #{preact_bottleneck_forward.9} parent=79 // pred_check_branch
          %543 = sbr.rel (%p541) target = $region92
        $region91: #{preact_bottleneck_forward.9} parent=79 // pred_region
          %544 = dma.done [#allocation13], 64
        $region92: #{preact_bottleneck_forward.9} parent=79 // pred_fallthru
          _
        // Predicated region
        $region93: #{preact_bottleneck_forward.9} parent=79 // pred_check
          %p545 = pneg %p342
        $region94: #{preact_bottleneck_forward.9} parent=79 // pred_check_branch
          %547 = sbr.rel (%p545) target = $region96
        $region95: #{preact_bottleneck_forward.9} parent=79 // pred_region
          %548 = dma.done [#allocation16], 64
        $region96: #{preact_bottleneck_forward.9} parent=79 // pred_fallthru
          _
        %549 = sfence
        %p550 = scmp.lt.s32.totalorder %s38, 1
        %s551 = scalar_select %p550, %s38, 1
        %s552 = smul.addr %s551, 8
        %s553 = smul.addr %s552, 8
        %s554 = scalar_lea.vmem %s0, %s553
        %p555 = pneg %p59
        %p556 = pneg %p56
        %p557 = scmp.lt.s32.totalorder %s38, 1
        %s558 = scalar_select %p557, %s38, 1
        %s559 = smul.addr %s558, 8
        %s560 = smul.addr %s559, 8
        %s561 = scalar_lea.vmem %s1, %s560
        %p562 = pneg %p85
        %p563 = pneg %p82
        %p564 = scmp.lt.s32.totalorder %s38, 1
        %s565 = scalar_select %p564, %s38, 1
        %s566 = smul.addr %s565, 2
        %s567 = smul.addr %s566, 8
        %s568 = scalar_lea.vmem %s2, %s567
        %p569 = pneg %p111
        %p570 = pneg %p108
        %p571 = pneg %p132
        %p572 = pneg %p129
        %p573 = pneg %p153
        %p574 = pneg %p150
        %p575 = pneg %p174
        %p576 = pneg %p171
        %p577 = pneg %p195
        %p578 = pneg %p192
        %p579 = pneg %p216
        %p580 = pneg %p213
        %p581 = pneg %p237
        %p582 = pneg %p234
        %p583 = pneg %p258
        %p584 = pneg %p255
        %p585 = pneg %p279
        %p586 = pneg %p276
        %p587 = pneg %p300
        %p588 = pneg %p297
        %p589 = pneg %p321
        %p590 = pneg %p318
        %p591 = pneg %p342
        %p592 = pneg %p339
        %p593 = pneg %p363
        %p594 = pneg %p360
        %p595 = pneg %p389
        %p596 = pneg %p386
        %p597 = scmp.lt.s32.totalorder %s38, 1
        %s598 = scalar_select %p597, %s38, 1
        %s599 = smul.addr %s598, 8
        %s600 = smul.addr %s599, 8
        %s601 = scalar_lea.vmem %s15, %s600
        %p602 = pneg %p415
        %p603 = pneg %p412
        %s604 = sand.u32 %s402, 1
        %s605 = scalar_lea.sflag [#allocation10], %s604
        %s606 = sand.u32 %s402, 1
        %s607 = smul.addr %s606, 8
        %s608 = scalar_lea.vmem [#allocation17], %s607
        %p609 = scmp.lt.s32.totalorder %s38, 1
        %s610 = scalar_select %p609, %s38, 1
        %s611 = smul.addr %s610, 8
        %s612 = smul.addr %s611, 8
        %s613 = scalar_lea.vmem %s0, %s612
        %p614 = scmp.lt.s32.totalorder %s38, 1
        %s615 = scalar_select %p614, %s38, 1
        %s616 = smul.addr %s615, 8
        %s617 = smul.addr %s616, 8
        %s618 = scalar_lea.vmem %s1, %s617
        %p619 = scmp.lt.s32.totalorder %s38, 1
        %s620 = scalar_select %p619, %s38, 1
        %s621 = smul.addr %s620, 2
        %s622 = smul.addr %s621, 8
        %s623 = scalar_lea.vmem %s2, %s622
        %p624 = scmp.lt.s32.totalorder %s38, 1
        %s625 = scalar_select %p624, %s38, 1
        %s626 = smul.addr %s625, 8
        %s627 = smul.addr %s626, 8
        %s628 = scalar_lea.vmem %s15, %s627
        %v629 = vld [vmem:[%s613] sm:$0xff]
        %v630 = vld [vmem:[%s613 + $0x8] sm:$0xff]
        %v631 = vld [vmem:[%s613 + $0x10] sm:$0xff]
        %v632 = vld [vmem:[%s613 + $0x18] sm:$0xff]
        %v633 = vld [vmem:[%s613 + $0x20] sm:$0xff]
        %v634 = vld [vmem:[%s613 + $0x28] sm:$0xff]
        %v635 = vld [vmem:[%s613 + $0x30] sm:$0xff]
        %v636 = vld [vmem:[%s613 + $0x38] sm:$0xff]
        %vm637 = vcmask 64512
        %v638 = vsel %vm637, %v629, 0.0
        %639 = vadd.xlane.f32.xlu0 %v638
        %v640 = vpop.xlane.xlu0 %639
        %v641 = vsel %vm637, %v630, 0.0
        %642 = vadd.xlane.f32.xlu0 %v641
        %v643 = vpop.xlane.xlu0 %642
        %v644 = vsel %vm637, %v631, 0.0
        %645 = vadd.xlane.f32.xlu0 %v644
        %v646 = vpop.xlane.xlu0 %645
        %v647 = vsel %vm637, %v632, 0.0
        %648 = vadd.xlane.f32.xlu0 %v647
        %v649 = vpop.xlane.xlu0 %648
        %v650 = vsel %vm637, %v633, 0.0
        %651 = vadd.xlane.f32.xlu0 %v650
        %v652 = vpop.xlane.xlu0 %651
        %v653 = vsel %vm637, %v634, 0.0
        %654 = vadd.xlane.f32.xlu0 %v653
        %v655 = vpop.xlane.xlu0 %654
        %v656 = vsel %vm637, %v635, 0.0
        %657 = vadd.xlane.f32.xlu0 %v656
        %v658 = vpop.xlane.xlu0 %657
        %v659 = vsel %vm637, %v636, 0.0
        %660 = vadd.xlane.f32.xlu0 %v659
        %v661 = vpop.xlane.xlu0 %660
        %v662 = vrcp.pop 8.0
        %v663 = vmul.f32 %v640, %v662
        %v664 = vmul.f32 %v643, %v662
        %v665 = vmul.f32 %v646, %v662
        %v666 = vmul.f32 %v649, %v662
        %v667 = vmul.f32 %v652, %v662
        %v668 = vmul.f32 %v655, %v662
        %v669 = vmul.f32 %v658, %v662
        %v670 = vmul.f32 %v661, %v662
        %vm671 = vcmask 97280
        %672 = vst.msk [vmem:[#allocation2] sm:$0xff] %vm671, 0.0
        %vm673 = vcmask 93184
        %674 = vst.msk [vmem:[#allocation2 + $0x8] sm:$0xf] %vm673, 0.0
        %v683 = vlaneseq
        %v684 = vand.u32 %v683, 127
        %v685 = vadd.s32 %v684, 4294967294
        %v686 = vlaneseq
        %v687 = vshrl.u32 %v686, 7
        %v688 = vsub.s32 %v685, %v687
        %v689 = vrot.slane %v663, %v688
        %v690 = vlaneseq
        %v691 = vshrl.u32 %v690, 7
        %v692 = vsub.s32 %v685, %v691
        %v693 = vrot.slane %v664, %v692
        %v694 = vlaneseq
        %v695 = vshrl.u32 %v694, 7
        %v696 = vsub.s32 %v685, %v695
        %v697 = vrot.slane %v665, %v696
        %v698 = vlaneseq
        %v699 = vshrl.u32 %v698, 7
        %v700 = vsub.s32 %v685, %v699
        %v701 = vrot.slane %v666, %v700
        %v702 = vlaneseq
        %v703 = vshrl.u32 %v702, 7
        %v704 = vsub.s32 %v685, %v703
        %v705 = vrot.slane %v667, %v704
        %v706 = vlaneseq
        %v707 = vshrl.u32 %v706, 7
        %v708 = vsub.s32 %v685, %v707
        %v709 = vrot.slane %v668, %v708
        %v710 = vlaneseq
        %v711 = vshrl.u32 %v710, 7
        %v712 = vsub.s32 %v685, %v711
        %v713 = vrot.slane %v669, %v712
        %v714 = vlaneseq
        %v715 = vshrl.u32 %v714, 7
        %v716 = vsub.s32 %v685, %v715
        %v717 = vrot.slane %v670, %v716
        %vm718 = vcmask 1041409
        %v719 = vsel %vm718, %v693, %v689
        %vm720 = vcmask 1042434
        %v721 = vsel %vm720, %v697, %v719
        %vm722 = vcmask 1043459
        %v723 = vsel %vm722, %v701, %v721
        %vm724 = vcmask 1044484
        %v725 = vsel %vm724, %v705, %v723
        %vm726 = vcmask 1045509
        %v727 = vsel %vm726, %v709, %v725
        %vm728 = vcmask 1046534
        %v729 = vsel %vm728, %v713, %v727
        %vm730 = vcmask 1047559
        %v731 = vsel %vm730, %v717, %v729
        %vm733 = vcmask 80912
        %734 = vst.msk [vmem:[#allocation2 + $0x2] sm:$0xff] %vm733, %v731
        %v735 = vld [vmem:[#allocation2] sm:$0xff]
        %s736 = sld [smem:[#allocation9]]
        %v737 = vstv %s736
        %v738 = vmul.f32 %v735, %v737
        %v739 = vadd.f32 %v738, 0.0
        %s740 = sld [smem:[#allocation9 + $0x1]]
        %v741 = vstv %s740
        %v742 = vmul.f32 %v735, %v741
        %744 = vrot.lane.b32.xlu0 %v742, 127
        %v745 = vpop.permute.xlu0 %744
        %v747 = vadd.f32 %v739, %v745
        %s748 = sld [smem:[#allocation9 + $0x2]]
        %v749 = vstv %s748
        %v750 = vmul.f32 %v735, %v749
        %752 = vrot.lane.b32.xlu0 %v750, 126
        %v753 = vpop.permute.xlu0 %752
        %v755 = vadd.f32 %v747, %v753
        %s756 = sld [smem:[#allocation9 + $0x3]]
        %v757 = vstv %s756
        %v758 = vmul.f32 %v735, %v757
        %760 = vrot.lane.b32.xlu0 %v758, 125
        %v761 = vpop.permute.xlu0 %760
        %v763 = vadd.f32 %v755, %v761
        %s764 = sld [smem:[#allocation9 + $0x4]]
        %v765 = vstv %s764
        %v766 = vmul.f32 %v735, %v765
        %768 = vrot.lane.b32.xlu0 %v766, 124
        %v769 = vpop.permute.xlu0 %768
        %v771 = vadd.f32 %v763, %v769
        %v772 = vld [vmem:[#allocation2 + $0x1] sm:$0xff]
        %s773 = sld [smem:[#allocation9 + $0x80]]
        %v774 = vstv %s773
        %v775 = vmul.f32 %v772, %v774
        %v776 = vadd.f32 %v771, %v775
        %s777 = sld [smem:[#allocation9 + $0x81]]
        %v778 = vstv %s777
        %v779 = vmul.f32 %v772, %v778
        %781 = vrot.lane.b32.xlu0 %v779, 127
        %v782 = vpop.permute.xlu0 %781
        %v784 = vadd.f32 %v776, %v782
        %s785 = sld [smem:[#allocation9 + $0x82]]
        %v786 = vstv %s785
        %v787 = vmul.f32 %v772, %v786
        %789 = vrot.lane.b32.xlu0 %v787, 126
        %v790 = vpop.permute.xlu0 %789
        %v792 = vadd.f32 %v784, %v790
        %s793 = sld [smem:[#allocation9 + $0x83]]
        %v794 = vstv %s793
        %v795 = vmul.f32 %v772, %v794
        %797 = vrot.lane.b32.xlu0 %v795, 125
        %v798 = vpop.permute.xlu0 %797
        %v800 = vadd.f32 %v792, %v798
        %s801 = sld [smem:[#allocation9 + $0x84]]
        %v802 = vstv %s801
        %v803 = vmul.f32 %v772, %v802
        %805 = vrot.lane.b32.xlu0 %v803, 124
        %v806 = vpop.permute.xlu0 %805
        %v808 = vadd.f32 %v800, %v806
        %v809 = vld [vmem:[#allocation2 + $0x2] sm:$0xff]
        %s810 = sld [smem:[#allocation9 + $0x100]]
        %v811 = vstv %s810
        %v812 = vmul.f32 %v809, %v811
        %v813 = vadd.f32 %v808, %v812
        %s814 = sld [smem:[#allocation9 + $0x101]]
        %v815 = vstv %s814
        %v816 = vmul.f32 %v809, %v815
        %818 = vrot.lane.b32.xlu0 %v816, 127
        %v819 = vpop.permute.xlu0 %818
        %v821 = vadd.f32 %v813, %v819
        %s822 = sld [smem:[#allocation9 + $0x102]]
        %v823 = vstv %s822
        %v824 = vmul.f32 %v809, %v823
        %826 = vrot.lane.b32.xlu0 %v824, 126
        %v827 = vpop.permute.xlu0 %826
        %v829 = vadd.f32 %v821, %v827
        %s830 = sld [smem:[#allocation9 + $0x103]]
        %v831 = vstv %s830
        %v832 = vmul.f32 %v809, %v831
        %834 = vrot.lane.b32.xlu0 %v832, 125
        %v835 = vpop.permute.xlu0 %834
        %v837 = vadd.f32 %v829, %v835
        %s838 = sld [smem:[#allocation9 + $0x104]]
        %v839 = vstv %s838
        %v840 = vmul.f32 %v809, %v839
        %842 = vrot.lane.b32.xlu0 %v840, 124
        %v843 = vpop.permute.xlu0 %842
        %v845 = vadd.f32 %v837, %v843
        %v846 = vld [vmem:[#allocation2 + $0x3] sm:$0xff]
        %s847 = sld [smem:[#allocation9 + $0x180]]
        %v848 = vstv %s847
        %v849 = vmul.f32 %v846, %v848
        %v850 = vadd.f32 %v845, %v849
        %s851 = sld [smem:[#allocation9 + $0x181]]
        %v852 = vstv %s851
        %v853 = vmul.f32 %v846, %v852
        %855 = vrot.lane.b32.xlu0 %v853, 127
        %v856 = vpop.permute.xlu0 %855
        %v858 = vadd.f32 %v850, %v856
        %s859 = sld [smem:[#allocation9 + $0x182]]
        %v860 = vstv %s859
        %v861 = vmul.f32 %v846, %v860
        %863 = vrot.lane.b32.xlu0 %v861, 126
        %v864 = vpop.permute.xlu0 %863
        %v866 = vadd.f32 %v858, %v864
        %s867 = sld [smem:[#allocation9 + $0x183]]
        %v868 = vstv %s867
        %v869 = vmul.f32 %v846, %v868
        %871 = vrot.lane.b32.xlu0 %v869, 125
        %v872 = vpop.permute.xlu0 %871
        %v874 = vadd.f32 %v866, %v872
        %s875 = sld [smem:[#allocation9 + $0x184]]
        %v876 = vstv %s875
        %v877 = vmul.f32 %v846, %v876
        %879 = vrot.lane.b32.xlu0 %v877, 124
        %v880 = vpop.permute.xlu0 %879
        %v882 = vadd.f32 %v874, %v880
        %v883 = vld [vmem:[#allocation2 + $0x4] sm:$0xff]
        %s884 = sld [smem:[#allocation9 + $0x200]]
        %v885 = vstv %s884
        %v886 = vmul.f32 %v883, %v885
        %v887 = vadd.f32 %v882, %v886
        %s888 = sld [smem:[#allocation9 + $0x201]]
        %v889 = vstv %s888
        %v890 = vmul.f32 %v883, %v889
        %892 = vrot.lane.b32.xlu0 %v890, 127
        %v893 = vpop.permute.xlu0 %892
        %v895 = vadd.f32 %v887, %v893
        %s896 = sld [smem:[#allocation9 + $0x202]]
        %v897 = vstv %s896
        %v898 = vmul.f32 %v883, %v897
        %900 = vrot.lane.b32.xlu0 %v898, 126
        %v901 = vpop.permute.xlu0 %900
        %v903 = vadd.f32 %v895, %v901
        %s904 = sld [smem:[#allocation9 + $0x203]]
        %v905 = vstv %s904
        %v906 = vmul.f32 %v883, %v905
        %908 = vrot.lane.b32.xlu0 %v906, 125
        %v909 = vpop.permute.xlu0 %908
        %v911 = vadd.f32 %v903, %v909
        %s912 = sld [smem:[#allocation9 + $0x204]]
        %v913 = vstv %s912
        %v914 = vmul.f32 %v883, %v913
        %916 = vrot.lane.b32.xlu0 %v914, 124
        %v917 = vpop.permute.xlu0 %916
        %v919 = vadd.f32 %v911, %v917
        %s920 = sld [smem:[#allocation5]]
        %v921 = vstv %s920
        %v922 = vadd.f32 %v919, %v921
        %v923 = vmax.f32 %v922, 0.0
        %vm924 = vcmask 80896
        %925 = vst.msk [vmem:[#allocation3] sm:$0xff] %vm924, 0.0
        %vm926 = vcmask 74752
        %927 = vst.msk [vmem:[#allocation3 + $0x8] sm:$0x3] %vm926, 0.0
        %929 = vrot.lane.b32.xlu0 %v923, 1
        %v930 = vpop.permute.xlu0 %929
        %vm932 = vcmask 72712
        %933 = vst.msk [vmem:[#allocation3 + $0x1] sm:$0xff] %vm932, %v930
        %v934 = vld [vmem:[#allocation3] sm:$0xff]
        %s935 = sld [smem:[#allocation12]]
        %v936 = vstv %s935
        %v937 = vmul.f32 %v934, %v936
        %v938 = vadd.f32 %v937, 0.0
        %s939 = sld [smem:[#allocation12 + $0x1]]
        %v940 = vstv %s939
        %v941 = vmul.f32 %v934, %v940
        %943 = vrot.lane.b32.xlu0 %v941, 127
        %v944 = vpop.permute.xlu0 %943
        %v946 = vadd.f32 %v938, %v944
        %s947 = sld [smem:[#allocation12 + $0x2]]
        %v948 = vstv %s947
        %v949 = vmul.f32 %v934, %v948
        %951 = vrot.lane.b32.xlu0 %v949, 126
        %v952 = vpop.permute.xlu0 %951
        %v954 = vadd.f32 %v946, %v952
        %v955 = vld [vmem:[#allocation3 + $0x1] sm:$0xff]
        %s956 = sld [smem:[#allocation12 + $0x80]]
        %v957 = vstv %s956
        %v958 = vmul.f32 %v955, %v957
        %v959 = vadd.f32 %v954, %v958
        %s960 = sld [smem:[#allocation12 + $0x81]]
        %v961 = vstv %s960
        %v962 = vmul.f32 %v955, %v961
        %964 = vrot.lane.b32.xlu0 %v962, 127
        %v965 = vpop.permute.xlu0 %964
        %v967 = vadd.f32 %v959, %v965
        %s968 = sld [smem:[#allocation12 + $0x82]]
        %v969 = vstv %s968
        %v970 = vmul.f32 %v955, %v969
        %972 = vrot.lane.b32.xlu0 %v970, 126
        %v973 = vpop.permute.xlu0 %972
        %v975 = vadd.f32 %v967, %v973
        %v976 = vld [vmem:[#allocation3 + $0x2] sm:$0xff]
        %s977 = sld [smem:[#allocation12 + $0x100]]
        %v978 = vstv %s977
        %v979 = vmul.f32 %v976, %v978
        %v980 = vadd.f32 %v975, %v979
        %s981 = sld [smem:[#allocation12 + $0x101]]
        %v982 = vstv %s981
        %v983 = vmul.f32 %v976, %v982
        %985 = vrot.lane.b32.xlu0 %v983, 127
        %v986 = vpop.permute.xlu0 %985
        %v988 = vadd.f32 %v980, %v986
        %s989 = sld [smem:[#allocation12 + $0x102]]
        %v990 = vstv %s989
        %v991 = vmul.f32 %v976, %v990
        %993 = vrot.lane.b32.xlu0 %v991, 126
        %v994 = vpop.permute.xlu0 %993
        %v996 = vadd.f32 %v988, %v994
        %s997 = sld [smem:[#allocation6]]
        %v998 = vstv %s997
        %v999 = vadd.f32 %v996, %v998
        %v1000 = vmax.f32 %v999, 0.0
        %v1001 = vld [vmem:[%s3] sm:$0xff]
        %v1003 = vsel %vm637, %v1001, 0
        %1005 = vmatprep.subr.mxu0 0.0
        %1006 = vmatpush1.msra.mxu0 0.0
        %1007 = vmatprep.subr.mxu0 0.0
        %1008 = vmatpush1.msra.mxu0 0.0
        %1009 = vmatprep.subr.mxu0 0.0
        %1010 = vmatpush1.msra.mxu0 0.0
        %1011 = vmatprep.subr.mxu0 0.0
        %1012 = vmatpush1.msra.mxu0 0.0
        %1013 = vmatprep.subr.mxu0 0.0
        %1014 = vmatpush1.msra.mxu0 0.0
        %1015 = vmatprep.subr.mxu0 0.0
        %1016 = vmatpush1.msra.mxu0 0.0
        %1017 = vmatprep.subr.mxu0 0.0
        %1018 = vmatpush1.msra.mxu0 0.0
        %1019 = vmatprep.subr.mxu0 0.0
        %1020 = vmatpush1.msra.mxu0 0.0
        %1021 = vmatprep.subr.mxu0 0.0
        %1022 = vmatpush1.msra.mxu0 0.0
        %1023 = vmatprep.subr.mxu0 0.0
        %1024 = vmatpush1.msra.mxu0 0.0
        %1025 = vmatprep.subr.mxu0 0.0
        %1026 = vmatpush1.msra.mxu0 0.0
        %1027 = vmatprep.subr.mxu0 0.0
        %1028 = vmatpush1.msra.mxu0 0.0
        %1029 = vmatprep.subr.mxu0 0.0
        %1030 = vmatpush1.msra.mxu0 0.0
        %1031 = vmatprep.subr.mxu0 0.0
        %1032 = vmatpush1.msra.mxu0 0.0
        %1033 = vmatprep.subr.mxu0 0.0
        %1034 = vmatpush1.msra.mxu0 0.0
        %1035 = vmatprep.subr.mxu0 0.0
        %1036 = vmatpush1.msra.mxu0 %v1000
        %1037 = vmatprep.subr.mxu0 0.0
        %1038 = vmatpush2.msra.mxu0 0.0
        %1039 = vmatprep.subr.mxu0 0.0
        %1040 = vmatpush2.msra.mxu0 0.0
        %1041 = vmatprep.subr.mxu0 0.0
        %1042 = vmatpush2.msra.mxu0 0.0
        %1043 = vmatprep.subr.mxu0 0.0
        %1044 = vmatpush2.msra.mxu0 0.0
        %1045 = vmatprep.subr.mxu0 0.0
        %1046 = vmatpush2.msra.mxu0 0.0
        %1047 = vmatprep.subr.mxu0 0.0
        %1048 = vmatpush2.msra.mxu0 0.0
        %1049 = vmatprep.subr.mxu0 0.0
        %1050 = vmatpush2.msra.mxu0 0.0
        %1051 = vmatprep.subr.mxu0 0.0
        %1052 = vmatpush2.msra.mxu0 0.0
        %1053 = vmatprep.subr.mxu0 0.0
        %1054 = vmatpush2.msra.mxu0 0.0
        %1055 = vmatprep.subr.mxu0 0.0
        %1056 = vmatpush2.msra.mxu0 0.0
        %1057 = vmatprep.subr.mxu0 0.0
        %1058 = vmatpush2.msra.mxu0 0.0
        %1059 = vmatprep.subr.mxu0 0.0
        %1060 = vmatpush2.msra.mxu0 0.0
        %1061 = vmatprep.subr.mxu0 0.0
        %1062 = vmatpush2.msra.mxu0 0.0
        %1063 = vmatprep.subr.mxu0 0.0
        %1064 = vmatpush2.msra.mxu0 0.0
        %1065 = vmatprep.subr.mxu0 0.0
        %1066 = vmatpush2.msra.mxu0 0.0
        %1067 = vmatprep.subr.mxu0 0.0
        %1068 = vmatpush2.msra.mxu0 0.0
        %1069 = vmatprep.mubr.f32.mxu0 0.0
        %1070 = vmatmul.mubr.f32.gmra.mxu0 %v1003
        %v1071 = vpop.f32.mrf.mxu0
        %v1072 = vadd.f32 0.0, %v1071
        %v1073 = vpop.f32.mrf.mxu0
        %1074 = vdwg.mxu0
        %v1075 = vld [vmem:[%s4] sm:$0xff]
        %v1077 = vsel %vm637, %v1072, 0
        %1079 = vmatprep.subr.mxu0 0.0
        %1080 = vmatpush1.msra.mxu0 0.0
        %1081 = vmatprep.subr.mxu0 0.0
        %1082 = vmatpush1.msra.mxu0 0.0
        %1083 = vmatprep.subr.mxu0 0.0
        %1084 = vmatpush1.msra.mxu0 0.0
        %1085 = vmatprep.subr.mxu0 0.0
        %1086 = vmatpush1.msra.mxu0 0.0
        %1087 = vmatprep.subr.mxu0 0.0
        %1088 = vmatpush1.msra.mxu0 0.0
        %1089 = vmatprep.subr.mxu0 0.0
        %1090 = vmatpush1.msra.mxu0 0.0
        %1091 = vmatprep.subr.mxu0 0.0
        %1092 = vmatpush1.msra.mxu0 0.0
        %1093 = vmatprep.subr.mxu0 0.0
        %1094 = vmatpush1.msra.mxu0 0.0
        %1095 = vmatprep.subr.mxu0 0.0
        %1096 = vmatpush1.msra.mxu0 0.0
        %1097 = vmatprep.subr.mxu0 0.0
        %1098 = vmatpush1.msra.mxu0 0.0
        %1099 = vmatprep.subr.mxu0 0.0
        %1100 = vmatpush1.msra.mxu0 0.0
        %1101 = vmatprep.subr.mxu0 0.0
        %1102 = vmatpush1.msra.mxu0 0.0
        %1103 = vmatprep.subr.mxu0 0.0
        %1104 = vmatpush1.msra.mxu0 0.0
        %1105 = vmatprep.subr.mxu0 0.0
        %1106 = vmatpush1.msra.mxu0 0.0
        %1107 = vmatprep.subr.mxu0 0.0
        %1108 = vmatpush1.msra.mxu0 0.0
        %1109 = vmatprep.subr.mxu0 0.0
        %1110 = vmatpush1.msra.mxu0 %v1075
        %1111 = vmatprep.subr.mxu0 0.0
        %1112 = vmatpush2.msra.mxu0 0.0
        %1113 = vmatprep.subr.mxu0 0.0
        %1114 = vmatpush2.msra.mxu0 0.0
        %1115 = vmatprep.subr.mxu0 0.0
        %1116 = vmatpush2.msra.mxu0 0.0
        %1117 = vmatprep.subr.mxu0 0.0
        %1118 = vmatpush2.msra.mxu0 0.0
        %1119 = vmatprep.subr.mxu0 0.0
        %1120 = vmatpush2.msra.mxu0 0.0
        %1121 = vmatprep.subr.mxu0 0.0
        %1122 = vmatpush2.msra.mxu0 0.0
        %1123 = vmatprep.subr.mxu0 0.0
        %1124 = vmatpush2.msra.mxu0 0.0
        %1125 = vmatprep.subr.mxu0 0.0
        %1126 = vmatpush2.msra.mxu0 0.0
        %1127 = vmatprep.subr.mxu0 0.0
        %1128 = vmatpush2.msra.mxu0 0.0
        %1129 = vmatprep.subr.mxu0 0.0
        %1130 = vmatpush2.msra.mxu0 0.0
        %1131 = vmatprep.subr.mxu0 0.0
        %1132 = vmatpush2.msra.mxu0 0.0
        %1133 = vmatprep.subr.mxu0 0.0
        %1134 = vmatpush2.msra.mxu0 0.0
        %1135 = vmatprep.subr.mxu0 0.0
        %1136 = vmatpush2.msra.mxu0 0.0
        %1137 = vmatprep.subr.mxu0 0.0
        %1138 = vmatpush2.msra.mxu0 0.0
        %1139 = vmatprep.subr.mxu0 0.0
        %1140 = vmatpush2.msra.mxu0 0.0
        %1141 = vmatprep.subr.mxu0 0.0
        %1142 = vmatpush2.msra.mxu0 0.0
        %1143 = vmatprep.mubr.f32.mxu0 0.0
        %1144 = vmatmul.mubr.f32.gmra.mxu0 %v1077
        %v1145 = vpop.f32.mrf.mxu0
        %v1146 = vadd.f32 0.0, %v1145
        %v1147 = vpop.f32.mrf.mxu0
        %1148 = vdwg.mxu0
        %1149 = vst.msk [vmem:[#allocation3] sm:$0xff] %vm924, 0.0
        %1150 = vst.msk [vmem:[#allocation3 + $0x8] sm:$0x3] %vm926, 0.0
        %1152 = vrot.lane.b32.xlu0 %v1146, 1
        %v1153 = vpop.permute.xlu0 %1152
        %1155 = vst.msk [vmem:[#allocation3 + $0x1] sm:$0xff] %vm932, %v1153
        %v1156 = vld [vmem:[#allocation3] sm:$0xff]
        %s1157 = sld [smem:[#allocation14]]
        %v1158 = vstv %s1157
        %v1159 = vmul.f32 %v1156, %v1158
        %v1160 = vadd.f32 %v1159, 0.0
        %s1161 = sld [smem:[#allocation14 + $0x1]]
        %v1162 = vstv %s1161
        %v1163 = vmul.f32 %v1156, %v1162
        %1165 = vrot.lane.b32.xlu0 %v1163, 127
        %v1166 = vpop.permute.xlu0 %1165
        %v1168 = vadd.f32 %v1160, %v1166
        %s1169 = sld [smem:[#allocation14 + $0x2]]
        %v1170 = vstv %s1169
        %v1171 = vmul.f32 %v1156, %v1170
        %1173 = vrot.lane.b32.xlu0 %v1171, 126
        %v1174 = vpop.permute.xlu0 %1173
        %v1176 = vadd.f32 %v1168, %v1174
        %v1177 = vld [vmem:[#allocation3 + $0x1] sm:$0xff]
        %s1178 = sld [smem:[#allocation14 + $0x80]]
        %v1179 = vstv %s1178
        %v1180 = vmul.f32 %v1177, %v1179
        %v1181 = vadd.f32 %v1176, %v1180
        %s1182 = sld [smem:[#allocation14 + $0x81]]
        %v1183 = vstv %s1182
        %v1184 = vmul.f32 %v1177, %v1183
        %1186 = vrot.lane.b32.xlu0 %v1184, 127
        %v1187 = vpop.permute.xlu0 %1186
        %v1189 = vadd.f32 %v1181, %v1187
        %s1190 = sld [smem:[#allocation14 + $0x82]]
        %v1191 = vstv %s1190
        %v1192 = vmul.f32 %v1177, %v1191
        %1194 = vrot.lane.b32.xlu0 %v1192, 126
        %v1195 = vpop.permute.xlu0 %1194
        %v1197 = vadd.f32 %v1189, %v1195
        %v1198 = vld [vmem:[#allocation3 + $0x2] sm:$0xff]
        %s1199 = sld [smem:[#allocation14 + $0x100]]
        %v1200 = vstv %s1199
        %v1201 = vmul.f32 %v1198, %v1200
        %v1202 = vadd.f32 %v1197, %v1201
        %s1203 = sld [smem:[#allocation14 + $0x101]]
        %v1204 = vstv %s1203
        %v1205 = vmul.f32 %v1198, %v1204
        %1207 = vrot.lane.b32.xlu0 %v1205, 127
        %v1208 = vpop.permute.xlu0 %1207
        %v1210 = vadd.f32 %v1202, %v1208
        %s1211 = sld [smem:[#allocation14 + $0x102]]
        %v1212 = vstv %s1211
        %v1213 = vmul.f32 %v1198, %v1212
        %1215 = vrot.lane.b32.xlu0 %v1213, 126
        %v1216 = vpop.permute.xlu0 %1215
        %v1218 = vadd.f32 %v1210, %v1216
        %s1219 = sld [smem:[#allocation7]]
        %v1220 = vstv %s1219
        %v1221 = vadd.f32 %v1218, %v1220
        %v1222 = vld [vmem:[%s623] sm:$0xff]
        %v1223 = vld [vmem:[%s623 + $0x8] sm:$0xff]
        %vm1224 = vcmask 146432
        %1225 = vst.msk [vmem:[#allocation4] sm:$0xff] %vm1224, 0.0
        %1226 = vst.msk [vmem:[#allocation4 + $0x8] sm:$0xff] %vm1224, 0.0
        %vm1227 = vcmask 140288
        %1228 = vst.msk [vmem:[#allocation4 + $0x10] sm:$0x3] %vm1227, 0.0
        %1231 = vrot.lane.b32.xlu0 %v1222, 1
        %v1232 = vpop.permute.xlu0 %1231
        %1233 = vrot.lane.b32.xlu0 %v1223, 1
        %v1234 = vpop.permute.xlu0 %1233
        %vm1237 = vcmask 138248
        %1238 = vst.msk [vmem:[#allocation4 + $0x1] sm:$0xff] %vm1237, %v1232
        %1239 = vst.msk [vmem:[#allocation4 + $0x9] sm:$0xff] %vm1237, %v1234
        %v1240 = vld [vmem:[#allocation4] sm:$0xff]
        %v1241 = vld [vmem:[#allocation4 + $0x8] sm:$0xff]
        %s1242 = sld [smem:[#allocation15]]
        %v1243 = vstv %s1242
        %v1244 = vmul.f32 %v1240, %v1243
        %v1245 = vmul.f32 %v1241, %v1243
        %v1246 = vadd.f32 %v1244, 0.0
        %v1247 = vadd.f32 %v1245, 0.0
        %s1248 = sld [smem:[#allocation15 + $0x1]]
        %v1249 = vstv %s1248
        %v1250 = vmul.f32 %v1240, %v1249
        %v1251 = vmul.f32 %v1241, %v1249
        %1254 = vrot.lane.b32.xlu0 %v1250, 127
        %v1255 = vpop.permute.xlu0 %1254
        %1256 = vrot.lane.b32.xlu0 %v1251, 127
        %v1257 = vpop.permute.xlu0 %1256
        %v1260 = vadd.f32 %v1246, %v1255
        %v1261 = vadd.f32 %v1247, %v1257
        %s1262 = sld [smem:[#allocation15 + $0x2]]
        %v1263 = vstv %s1262
        %v1264 = vmul.f32 %v1240, %v1263
        %v1265 = vmul.f32 %v1241, %v1263
        %1268 = vrot.lane.b32.xlu0 %v1264, 126
        %v1269 = vpop.permute.xlu0 %1268
        %1270 = vrot.lane.b32.xlu0 %v1265, 126
        %v1271 = vpop.permute.xlu0 %1270
        %v1274 = vadd.f32 %v1260, %v1269
        %v1275 = vadd.f32 %v1261, %v1271
        %v1276 = vld [vmem:[#allocation4 + $0x1] sm:$0xff]
        %v1277 = vld [vmem:[#allocation4 + $0x9] sm:$0xff]
        %s1278 = sld [smem:[#allocation15 + $0x80]]
        %v1279 = vstv %s1278
        %v1280 = vmul.f32 %v1276, %v1279
        %v1281 = vmul.f32 %v1277, %v1279
        %v1282 = vadd.f32 %v1274, %v1280
        %v1283 = vadd.f32 %v1275, %v1281
        %s1284 = sld [smem:[#allocation15 + $0x81]]
        %v1285 = vstv %s1284
        %v1286 = vmul.f32 %v1276, %v1285
        %v1287 = vmul.f32 %v1277, %v1285
        %1290 = vrot.lane.b32.xlu0 %v1286, 127
        %v1291 = vpop.permute.xlu0 %1290
        %1292 = vrot.lane.b32.xlu0 %v1287, 127
        %v1293 = vpop.permute.xlu0 %1292
        %v1296 = vadd.f32 %v1282, %v1291
        %v1297 = vadd.f32 %v1283, %v1293
        %s1298 = sld [smem:[#allocation15 + $0x82]]
        %v1299 = vstv %s1298
        %v1300 = vmul.f32 %v1276, %v1299
        %v1301 = vmul.f32 %v1277, %v1299
        %1304 = vrot.lane.b32.xlu0 %v1300, 126
        %v1305 = vpop.permute.xlu0 %1304
        %1306 = vrot.lane.b32.xlu0 %v1301, 126
        %v1307 = vpop.permute.xlu0 %1306
        %v1310 = vadd.f32 %v1296, %v1305
        %v1311 = vadd.f32 %v1297, %v1307
        %v1312 = vld [vmem:[#allocation4 + $0x2] sm:$0xff]
        %v1313 = vld [vmem:[#allocation4 + $0xa] sm:$0xff]
        %s1314 = sld [smem:[#allocation15 + $0x100]]
        %v1315 = vstv %s1314
        %v1316 = vmul.f32 %v1312, %v1315
        %v1317 = vmul.f32 %v1313, %v1315
        %v1318 = vadd.f32 %v1310, %v1316
        %v1319 = vadd.f32 %v1311, %v1317
        %s1320 = sld [smem:[#allocation15 + $0x101]]
        %v1321 = vstv %s1320
        %v1322 = vmul.f32 %v1312, %v1321
        %v1323 = vmul.f32 %v1313, %v1321
        %1326 = vrot.lane.b32.xlu0 %v1322, 127
        %v1327 = vpop.permute.xlu0 %1326
        %1328 = vrot.lane.b32.xlu0 %v1323, 127
        %v1329 = vpop.permute.xlu0 %1328
        %v1332 = vadd.f32 %v1318, %v1327
        %v1333 = vadd.f32 %v1319, %v1329
        %s1334 = sld [smem:[#allocation15 + $0x102]]
        %v1335 = vstv %s1334
        %v1336 = vmul.f32 %v1312, %v1335
        %v1337 = vmul.f32 %v1313, %v1335
        %1340 = vrot.lane.b32.xlu0 %v1336, 126
        %v1341 = vpop.permute.xlu0 %1340
        %1342 = vrot.lane.b32.xlu0 %v1337, 126
        %v1343 = vpop.permute.xlu0 %1342
        %v1346 = vadd.f32 %v1332, %v1341
        %v1347 = vadd.f32 %v1333, %v1343
        %s1348 = sld [smem:[#allocation8]]
        %v1349 = vstv %s1348
        %v1350 = vadd.f32 %v1346, %v1349
        %v1351 = vadd.f32 %v1347, %v1349
        %v1352 = vld [vmem:[%s5] sm:$0xff]
        %vm1353 = vcmask 130048
        %v1355 = vsel %vm1353, %v1352, 0
        %1357 = vmatprep.subr.mxu0 0.0
        %1358 = vmatpush1.msra.mxu0 0.0
        %1359 = vmatprep.subr.mxu0 0.0
        %1360 = vmatpush1.msra.mxu0 0.0
        %1361 = vmatprep.subr.mxu0 0.0
        %1362 = vmatpush1.msra.mxu0 0.0
        %1363 = vmatprep.subr.mxu0 0.0
        %1364 = vmatpush1.msra.mxu0 0.0
        %1365 = vmatprep.subr.mxu0 0.0
        %1366 = vmatpush1.msra.mxu0 0.0
        %1367 = vmatprep.subr.mxu0 0.0
        %1368 = vmatpush1.msra.mxu0 0.0
        %1369 = vmatprep.subr.mxu0 0.0
        %1370 = vmatpush1.msra.mxu0 0.0
        %1371 = vmatprep.subr.mxu0 0.0
        %1372 = vmatpush1.msra.mxu0 0.0
        %1373 = vmatprep.subr.mxu0 0.0
        %1374 = vmatpush1.msra.mxu0 0.0
        %1375 = vmatprep.subr.mxu0 0.0
        %1376 = vmatpush1.msra.mxu0 0.0
        %1377 = vmatprep.subr.mxu0 0.0
        %1378 = vmatpush1.msra.mxu0 0.0
        %1379 = vmatprep.subr.mxu0 0.0
        %1380 = vmatpush1.msra.mxu0 0.0
        %1381 = vmatprep.subr.mxu0 0.0
        %1382 = vmatpush1.msra.mxu0 0.0
        %1383 = vmatprep.subr.mxu0 0.0
        %1384 = vmatpush1.msra.mxu0 0.0
        %1385 = vmatprep.subr.mxu0 0.0
        %1386 = vmatpush1.msra.mxu0 %v1351
        %1387 = vmatprep.subr.mxu0 0.0
        %1388 = vmatpush1.msra.mxu0 %v1350
        %1389 = vmatprep.subr.mxu0 0.0
        %1390 = vmatpush2.msra.mxu0 0.0
        %1391 = vmatprep.subr.mxu0 0.0
        %1392 = vmatpush2.msra.mxu0 0.0
        %1393 = vmatprep.subr.mxu0 0.0
        %1394 = vmatpush2.msra.mxu0 0.0
        %1395 = vmatprep.subr.mxu0 0.0
        %1396 = vmatpush2.msra.mxu0 0.0
        %1397 = vmatprep.subr.mxu0 0.0
        %1398 = vmatpush2.msra.mxu0 0.0
        %1399 = vmatprep.subr.mxu0 0.0
        %1400 = vmatpush2.msra.mxu0 0.0
        %1401 = vmatprep.subr.mxu0 0.0
        %1402 = vmatpush2.msra.mxu0 0.0
        %1403 = vmatprep.subr.mxu0 0.0
        %1404 = vmatpush2.msra.mxu0 0.0
        %1405 = vmatprep.subr.mxu0 0.0
        %1406 = vmatpush2.msra.mxu0 0.0
        %1407 = vmatprep.subr.mxu0 0.0
        %1408 = vmatpush2.msra.mxu0 0.0
        %1409 = vmatprep.subr.mxu0 0.0
        %1410 = vmatpush2.msra.mxu0 0.0
        %1411 = vmatprep.subr.mxu0 0.0
        %1412 = vmatpush2.msra.mxu0 0.0
        %1413 = vmatprep.subr.mxu0 0.0
        %1414 = vmatpush2.msra.mxu0 0.0
        %1415 = vmatprep.subr.mxu0 0.0
        %1416 = vmatpush2.msra.mxu0 0.0
        %1417 = vmatprep.subr.mxu0 0.0
        %1418 = vmatpush2.msra.mxu0 0.0
        %1419 = vmatprep.subr.mxu0 0.0
        %1420 = vmatpush2.msra.mxu0 0.0
        %1421 = vmatprep.mubr.f32.mxu0 0.0
        %1422 = vmatmul.mubr.f32.gmra.mxu0 %v1355
        %v1423 = vpop.f32.mrf.mxu0
        %v1424 = vadd.f32 0.0, %v1423
        %v1425 = vpop.f32.mrf.mxu0
        %1426 = vdwg.mxu0
        %v1427 = vld [vmem:[%s6] sm:$0xff]
        %v1428 = vld [vmem:[%s6 + $0x8] sm:$0xff]
        %v1430 = vsel %vm1353, %v1424, 0
        %1432 = vmatprep.subr.mxu0 0.0
        %1433 = vmatpush1.msra.mxu0 0.0
        %1434 = vmatprep.subr.mxu0 0.0
        %1435 = vmatpush1.msra.mxu0 0.0
        %1436 = vmatprep.subr.mxu0 0.0
        %1437 = vmatpush1.msra.mxu0 0.0
        %1438 = vmatprep.subr.mxu0 0.0
        %1439 = vmatpush1.msra.mxu0 0.0
        %1440 = vmatprep.subr.mxu0 0.0
        %1441 = vmatpush1.msra.mxu0 0.0
        %1442 = vmatprep.subr.mxu0 0.0
        %1443 = vmatpush1.msra.mxu0 0.0
        %1444 = vmatprep.subr.mxu0 0.0
        %1445 = vmatpush1.msra.mxu0 0.0
        %1446 = vmatprep.subr.mxu0 0.0
        %1447 = vmatpush1.msra.mxu0 0.0
        %1448 = vmatprep.subr.mxu0 0.0
        %1449 = vmatpush1.msra.mxu0 0.0
        %1450 = vmatprep.subr.mxu0 0.0
        %1451 = vmatpush1.msra.mxu0 0.0
        %1452 = vmatprep.subr.mxu0 0.0
        %1453 = vmatpush1.msra.mxu0 0.0
        %1454 = vmatprep.subr.mxu0 0.0
        %1455 = vmatpush1.msra.mxu0 0.0
        %1456 = vmatprep.subr.mxu0 0.0
        %1457 = vmatpush1.msra.mxu0 0.0
        %1458 = vmatprep.subr.mxu0 0.0
        %1459 = vmatpush1.msra.mxu0 0.0
        %1460 = vmatprep.subr.mxu0 0.0
        %1461 = vmatpush1.msra.mxu0 %v1428
        %1462 = vmatprep.subr.mxu0 0.0
        %1463 = vmatpush1.msra.mxu0 %v1427
        %1464 = vmatprep.subr.mxu0 0.0
        %1465 = vmatpush2.msra.mxu0 0.0
        %1466 = vmatprep.subr.mxu0 0.0
        %1467 = vmatpush2.msra.mxu0 0.0
        %1468 = vmatprep.subr.mxu0 0.0
        %1469 = vmatpush2.msra.mxu0 0.0
        %1470 = vmatprep.subr.mxu0 0.0
        %1471 = vmatpush2.msra.mxu0 0.0
        %1472 = vmatprep.subr.mxu0 0.0
        %1473 = vmatpush2.msra.mxu0 0.0
        %1474 = vmatprep.subr.mxu0 0.0
        %1475 = vmatpush2.msra.mxu0 0.0
        %1476 = vmatprep.subr.mxu0 0.0
        %1477 = vmatpush2.msra.mxu0 0.0
        %1478 = vmatprep.subr.mxu0 0.0
        %1479 = vmatpush2.msra.mxu0 0.0
        %1480 = vmatprep.subr.mxu0 0.0
        %1481 = vmatpush2.msra.mxu0 0.0
        %1482 = vmatprep.subr.mxu0 0.0
        %1483 = vmatpush2.msra.mxu0 0.0
        %1484 = vmatprep.subr.mxu0 0.0
        %1485 = vmatpush2.msra.mxu0 0.0
        %1486 = vmatprep.subr.mxu0 0.0
        %1487 = vmatpush2.msra.mxu0 0.0
        %1488 = vmatprep.subr.mxu0 0.0
        %1489 = vmatpush2.msra.mxu0 0.0
        %1490 = vmatprep.subr.mxu0 0.0
        %1491 = vmatpush2.msra.mxu0 0.0
        %1492 = vmatprep.subr.mxu0 0.0
        %1493 = vmatpush2.msra.mxu0 0.0
        %1494 = vmatprep.subr.mxu0 0.0
        %1495 = vmatpush2.msra.mxu0 0.0
        %1496 = vmatprep.mubr.f32.mxu0 0.0
        %1497 = vmatmul.mubr.f32.gmra.mxu0 %v1430
        %v1498 = vpop.f32.mrf.mxu0
        %v1499 = vadd.f32 0.0, %v1498
        %v1500 = vpop.f32.mrf.mxu0
        %1501 = vdwg.mxu0
        %v1502 = vadd.f32 %v1221, %v1499
        %1503 = vst.msk [vmem:[%s608] sm:$0xff] %vm637, %v1502
        %v1504 = vsub.f32 0.0, %v1502
        %v1505 = vmul.f32 %v1504, 1.442695
        %v1506 = vpow.pop %v1505
        %v1507 = vadd.f32 %v1506, 1.0
        %v1508 = vrcp.pop %v1507
        %v1509 = vmul.f32 1.0, %v1508
        %v1510 = vld [vmem:[%s613] sm:$0xff]
        %v1511 = vld [vmem:[%s613 + $0x8] sm:$0xff]
        %v1512 = vld [vmem:[%s613 + $0x10] sm:$0xff]
        %v1513 = vld [vmem:[%s613 + $0x18] sm:$0xff]
        %v1514 = vld [vmem:[%s613 + $0x20] sm:$0xff]
        %v1515 = vld [vmem:[%s613 + $0x28] sm:$0xff]
        %v1516 = vld [vmem:[%s613 + $0x30] sm:$0xff]
        %v1517 = vld [vmem:[%s613 + $0x38] sm:$0xff]
        %v1518 = vlaneseq
        %v1519 = vshrl.u32 %v1518, 7
        %v1520 = vsub.s32 0, %v1519
        %v1521 = vrot.slane %v1509, %v1520
        %1523 = vbcast.lane.b32.xlu0 %v1521, 256
        %v1524 = vpop.permute.xlu0 %1523
        %v1525 = vlaneseq
        %v1526 = vshrl.u32 %v1525, 7
        %v1527 = vsub.s32 1, %v1526
        %v1528 = vrot.slane %v1509, %v1527
        %1530 = vbcast.lane.b32.xlu0 %v1528, 256
        %v1531 = vpop.permute.xlu0 %1530
        %v1532 = vlaneseq
        %v1533 = vshrl.u32 %v1532, 7
        %v1534 = vsub.s32 2, %v1533
        %v1535 = vrot.slane %v1509, %v1534
        %1537 = vbcast.lane.b32.xlu0 %v1535, 256
        %v1538 = vpop.permute.xlu0 %1537
        %v1539 = vlaneseq
        %v1540 = vshrl.u32 %v1539, 7
        %v1541 = vsub.s32 3, %v1540
        %v1542 = vrot.slane %v1509, %v1541
        %1544 = vbcast.lane.b32.xlu0 %v1542, 256
        %v1545 = vpop.permute.xlu0 %1544
        %v1546 = vlaneseq
        %v1547 = vshrl.u32 %v1546, 7
        %v1548 = vsub.s32 4, %v1547
        %v1549 = vrot.slane %v1509, %v1548
        %1551 = vbcast.lane.b32.xlu0 %v1549, 256
        %v1552 = vpop.permute.xlu0 %1551
        %v1553 = vlaneseq
        %v1554 = vshrl.u32 %v1553, 7
        %v1555 = vsub.s32 5, %v1554
        %v1556 = vrot.slane %v1509, %v1555
        %1558 = vbcast.lane.b32.xlu0 %v1556, 256
        %v1559 = vpop.permute.xlu0 %1558
        %v1560 = vlaneseq
        %v1561 = vshrl.u32 %v1560, 7
        %v1562 = vsub.s32 6, %v1561
        %v1563 = vrot.slane %v1509, %v1562
        %1565 = vbcast.lane.b32.xlu0 %v1563, 256
        %v1566 = vpop.permute.xlu0 %1565
        %v1567 = vlaneseq
        %v1568 = vshrl.u32 %v1567, 7
        %v1569 = vsub.s32 7, %v1568
        %v1570 = vrot.slane %v1509, %v1569
        %1572 = vbcast.lane.b32.xlu0 %v1570, 256
        %v1573 = vpop.permute.xlu0 %1572
        %v1574 = vmul.f32 %v1510, %v1524
        %v1575 = vmul.f32 %v1511, %v1531
        %v1576 = vmul.f32 %v1512, %v1538
        %v1577 = vmul.f32 %v1513, %v1545
        %v1578 = vmul.f32 %v1514, %v1552
        %v1579 = vmul.f32 %v1515, %v1559
        %v1580 = vmul.f32 %v1516, %v1566
        %v1581 = vmul.f32 %v1517, %v1573
        %v1582 = vld [vmem:[%s618] sm:$0xff]
        %v1583 = vld [vmem:[%s618 + $0x8] sm:$0xff]
        %v1584 = vld [vmem:[%s618 + $0x10] sm:$0xff]
        %v1585 = vld [vmem:[%s618 + $0x18] sm:$0xff]
        %v1586 = vld [vmem:[%s618 + $0x20] sm:$0xff]
        %v1587 = vld [vmem:[%s618 + $0x28] sm:$0xff]
        %v1588 = vld [vmem:[%s618 + $0x30] sm:$0xff]
        %v1589 = vld [vmem:[%s618 + $0x38] sm:$0xff]
        %v1590 = vadd.f32 %v1574, %v1582
        %v1591 = vadd.f32 %v1575, %v1583
        %v1592 = vadd.f32 %v1576, %v1584
        %v1593 = vadd.f32 %v1577, %v1585
        %v1594 = vadd.f32 %v1578, %v1586
        %v1595 = vadd.f32 %v1579, %v1587
        %v1596 = vadd.f32 %v1580, %v1588
        %v1597 = vadd.f32 %v1581, %v1589
        %1598 = vst.msk [vmem:[%s628] sm:$0xff] %vm637, %v1590
        %1599 = vst.msk [vmem:[%s628 + $0x8] sm:$0xff] %vm637, %v1591
        %1600 = vst.msk [vmem:[%s628 + $0x10] sm:$0xff] %vm637, %v1592
        %1601 = vst.msk [vmem:[%s628 + $0x18] sm:$0xff] %vm637, %v1593
        %1602 = vst.msk [vmem:[%s628 + $0x20] sm:$0xff] %vm637, %v1594
        %1603 = vst.msk [vmem:[%s628 + $0x28] sm:$0xff] %vm637, %v1595
        %1604 = vst.msk [vmem:[%s628 + $0x30] sm:$0xff] %vm637, %v1596
        %1605 = vst.msk [vmem:[%s628 + $0x38] sm:$0xff] %vm637, %v1597
        %p1606 = scmp.lt.s32.totalorder %s38, 1
        %s1607 = scalar_select %p1606, %s38, 1
        %s1608 = smul.addr %s1607, 8
        %s1609 = smul.addr %s1608, 8
        %s1610 = scalar_lea.vmem %s15, %s1609
        %s1611 = sand.u32 %s402, 1
        %s1612 = scalar_lea.sflag [#allocation10], %s1611
        %s1613 = sand.u32 %s402, 1
        %s1614 = smul.addr %s1613, 8
        %s1615 = scalar_lea.vmem [#allocation17], %s1614
        // Predicated region
        $region97: #{preact_bottleneck_forward.9} parent=79 // pred_check
          %p1616 = pneg %p386
        $region98: #{preact_bottleneck_forward.9} parent=79 // pred_check_branch
          %1618 = sbr.rel (%p1616) target = $region100
        $region99: #{preact_bottleneck_forward.9} parent=79 // pred_region
          _
        $region100: #{preact_bottleneck_forward.9} parent=79 // pred_fallthru
          _
        // Predicated region
        $region101: #{preact_bottleneck_forward.9} parent=79 // pred_check
          %p1619 = pneg %p412
        $region102: #{preact_bottleneck_forward.9} parent=79 // pred_check_branch
          %1621 = sbr.rel (%p1619) target = $region104
        $region103: #{preact_bottleneck_forward.9} parent=79 // pred_region
          %s1623 = ssub.s32 128, 128
          %1624 = vsyncadd %s1612, %s1623
          %s1625 = smul.addr %s38, 128
          %s1626 = scalar_lea.hbm %s16, %s1625
          %s1628 = sshll.u32 %s1615, 4
          %s1629 = int_to_ptr.vmem [resolvable:$true] %s1628
          %1631 = dma.vmem_to_hbm [thread:$0]  %s1629, 128, %s1626, %s1612
        $region104: #{preact_bottleneck_forward.9} parent=79 // pred_fallthru
          _
      $region80: #{preact_bottleneck_forward.9} parent=5 // pred_fallthru
        _
      %p1632 = scmp.le.s32.totalorder 2, %s33
      // Predicated region
      $region105: #{preact_bottleneck_forward.9} parent=5 // pred_check
        %p1633 = pneg %p1632
      $region106: #{preact_bottleneck_forward.9} parent=5 // pred_check_branch
        %1635 = sbr.rel (%p1633) target = $region108
      $region107: #{preact_bottleneck_forward.9} parent=5 // pred_region
        %s1636 = ssub.s32 %s33, 2
        // Predicated region
        $region109: #{preact_bottleneck_forward.9} parent=107 // pred_check
          %p1637 = pneg %p392
        $region110: #{preact_bottleneck_forward.9} parent=107 // pred_check_branch
          %1639 = sbr.rel (%p1637) target = $region112
        $region111: #{preact_bottleneck_forward.9} parent=107 // pred_region
          %p1640 = scmp.lt.s32.totalorder %s39, 1
          %s1641 = scalar_select %p1640, %s39, 1
          %s1642 = smul.addr %s1641, 8
          %s1643 = smul.addr %s1642, 8
          %s1644 = scalar_lea.vmem %s15, %s1643
        $region112: #{preact_bottleneck_forward.9} parent=107 // pred_fallthru
          _
        // Predicated region
        $region113: #{preact_bottleneck_forward.9} parent=107 // pred_check
          %p1645 = pneg %p418
        $region114: #{preact_bottleneck_forward.9} parent=107 // pred_check_branch
          %1647 = sbr.rel (%p1645) target = $region116
        $region115: #{preact_bottleneck_forward.9} parent=107 // pred_region
          %s1648 = sand.u32 %s403, 1
          %s1649 = scalar_lea.sflag [#allocation10], %s1648
          %s1650 = sand.u32 %s403, 1
          %s1651 = smul.addr %s1650, 8
          %s1652 = scalar_lea.vmem [#allocation17], %s1651
          %1653 = dma.done %s1649, 128
        $region116: #{preact_bottleneck_forward.9} parent=107 // pred_fallthru
          _
      $region108: #{preact_bottleneck_forward.9} parent=5 // pred_fallthru
        _
    $region6: #{preact_bottleneck_forward.9} parent=1 // loop_footer
      %s37 = sadd.s32 1, %s33
    $region7: #{preact_bottleneck_forward.9} parent=1 // loop_footer_branch
      %32 = sbr.rel target = $region3
    $region8: #{preact_bottleneck_forward.9} parent=1 // loop_exit
      _
    %1654 = vsyncpa [#allocation10], 1
    %s1655 = scalar_lea.sflag [#allocation10], 1
    %1656 = vsyncpa %s1655, 1
    %1657 = vsyncpa [#allocation11], 1
    %s1658 = scalar_lea.sflag [#allocation11], 1
    %1659 = vsyncpa %s1658, 1
    %1660 = vsyncpa [#allocation13], 1
    %1661 = vsyncpa [#allocation16], 1

</llo_original>
